<compile_context>
chip_gen: v7x
topology: tpu7x:2x2x1
jax: 0.10.0
libtpu: 0.0.40
codegen_flags: <defaults>
</compile_context>

<pallas_src>
import functools

import jax
import jax.numpy as jnp
from jax.experimental import pallas as pl
from jax.experimental.pallas import tpu as pltpu

INPUT_DIM = 32
HIDDEN_DIM = 32
LAYERS = 2
NCLASS = 4


def _gru_gates(gi, gh, h, H):
    """PyTorch GRUCell from packed gate pre-activations.
    gi = x @ W_ih^T + b_ih  (R, 3H), gate order (r, z, n)
    gh = h @ W_hh^T + b_hh  (R, 3H)
    h : hidden state (R, H)."""
    r = jax.nn.sigmoid(gi[:, 0:H] + gh[:, 0:H])
    z = jax.nn.sigmoid(gi[:, H:2 * H] + gh[:, H:2 * H])
    n = jnp.tanh(gi[:, 2 * H:3 * H] + r * gh[:, 2 * H:3 * H])
    return (1.0 - z) * n + z * h


def _dagerc_kernel(x_ref, adjT_ref, sfeat_ref, sadj_ref, sadjT_ref,
                   fc1_wt_ref, fc1_b_ref, fc2_wt_ref, fc2_b_ref,
                   w1t_ref, b1_ref, w2t_ref, b2_ref,
                   wl1t_ref, wl2t_ref, bl_ref,
                   wih_ref, whh_ref, bih_ref, bhh_ref,
                   mlp0_wt_ref, mlp0_b_ref, mlph_wt_ref, mlph_b_ref,
                   mlpo_wt_ref, mlpo_b_ref,
                   out_ref, h1_scr, k_scr, *, N, M, H, L):
    f32 = jnp.float32
    dot = functools.partial(jnp.dot, preferred_element_type=f32)

    x = x_ref[...]                 # (N, D)
    adjT = adjT_ref[...]           # (N, N); adjT[j, i] = adj[i, j]
    sfeat = sfeat_ref[...]         # (M, D)
    sadj = sadj_ref[...]           # (M, N)
    sadjT = sadjT_ref[...]         # (N, M)

    # Encoders: H0 = relu(fc1(x)), P0 = relu(fc2(s_feature)).
    Hcur = jnp.maximum(dot(x, fc1_wt_ref[...]) + fc1_b_ref[...], 0.0)      # (N,H)
    Pcur = jnp.maximum(dot(sfeat, fc2_wt_ref[...]) + fc2_b_ref[...], 0.0)  # (M,H)

    feat_pieces = [Hcur]

    for l in range(L):
        w1t, b1 = w1t_ref[l], b1_ref[l]
        w2t, b2 = w2t_ref[l], b2_ref[l]
        wl1t, wl2t, bl = wl1t_ref[l], wl2t_ref[l], bl_ref[l]
        wih, whh = wih_ref[l], whh_ref[l]
        bih, bhh = bih_ref[l], bhh_ref[l]

        # Mp = s_adj^T @ P_l                                   (N, H)
        mp = dot(sadjT, Pcur)

        # Loop-invariant projections hoisted out of the serial recurrence.
        q_all = dot(Hcur, w1t) + b1        # GatDot.linear1 over all rows
        mp_proj = dot(mp, wl2t) + bl       # linears[l] second half + bias
        gi_all = dot(Hcur, wih) + bih      # GRU input gates, (N, 3H)

        # i = 0: GRU(H_l[0], hidden=0)  ->  gh == b_hh.
        h0 = _gru_gates(gi_all[0:1, :], bhh, jnp.zeros((1, H), f32), H)
        h1_scr[0:1, :] = h0
        k_scr[0:1, :] = dot(h0, w2t) + b2  # incremental GatDot.linear2 cache

        for i in range(1, N):
            h1 = h1_scr[0:i, :]            # (i, H) previously emitted rows
            kc = k_scr[0:i, :]             # (i, H) cached linear2(H1)
            q_i = q_all[i:i + 1, :]        # (1, H)
            alpha = jnp.sum(kc * q_i, axis=1, keepdims=True)      # (i, 1)
            adj_col = adjT[0:i, i:i + 1]                          # adj[i, :i]
            alpha = alpha - (1.0 - adj_col) * 1e30                # mask_logic
            mmax = jnp.max(alpha, axis=0, keepdims=True)
            e = jnp.exp(alpha - mmax)
            denom = jnp.sum(e, axis=0, keepdims=True)
            attn_w = e * pl.reciprocal(denom, approx=True)        # softmax
            attn_sum = jnp.sum(attn_w * h1, axis=0, keepdims=True)  # (1, H)
            # linears[l](cat([attn_sum, Mp[i]])) == split matmuls (2nd hoisted)
            mlin = dot(attn_sum, wl1t) + mp_proj[i:i + 1, :]
            gh = dot(mlin, whh) + bhh                             # (1, 3H)
            hnew = _gru_gates(gi_all[i:i + 1, :], gh, mlin, H)
            h1_scr[i:i + 1, :] = hnew
            k_scr[i:i + 1, :] = dot(hnew, w2t) + b2

        H1 = h1_scr[...]                   # (N, H)
        # TODO(synk): nn.Dropout(0.1) treated as identity (eval-mode forward).
        feat_pieces.append(H1)

        # P update: P_{l+1}[m] = GRU(P_l[m], (s_adj @ H1)[m]), batched over M.
        p_hidden = dot(sadj, H1)                       # (M, H)
        gi_p = dot(Pcur, wih) + bih                    # (M, 3H)
        gh_p = dot(p_hidden, whh) + bhh                # (M, 3H)
        Pcur = _gru_gates(gi_p, gh_p, p_hidden, H)

        Hcur = H1

    feat_pieces.append(x)                  # widths: H, H, ..., H, D

    # out_mlp: first layer as split matmuls over the concat pieces (avoids an
    # in-kernel lane concatenate), then hidden ReLU layers, then nclass proj.
    acc = mlp0_b_ref[...]
    off = 0
    for piece in feat_pieces:
        w = piece.shape[1]
        acc = acc + dot(piece, mlp0_wt_ref[off:off + w, :])
        off += w
    h = jnp.maximum(acc, 0.0)
    for j in range(L - 1):
        h = jnp.maximum(dot(h, mlph_wt_ref[j]) + mlph_b_ref[j], 0.0)
    out_ref[...] = dot(h, mlpo_wt_ref[...]) + mlpo_b_ref[...]


_WEIGHT_KEYS = ("fc1_wt", "fc1_b", "fc2_wt", "fc2_b",
                "w1t", "b1", "w2t", "b2",
                "wl1t", "wl2t", "bl",
                "wih", "whh", "bih", "bhh",
                "mlp0_wt", "mlp0_b", "mlph_wt", "mlph_b",
                "mlpo_wt", "mlpo_b")


def dagerc_forward(params, x, adj, s_mask, s_feature, s_adj):
    del s_mask   # accepted but never used by the reference GatDot.forward
    B, N, D = x.shape
    M = s_feature.shape[1]
    H = HIDDEN_DIM
    L = LAYERS

    adjT = jnp.transpose(adj, (0, 2, 1))        # adjT[:, j, i] = adj[:, i, j]
    s_adjT = jnp.transpose(s_adj, (0, 2, 1))    # (B, N, M)

    weights = [params[k] for k in _WEIGHT_KEYS]

    def rep(arr):
        zeros = (0,) * arr.ndim
        return pl.BlockSpec(arr.shape, lambda b, _z=zeros: _z)

    in_specs = [
        pl.BlockSpec((None, N, D), lambda b: (b, 0, 0)),   # x
        pl.BlockSpec((None, N, N), lambda b: (b, 0, 0)),   # adjT
        pl.BlockSpec((None, M, D), lambda b: (b, 0, 0)),   # s_feature
        pl.BlockSpec((None, M, N), lambda b: (b, 0, 0)),   # s_adj
        pl.BlockSpec((None, N, M), lambda b: (b, 0, 0)),   # s_adjT
    ] + [rep(w) for w in weights]

    return pl.pallas_call(
        functools.partial(_dagerc_kernel, N=N, M=M, H=H, L=L),
        out_shape=jax.ShapeDtypeStruct((B, N, NCLASS), jnp.float32),
        grid=(B,),
        in_specs=in_specs,
        out_specs=pl.BlockSpec((None, N, NCLASS), lambda b: (b, 0, 0)),
        scratch_shapes=[pltpu.VMEM((N, H), jnp.float32),    # H1 rows
                        pltpu.VMEM((N, H), jnp.float32)],   # linear2(H1) cache
        compiler_params=pltpu.CompilerParams(
            dimension_semantics=("parallel",)),
    )(x, adjT, s_feature, s_adj, s_adjT, *weights)


# ---------------- parameters (deterministic, synthetic, pre-packed) --------
def init_params(key):
    H, D, L = HIDDEN_DIM, INPUT_DIM, LAYERS

    def dense(k, dout, din):
        kw, kb = jax.random.split(k)
        w = jax.random.normal(kw, (dout, din), jnp.float32) * 0.1
        b = jax.random.normal(kb, (dout,), jnp.float32) * 0.1
        return w, b

    keys = jax.random.split(key, 3 + L)
    params = {}
    fc1_w, fc1_b = dense(keys[0], H, D)
    fc2_w, fc2_b = dense(keys[1], H, D)
    params["fc1_wt"] = fc1_w.T
    params["fc1_b"] = fc1_b.reshape(1, H)
    params["fc2_wt"] = fc2_w.T
    params["fc2_b"] = fc2_b.reshape(1, H)

    stacks = {k: [] for k in ("w1t", "b1", "w2t", "b2", "wl1t", "wl2t", "bl",
                              "wih", "whh", "bih", "bhh")}
    for l in range(L):
        lk = jax.random.split(keys[2 + l], 5)
        w1, b1 = dense(lk[0], H, H)              # GatDot.linear1
        w2, b2 = dense(lk[1], H, H)              # GatDot.linear2
        wl, blin = dense(lk[2], H, 2 * H)        # self.linears[l]
        wih, bih = dense(lk[3], 3 * H, H)        # GRUCell weight_ih / bias_ih
        whh, bhh = dense(lk[4], 3 * H, H)        # GRUCell weight_hh / bias_hh
        stacks["w1t"].append(w1.T)
        stacks["b1"].append(b1.reshape(1, H))
        stacks["w2t"].append(w2.T)
        stacks["b2"].append(b2.reshape(1, H))
        stacks["wl1t"].append(wl[:, :H].T)
        stacks["wl2t"].append(wl[:, H:].T)
        stacks["bl"].append(blin.reshape(1, H))
        stacks["wih"].append(wih.T)              # (H, 3H), gate order (r,z,n)
        stacks["whh"].append(whh.T)
        stacks["bih"].append(bih.reshape(1, 3 * H))
        stacks["bhh"].append(bhh.reshape(1, 3 * H))
    for k, v in stacks.items():
        params[k] = jnp.stack(v)

    in_dim = H * (L + 1) + D
    mk = jax.random.split(keys[2 + L], L + 1)
    w0, b0 = dense(mk[0], H, in_dim)
    params["mlp0_wt"] = w0.T                     # (in_dim, H)
    params["mlp0_b"] = b0.reshape(1, H)
    wh, bh = [], []
    for j in range(1, L):
        wj, bj = dense(mk[j], H, H)
        wh.append(wj.T)
        bh.append(bj.reshape(1, H))
    params["mlph_wt"] = jnp.stack(wh)            # (L-1, H, H)
    params["mlph_b"] = jnp.stack(bh)             # (L-1, 1, H)
    wo, bo = dense(mk[L], NCLASS, H)
    params["mlpo_wt"] = wo.T                     # (H, NCLASS)
    params["mlpo_b"] = bo.reshape(1, NCLASS)
    return params


if __name__ == "__main__":
    B, N, M = 2, 8, 4
    key = jax.random.PRNGKey(0)
    kx, ka, ksf, ksa, kp = jax.random.split(key, 5)

    x = jax.random.normal(kx, (B, N, INPUT_DIM), jnp.float32)
    adj = (jax.random.uniform(ka, (B, N, N)) < 0.5).astype(jnp.float32)
    s_mask = jnp.zeros((B, N, N, 2), jnp.float32)   # unused by the forward
    s_feature = jax.random.normal(ksf, (B, M, INPUT_DIM), jnp.float32)
    s_adj = (jax.random.uniform(ksa, (B, M, N)) < 0.5).astype(jnp.float32)

    params = init_params(kp)
    fwd = jax.jit(dagerc_forward)
    logits = fwd(params, x, adj, s_mask, s_feature, s_adj)
    logits = jax.block_until_ready(logits)

    assert logits.shape == (B, N, NCLASS)
    assert bool(jnp.all(jnp.isfinite(logits)))
    print("KERNEL_OK")
</pallas_src>

<mosaic_0001>
module attributes {stable_mosaic.version = 11 : i64} {
  func.func @_dagerc_kernel(%arg0: i32, %arg1: memref<1x8x32xf32, #tpu.memory_space<vmem>>, %arg2: memref<1x8x8xf32, #tpu.memory_space<vmem>>, %arg3: memref<1x4x32xf32, #tpu.memory_space<vmem>>, %arg4: memref<1x4x8xf32, #tpu.memory_space<vmem>>, %arg5: memref<1x8x4xf32, #tpu.memory_space<vmem>>, %arg6: memref<32x32xf32, #tpu.memory_space<vmem>>, %arg7: memref<1x32xf32, #tpu.memory_space<vmem>>, %arg8: memref<32x32xf32, #tpu.memory_space<vmem>>, %arg9: memref<1x32xf32, #tpu.memory_space<vmem>>, %arg10: memref<2x32x32xf32, #tpu.memory_space<vmem>>, %arg11: memref<2x1x32xf32, #tpu.memory_space<vmem>>, %arg12: memref<2x32x32xf32, #tpu.memory_space<vmem>>, %arg13: memref<2x1x32xf32, #tpu.memory_space<vmem>>, %arg14: memref<2x32x32xf32, #tpu.memory_space<vmem>>, %arg15: memref<2x32x32xf32, #tpu.memory_space<vmem>>, %arg16: memref<2x1x32xf32, #tpu.memory_space<vmem>>, %arg17: memref<2x32x96xf32, #tpu.memory_space<vmem>>, %arg18: memref<2x32x96xf32, #tpu.memory_space<vmem>>, %arg19: memref<2x1x96xf32, #tpu.memory_space<vmem>>, %arg20: memref<2x1x96xf32, #tpu.memory_space<vmem>>, %arg21: memref<128x32xf32, #tpu.memory_space<vmem>>, %arg22: memref<1x32xf32, #tpu.memory_space<vmem>>, %arg23: memref<1x32x32xf32, #tpu.memory_space<vmem>>, %arg24: memref<1x1x32xf32, #tpu.memory_space<vmem>>, %arg25: memref<32x4xf32, #tpu.memory_space<vmem>>, %arg26: memref<1x4xf32, #tpu.memory_space<vmem>>, %arg27: memref<1x8x4xf32, #tpu.memory_space<vmem>>, %arg28: memref<8x32xf32, #tpu.memory_space<vmem>>, %arg29: memref<8x32xf32, #tpu.memory_space<vmem>>) attributes {dimension_semantics = [#tpu.dimension_semantics<parallel>], iteration_bounds = array<i64: 2>, scalar_prefetch = 0 : i64, scratch_operands = 2 : i64, tpu.core_type = #tpu.core_type<tc>, window_params = [{transform_indices = @transform_0, window_bounds = array<i64: 1, 8, 32>}, {transform_indices = @transform_1, window_bounds = array<i64: 1, 8, 8>}, {transform_indices = @transform_2, window_bounds = array<i64: 1, 4, 32>}, {transform_indices = @transform_3, window_bounds = array<i64: 1, 4, 8>}, {transform_indices = @transform_4, window_bounds = array<i64: 1, 8, 4>}, {pipeline_mode = #tpu.pipeline_mode<synchronous>, transform_indices = @transform_5, window_bounds = array<i64: 32, 32>}, {pipeline_mode = #tpu.pipeline_mode<synchronous>, transform_indices = @transform_6, window_bounds = array<i64: 1, 32>}, {pipeline_mode = #tpu.pipeline_mode<synchronous>, transform_indices = @transform_7, window_bounds = array<i64: 32, 32>}, {pipeline_mode = #tpu.pipeline_mode<synchronous>, transform_indices = @transform_8, window_bounds = array<i64: 1, 32>}, {pipeline_mode = #tpu.pipeline_mode<synchronous>, transform_indices = @transform_9, window_bounds = array<i64: 2, 32, 32>}, {pipeline_mode = #tpu.pipeline_mode<synchronous>, transform_indices = @transform_10, window_bounds = array<i64: 2, 1, 32>}, {pipeline_mode = #tpu.pipeline_mode<synchronous>, transform_indices = @transform_11, window_bounds = array<i64: 2, 32, 32>}, {pipeline_mode = #tpu.pipeline_mode<synchronous>, transform_indices = @transform_12, window_bounds = array<i64: 2, 1, 32>}, {pipeline_mode = #tpu.pipeline_mode<synchronous>, transform_indices = @transform_13, window_bounds = array<i64: 2, 32, 32>}, {pipeline_mode = #tpu.pipeline_mode<synchronous>, transform_indices = @transform_14, window_bounds = array<i64: 2, 32, 32>}, {pipeline_mode = #tpu.pipeline_mode<synchronous>, transform_indices = @transform_15, window_bounds = array<i64: 2, 1, 32>}, {pipeline_mode = #tpu.pipeline_mode<synchronous>, transform_indices = @transform_16, window_bounds = array<i64: 2, 32, 96>}, {pipeline_mode = #tpu.pipeline_mode<synchronous>, transform_indices = @transform_17, window_bounds = array<i64: 2, 32, 96>}, {pipeline_mode = #tpu.pipeline_mode<synchronous>, transform_indices = @transform_18, window_bounds = array<i64: 2, 1, 96>}, {pipeline_mode = #tpu.pipeline_mode<synchronous>, transform_indices = @transform_19, window_bounds = array<i64: 2, 1, 96>}, {pipeline_mode = #tpu.pipeline_mode<synchronous>, transform_indices = @transform_20, window_bounds = array<i64: 128, 32>}, {pipeline_mode = #tpu.pipeline_mode<synchronous>, transform_indices = @transform_21, window_bounds = array<i64: 1, 32>}, {pipeline_mode = #tpu.pipeline_mode<synchronous>, transform_indices = @transform_22, window_bounds = array<i64: 1, 32, 32>}, {pipeline_mode = #tpu.pipeline_mode<synchronous>, transform_indices = @transform_23, window_bounds = array<i64: 1, 1, 32>}, {pipeline_mode = #tpu.pipeline_mode<synchronous>, transform_indices = @transform_24, window_bounds = array<i64: 32, 4>}, {pipeline_mode = #tpu.pipeline_mode<synchronous>, transform_indices = @transform_25, window_bounds = array<i64: 1, 4>}, {transform_indices = @transform_26, window_bounds = array<i64: 1, 8, 4>}]} {
    %c0 = arith.constant 0 : index
    %c0_0 = arith.constant 0 : index
    %c0_1 = arith.constant 0 : index
    %0 = vector.load %arg1[%c0, %c0_0, %c0_1] : memref<1x8x32xf32, #tpu.memory_space<vmem>>, vector<1x8x32xf32>
    %1 = vector.shape_cast %0 : vector<1x8x32xf32> to vector<8x32xf32>
    %c0_2 = arith.constant 0 : index
    %c0_3 = arith.constant 0 : index
    %c0_4 = arith.constant 0 : index
    %2 = vector.load %arg2[%c0_2, %c0_3, %c0_4] : memref<1x8x8xf32, #tpu.memory_space<vmem>>, vector<1x8x8xf32>
    %3 = vector.shape_cast %2 : vector<1x8x8xf32> to vector<8x8xf32>
    %c0_5 = arith.constant 0 : index
    %c0_6 = arith.constant 0 : index
    %c0_7 = arith.constant 0 : index
    %4 = vector.load %arg3[%c0_5, %c0_6, %c0_7] : memref<1x4x32xf32, #tpu.memory_space<vmem>>, vector<1x4x32xf32>
    %5 = vector.shape_cast %4 : vector<1x4x32xf32> to vector<4x32xf32>
    %c0_8 = arith.constant 0 : index
    %c0_9 = arith.constant 0 : index
    %c0_10 = arith.constant 0 : index
    %6 = vector.load %arg4[%c0_8, %c0_9, %c0_10] : memref<1x4x8xf32, #tpu.memory_space<vmem>>, vector<1x4x8xf32>
    %7 = vector.shape_cast %6 : vector<1x4x8xf32> to vector<4x8xf32>
    %c0_11 = arith.constant 0 : index
    %c0_12 = arith.constant 0 : index
    %c0_13 = arith.constant 0 : index
    %8 = vector.load %arg5[%c0_11, %c0_12, %c0_13] : memref<1x8x4xf32, #tpu.memory_space<vmem>>, vector<1x8x4xf32>
    %9 = vector.shape_cast %8 : vector<1x8x4xf32> to vector<8x4xf32>
    %c0_14 = arith.constant 0 : index
    %c0_15 = arith.constant 0 : index
    %10 = vector.load %arg6[%c0_14, %c0_15] : memref<32x32xf32, #tpu.memory_space<vmem>>, vector<32x32xf32>
    %cst = arith.constant dense<0.000000e+00> : vector<8x32xf32>
    %11 = tpu.matmul %1, %10, %cst {dimension_numbers = #tpu.dot_dimension_numbers<[1], [0], [0], [1], [0, 0, 1, 1], [], []>} : vector<8x32xf32>, vector<32x32xf32>, vector<8x32xf32> -> vector<8x32xf32>
    %c0_16 = arith.constant 0 : index
    %c0_17 = arith.constant 0 : index
    %12 = vector.load %arg7[%c0_16, %c0_17] : memref<1x32xf32, #tpu.memory_space<vmem>>, vector<1x32xf32>
    %13 = vector.broadcast %12 : vector<1x32xf32> to vector<8x32xf32>
    %14 = arith.addf %11, %13 : vector<8x32xf32>
    %cst_18 = arith.constant 0.000000e+00 : f32
    %15 = vector.broadcast %cst_18 : f32 to vector<8x32xf32>
    %16 = arith.maximumf %14, %15 : vector<8x32xf32>
    %c0_19 = arith.constant 0 : index
    %c0_20 = arith.constant 0 : index
    %17 = vector.load %arg8[%c0_19, %c0_20] : memref<32x32xf32, #tpu.memory_space<vmem>>, vector<32x32xf32>
    %cst_21 = arith.constant dense<0.000000e+00> : vector<4x32xf32>
    %18 = tpu.matmul %5, %17, %cst_21 {dimension_numbers = #tpu.dot_dimension_numbers<[1], [0], [0], [1], [0, 0, 1, 1], [], []>} : vector<4x32xf32>, vector<32x32xf32>, vector<4x32xf32> -> vector<4x32xf32>
    %c0_22 = arith.constant 0 : index
    %c0_23 = arith.constant 0 : index
    %19 = vector.load %arg9[%c0_22, %c0_23] : memref<1x32xf32, #tpu.memory_space<vmem>>, vector<1x32xf32>
    %20 = vector.broadcast %19 : vector<1x32xf32> to vector<4x32xf32>
    %21 = arith.addf %18, %20 : vector<4x32xf32>
    %cst_24 = arith.constant 0.000000e+00 : f32
    %22 = vector.broadcast %cst_24 : f32 to vector<4x32xf32>
    %23 = arith.maximumf %21, %22 : vector<4x32xf32>
    %c0_25 = arith.constant 0 : index
    %c0_26 = arith.constant 0 : index
    %c0_27 = arith.constant 0 : index
    %24 = vector.load %arg10[%c0_25, %c0_26, %c0_27] : memref<2x32x32xf32, #tpu.memory_space<vmem>>, vector<1x32x32xf32>
    %25 = vector.shape_cast %24 : vector<1x32x32xf32> to vector<32x32xf32>
    %c0_28 = arith.constant 0 : index
    %c0_29 = arith.constant 0 : index
    %c0_30 = arith.constant 0 : index
    %26 = vector.load %arg11[%c0_28, %c0_29, %c0_30] : memref<2x1x32xf32, #tpu.memory_space<vmem>>, vector<1x1x32xf32>
    %27 = vector.shape_cast %26 : vector<1x1x32xf32> to vector<1x32xf32>
    %c0_31 = arith.constant 0 : index
    %c0_32 = arith.constant 0 : index
    %c0_33 = arith.constant 0 : index
    %28 = vector.load %arg12[%c0_31, %c0_32, %c0_33] : memref<2x32x32xf32, #tpu.memory_space<vmem>>, vector<1x32x32xf32>
    %29 = vector.shape_cast %28 : vector<1x32x32xf32> to vector<32x32xf32>
    %c0_34 = arith.constant 0 : index
    %c0_35 = arith.constant 0 : index
    %c0_36 = arith.constant 0 : index
    %30 = vector.load %arg13[%c0_34, %c0_35, %c0_36] : memref<2x1x32xf32, #tpu.memory_space<vmem>>, vector<1x1x32xf32>
    %31 = vector.shape_cast %30 : vector<1x1x32xf32> to vector<1x32xf32>
    %c0_37 = arith.constant 0 : index
    %c0_38 = arith.constant 0 : index
    %c0_39 = arith.constant 0 : index
    %32 = vector.load %arg14[%c0_37, %c0_38, %c0_39] : memref<2x32x32xf32, #tpu.memory_space<vmem>>, vector<1x32x32xf32>
    %33 = vector.shape_cast %32 : vector<1x32x32xf32> to vector<32x32xf32>
    %c0_40 = arith.constant 0 : index
    %c0_41 = arith.constant 0 : index
    %c0_42 = arith.constant 0 : index
    %34 = vector.load %arg15[%c0_40, %c0_41, %c0_42] : memref<2x32x32xf32, #tpu.memory_space<vmem>>, vector<1x32x32xf32>
    %35 = vector.shape_cast %34 : vector<1x32x32xf32> to vector<32x32xf32>
    %c0_43 = arith.constant 0 : index
    %c0_44 = arith.constant 0 : index
    %c0_45 = arith.constant 0 : index
    %36 = vector.load %arg16[%c0_43, %c0_44, %c0_45] : memref<2x1x32xf32, #tpu.memory_space<vmem>>, vector<1x1x32xf32>
    %37 = vector.shape_cast %36 : vector<1x1x32xf32> to vector<1x32xf32>
    %c0_46 = arith.constant 0 : index
    %c0_47 = arith.constant 0 : index
    %c0_48 = arith.constant 0 : index
    %38 = vector.load %arg17[%c0_46, %c0_47, %c0_48] : memref<2x32x96xf32, #tpu.memory_space<vmem>>, vector<1x32x96xf32>
    %39 = vector.shape_cast %38 : vector<1x32x96xf32> to vector<32x96xf32>
    %c0_49 = arith.constant 0 : index
    %c0_50 = arith.constant 0 : index
    %c0_51 = arith.constant 0 : index
    %40 = vector.load %arg18[%c0_49, %c0_50, %c0_51] : memref<2x32x96xf32, #tpu.memory_space<vmem>>, vector<1x32x96xf32>
    %41 = vector.shape_cast %40 : vector<1x32x96xf32> to vector<32x96xf32>
    %c0_52 = arith.constant 0 : index
    %c0_53 = arith.constant 0 : index
    %c0_54 = arith.constant 0 : index
    %42 = vector.load %arg19[%c0_52, %c0_53, %c0_54] : memref<2x1x96xf32, #tpu.memory_space<vmem>>, vector<1x1x96xf32>
    %43 = vector.shape_cast %42 : vector<1x1x96xf32> to vector<1x96xf32>
    %c0_55 = arith.constant 0 : index
    %c0_56 = arith.constant 0 : index
    %c0_57 = arith.constant 0 : index
    %44 = vector.load %arg20[%c0_55, %c0_56, %c0_57] : memref<2x1x96xf32, #tpu.memory_space<vmem>>, vector<1x1x96xf32>
    %45 = vector.shape_cast %44 : vector<1x1x96xf32> to vector<1x96xf32>
    %cst_58 = arith.constant dense<0.000000e+00> : vector<8x32xf32>
    %46 = tpu.matmul %9, %23, %cst_58 {dimension_numbers = #tpu.dot_dimension_numbers<[1], [0], [0], [1], [0, 0, 1, 1], [], []>} : vector<8x4xf32>, vector<4x32xf32>, vector<8x32xf32> -> vector<8x32xf32>
    %cst_59 = arith.constant dense<0.000000e+00> : vector<8x32xf32>
    %47 = tpu.matmul %16, %25, %cst_59 {dimension_numbers = #tpu.dot_dimension_numbers<[1], [0], [0], [1], [0, 0, 1, 1], [], []>} : vector<8x32xf32>, vector<32x32xf32>, vector<8x32xf32> -> vector<8x32xf32>
    %48 = vector.broadcast %27 : vector<1x32xf32> to vector<8x32xf32>
    %49 = arith.addf %47, %48 : vector<8x32xf32>
    %cst_60 = arith.constant dense<0.000000e+00> : vector<8x32xf32>
    %50 = tpu.matmul %46, %35, %cst_60 {dimension_numbers = #tpu.dot_dimension_numbers<[1], [0], [0], [1], [0, 0, 1, 1], [], []>} : vector<8x32xf32>, vector<32x32xf32>, vector<8x32xf32> -> vector<8x32xf32>
    %51 = vector.broadcast %37 : vector<1x32xf32> to vector<8x32xf32>
    %52 = arith.addf %50, %51 : vector<8x32xf32>
    %cst_61 = arith.constant dense<0.000000e+00> : vector<8x96xf32>
    %53 = tpu.matmul %16, %39, %cst_61 {dimension_numbers = #tpu.dot_dimension_numbers<[1], [0], [0], [1], [0, 0, 1, 1], [], []>} : vector<8x32xf32>, vector<32x96xf32>, vector<8x96xf32> -> vector<8x96xf32>
    %54 = vector.broadcast %43 : vector<1x96xf32> to vector<8x96xf32>
    %55 = arith.addf %53, %54 : vector<8x96xf32>
    %56 = vector.extract_strided_slice %55 {offsets = [0, 0], sizes = [1, 96], strides = [1, 1]} : vector<8x96xf32> to vector<1x96xf32>
    %cst_62 = arith.constant 0.000000e+00 : f32
    %57 = vector.broadcast %cst_62 : f32 to vector<1x32xf32>
    %58 = vector.extract_strided_slice %56 {offsets = [0, 0], sizes = [1, 32], strides = [1, 1]} : vector<1x96xf32> to vector<1x32xf32>
    %59 = vector.extract_strided_slice %45 {offsets = [0, 0], sizes = [1, 32], strides = [1, 1]} : vector<1x96xf32> to vector<1x32xf32>
    %60 = arith.addf %58, %59 : vector<1x32xf32>
    %61 = arith.negf %60 : vector<1x32xf32>
    %62 = math.exp %61 : vector<1x32xf32>
    %cst_63 = arith.constant 1.000000e+00 : f32
    %63 = vector.broadcast %cst_63 : f32 to vector<1x32xf32>
    %64 = arith.addf %63, %62 : vector<1x32xf32>
    %65 = arith.divf %63, %64 : vector<1x32xf32>
    %66 = vector.extract_strided_slice %56 {offsets = [0, 32], sizes = [1, 32], strides = [1, 1]} : vector<1x96xf32> to vector<1x32xf32>
    %67 = vector.extract_strided_slice %45 {offsets = [0, 32], sizes = [1, 32], strides = [1, 1]} : vector<1x96xf32> to vector<1x32xf32>
    %68 = arith.addf %66, %67 : vector<1x32xf32>
    %69 = arith.negf %68 : vector<1x32xf32>
    %70 = math.exp %69 : vector<1x32xf32>
    %cst_64 = arith.constant 1.000000e+00 : f32
    %71 = vector.broadcast %cst_64 : f32 to vector<1x32xf32>
    %72 = arith.addf %71, %70 : vector<1x32xf32>
    %73 = arith.divf %71, %72 : vector<1x32xf32>
    %74 = vector.extract_strided_slice %56 {offsets = [0, 64], sizes = [1, 32], strides = [1, 1]} : vector<1x96xf32> to vector<1x32xf32>
    %75 = vector.extract_strided_slice %45 {offsets = [0, 64], sizes = [1, 32], strides = [1, 1]} : vector<1x96xf32> to vector<1x32xf32>
    %76 = arith.mulf %65, %75 : vector<1x32xf32>
    %77 = arith.addf %74, %76 : vector<1x32xf32>
    %78 = math.tanh %77 : vector<1x32xf32>
    %cst_65 = arith.constant 1.000000e+00 : f32
    %79 = vector.broadcast %cst_65 : f32 to vector<1x32xf32>
    %80 = arith.subf %79, %73 : vector<1x32xf32>
    %81 = arith.mulf %80, %78 : vector<1x32xf32>
    %82 = arith.mulf %73, %57 : vector<1x32xf32>
    %83 = arith.addf %81, %82 : vector<1x32xf32>
    %c0_66 = arith.constant 0 : index
    %c0_67 = arith.constant 0 : index
    %84 = vector.load %arg28[%c0_66, %c0_67] : memref<8x32xf32, #tpu.memory_space<vmem>>, vector<1x32xf32>
    tpu.vector_store %arg28[%c0_66, %c0_67], %83 {strides = array<i32>} : memref<8x32xf32, #tpu.memory_space<vmem>>, vector<1x32xf32>,
    %cst_68 = arith.constant dense<0.000000e+00> : vector<1x32xf32>
    %85 = tpu.matmul %83, %29, %cst_68 {dimension_numbers = #tpu.dot_dimension_numbers<[1], [0], [0], [1], [0, 0, 1, 1], [], []>} : vector<1x32xf32>, vector<32x32xf32>, vector<1x32xf32> -> vector<1x32xf32>
    %86 = arith.addf %85, %31 : vector<1x32xf32>
    %c0_69 = arith.constant 0 : index
    %c0_70 = arith.constant 0 : index
    %87 = vector.load %arg29[%c0_69, %c0_70] : memref<8x32xf32, #tpu.memory_space<vmem>>, vector<1x32xf32>
    tpu.vector_store %arg29[%c0_69, %c0_70], %86 {strides = array<i32>} : memref<8x32xf32, #tpu.memory_space<vmem>>, vector<1x32xf32>,
    %c0_71 = arith.constant 0 : index
    %c0_72 = arith.constant 0 : index
    %88 = vector.load %arg28[%c0_71, %c0_72] : memref<8x32xf32, #tpu.memory_space<vmem>>, vector<1x32xf32>
    %c0_73 = arith.constant 0 : index
    %c0_74 = arith.constant 0 : index
    %89 = vector.load %arg29[%c0_73, %c0_74] : memref<8x32xf32, #tpu.memory_space<vmem>>, vector<1x32xf32>
    %90 = vector.extract_strided_slice %49 {offsets = [1, 0], sizes = [1, 32], strides = [1, 1]} : vector<8x32xf32> to vector<1x32xf32>
    %91 = arith.mulf %89, %90 : vector<1x32xf32>
    %cst_75 = arith.constant dense<0.000000e+00> : vector<1xf32>
    %92 = vector.multi_reduction <add>, %91, %cst_75 [1] : vector<1x32xf32> to vector<1xf32>
    %93 = vector.shape_cast %92 : vector<1xf32> to vector<1x1xf32>
    %94 = vector.extract_strided_slice %3 {offsets = [0, 1], sizes = [1, 1], strides = [1, 1]} : vector<8x8xf32> to vector<1x1xf32>
    %cst_76 = arith.constant 1.000000e+00 : f32
    %95 = vector.broadcast %cst_76 : f32 to vector<1x1xf32>
    %96 = arith.subf %95, %94 : vector<1x1xf32>
    %cst_77 = arith.constant 1.000000e+30 : f32
    %97 = vector.broadcast %cst_77 : f32 to vector<1x1xf32>
    %98 = arith.mulf %96, %97 : vector<1x1xf32>
    %99 = arith.subf %93, %98 : vector<1x1xf32>
    %cst_78 = arith.constant dense<0xFF800000> : vector<1xf32>
    %100 = vector.multi_reduction <maximumf>, %99, %cst_78 [0] : vector<1x1xf32> to vector<1xf32>
    %101 = vector.shape_cast %100 : vector<1xf32> to vector<1x1xf32>
    %102 = arith.subf %99, %101 : vector<1x1xf32>
    %103 = math.exp %102 : vector<1x1xf32>
    %cst_79 = arith.constant dense<0.000000e+00> : vector<1xf32>
    %104 = vector.multi_reduction <add>, %103, %cst_79 [0] : vector<1x1xf32> to vector<1xf32>
    %105 = vector.shape_cast %104 : vector<1xf32> to vector<1x1xf32>
    %106 = tpu.reciprocal %105 {approx = true} : vector<1x1xf32> -> vector<1x1xf32>
    %107 = arith.mulf %103, %106 : vector<1x1xf32>
    %108 = vector.broadcast %107 : vector<1x1xf32> to vector<1x32xf32>
    %109 = arith.mulf %108, %88 : vector<1x32xf32>
    %cst_80 = arith.constant dense<0.000000e+00> : vector<32xf32>
    %110 = vector.multi_reduction <add>, %109, %cst_80 [0] : vector<1x32xf32> to vector<32xf32>
    %111 = vector.shape_cast %110 : vector<32xf32> to vector<1x32xf32>
    %cst_81 = arith.constant dense<0.000000e+00> : vector<1x32xf32>
    %112 = tpu.matmul %111, %33, %cst_81 {dimension_numbers = #tpu.dot_dimension_numbers<[1], [0], [0], [1], [0, 0, 1, 1], [], []>} : vector<1x32xf32>, vector<32x32xf32>, vector<1x32xf32> -> vector<1x32xf32>
    %113 = vector.extract_strided_slice %52 {offsets = [1, 0], sizes = [1, 32], strides = [1, 1]} : vector<8x32xf32> to vector<1x32xf32>
    %114 = arith.addf %112, %113 : vector<1x32xf32>
    %cst_82 = arith.constant dense<0.000000e+00> : vector<1x96xf32>
    %115 = tpu.matmul %114, %41, %cst_82 {dimension_numbers = #tpu.dot_dimension_numbers<[1], [0], [0], [1], [0, 0, 1, 1], [], []>} : vector<1x32xf32>, vector<32x96xf32>, vector<1x96xf32> -> vector<1x96xf32>
    %116 = arith.addf %115, %45 : vector<1x96xf32>
    %117 = vector.extract_strided_slice %55 {offsets = [1, 0], sizes = [1, 96], strides = [1, 1]} : vector<8x96xf32> to vector<1x96xf32>
    %118 = vector.extract_strided_slice %117 {offsets = [0, 0], sizes = [1, 32], strides = [1, 1]} : vector<1x96xf32> to vector<1x32xf32>
    %119 = vector.extract_strided_slice %116 {offsets = [0, 0], sizes = [1, 32], strides = [1, 1]} : vector<1x96xf32> to vector<1x32xf32>
    %120 = arith.addf %118, %119 : vector<1x32xf32>
    %121 = arith.negf %120 : vector<1x32xf32>
    %122 = math.exp %121 : vector<1x32xf32>
    %cst_83 = arith.constant 1.000000e+00 : f32
    %123 = vector.broadcast %cst_83 : f32 to vector<1x32xf32>
    %124 = arith.addf %123, %122 : vector<1x32xf32>
    %125 = arith.divf %123, %124 : vector<1x32xf32>
    %126 = vector.extract_strided_slice %117 {offsets = [0, 32], sizes = [1, 32], strides = [1, 1]} : vector<1x96xf32> to vector<1x32xf32>
    %127 = vector.extract_strided_slice %116 {offsets = [0, 32], sizes = [1, 32], strides = [1, 1]} : vector<1x96xf32> to vector<1x32xf32>
    %128 = arith.addf %126, %127 : vector<1x32xf32>
    %129 = arith.negf %128 : vector<1x32xf32>
    %130 = math.exp %129 : vector<1x32xf32>
    %cst_84 = arith.constant 1.000000e+00 : f32
    %131 = vector.broadcast %cst_84 : f32 to vector<1x32xf32>
    %132 = arith.addf %131, %130 : vector<1x32xf32>
    %133 = arith.divf %131, %132 : vector<1x32xf32>
    %134 = vector.extract_strided_slice %117 {offsets = [0, 64], sizes = [1, 32], strides = [1, 1]} : vector<1x96xf32> to vector<1x32xf32>
    %135 = vector.extract_strided_slice %116 {offsets = [0, 64], sizes = [1, 32], strides = [1, 1]} : vector<1x96xf32> to vector<1x32xf32>
    %136 = arith.mulf %125, %135 : vector<1x32xf32>
    %137 = arith.addf %134, %136 : vector<1x32xf32>
    %138 = math.tanh %137 : vector<1x32xf32>
    %cst_85 = arith.constant 1.000000e+00 : f32
    %139 = vector.broadcast %cst_85 : f32 to vector<1x32xf32>
    %140 = arith.subf %139, %133 : vector<1x32xf32>
    %141 = arith.mulf %140, %138 : vector<1x32xf32>
    %142 = arith.mulf %133, %114 : vector<1x32xf32>
    %143 = arith.addf %141, %142 : vector<1x32xf32>
    %c1 = arith.constant 1 : index
    %c0_86 = arith.constant 0 : index
    %144 = vector.load %arg28[%c1, %c0_86] : memref<8x32xf32, #tpu.memory_space<vmem>>, vector<1x32xf32>
    tpu.vector_store %arg28[%c1, %c0_86], %143 {strides = array<i32>} : memref<8x32xf32, #tpu.memory_space<vmem>>, vector<1x32xf32>,
    %cst_87 = arith.constant dense<0.000000e+00> : vector<1x32xf32>
    %145 = tpu.matmul %143, %29, %cst_87 {dimension_numbers = #tpu.dot_dimension_numbers<[1], [0], [0], [1], [0, 0, 1, 1], [], []>} : vector<1x32xf32>, vector<32x32xf32>, vector<1x32xf32> -> vector<1x32xf32>
    %146 = arith.addf %145, %31 : vector<1x32xf32>
    %c1_88 = arith.constant 1 : index
    %c0_89 = arith.constant 0 : index
    %147 = vector.load %arg29[%c1_88, %c0_89] : memref<8x32xf32, #tpu.memory_space<vmem>>, vector<1x32xf32>
    tpu.vector_store %arg29[%c1_88, %c0_89], %146 {strides = array<i32>} : memref<8x32xf32, #tpu.memory_space<vmem>>, vector<1x32xf32>,
    %c0_90 = arith.constant 0 : index
    %c0_91 = arith.constant 0 : index
    %148 = vector.load %arg28[%c0_90, %c0_91] : memref<8x32xf32, #tpu.memory_space<vmem>>, vector<2x32xf32>
    %c0_92 = arith.constant 0 : index
    %c0_93 = arith.constant 0 : index
    %149 = vector.load %arg29[%c0_92, %c0_93] : memref<8x32xf32, #tpu.memory_space<vmem>>, vector<2x32xf32>
    %150 = vector.extract_strided_slice %49 {offsets = [2, 0], sizes = [1, 32], strides = [1, 1]} : vector<8x32xf32> to vector<1x32xf32>
    %151 = vector.broadcast %150 : vector<1x32xf32> to vector<2x32xf32>
    %152 = arith.mulf %149, %151 : vector<2x32xf32>
    %cst_94 = arith.constant dense<0.000000e+00> : vector<2xf32>
    %153 = vector.multi_reduction <add>, %152, %cst_94 [1] : vector<2x32xf32> to vector<2xf32>
    %154 = vector.shape_cast %153 : vector<2xf32> to vector<2x1xf32>
    %155 = vector.extract_strided_slice %3 {offsets = [0, 2], sizes = [2, 1], strides = [1, 1]} : vector<8x8xf32> to vector<2x1xf32>
    %cst_95 = arith.constant 1.000000e+00 : f32
    %156 = vector.broadcast %cst_95 : f32 to vector<2x1xf32>
    %157 = arith.subf %156, %155 : vector<2x1xf32>
    %cst_96 = arith.constant 1.000000e+30 : f32
    %158 = vector.broadcast %cst_96 : f32 to vector<2x1xf32>
    %159 = arith.mulf %157, %158 : vector<2x1xf32>
    %160 = arith.subf %154, %159 : vector<2x1xf32>
    %cst_97 = arith.constant dense<0xFF800000> : vector<1xf32>
    %161 = vector.multi_reduction <maximumf>, %160, %cst_97 [0] : vector<2x1xf32> to vector<1xf32>
    %162 = vector.shape_cast %161 : vector<1xf32> to vector<1x1xf32>
    %163 = vector.broadcast %162 : vector<1x1xf32> to vector<2x1xf32>
    %164 = arith.subf %160, %163 : vector<2x1xf32>
    %165 = math.exp %164 : vector<2x1xf32>
    %cst_98 = arith.constant dense<0.000000e+00> : vector<1xf32>
    %166 = vector.multi_reduction <add>, %165, %cst_98 [0] : vector<2x1xf32> to vector<1xf32>
    %167 = vector.shape_cast %166 : vector<1xf32> to vector<1x1xf32>
    %168 = tpu.reciprocal %167 {approx = true} : vector<1x1xf32> -> vector<1x1xf32>
    %169 = vector.broadcast %168 : vector<1x1xf32> to vector<2x1xf32>
    %170 = arith.mulf %165, %169 : vector<2x1xf32>
    %171 = vector.broadcast %170 : vector<2x1xf32> to vector<2x32xf32>
    %172 = arith.mulf %171, %148 : vector<2x32xf32>
    %cst_99 = arith.constant dense<0.000000e+00> : vector<32xf32>
    %173 = vector.multi_reduction <add>, %172, %cst_99 [0] : vector<2x32xf32> to vector<32xf32>
    %174 = vector.shape_cast %173 : vector<32xf32> to vector<1x32xf32>
    %cst_100 = arith.constant dense<0.000000e+00> : vector<1x32xf32>
    %175 = tpu.matmul %174, %33, %cst_100 {dimension_numbers = #tpu.dot_dimension_numbers<[1], [0], [0], [1], [0, 0, 1, 1], [], []>} : vector<1x32xf32>, vector<32x32xf32>, vector<1x32xf32> -> vector<1x32xf32>
    %176 = vector.extract_strided_slice %52 {offsets = [2, 0], sizes = [1, 32], strides = [1, 1]} : vector<8x32xf32> to vector<1x32xf32>
    %177 = arith.addf %175, %176 : vector<1x32xf32>
    %cst_101 = arith.constant dense<0.000000e+00> : vector<1x96xf32>
    %178 = tpu.matmul %177, %41, %cst_101 {dimension_numbers = #tpu.dot_dimension_numbers<[1], [0], [0], [1], [0, 0, 1, 1], [], []>} : vector<1x32xf32>, vector<32x96xf32>, vector<1x96xf32> -> vector<1x96xf32>
    %179 = arith.addf %178, %45 : vector<1x96xf32>
    %180 = vector.extract_strided_slice %55 {offsets = [2, 0], sizes = [1, 96], strides = [1, 1]} : vector<8x96xf32> to vector<1x96xf32>
    %181 = vector.extract_strided_slice %180 {offsets = [0, 0], sizes = [1, 32], strides = [1, 1]} : vector<1x96xf32> to vector<1x32xf32>
    %182 = vector.extract_strided_slice %179 {offsets = [0, 0], sizes = [1, 32], strides = [1, 1]} : vector<1x96xf32> to vector<1x32xf32>
    %183 = arith.addf %181, %182 : vector<1x32xf32>
    %184 = arith.negf %183 : vector<1x32xf32>
    %185 = math.exp %184 : vector<1x32xf32>
    %cst_102 = arith.constant 1.000000e+00 : f32
    %186 = vector.broadcast %cst_102 : f32 to vector<1x32xf32>
    %187 = arith.addf %186, %185 : vector<1x32xf32>
    %188 = arith.divf %186, %187 : vector<1x32xf32>
    %189 = vector.extract_strided_slice %180 {offsets = [0, 32], sizes = [1, 32], strides = [1, 1]} : vector<1x96xf32> to vector<1x32xf32>
    %190 = vector.extract_strided_slice %179 {offsets = [0, 32], sizes = [1, 32], strides = [1, 1]} : vector<1x96xf32> to vector<1x32xf32>
    %191 = arith.addf %189, %190 : vector<1x32xf32>
    %192 = arith.negf %191 : vector<1x32xf32>
    %193 = math.exp %192 : vector<1x32xf32>
    %cst_103 = arith.constant 1.000000e+00 : f32
    %194 = vector.broadcast %cst_103 : f32 to vector<1x32xf32>
    %195 = arith.addf %194, %193 : vector<1x32xf32>
    %196 = arith.divf %194, %195 : vector<1x32xf32>
    %197 = vector.extract_strided_slice %180 {offsets = [0, 64], sizes = [1, 32], strides = [1, 1]} : vector<1x96xf32> to vector<1x32xf32>
    %198 = vector.extract_strided_slice %179 {offsets = [0, 64], sizes = [1, 32], strides = [1, 1]} : vector<1x96xf32> to vector<1x32xf32>
    %199 = arith.mulf %188, %198 : vector<1x32xf32>
    %200 = arith.addf %197, %199 : vector<1x32xf32>
    %201 = math.tanh %200 : vector<1x32xf32>
    %cst_104 = arith.constant 1.000000e+00 : f32
    %202 = vector.broadcast %cst_104 : f32 to vector<1x32xf32>
    %203 = arith.subf %202, %196 : vector<1x32xf32>
    %204 = arith.mulf %203, %201 : vector<1x32xf32>
    %205 = arith.mulf %196, %177 : vector<1x32xf32>
    %206 = arith.addf %204, %205 : vector<1x32xf32>
    %c2 = arith.constant 2 : index
    %c0_105 = arith.constant 0 : index
    %207 = vector.load %arg28[%c2, %c0_105] : memref<8x32xf32, #tpu.memory_space<vmem>>, vector<1x32xf32>
    tpu.vector_store %arg28[%c2, %c0_105], %206 {strides = array<i32>} : memref<8x32xf32, #tpu.memory_space<vmem>>, vector<1x32xf32>,
    %cst_106 = arith.constant dense<0.000000e+00> : vector<1x32xf32>
    %208 = tpu.matmul %206, %29, %cst_106 {dimension_numbers = #tpu.dot_dimension_numbers<[1], [0], [0], [1], [0, 0, 1, 1], [], []>} : vector<1x32xf32>, vector<32x32xf32>, vector<1x32xf32> -> vector<1x32xf32>
    %209 = arith.addf %208, %31 : vector<1x32xf32>
    %c2_107 = arith.constant 2 : index
    %c0_108 = arith.constant 0 : index
    %210 = vector.load %arg29[%c2_107, %c0_108] : memref<8x32xf32, #tpu.memory_space<vmem>>, vector<1x32xf32>
    tpu.vector_store %arg29[%c2_107, %c0_108], %209 {strides = array<i32>} : memref<8x32xf32, #tpu.memory_space<vmem>>, vector<1x32xf32>,
    %c0_109 = arith.constant 0 : index
    %c0_110 = arith.constant 0 : index
    %211 = vector.load %arg28[%c0_109, %c0_110] : memref<8x32xf32, #tpu.memory_space<vmem>>, vector<3x32xf32>
    %c0_111 = arith.constant 0 : index
    %c0_112 = arith.constant 0 : index
    %212 = vector.load %arg29[%c0_111, %c0_112] : memref<8x32xf32, #tpu.memory_space<vmem>>, vector<3x32xf32>
    %213 = vector.extract_strided_slice %49 {offsets = [3, 0], sizes = [1, 32], strides = [1, 1]} : vector<8x32xf32> to vector<1x32xf32>
    %214 = vector.broadcast %213 : vector<1x32xf32> to vector<3x32xf32>
    %215 = arith.mulf %212, %214 : vector<3x32xf32>
    %cst_113 = arith.constant dense<0.000000e+00> : vector<3xf32>
    %216 = vector.multi_reduction <add>, %215, %cst_113 [1] : vector<3x32xf32> to vector<3xf32>
    %217 = vector.shape_cast %216 : vector<3xf32> to vector<3x1xf32>
    %218 = vector.extract_strided_slice %3 {offsets = [0, 3], sizes = [3, 1], strides = [1, 1]} : vector<8x8xf32> to vector<3x1xf32>
    %cst_114 = arith.constant 1.000000e+00 : f32
    %219 = vector.broadcast %cst_114 : f32 to vector<3x1xf32>
    %220 = arith.subf %219, %218 : vector<3x1xf32>
    %cst_115 = arith.constant 1.000000e+30 : f32
    %221 = vector.broadcast %cst_115 : f32 to vector<3x1xf32>
    %222 = arith.mulf %220, %221 : vector<3x1xf32>
    %223 = arith.subf %217, %222 : vector<3x1xf32>
    %cst_116 = arith.constant dense<0xFF800000> : vector<1xf32>
    %224 = vector.multi_reduction <maximumf>, %223, %cst_116 [0] : vector<3x1xf32> to vector<1xf32>
    %225 = vector.shape_cast %224 : vector<1xf32> to vector<1x1xf32>
    %226 = vector.broadcast %225 : vector<1x1xf32> to vector<3x1xf32>
    %227 = arith.subf %223, %226 : vector<3x1xf32>
    %228 = math.exp %227 : vector<3x1xf32>
    %cst_117 = arith.constant dense<0.000000e+00> : vector<1xf32>
    %229 = vector.multi_reduction <add>, %228, %cst_117 [0] : vector<3x1xf32> to vector<1xf32>
    %230 = vector.shape_cast %229 : vector<1xf32> to vector<1x1xf32>
    %231 = tpu.reciprocal %230 {approx = true} : vector<1x1xf32> -> vector<1x1xf32>
    %232 = vector.broadcast %231 : vector<1x1xf32> to vector<3x1xf32>
    %233 = arith.mulf %228, %232 : vector<3x1xf32>
    %234 = vector.broadcast %233 : vector<3x1xf32> to vector<3x32xf32>
    %235 = arith.mulf %234, %211 : vector<3x32xf32>
    %cst_118 = arith.constant dense<0.000000e+00> : vector<32xf32>
    %236 = vector.multi_reduction <add>, %235, %cst_118 [0] : vector<3x32xf32> to vector<32xf32>
    %237 = vector.shape_cast %236 : vector<32xf32> to vector<1x32xf32>
    %cst_119 = arith.constant dense<0.000000e+00> : vector<1x32xf32>
    %238 = tpu.matmul %237, %33, %cst_119 {dimension_numbers = #tpu.dot_dimension_numbers<[1], [0], [0], [1], [0, 0, 1, 1], [], []>} : vector<1x32xf32>, vector<32x32xf32>, vector<1x32xf32> -> vector<1x32xf32>
    %239 = vector.extract_strided_slice %52 {offsets = [3, 0], sizes = [1, 32], strides = [1, 1]} : vector<8x32xf32> to vector<1x32xf32>
    %240 = arith.addf %238, %239 : vector<1x32xf32>
    %cst_120 = arith.constant dense<0.000000e+00> : vector<1x96xf32>
    %241 = tpu.matmul %240, %41, %cst_120 {dimension_numbers = #tpu.dot_dimension_numbers<[1], [0], [0], [1], [0, 0, 1, 1], [], []>} : vector<1x32xf32>, vector<32x96xf32>, vector<1x96xf32> -> vector<1x96xf32>
    %242 = arith.addf %241, %45 : vector<1x96xf32>
    %243 = vector.extract_strided_slice %55 {offsets = [3, 0], sizes = [1, 96], strides = [1, 1]} : vector<8x96xf32> to vector<1x96xf32>
    %244 = vector.extract_strided_slice %243 {offsets = [0, 0], sizes = [1, 32], strides = [1, 1]} : vector<1x96xf32> to vector<1x32xf32>
    %245 = vector.extract_strided_slice %242 {offsets = [0, 0], sizes = [1, 32], strides = [1, 1]} : vector<1x96xf32> to vector<1x32xf32>
    %246 = arith.addf %244, %245 : vector<1x32xf32>
    %247 = arith.negf %246 : vector<1x32xf32>
    %248 = math.exp %247 : vector<1x32xf32>
    %cst_121 = arith.constant 1.000000e+00 : f32
    %249 = vector.broadcast %cst_121 : f32 to vector<1x32xf32>
    %250 = arith.addf %249, %248 : vector<1x32xf32>
    %251 = arith.divf %249, %250 : vector<1x32xf32>
    %252 = vector.extract_strided_slice %243 {offsets = [0, 32], sizes = [1, 32], strides = [1, 1]} : vector<1x96xf32> to vector<1x32xf32>
    %253 = vector.extract_strided_slice %242 {offsets = [0, 32], sizes = [1, 32], strides = [1, 1]} : vector<1x96xf32> to vector<1x32xf32>
    %254 = arith.addf %252, %253 : vector<1x32xf32>
    %255 = arith.negf %254 : vector<1x32xf32>
    %256 = math.exp %255 : vector<1x32xf32>
    %cst_122 = arith.constant 1.000000e+00 : f32
    %257 = vector.broadcast %cst_122 : f32 to vector<1x32xf32>
    %258 = arith.addf %257, %256 : vector<1x32xf32>
    %259 = arith.divf %257, %258 : vector<1x32xf32>
    %260 = vector.extract_strided_slice %243 {offsets = [0, 64], sizes = [1, 32], strides = [1, 1]} : vector<1x96xf32> to vector<1x32xf32>
    %261 = vector.extract_strided_slice %242 {offsets = [0, 64], sizes = [1, 32], strides = [1, 1]} : vector<1x96xf32> to vector<1x32xf32>
    %262 = arith.mulf %251, %261 : vector<1x32xf32>
    %263 = arith.addf %260, %262 : vector<1x32xf32>
    %264 = math.tanh %263 : vector<1x32xf32>
    %cst_123 = arith.constant 1.000000e+00 : f32
    %265 = vector.broadcast %cst_123 : f32 to vector<1x32xf32>
    %266 = arith.subf %265, %259 : vector<1x32xf32>
    %267 = arith.mulf %266, %264 : vector<1x32xf32>
    %268 = arith.mulf %259, %240 : vector<1x32xf32>
    %269 = arith.addf %267, %268 : vector<1x32xf32>
    %c3 = arith.constant 3 : index
    %c0_124 = arith.constant 0 : index
    %270 = vector.load %arg28[%c3, %c0_124] : memref<8x32xf32, #tpu.memory_space<vmem>>, vector<1x32xf32>
    tpu.vector_store %arg28[%c3, %c0_124], %269 {strides = array<i32>} : memref<8x32xf32, #tpu.memory_space<vmem>>, vector<1x32xf32>,
    %cst_125 = arith.constant dense<0.000000e+00> : vector<1x32xf32>
    %271 = tpu.matmul %269, %29, %cst_125 {dimension_numbers = #tpu.dot_dimension_numbers<[1], [0], [0], [1], [0, 0, 1, 1], [], []>} : vector<1x32xf32>, vector<32x32xf32>, vector<1x32xf32> -> vector<1x32xf32>
    %272 = arith.addf %271, %31 : vector<1x32xf32>
    %c3_126 = arith.constant 3 : index
    %c0_127 = arith.constant 0 : index
    %273 = vector.load %arg29[%c3_126, %c0_127] : memref<8x32xf32, #tpu.memory_space<vmem>>, vector<1x32xf32>
    tpu.vector_store %arg29[%c3_126, %c0_127], %272 {strides = array<i32>} : memref<8x32xf32, #tpu.memory_space<vmem>>, vector<1x32xf32>,
    %c0_128 = arith.constant 0 : index
    %c0_129 = arith.constant 0 : index
    %274 = vector.load %arg28[%c0_128, %c0_129] : memref<8x32xf32, #tpu.memory_space<vmem>>, vector<4x32xf32>
    %c0_130 = arith.constant 0 : index
    %c0_131 = arith.constant 0 : index
    %275 = vector.load %arg29[%c0_130, %c0_131] : memref<8x32xf32, #tpu.memory_space<vmem>>, vector<4x32xf32>
    %276 = vector.extract_strided_slice %49 {offsets = [4, 0], sizes = [1, 32], strides = [1, 1]} : vector<8x32xf32> to vector<1x32xf32>
    %277 = vector.broadcast %276 : vector<1x32xf32> to vector<4x32xf32>
    %278 = arith.mulf %275, %277 : vector<4x32xf32>
    %cst_132 = arith.constant dense<0.000000e+00> : vector<4xf32>
    %279 = vector.multi_reduction <add>, %278, %cst_132 [1] : vector<4x32xf32> to vector<4xf32>
    %280 = vector.shape_cast %279 : vector<4xf32> to vector<4x1xf32>
    %281 = vector.extract_strided_slice %3 {offsets = [0, 4], sizes = [4, 1], strides = [1, 1]} : vector<8x8xf32> to vector<4x1xf32>
    %cst_133 = arith.constant 1.000000e+00 : f32
    %282 = vector.broadcast %cst_133 : f32 to vector<4x1xf32>
    %283 = arith.subf %282, %281 : vector<4x1xf32>
    %cst_134 = arith.constant 1.000000e+30 : f32
    %284 = vector.broadcast %cst_134 : f32 to vector<4x1xf32>
    %285 = arith.mulf %283, %284 : vector<4x1xf32>
    %286 = arith.subf %280, %285 : vector<4x1xf32>
    %cst_135 = arith.constant dense<0xFF800000> : vector<1xf32>
    %287 = vector.multi_reduction <maximumf>, %286, %cst_135 [0] : vector<4x1xf32> to vector<1xf32>
    %288 = vector.shape_cast %287 : vector<1xf32> to vector<1x1xf32>
    %289 = vector.broadcast %288 : vector<1x1xf32> to vector<4x1xf32>
    %290 = arith.subf %286, %289 : vector<4x1xf32>
    %291 = math.exp %290 : vector<4x1xf32>
    %cst_136 = arith.constant dense<0.000000e+00> : vector<1xf32>
    %292 = vector.multi_reduction <add>, %291, %cst_136 [0] : vector<4x1xf32> to vector<1xf32>
    %293 = vector.shape_cast %292 : vector<1xf32> to vector<1x1xf32>
    %294 = tpu.reciprocal %293 {approx = true} : vector<1x1xf32> -> vector<1x1xf32>
    %295 = vector.broadcast %294 : vector<1x1xf32> to vector<4x1xf32>
    %296 = arith.mulf %291, %295 : vector<4x1xf32>
    %297 = vector.broadcast %296 : vector<4x1xf32> to vector<4x32xf32>
    %298 = arith.mulf %297, %274 : vector<4x32xf32>
    %cst_137 = arith.constant dense<0.000000e+00> : vector<32xf32>
    %299 = vector.multi_reduction <add>, %298, %cst_137 [0] : vector<4x32xf32> to vector<32xf32>
    %300 = vector.shape_cast %299 : vector<32xf32> to vector<1x32xf32>
    %cst_138 = arith.constant dense<0.000000e+00> : vector<1x32xf32>
    %301 = tpu.matmul %300, %33, %cst_138 {dimension_numbers = #tpu.dot_dimension_numbers<[1], [0], [0], [1], [0, 0, 1, 1], [], []>} : vector<1x32xf32>, vector<32x32xf32>, vector<1x32xf32> -> vector<1x32xf32>
    %302 = vector.extract_strided_slice %52 {offsets = [4, 0], sizes = [1, 32], strides = [1, 1]} : vector<8x32xf32> to vector<1x32xf32>
    %303 = arith.addf %301, %302 : vector<1x32xf32>
    %cst_139 = arith.constant dense<0.000000e+00> : vector<1x96xf32>
    %304 = tpu.matmul %303, %41, %cst_139 {dimension_numbers = #tpu.dot_dimension_numbers<[1], [0], [0], [1], [0, 0, 1, 1], [], []>} : vector<1x32xf32>, vector<32x96xf32>, vector<1x96xf32> -> vector<1x96xf32>
    %305 = arith.addf %304, %45 : vector<1x96xf32>
    %306 = vector.extract_strided_slice %55 {offsets = [4, 0], sizes = [1, 96], strides = [1, 1]} : vector<8x96xf32> to vector<1x96xf32>
    %307 = vector.extract_strided_slice %306 {offsets = [0, 0], sizes = [1, 32], strides = [1, 1]} : vector<1x96xf32> to vector<1x32xf32>
    %308 = vector.extract_strided_slice %305 {offsets = [0, 0], sizes = [1, 32], strides = [1, 1]} : vector<1x96xf32> to vector<1x32xf32>
    %309 = arith.addf %307, %308 : vector<1x32xf32>
    %310 = arith.negf %309 : vector<1x32xf32>
    %311 = math.exp %310 : vector<1x32xf32>
    %cst_140 = arith.constant 1.000000e+00 : f32
    %312 = vector.broadcast %cst_140 : f32 to vector<1x32xf32>
    %313 = arith.addf %312, %311 : vector<1x32xf32>
    %314 = arith.divf %312, %313 : vector<1x32xf32>
    %315 = vector.extract_strided_slice %306 {offsets = [0, 32], sizes = [1, 32], strides = [1, 1]} : vector<1x96xf32> to vector<1x32xf32>
    %316 = vector.extract_strided_slice %305 {offsets = [0, 32], sizes = [1, 32], strides = [1, 1]} : vector<1x96xf32> to vector<1x32xf32>
    %317 = arith.addf %315, %316 : vector<1x32xf32>
    %318 = arith.negf %317 : vector<1x32xf32>
    %319 = math.exp %318 : vector<1x32xf32>
    %cst_141 = arith.constant 1.000000e+00 : f32
    %320 = vector.broadcast %cst_141 : f32 to vector<1x32xf32>
    %321 = arith.addf %320, %319 : vector<1x32xf32>
    %322 = arith.divf %320, %321 : vector<1x32xf32>
    %323 = vector.extract_strided_slice %306 {offsets = [0, 64], sizes = [1, 32], strides = [1, 1]} : vector<1x96xf32> to vector<1x32xf32>
    %324 = vector.extract_strided_slice %305 {offsets = [0, 64], sizes = [1, 32], strides = [1, 1]} : vector<1x96xf32> to vector<1x32xf32>
    %325 = arith.mulf %314, %324 : vector<1x32xf32>
    %326 = arith.addf %323, %325 : vector<1x32xf32>
    %327 = math.tanh %326 : vector<1x32xf32>
    %cst_142 = arith.constant 1.000000e+00 : f32
    %328 = vector.broadcast %cst_142 : f32 to vector<1x32xf32>
    %329 = arith.subf %328, %322 : vector<1x32xf32>
    %330 = arith.mulf %329, %327 : vector<1x32xf32>
    %331 = arith.mulf %322, %303 : vector<1x32xf32>
    %332 = arith.addf %330, %331 : vector<1x32xf32>
    %c4 = arith.constant 4 : index
    %c0_143 = arith.constant 0 : index
    %333 = vector.load %arg28[%c4, %c0_143] : memref<8x32xf32, #tpu.memory_space<vmem>>, vector<1x32xf32>
    tpu.vector_store %arg28[%c4, %c0_143], %332 {strides = array<i32>} : memref<8x32xf32, #tpu.memory_space<vmem>>, vector<1x32xf32>,
    %cst_144 = arith.constant dense<0.000000e+00> : vector<1x32xf32>
    %334 = tpu.matmul %332, %29, %cst_144 {dimension_numbers = #tpu.dot_dimension_numbers<[1], [0], [0], [1], [0, 0, 1, 1], [], []>} : vector<1x32xf32>, vector<32x32xf32>, vector<1x32xf32> -> vector<1x32xf32>
    %335 = arith.addf %334, %31 : vector<1x32xf32>
    %c4_145 = arith.constant 4 : index
    %c0_146 = arith.constant 0 : index
    %336 = vector.load %arg29[%c4_145, %c0_146] : memref<8x32xf32, #tpu.memory_space<vmem>>, vector<1x32xf32>
    tpu.vector_store %arg29[%c4_145, %c0_146], %335 {strides = array<i32>} : memref<8x32xf32, #tpu.memory_space<vmem>>, vector<1x32xf32>,
    %c0_147 = arith.constant 0 : index
    %c0_148 = arith.constant 0 : index
    %337 = vector.load %arg28[%c0_147, %c0_148] : memref<8x32xf32, #tpu.memory_space<vmem>>, vector<5x32xf32>
    %c0_149 = arith.constant 0 : index
    %c0_150 = arith.constant 0 : index
    %338 = vector.load %arg29[%c0_149, %c0_150] : memref<8x32xf32, #tpu.memory_space<vmem>>, vector<5x32xf32>
    %339 = vector.extract_strided_slice %49 {offsets = [5, 0], sizes = [1, 32], strides = [1, 1]} : vector<8x32xf32> to vector<1x32xf32>
    %340 = vector.broadcast %339 : vector<1x32xf32> to vector<5x32xf32>
    %341 = arith.mulf %338, %340 : vector<5x32xf32>
    %cst_151 = arith.constant dense<0.000000e+00> : vector<5xf32>
    %342 = vector.multi_reduction <add>, %341, %cst_151 [1] : vector<5x32xf32> to vector<5xf32>
    %343 = vector.shape_cast %342 : vector<5xf32> to vector<5x1xf32>
    %344 = vector.extract_strided_slice %3 {offsets = [0, 5], sizes = [5, 1], strides = [1, 1]} : vector<8x8xf32> to vector<5x1xf32>
    %cst_152 = arith.constant 1.000000e+00 : f32
    %345 = vector.broadcast %cst_152 : f32 to vector<5x1xf32>
    %346 = arith.subf %345, %344 : vector<5x1xf32>
    %cst_153 = arith.constant 1.000000e+30 : f32
    %347 = vector.broadcast %cst_153 : f32 to vector<5x1xf32>
    %348 = arith.mulf %346, %347 : vector<5x1xf32>
    %349 = arith.subf %343, %348 : vector<5x1xf32>
    %cst_154 = arith.constant dense<0xFF800000> : vector<1xf32>
    %350 = vector.multi_reduction <maximumf>, %349, %cst_154 [0] : vector<5x1xf32> to vector<1xf32>
    %351 = vector.shape_cast %350 : vector<1xf32> to vector<1x1xf32>
    %352 = vector.broadcast %351 : vector<1x1xf32> to vector<5x1xf32>
    %353 = arith.subf %349, %352 : vector<5x1xf32>
    %354 = math.exp %353 : vector<5x1xf32>
    %cst_155 = arith.constant dense<0.000000e+00> : vector<1xf32>
    %355 = vector.multi_reduction <add>, %354, %cst_155 [0] : vector<5x1xf32> to vector<1xf32>
    %356 = vector.shape_cast %355 : vector<1xf32> to vector<1x1xf32>
    %357 = tpu.reciprocal %356 {approx = true} : vector<1x1xf32> -> vector<1x1xf32>
    %358 = vector.broadcast %357 : vector<1x1xf32> to vector<5x1xf32>
    %359 = arith.mulf %354, %358 : vector<5x1xf32>
    %360 = vector.broadcast %359 : vector<5x1xf32> to vector<5x32xf32>
    %361 = arith.mulf %360, %337 : vector<5x32xf32>
    %cst_156 = arith.constant dense<0.000000e+00> : vector<32xf32>
    %362 = vector.multi_reduction <add>, %361, %cst_156 [0] : vector<5x32xf32> to vector<32xf32>
    %363 = vector.shape_cast %362 : vector<32xf32> to vector<1x32xf32>
    %cst_157 = arith.constant dense<0.000000e+00> : vector<1x32xf32>
    %364 = tpu.matmul %363, %33, %cst_157 {dimension_numbers = #tpu.dot_dimension_numbers<[1], [0], [0], [1], [0, 0, 1, 1], [], []>} : vector<1x32xf32>, vector<32x32xf32>, vector<1x32xf32> -> vector<1x32xf32>
    %365 = vector.extract_strided_slice %52 {offsets = [5, 0], sizes = [1, 32], strides = [1, 1]} : vector<8x32xf32> to vector<1x32xf32>
    %366 = arith.addf %364, %365 : vector<1x32xf32>
    %cst_158 = arith.constant dense<0.000000e+00> : vector<1x96xf32>
    %367 = tpu.matmul %366, %41, %cst_158 {dimension_numbers = #tpu.dot_dimension_numbers<[1], [0], [0], [1], [0, 0, 1, 1], [], []>} : vector<1x32xf32>, vector<32x96xf32>, vector<1x96xf32> -> vector<1x96xf32>
    %368 = arith.addf %367, %45 : vector<1x96xf32>
    %369 = vector.extract_strided_slice %55 {offsets = [5, 0], sizes = [1, 96], strides = [1, 1]} : vector<8x96xf32> to vector<1x96xf32>
    %370 = vector.extract_strided_slice %369 {offsets = [0, 0], sizes = [1, 32], strides = [1, 1]} : vector<1x96xf32> to vector<1x32xf32>
    %371 = vector.extract_strided_slice %368 {offsets = [0, 0], sizes = [1, 32], strides = [1, 1]} : vector<1x96xf32> to vector<1x32xf32>
    %372 = arith.addf %370, %371 : vector<1x32xf32>
    %373 = arith.negf %372 : vector<1x32xf32>
    %374 = math.exp %373 : vector<1x32xf32>
    %cst_159 = arith.constant 1.000000e+00 : f32
    %375 = vector.broadcast %cst_159 : f32 to vector<1x32xf32>
    %376 = arith.addf %375, %374 : vector<1x32xf32>
    %377 = arith.divf %375, %376 : vector<1x32xf32>
    %378 = vector.extract_strided_slice %369 {offsets = [0, 32], sizes = [1, 32], strides = [1, 1]} : vector<1x96xf32> to vector<1x32xf32>
    %379 = vector.extract_strided_slice %368 {offsets = [0, 32], sizes = [1, 32], strides = [1, 1]} : vector<1x96xf32> to vector<1x32xf32>
    %380 = arith.addf %378, %379 : vector<1x32xf32>
    %381 = arith.negf %380 : vector<1x32xf32>
    %382 = math.exp %381 : vector<1x32xf32>
    %cst_160 = arith.constant 1.000000e+00 : f32
    %383 = vector.broadcast %cst_160 : f32 to vector<1x32xf32>
    %384 = arith.addf %383, %382 : vector<1x32xf32>
    %385 = arith.divf %383, %384 : vector<1x32xf32>
    %386 = vector.extract_strided_slice %369 {offsets = [0, 64], sizes = [1, 32], strides = [1, 1]} : vector<1x96xf32> to vector<1x32xf32>
    %387 = vector.extract_strided_slice %368 {offsets = [0, 64], sizes = [1, 32], strides = [1, 1]} : vector<1x96xf32> to vector<1x32xf32>
    %388 = arith.mulf %377, %387 : vector<1x32xf32>
    %389 = arith.addf %386, %388 : vector<1x32xf32>
    %390 = math.tanh %389 : vector<1x32xf32>
    %cst_161 = arith.constant 1.000000e+00 : f32
    %391 = vector.broadcast %cst_161 : f32 to vector<1x32xf32>
    %392 = arith.subf %391, %385 : vector<1x32xf32>
    %393 = arith.mulf %392, %390 : vector<1x32xf32>
    %394 = arith.mulf %385, %366 : vector<1x32xf32>
    %395 = arith.addf %393, %394 : vector<1x32xf32>
    %c5 = arith.constant 5 : index
    %c0_162 = arith.constant 0 : index
    %396 = vector.load %arg28[%c5, %c0_162] : memref<8x32xf32, #tpu.memory_space<vmem>>, vector<1x32xf32>
    tpu.vector_store %arg28[%c5, %c0_162], %395 {strides = array<i32>} : memref<8x32xf32, #tpu.memory_space<vmem>>, vector<1x32xf32>,
    %cst_163 = arith.constant dense<0.000000e+00> : vector<1x32xf32>
    %397 = tpu.matmul %395, %29, %cst_163 {dimension_numbers = #tpu.dot_dimension_numbers<[1], [0], [0], [1], [0, 0, 1, 1], [], []>} : vector<1x32xf32>, vector<32x32xf32>, vector<1x32xf32> -> vector<1x32xf32>
    %398 = arith.addf %397, %31 : vector<1x32xf32>
    %c5_164 = arith.constant 5 : index
    %c0_165 = arith.constant 0 : index
    %399 = vector.load %arg29[%c5_164, %c0_165] : memref<8x32xf32, #tpu.memory_space<vmem>>, vector<1x32xf32>
    tpu.vector_store %arg29[%c5_164, %c0_165], %398 {strides = array<i32>} : memref<8x32xf32, #tpu.memory_space<vmem>>, vector<1x32xf32>,
    %c0_166 = arith.constant 0 : index
    %c0_167 = arith.constant 0 : index
    %400 = vector.load %arg28[%c0_166, %c0_167] : memref<8x32xf32, #tpu.memory_space<vmem>>, vector<6x32xf32>
    %c0_168 = arith.constant 0 : index
    %c0_169 = arith.constant 0 : index
    %401 = vector.load %arg29[%c0_168, %c0_169] : memref<8x32xf32, #tpu.memory_space<vmem>>, vector<6x32xf32>
    %402 = vector.extract_strided_slice %49 {offsets = [6, 0], sizes = [1, 32], strides = [1, 1]} : vector<8x32xf32> to vector<1x32xf32>
    %403 = vector.broadcast %402 : vector<1x32xf32> to vector<6x32xf32>
    %404 = arith.mulf %401, %403 : vector<6x32xf32>
    %cst_170 = arith.constant dense<0.000000e+00> : vector<6xf32>
    %405 = vector.multi_reduction <add>, %404, %cst_170 [1] : vector<6x32xf32> to vector<6xf32>
    %406 = vector.shape_cast %405 : vector<6xf32> to vector<6x1xf32>
    %407 = vector.extract_strided_slice %3 {offsets = [0, 6], sizes = [6, 1], strides = [1, 1]} : vector<8x8xf32> to vector<6x1xf32>
    %cst_171 = arith.constant 1.000000e+00 : f32
    %408 = vector.broadcast %cst_171 : f32 to vector<6x1xf32>
    %409 = arith.subf %408, %407 : vector<6x1xf32>
    %cst_172 = arith.constant 1.000000e+30 : f32
    %410 = vector.broadcast %cst_172 : f32 to vector<6x1xf32>
    %411 = arith.mulf %409, %410 : vector<6x1xf32>
    %412 = arith.subf %406, %411 : vector<6x1xf32>
    %cst_173 = arith.constant dense<0xFF800000> : vector<1xf32>
    %413 = vector.multi_reduction <maximumf>, %412, %cst_173 [0] : vector<6x1xf32> to vector<1xf32>
    %414 = vector.shape_cast %413 : vector<1xf32> to vector<1x1xf32>
    %415 = vector.broadcast %414 : vector<1x1xf32> to vector<6x1xf32>
    %416 = arith.subf %412, %415 : vector<6x1xf32>
    %417 = math.exp %416 : vector<6x1xf32>
    %cst_174 = arith.constant dense<0.000000e+00> : vector<1xf32>
    %418 = vector.multi_reduction <add>, %417, %cst_174 [0] : vector<6x1xf32> to vector<1xf32>
    %419 = vector.shape_cast %418 : vector<1xf32> to vector<1x1xf32>
    %420 = tpu.reciprocal %419 {approx = true} : vector<1x1xf32> -> vector<1x1xf32>
    %421 = vector.broadcast %420 : vector<1x1xf32> to vector<6x1xf32>
    %422 = arith.mulf %417, %421 : vector<6x1xf32>
    %423 = vector.broadcast %422 : vector<6x1xf32> to vector<6x32xf32>
    %424 = arith.mulf %423, %400 : vector<6x32xf32>
    %cst_175 = arith.constant dense<0.000000e+00> : vector<32xf32>
    %425 = vector.multi_reduction <add>, %424, %cst_175 [0] : vector<6x32xf32> to vector<32xf32>
    %426 = vector.shape_cast %425 : vector<32xf32> to vector<1x32xf32>
    %cst_176 = arith.constant dense<0.000000e+00> : vector<1x32xf32>
    %427 = tpu.matmul %426, %33, %cst_176 {dimension_numbers = #tpu.dot_dimension_numbers<[1], [0], [0], [1], [0, 0, 1, 1], [], []>} : vector<1x32xf32>, vector<32x32xf32>, vector<1x32xf32> -> vector<1x32xf32>
    %428 = vector.extract_strided_slice %52 {offsets = [6, 0], sizes = [1, 32], strides = [1, 1]} : vector<8x32xf32> to vector<1x32xf32>
    %429 = arith.addf %427, %428 : vector<1x32xf32>
    %cst_177 = arith.constant dense<0.000000e+00> : vector<1x96xf32>
    %430 = tpu.matmul %429, %41, %cst_177 {dimension_numbers = #tpu.dot_dimension_numbers<[1], [0], [0], [1], [0, 0, 1, 1], [], []>} : vector<1x32xf32>, vector<32x96xf32>, vector<1x96xf32> -> vector<1x96xf32>
    %431 = arith.addf %430, %45 : vector<1x96xf32>
    %432 = vector.extract_strided_slice %55 {offsets = [6, 0], sizes = [1, 96], strides = [1, 1]} : vector<8x96xf32> to vector<1x96xf32>
    %433 = vector.extract_strided_slice %432 {offsets = [0, 0], sizes = [1, 32], strides = [1, 1]} : vector<1x96xf32> to vector<1x32xf32>
    %434 = vector.extract_strided_slice %431 {offsets = [0, 0], sizes = [1, 32], strides = [1, 1]} : vector<1x96xf32> to vector<1x32xf32>
    %435 = arith.addf %433, %434 : vector<1x32xf32>
    %436 = arith.negf %435 : vector<1x32xf32>
    %437 = math.exp %436 : vector<1x32xf32>
    %cst_178 = arith.constant 1.000000e+00 : f32
    %438 = vector.broadcast %cst_178 : f32 to vector<1x32xf32>
    %439 = arith.addf %438, %437 : vector<1x32xf32>
    %440 = arith.divf %438, %439 : vector<1x32xf32>
    %441 = vector.extract_strided_slice %432 {offsets = [0, 32], sizes = [1, 32], strides = [1, 1]} : vector<1x96xf32> to vector<1x32xf32>
    %442 = vector.extract_strided_slice %431 {offsets = [0, 32], sizes = [1, 32], strides = [1, 1]} : vector<1x96xf32> to vector<1x32xf32>
    %443 = arith.addf %441, %442 : vector<1x32xf32>
    %444 = arith.negf %443 : vector<1x32xf32>
    %445 = math.exp %444 : vector<1x32xf32>
    %cst_179 = arith.constant 1.000000e+00 : f32
    %446 = vector.broadcast %cst_179 : f32 to vector<1x32xf32>
    %447 = arith.addf %446, %445 : vector<1x32xf32>
    %448 = arith.divf %446, %447 : vector<1x32xf32>
    %449 = vector.extract_strided_slice %432 {offsets = [0, 64], sizes = [1, 32], strides = [1, 1]} : vector<1x96xf32> to vector<1x32xf32>
    %450 = vector.extract_strided_slice %431 {offsets = [0, 64], sizes = [1, 32], strides = [1, 1]} : vector<1x96xf32> to vector<1x32xf32>
    %451 = arith.mulf %440, %450 : vector<1x32xf32>
    %452 = arith.addf %449, %451 : vector<1x32xf32>
    %453 = math.tanh %452 : vector<1x32xf32>
    %cst_180 = arith.constant 1.000000e+00 : f32
    %454 = vector.broadcast %cst_180 : f32 to vector<1x32xf32>
    %455 = arith.subf %454, %448 : vector<1x32xf32>
    %456 = arith.mulf %455, %453 : vector<1x32xf32>
    %457 = arith.mulf %448, %429 : vector<1x32xf32>
    %458 = arith.addf %456, %457 : vector<1x32xf32>
    %c6 = arith.constant 6 : index
    %c0_181 = arith.constant 0 : index
    %459 = vector.load %arg28[%c6, %c0_181] : memref<8x32xf32, #tpu.memory_space<vmem>>, vector<1x32xf32>
    tpu.vector_store %arg28[%c6, %c0_181], %458 {strides = array<i32>} : memref<8x32xf32, #tpu.memory_space<vmem>>, vector<1x32xf32>,
    %cst_182 = arith.constant dense<0.000000e+00> : vector<1x32xf32>
    %460 = tpu.matmul %458, %29, %cst_182 {dimension_numbers = #tpu.dot_dimension_numbers<[1], [0], [0], [1], [0, 0, 1, 1], [], []>} : vector<1x32xf32>, vector<32x32xf32>, vector<1x32xf32> -> vector<1x32xf32>
    %461 = arith.addf %460, %31 : vector<1x32xf32>
    %c6_183 = arith.constant 6 : index
    %c0_184 = arith.constant 0 : index
    %462 = vector.load %arg29[%c6_183, %c0_184] : memref<8x32xf32, #tpu.memory_space<vmem>>, vector<1x32xf32>
    tpu.vector_store %arg29[%c6_183, %c0_184], %461 {strides = array<i32>} : memref<8x32xf32, #tpu.memory_space<vmem>>, vector<1x32xf32>,
    %c0_185 = arith.constant 0 : index
    %c0_186 = arith.constant 0 : index
    %463 = vector.load %arg28[%c0_185, %c0_186] : memref<8x32xf32, #tpu.memory_space<vmem>>, vector<7x32xf32>
    %c0_187 = arith.constant 0 : index
    %c0_188 = arith.constant 0 : index
    %464 = vector.load %arg29[%c0_187, %c0_188] : memref<8x32xf32, #tpu.memory_space<vmem>>, vector<7x32xf32>
    %465 = vector.extract_strided_slice %49 {offsets = [7, 0], sizes = [1, 32], strides = [1, 1]} : vector<8x32xf32> to vector<1x32xf32>
    %466 = vector.broadcast %465 : vector<1x32xf32> to vector<7x32xf32>
    %467 = arith.mulf %464, %466 : vector<7x32xf32>
    %cst_189 = arith.constant dense<0.000000e+00> : vector<7xf32>
    %468 = vector.multi_reduction <add>, %467, %cst_189 [1] : vector<7x32xf32> to vector<7xf32>
    %469 = vector.shape_cast %468 : vector<7xf32> to vector<7x1xf32>
    %470 = vector.extract_strided_slice %3 {offsets = [0, 7], sizes = [7, 1], strides = [1, 1]} : vector<8x8xf32> to vector<7x1xf32>
    %cst_190 = arith.constant 1.000000e+00 : f32
    %471 = vector.broadcast %cst_190 : f32 to vector<7x1xf32>
    %472 = arith.subf %471, %470 : vector<7x1xf32>
    %cst_191 = arith.constant 1.000000e+30 : f32
    %473 = vector.broadcast %cst_191 : f32 to vector<7x1xf32>
    %474 = arith.mulf %472, %473 : vector<7x1xf32>
    %475 = arith.subf %469, %474 : vector<7x1xf32>
    %cst_192 = arith.constant dense<0xFF800000> : vector<1xf32>
    %476 = vector.multi_reduction <maximumf>, %475, %cst_192 [0] : vector<7x1xf32> to vector<1xf32>
    %477 = vector.shape_cast %476 : vector<1xf32> to vector<1x1xf32>
    %478 = vector.broadcast %477 : vector<1x1xf32> to vector<7x1xf32>
    %479 = arith.subf %475, %478 : vector<7x1xf32>
    %480 = math.exp %479 : vector<7x1xf32>
    %cst_193 = arith.constant dense<0.000000e+00> : vector<1xf32>
    %481 = vector.multi_reduction <add>, %480, %cst_193 [0] : vector<7x1xf32> to vector<1xf32>
    %482 = vector.shape_cast %481 : vector<1xf32> to vector<1x1xf32>
    %483 = tpu.reciprocal %482 {approx = true} : vector<1x1xf32> -> vector<1x1xf32>
    %484 = vector.broadcast %483 : vector<1x1xf32> to vector<7x1xf32>
    %485 = arith.mulf %480, %484 : vector<7x1xf32>
    %486 = vector.broadcast %485 : vector<7x1xf32> to vector<7x32xf32>
    %487 = arith.mulf %486, %463 : vector<7x32xf32>
    %cst_194 = arith.constant dense<0.000000e+00> : vector<32xf32>
    %488 = vector.multi_reduction <add>, %487, %cst_194 [0] : vector<7x32xf32> to vector<32xf32>
    %489 = vector.shape_cast %488 : vector<32xf32> to vector<1x32xf32>
    %cst_195 = arith.constant dense<0.000000e+00> : vector<1x32xf32>
    %490 = tpu.matmul %489, %33, %cst_195 {dimension_numbers = #tpu.dot_dimension_numbers<[1], [0], [0], [1], [0, 0, 1, 1], [], []>} : vector<1x32xf32>, vector<32x32xf32>, vector<1x32xf32> -> vector<1x32xf32>
    %491 = vector.extract_strided_slice %52 {offsets = [7, 0], sizes = [1, 32], strides = [1, 1]} : vector<8x32xf32> to vector<1x32xf32>
    %492 = arith.addf %490, %491 : vector<1x32xf32>
    %cst_196 = arith.constant dense<0.000000e+00> : vector<1x96xf32>
    %493 = tpu.matmul %492, %41, %cst_196 {dimension_numbers = #tpu.dot_dimension_numbers<[1], [0], [0], [1], [0, 0, 1, 1], [], []>} : vector<1x32xf32>, vector<32x96xf32>, vector<1x96xf32> -> vector<1x96xf32>
    %494 = arith.addf %493, %45 : vector<1x96xf32>
    %495 = vector.extract_strided_slice %55 {offsets = [7, 0], sizes = [1, 96], strides = [1, 1]} : vector<8x96xf32> to vector<1x96xf32>
    %496 = vector.extract_strided_slice %495 {offsets = [0, 0], sizes = [1, 32], strides = [1, 1]} : vector<1x96xf32> to vector<1x32xf32>
    %497 = vector.extract_strided_slice %494 {offsets = [0, 0], sizes = [1, 32], strides = [1, 1]} : vector<1x96xf32> to vector<1x32xf32>
    %498 = arith.addf %496, %497 : vector<1x32xf32>
    %499 = arith.negf %498 : vector<1x32xf32>
    %500 = math.exp %499 : vector<1x32xf32>
    %cst_197 = arith.constant 1.000000e+00 : f32
    %501 = vector.broadcast %cst_197 : f32 to vector<1x32xf32>
    %502 = arith.addf %501, %500 : vector<1x32xf32>
    %503 = arith.divf %501, %502 : vector<1x32xf32>
    %504 = vector.extract_strided_slice %495 {offsets = [0, 32], sizes = [1, 32], strides = [1, 1]} : vector<1x96xf32> to vector<1x32xf32>
    %505 = vector.extract_strided_slice %494 {offsets = [0, 32], sizes = [1, 32], strides = [1, 1]} : vector<1x96xf32> to vector<1x32xf32>
    %506 = arith.addf %504, %505 : vector<1x32xf32>
    %507 = arith.negf %506 : vector<1x32xf32>
    %508 = math.exp %507 : vector<1x32xf32>
    %cst_198 = arith.constant 1.000000e+00 : f32
    %509 = vector.broadcast %cst_198 : f32 to vector<1x32xf32>
    %510 = arith.addf %509, %508 : vector<1x32xf32>
    %511 = arith.divf %509, %510 : vector<1x32xf32>
    %512 = vector.extract_strided_slice %495 {offsets = [0, 64], sizes = [1, 32], strides = [1, 1]} : vector<1x96xf32> to vector<1x32xf32>
    %513 = vector.extract_strided_slice %494 {offsets = [0, 64], sizes = [1, 32], strides = [1, 1]} : vector<1x96xf32> to vector<1x32xf32>
    %514 = arith.mulf %503, %513 : vector<1x32xf32>
    %515 = arith.addf %512, %514 : vector<1x32xf32>
    %516 = math.tanh %515 : vector<1x32xf32>
    %cst_199 = arith.constant 1.000000e+00 : f32
    %517 = vector.broadcast %cst_199 : f32 to vector<1x32xf32>
    %518 = arith.subf %517, %511 : vector<1x32xf32>
    %519 = arith.mulf %518, %516 : vector<1x32xf32>
    %520 = arith.mulf %511, %492 : vector<1x32xf32>
    %521 = arith.addf %519, %520 : vector<1x32xf32>
    %c7 = arith.constant 7 : index
    %c0_200 = arith.constant 0 : index
    %522 = vector.load %arg28[%c7, %c0_200] : memref<8x32xf32, #tpu.memory_space<vmem>>, vector<1x32xf32>
    tpu.vector_store %arg28[%c7, %c0_200], %521 {strides = array<i32>} : memref<8x32xf32, #tpu.memory_space<vmem>>, vector<1x32xf32>,
    %cst_201 = arith.constant dense<0.000000e+00> : vector<1x32xf32>
    %523 = tpu.matmul %521, %29, %cst_201 {dimension_numbers = #tpu.dot_dimension_numbers<[1], [0], [0], [1], [0, 0, 1, 1], [], []>} : vector<1x32xf32>, vector<32x32xf32>, vector<1x32xf32> -> vector<1x32xf32>
    %524 = arith.addf %523, %31 : vector<1x32xf32>
    %c7_202 = arith.constant 7 : index
    %c0_203 = arith.constant 0 : index
    %525 = vector.load %arg29[%c7_202, %c0_203] : memref<8x32xf32, #tpu.memory_space<vmem>>, vector<1x32xf32>
    tpu.vector_store %arg29[%c7_202, %c0_203], %524 {strides = array<i32>} : memref<8x32xf32, #tpu.memory_space<vmem>>, vector<1x32xf32>,
    %c0_204 = arith.constant 0 : index
    %c0_205 = arith.constant 0 : index
    %526 = vector.load %arg28[%c0_204, %c0_205] : memref<8x32xf32, #tpu.memory_space<vmem>>, vector<8x32xf32>
    %cst_206 = arith.constant dense<0.000000e+00> : vector<4x32xf32>
    %527 = tpu.matmul %7, %526, %cst_206 {dimension_numbers = #tpu.dot_dimension_numbers<[1], [0], [0], [1], [0, 0, 1, 1], [], []>} : vector<4x8xf32>, vector<8x32xf32>, vector<4x32xf32> -> vector<4x32xf32>
    %cst_207 = arith.constant dense<0.000000e+00> : vector<4x96xf32>
    %528 = tpu.matmul %23, %39, %cst_207 {dimension_numbers = #tpu.dot_dimension_numbers<[1], [0], [0], [1], [0, 0, 1, 1], [], []>} : vector<4x32xf32>, vector<32x96xf32>, vector<4x96xf32> -> vector<4x96xf32>
    %529 = vector.broadcast %43 : vector<1x96xf32> to vector<4x96xf32>
    %530 = arith.addf %528, %529 : vector<4x96xf32>
    %cst_208 = arith.constant dense<0.000000e+00> : vector<4x96xf32>
    %531 = tpu.matmul %527, %41, %cst_208 {dimension_numbers = #tpu.dot_dimension_numbers<[1], [0], [0], [1], [0, 0, 1, 1], [], []>} : vector<4x32xf32>, vector<32x96xf32>, vector<4x96xf32> -> vector<4x96xf32>
    %532 = vector.broadcast %45 : vector<1x96xf32> to vector<4x96xf32>
    %533 = arith.addf %531, %532 : vector<4x96xf32>
    %534 = vector.extract_strided_slice %530 {offsets = [0, 0], sizes = [4, 32], strides = [1, 1]} : vector<4x96xf32> to vector<4x32xf32>
    %535 = vector.extract_strided_slice %533 {offsets = [0, 0], sizes = [4, 32], strides = [1, 1]} : vector<4x96xf32> to vector<4x32xf32>
    %536 = arith.addf %534, %535 : vector<4x32xf32>
    %537 = arith.negf %536 : vector<4x32xf32>
    %538 = math.exp %537 : vector<4x32xf32>
    %cst_209 = arith.constant 1.000000e+00 : f32
    %539 = vector.broadcast %cst_209 : f32 to vector<4x32xf32>
    %540 = arith.addf %539, %538 : vector<4x32xf32>
    %541 = arith.divf %539, %540 : vector<4x32xf32>
    %542 = vector.extract_strided_slice %530 {offsets = [0, 32], sizes = [4, 32], strides = [1, 1]} : vector<4x96xf32> to vector<4x32xf32>
    %543 = vector.extract_strided_slice %533 {offsets = [0, 32], sizes = [4, 32], strides = [1, 1]} : vector<4x96xf32> to vector<4x32xf32>
    %544 = arith.addf %542, %543 : vector<4x32xf32>
    %545 = arith.negf %544 : vector<4x32xf32>
    %546 = math.exp %545 : vector<4x32xf32>
    %cst_210 = arith.constant 1.000000e+00 : f32
    %547 = vector.broadcast %cst_210 : f32 to vector<4x32xf32>
    %548 = arith.addf %547, %546 : vector<4x32xf32>
    %549 = arith.divf %547, %548 : vector<4x32xf32>
    %550 = vector.extract_strided_slice %530 {offsets = [0, 64], sizes = [4, 32], strides = [1, 1]} : vector<4x96xf32> to vector<4x32xf32>
    %551 = vector.extract_strided_slice %533 {offsets = [0, 64], sizes = [4, 32], strides = [1, 1]} : vector<4x96xf32> to vector<4x32xf32>
    %552 = arith.mulf %541, %551 : vector<4x32xf32>
    %553 = arith.addf %550, %552 : vector<4x32xf32>
    %554 = math.tanh %553 : vector<4x32xf32>
    %cst_211 = arith.constant 1.000000e+00 : f32
    %555 = vector.broadcast %cst_211 : f32 to vector<4x32xf32>
    %556 = arith.subf %555, %549 : vector<4x32xf32>
    %557 = arith.mulf %556, %554 : vector<4x32xf32>
    %558 = arith.mulf %549, %527 : vector<4x32xf32>
    %559 = arith.addf %557, %558 : vector<4x32xf32>
    %c1_212 = arith.constant 1 : index
    %c0_213 = arith.constant 0 : index
    %c0_214 = arith.constant 0 : index
    %560 = vector.load %arg10[%c1_212, %c0_213, %c0_214] : memref<2x32x32xf32, #tpu.memory_space<vmem>>, vector<1x32x32xf32>
    %561 = vector.shape_cast %560 : vector<1x32x32xf32> to vector<32x32xf32>
    %c1_215 = arith.constant 1 : index
    %c0_216 = arith.constant 0 : index
    %c0_217 = arith.constant 0 : index
    %562 = vector.load %arg11[%c1_215, %c0_216, %c0_217] : memref<2x1x32xf32, #tpu.memory_space<vmem>>, vector<1x1x32xf32>
    %563 = vector.shape_cast %562 : vector<1x1x32xf32> to vector<1x32xf32>
    %c1_218 = arith.constant 1 : index
    %c0_219 = arith.constant 0 : index
    %c0_220 = arith.constant 0 : index
    %564 = vector.load %arg12[%c1_218, %c0_219, %c0_220] : memref<2x32x32xf32, #tpu.memory_space<vmem>>, vector<1x32x32xf32>
    %565 = vector.shape_cast %564 : vector<1x32x32xf32> to vector<32x32xf32>
    %c1_221 = arith.constant 1 : index
    %c0_222 = arith.constant 0 : index
    %c0_223 = arith.constant 0 : index
    %566 = vector.load %arg13[%c1_221, %c0_222, %c0_223] : memref<2x1x32xf32, #tpu.memory_space<vmem>>, vector<1x1x32xf32>
    %567 = vector.shape_cast %566 : vector<1x1x32xf32> to vector<1x32xf32>
    %c1_224 = arith.constant 1 : index
    %c0_225 = arith.constant 0 : index
    %c0_226 = arith.constant 0 : index
    %568 = vector.load %arg14[%c1_224, %c0_225, %c0_226] : memref<2x32x32xf32, #tpu.memory_space<vmem>>, vector<1x32x32xf32>
    %569 = vector.shape_cast %568 : vector<1x32x32xf32> to vector<32x32xf32>
    %c1_227 = arith.constant 1 : index
    %c0_228 = arith.constant 0 : index
    %c0_229 = arith.constant 0 : index
    %570 = vector.load %arg15[%c1_227, %c0_228, %c0_229] : memref<2x32x32xf32, #tpu.memory_space<vmem>>, vector<1x32x32xf32>
    %571 = vector.shape_cast %570 : vector<1x32x32xf32> to vector<32x32xf32>
    %c1_230 = arith.constant 1 : index
    %c0_231 = arith.constant 0 : index
    %c0_232 = arith.constant 0 : index
    %572 = vector.load %arg16[%c1_230, %c0_231, %c0_232] : memref<2x1x32xf32, #tpu.memory_space<vmem>>, vector<1x1x32xf32>
    %573 = vector.shape_cast %572 : vector<1x1x32xf32> to vector<1x32xf32>
    %c1_233 = arith.constant 1 : index
    %c0_234 = arith.constant 0 : index
    %c0_235 = arith.constant 0 : index
    %574 = vector.load %arg17[%c1_233, %c0_234, %c0_235] : memref<2x32x96xf32, #tpu.memory_space<vmem>>, vector<1x32x96xf32>
    %575 = vector.shape_cast %574 : vector<1x32x96xf32> to vector<32x96xf32>
    %c1_236 = arith.constant 1 : index
    %c0_237 = arith.constant 0 : index
    %c0_238 = arith.constant 0 : index
    %576 = vector.load %arg18[%c1_236, %c0_237, %c0_238] : memref<2x32x96xf32, #tpu.memory_space<vmem>>, vector<1x32x96xf32>
    %577 = vector.shape_cast %576 : vector<1x32x96xf32> to vector<32x96xf32>
    %c1_239 = arith.constant 1 : index
    %c0_240 = arith.constant 0 : index
    %c0_241 = arith.constant 0 : index
    %578 = vector.load %arg19[%c1_239, %c0_240, %c0_241] : memref<2x1x96xf32, #tpu.memory_space<vmem>>, vector<1x1x96xf32>
    %579 = vector.shape_cast %578 : vector<1x1x96xf32> to vector<1x96xf32>
    %c1_242 = arith.constant 1 : index
    %c0_243 = arith.constant 0 : index
    %c0_244 = arith.constant 0 : index
    %580 = vector.load %arg20[%c1_242, %c0_243, %c0_244] : memref<2x1x96xf32, #tpu.memory_space<vmem>>, vector<1x1x96xf32>
    %581 = vector.shape_cast %580 : vector<1x1x96xf32> to vector<1x96xf32>
    %cst_245 = arith.constant dense<0.000000e+00> : vector<8x32xf32>
    %582 = tpu.matmul %9, %559, %cst_245 {dimension_numbers = #tpu.dot_dimension_numbers<[1], [0], [0], [1], [0, 0, 1, 1], [], []>} : vector<8x4xf32>, vector<4x32xf32>, vector<8x32xf32> -> vector<8x32xf32>
    %cst_246 = arith.constant dense<0.000000e+00> : vector<8x32xf32>
    %583 = tpu.matmul %526, %561, %cst_246 {dimension_numbers = #tpu.dot_dimension_numbers<[1], [0], [0], [1], [0, 0, 1, 1], [], []>} : vector<8x32xf32>, vector<32x32xf32>, vector<8x32xf32> -> vector<8x32xf32>
    %584 = vector.broadcast %563 : vector<1x32xf32> to vector<8x32xf32>
    %585 = arith.addf %583, %584 : vector<8x32xf32>
    %cst_247 = arith.constant dense<0.000000e+00> : vector<8x32xf32>
    %586 = tpu.matmul %582, %571, %cst_247 {dimension_numbers = #tpu.dot_dimension_numbers<[1], [0], [0], [1], [0, 0, 1, 1], [], []>} : vector<8x32xf32>, vector<32x32xf32>, vector<8x32xf32> -> vector<8x32xf32>
    %587 = vector.broadcast %573 : vector<1x32xf32> to vector<8x32xf32>
    %588 = arith.addf %586, %587 : vector<8x32xf32>
    %cst_248 = arith.constant dense<0.000000e+00> : vector<8x96xf32>
    %589 = tpu.matmul %526, %575, %cst_248 {dimension_numbers = #tpu.dot_dimension_numbers<[1], [0], [0], [1], [0, 0, 1, 1], [], []>} : vector<8x32xf32>, vector<32x96xf32>, vector<8x96xf32> -> vector<8x96xf32>
    %590 = vector.broadcast %579 : vector<1x96xf32> to vector<8x96xf32>
    %591 = arith.addf %589, %590 : vector<8x96xf32>
    %592 = vector.extract_strided_slice %591 {offsets = [0, 0], sizes = [1, 96], strides = [1, 1]} : vector<8x96xf32> to vector<1x96xf32>
    %cst_249 = arith.constant 0.000000e+00 : f32
    %593 = vector.broadcast %cst_249 : f32 to vector<1x32xf32>
    %594 = vector.extract_strided_slice %592 {offsets = [0, 0], sizes = [1, 32], strides = [1, 1]} : vector<1x96xf32> to vector<1x32xf32>
    %595 = vector.extract_strided_slice %581 {offsets = [0, 0], sizes = [1, 32], strides = [1, 1]} : vector<1x96xf32> to vector<1x32xf32>
    %596 = arith.addf %594, %595 : vector<1x32xf32>
    %597 = arith.negf %596 : vector<1x32xf32>
    %598 = math.exp %597 : vector<1x32xf32>
    %cst_250 = arith.constant 1.000000e+00 : f32
    %599 = vector.broadcast %cst_250 : f32 to vector<1x32xf32>
    %600 = arith.addf %599, %598 : vector<1x32xf32>
    %601 = arith.divf %599, %600 : vector<1x32xf32>
    %602 = vector.extract_strided_slice %592 {offsets = [0, 32], sizes = [1, 32], strides = [1, 1]} : vector<1x96xf32> to vector<1x32xf32>
    %603 = vector.extract_strided_slice %581 {offsets = [0, 32], sizes = [1, 32], strides = [1, 1]} : vector<1x96xf32> to vector<1x32xf32>
    %604 = arith.addf %602, %603 : vector<1x32xf32>
    %605 = arith.negf %604 : vector<1x32xf32>
    %606 = math.exp %605 : vector<1x32xf32>
    %cst_251 = arith.constant 1.000000e+00 : f32
    %607 = vector.broadcast %cst_251 : f32 to vector<1x32xf32>
    %608 = arith.addf %607, %606 : vector<1x32xf32>
    %609 = arith.divf %607, %608 : vector<1x32xf32>
    %610 = vector.extract_strided_slice %592 {offsets = [0, 64], sizes = [1, 32], strides = [1, 1]} : vector<1x96xf32> to vector<1x32xf32>
    %611 = vector.extract_strided_slice %581 {offsets = [0, 64], sizes = [1, 32], strides = [1, 1]} : vector<1x96xf32> to vector<1x32xf32>
    %612 = arith.mulf %601, %611 : vector<1x32xf32>
    %613 = arith.addf %610, %612 : vector<1x32xf32>
    %614 = math.tanh %613 : vector<1x32xf32>
    %cst_252 = arith.constant 1.000000e+00 : f32
    %615 = vector.broadcast %cst_252 : f32 to vector<1x32xf32>
    %616 = arith.subf %615, %609 : vector<1x32xf32>
    %617 = arith.mulf %616, %614 : vector<1x32xf32>
    %618 = arith.mulf %609, %593 : vector<1x32xf32>
    %619 = arith.addf %617, %618 : vector<1x32xf32>
    %c0_253 = arith.constant 0 : index
    %c0_254 = arith.constant 0 : index
    %620 = vector.load %arg28[%c0_253, %c0_254] : memref<8x32xf32, #tpu.memory_space<vmem>>, vector<1x32xf32>
    tpu.vector_store %arg28[%c0_253, %c0_254], %619 {strides = array<i32>} : memref<8x32xf32, #tpu.memory_space<vmem>>, vector<1x32xf32>,
    %cst_255 = arith.constant dense<0.000000e+00> : vector<1x32xf32>
    %621 = tpu.matmul %619, %565, %cst_255 {dimension_numbers = #tpu.dot_dimension_numbers<[1], [0], [0], [1], [0, 0, 1, 1], [], []>} : vector<1x32xf32>, vector<32x32xf32>, vector<1x32xf32> -> vector<1x32xf32>
    %622 = arith.addf %621, %567 : vector<1x32xf32>
    %c0_256 = arith.constant 0 : index
    %c0_257 = arith.constant 0 : index
    %623 = vector.load %arg29[%c0_256, %c0_257] : memref<8x32xf32, #tpu.memory_space<vmem>>, vector<1x32xf32>
    tpu.vector_store %arg29[%c0_256, %c0_257], %622 {strides = array<i32>} : memref<8x32xf32, #tpu.memory_space<vmem>>, vector<1x32xf32>,
    %c0_258 = arith.constant 0 : index
    %c0_259 = arith.constant 0 : index
    %624 = vector.load %arg28[%c0_258, %c0_259] : memref<8x32xf32, #tpu.memory_space<vmem>>, vector<1x32xf32>
    %c0_260 = arith.constant 0 : index
    %c0_261 = arith.constant 0 : index
    %625 = vector.load %arg29[%c0_260, %c0_261] : memref<8x32xf32, #tpu.memory_space<vmem>>, vector<1x32xf32>
    %626 = vector.extract_strided_slice %585 {offsets = [1, 0], sizes = [1, 32], strides = [1, 1]} : vector<8x32xf32> to vector<1x32xf32>
    %627 = arith.mulf %625, %626 : vector<1x32xf32>
    %cst_262 = arith.constant dense<0.000000e+00> : vector<1xf32>
    %628 = vector.multi_reduction <add>, %627, %cst_262 [1] : vector<1x32xf32> to vector<1xf32>
    %629 = vector.shape_cast %628 : vector<1xf32> to vector<1x1xf32>
    %630 = vector.extract_strided_slice %3 {offsets = [0, 1], sizes = [1, 1], strides = [1, 1]} : vector<8x8xf32> to vector<1x1xf32>
    %cst_263 = arith.constant 1.000000e+00 : f32
    %631 = vector.broadcast %cst_263 : f32 to vector<1x1xf32>
    %632 = arith.subf %631, %630 : vector<1x1xf32>
    %cst_264 = arith.constant 1.000000e+30 : f32
    %633 = vector.broadcast %cst_264 : f32 to vector<1x1xf32>
    %634 = arith.mulf %632, %633 : vector<1x1xf32>
    %635 = arith.subf %629, %634 : vector<1x1xf32>
    %cst_265 = arith.constant dense<0xFF800000> : vector<1xf32>
    %636 = vector.multi_reduction <maximumf>, %635, %cst_265 [0] : vector<1x1xf32> to vector<1xf32>
    %637 = vector.shape_cast %636 : vector<1xf32> to vector<1x1xf32>
    %638 = arith.subf %635, %637 : vector<1x1xf32>
    %639 = math.exp %638 : vector<1x1xf32>
    %cst_266 = arith.constant dense<0.000000e+00> : vector<1xf32>
    %640 = vector.multi_reduction <add>, %639, %cst_266 [0] : vector<1x1xf32> to vector<1xf32>
    %641 = vector.shape_cast %640 : vector<1xf32> to vector<1x1xf32>
    %642 = tpu.reciprocal %641 {approx = true} : vector<1x1xf32> -> vector<1x1xf32>
    %643 = arith.mulf %639, %642 : vector<1x1xf32>
    %644 = vector.broadcast %643 : vector<1x1xf32> to vector<1x32xf32>
    %645 = arith.mulf %644, %624 : vector<1x32xf32>
    %cst_267 = arith.constant dense<0.000000e+00> : vector<32xf32>
    %646 = vector.multi_reduction <add>, %645, %cst_267 [0] : vector<1x32xf32> to vector<32xf32>
    %647 = vector.shape_cast %646 : vector<32xf32> to vector<1x32xf32>
    %cst_268 = arith.constant dense<0.000000e+00> : vector<1x32xf32>
    %648 = tpu.matmul %647, %569, %cst_268 {dimension_numbers = #tpu.dot_dimension_numbers<[1], [0], [0], [1], [0, 0, 1, 1], [], []>} : vector<1x32xf32>, vector<32x32xf32>, vector<1x32xf32> -> vector<1x32xf32>
    %649 = vector.extract_strided_slice %588 {offsets = [1, 0], sizes = [1, 32], strides = [1, 1]} : vector<8x32xf32> to vector<1x32xf32>
    %650 = arith.addf %648, %649 : vector<1x32xf32>
    %cst_269 = arith.constant dense<0.000000e+00> : vector<1x96xf32>
    %651 = tpu.matmul %650, %577, %cst_269 {dimension_numbers = #tpu.dot_dimension_numbers<[1], [0], [0], [1], [0, 0, 1, 1], [], []>} : vector<1x32xf32>, vector<32x96xf32>, vector<1x96xf32> -> vector<1x96xf32>
    %652 = arith.addf %651, %581 : vector<1x96xf32>
    %653 = vector.extract_strided_slice %591 {offsets = [1, 0], sizes = [1, 96], strides = [1, 1]} : vector<8x96xf32> to vector<1x96xf32>
    %654 = vector.extract_strided_slice %653 {offsets = [0, 0], sizes = [1, 32], strides = [1, 1]} : vector<1x96xf32> to vector<1x32xf32>
    %655 = vector.extract_strided_slice %652 {offsets = [0, 0], sizes = [1, 32], strides = [1, 1]} : vector<1x96xf32> to vector<1x32xf32>
    %656 = arith.addf %654, %655 : vector<1x32xf32>
    %657 = arith.negf %656 : vector<1x32xf32>
    %658 = math.exp %657 : vector<1x32xf32>
    %cst_270 = arith.constant 1.000000e+00 : f32
    %659 = vector.broadcast %cst_270 : f32 to vector<1x32xf32>
    %660 = arith.addf %659, %658 : vector<1x32xf32>
    %661 = arith.divf %659, %660 : vector<1x32xf32>
    %662 = vector.extract_strided_slice %653 {offsets = [0, 32], sizes = [1, 32], strides = [1, 1]} : vector<1x96xf32> to vector<1x32xf32>
    %663 = vector.extract_strided_slice %652 {offsets = [0, 32], sizes = [1, 32], strides = [1, 1]} : vector<1x96xf32> to vector<1x32xf32>
    %664 = arith.addf %662, %663 : vector<1x32xf32>
    %665 = arith.negf %664 : vector<1x32xf32>
    %666 = math.exp %665 : vector<1x32xf32>
    %cst_271 = arith.constant 1.000000e+00 : f32
    %667 = vector.broadcast %cst_271 : f32 to vector<1x32xf32>
    %668 = arith.addf %667, %666 : vector<1x32xf32>
    %669 = arith.divf %667, %668 : vector<1x32xf32>
    %670 = vector.extract_strided_slice %653 {offsets = [0, 64], sizes = [1, 32], strides = [1, 1]} : vector<1x96xf32> to vector<1x32xf32>
    %671 = vector.extract_strided_slice %652 {offsets = [0, 64], sizes = [1, 32], strides = [1, 1]} : vector<1x96xf32> to vector<1x32xf32>
    %672 = arith.mulf %661, %671 : vector<1x32xf32>
    %673 = arith.addf %670, %672 : vector<1x32xf32>
    %674 = math.tanh %673 : vector<1x32xf32>
    %cst_272 = arith.constant 1.000000e+00 : f32
    %675 = vector.broadcast %cst_272 : f32 to vector<1x32xf32>
    %676 = arith.subf %675, %669 : vector<1x32xf32>
    %677 = arith.mulf %676, %674 : vector<1x32xf32>
    %678 = arith.mulf %669, %650 : vector<1x32xf32>
    %679 = arith.addf %677, %678 : vector<1x32xf32>
    %c1_273 = arith.constant 1 : index
    %c0_274 = arith.constant 0 : index
    %680 = vector.load %arg28[%c1_273, %c0_274] : memref<8x32xf32, #tpu.memory_space<vmem>>, vector<1x32xf32>
    tpu.vector_store %arg28[%c1_273, %c0_274], %679 {strides = array<i32>} : memref<8x32xf32, #tpu.memory_space<vmem>>, vector<1x32xf32>,
    %cst_275 = arith.constant dense<0.000000e+00> : vector<1x32xf32>
    %681 = tpu.matmul %679, %565, %cst_275 {dimension_numbers = #tpu.dot_dimension_numbers<[1], [0], [0], [1], [0, 0, 1, 1], [], []>} : vector<1x32xf32>, vector<32x32xf32>, vector<1x32xf32> -> vector<1x32xf32>
    %682 = arith.addf %681, %567 : vector<1x32xf32>
    %c1_276 = arith.constant 1 : index
    %c0_277 = arith.constant 0 : index
    %683 = vector.load %arg29[%c1_276, %c0_277] : memref<8x32xf32, #tpu.memory_space<vmem>>, vector<1x32xf32>
    tpu.vector_store %arg29[%c1_276, %c0_277], %682 {strides = array<i32>} : memref<8x32xf32, #tpu.memory_space<vmem>>, vector<1x32xf32>,
    %c0_278 = arith.constant 0 : index
    %c0_279 = arith.constant 0 : index
    %684 = vector.load %arg28[%c0_278, %c0_279] : memref<8x32xf32, #tpu.memory_space<vmem>>, vector<2x32xf32>
    %c0_280 = arith.constant 0 : index
    %c0_281 = arith.constant 0 : index
    %685 = vector.load %arg29[%c0_280, %c0_281] : memref<8x32xf32, #tpu.memory_space<vmem>>, vector<2x32xf32>
    %686 = vector.extract_strided_slice %585 {offsets = [2, 0], sizes = [1, 32], strides = [1, 1]} : vector<8x32xf32> to vector<1x32xf32>
    %687 = vector.broadcast %686 : vector<1x32xf32> to vector<2x32xf32>
    %688 = arith.mulf %685, %687 : vector<2x32xf32>
    %cst_282 = arith.constant dense<0.000000e+00> : vector<2xf32>
    %689 = vector.multi_reduction <add>, %688, %cst_282 [1] : vector<2x32xf32> to vector<2xf32>
    %690 = vector.shape_cast %689 : vector<2xf32> to vector<2x1xf32>
    %691 = vector.extract_strided_slice %3 {offsets = [0, 2], sizes = [2, 1], strides = [1, 1]} : vector<8x8xf32> to vector<2x1xf32>
    %cst_283 = arith.constant 1.000000e+00 : f32
    %692 = vector.broadcast %cst_283 : f32 to vector<2x1xf32>
    %693 = arith.subf %692, %691 : vector<2x1xf32>
    %cst_284 = arith.constant 1.000000e+30 : f32
    %694 = vector.broadcast %cst_284 : f32 to vector<2x1xf32>
    %695 = arith.mulf %693, %694 : vector<2x1xf32>
    %696 = arith.subf %690, %695 : vector<2x1xf32>
    %cst_285 = arith.constant dense<0xFF800000> : vector<1xf32>
    %697 = vector.multi_reduction <maximumf>, %696, %cst_285 [0] : vector<2x1xf32> to vector<1xf32>
    %698 = vector.shape_cast %697 : vector<1xf32> to vector<1x1xf32>
    %699 = vector.broadcast %698 : vector<1x1xf32> to vector<2x1xf32>
    %700 = arith.subf %696, %699 : vector<2x1xf32>
    %701 = math.exp %700 : vector<2x1xf32>
    %cst_286 = arith.constant dense<0.000000e+00> : vector<1xf32>
    %702 = vector.multi_reduction <add>, %701, %cst_286 [0] : vector<2x1xf32> to vector<1xf32>
    %703 = vector.shape_cast %702 : vector<1xf32> to vector<1x1xf32>
    %704 = tpu.reciprocal %703 {approx = true} : vector<1x1xf32> -> vector<1x1xf32>
    %705 = vector.broadcast %704 : vector<1x1xf32> to vector<2x1xf32>
    %706 = arith.mulf %701, %705 : vector<2x1xf32>
    %707 = vector.broadcast %706 : vector<2x1xf32> to vector<2x32xf32>
    %708 = arith.mulf %707, %684 : vector<2x32xf32>
    %cst_287 = arith.constant dense<0.000000e+00> : vector<32xf32>
    %709 = vector.multi_reduction <add>, %708, %cst_287 [0] : vector<2x32xf32> to vector<32xf32>
    %710 = vector.shape_cast %709 : vector<32xf32> to vector<1x32xf32>
    %cst_288 = arith.constant dense<0.000000e+00> : vector<1x32xf32>
    %711 = tpu.matmul %710, %569, %cst_288 {dimension_numbers = #tpu.dot_dimension_numbers<[1], [0], [0], [1], [0, 0, 1, 1], [], []>} : vector<1x32xf32>, vector<32x32xf32>, vector<1x32xf32> -> vector<1x32xf32>
    %712 = vector.extract_strided_slice %588 {offsets = [2, 0], sizes = [1, 32], strides = [1, 1]} : vector<8x32xf32> to vector<1x32xf32>
    %713 = arith.addf %711, %712 : vector<1x32xf32>
    %cst_289 = arith.constant dense<0.000000e+00> : vector<1x96xf32>
    %714 = tpu.matmul %713, %577, %cst_289 {dimension_numbers = #tpu.dot_dimension_numbers<[1], [0], [0], [1], [0, 0, 1, 1], [], []>} : vector<1x32xf32>, vector<32x96xf32>, vector<1x96xf32> -> vector<1x96xf32>
    %715 = arith.addf %714, %581 : vector<1x96xf32>
    %716 = vector.extract_strided_slice %591 {offsets = [2, 0], sizes = [1, 96], strides = [1, 1]} : vector<8x96xf32> to vector<1x96xf32>
    %717 = vector.extract_strided_slice %716 {offsets = [0, 0], sizes = [1, 32], strides = [1, 1]} : vector<1x96xf32> to vector<1x32xf32>
    %718 = vector.extract_strided_slice %715 {offsets = [0, 0], sizes = [1, 32], strides = [1, 1]} : vector<1x96xf32> to vector<1x32xf32>
    %719 = arith.addf %717, %718 : vector<1x32xf32>
    %720 = arith.negf %719 : vector<1x32xf32>
    %721 = math.exp %720 : vector<1x32xf32>
    %cst_290 = arith.constant 1.000000e+00 : f32
    %722 = vector.broadcast %cst_290 : f32 to vector<1x32xf32>
    %723 = arith.addf %722, %721 : vector<1x32xf32>
    %724 = arith.divf %722, %723 : vector<1x32xf32>
    %725 = vector.extract_strided_slice %716 {offsets = [0, 32], sizes = [1, 32], strides = [1, 1]} : vector<1x96xf32> to vector<1x32xf32>
    %726 = vector.extract_strided_slice %715 {offsets = [0, 32], sizes = [1, 32], strides = [1, 1]} : vector<1x96xf32> to vector<1x32xf32>
    %727 = arith.addf %725, %726 : vector<1x32xf32>
    %728 = arith.negf %727 : vector<1x32xf32>
    %729 = math.exp %728 : vector<1x32xf32>
    %cst_291 = arith.constant 1.000000e+00 : f32
    %730 = vector.broadcast %cst_291 : f32 to vector<1x32xf32>
    %731 = arith.addf %730, %729 : vector<1x32xf32>
    %732 = arith.divf %730, %731 : vector<1x32xf32>
    %733 = vector.extract_strided_slice %716 {offsets = [0, 64], sizes = [1, 32], strides = [1, 1]} : vector<1x96xf32> to vector<1x32xf32>
    %734 = vector.extract_strided_slice %715 {offsets = [0, 64], sizes = [1, 32], strides = [1, 1]} : vector<1x96xf32> to vector<1x32xf32>
    %735 = arith.mulf %724, %734 : vector<1x32xf32>
    %736 = arith.addf %733, %735 : vector<1x32xf32>
    %737 = math.tanh %736 : vector<1x32xf32>
    %cst_292 = arith.constant 1.000000e+00 : f32
    %738 = vector.broadcast %cst_292 : f32 to vector<1x32xf32>
    %739 = arith.subf %738, %732 : vector<1x32xf32>
    %740 = arith.mulf %739, %737 : vector<1x32xf32>
    %741 = arith.mulf %732, %713 : vector<1x32xf32>
    %742 = arith.addf %740, %741 : vector<1x32xf32>
    %c2_293 = arith.constant 2 : index
    %c0_294 = arith.constant 0 : index
    %743 = vector.load %arg28[%c2_293, %c0_294] : memref<8x32xf32, #tpu.memory_space<vmem>>, vector<1x32xf32>
    tpu.vector_store %arg28[%c2_293, %c0_294], %742 {strides = array<i32>} : memref<8x32xf32, #tpu.memory_space<vmem>>, vector<1x32xf32>,
    %cst_295 = arith.constant dense<0.000000e+00> : vector<1x32xf32>
    %744 = tpu.matmul %742, %565, %cst_295 {dimension_numbers = #tpu.dot_dimension_numbers<[1], [0], [0], [1], [0, 0, 1, 1], [], []>} : vector<1x32xf32>, vector<32x32xf32>, vector<1x32xf32> -> vector<1x32xf32>
    %745 = arith.addf %744, %567 : vector<1x32xf32>
    %c2_296 = arith.constant 2 : index
    %c0_297 = arith.constant 0 : index
    %746 = vector.load %arg29[%c2_296, %c0_297] : memref<8x32xf32, #tpu.memory_space<vmem>>, vector<1x32xf32>
    tpu.vector_store %arg29[%c2_296, %c0_297], %745 {strides = array<i32>} : memref<8x32xf32, #tpu.memory_space<vmem>>, vector<1x32xf32>,
    %c0_298 = arith.constant 0 : index
    %c0_299 = arith.constant 0 : index
    %747 = vector.load %arg28[%c0_298, %c0_299] : memref<8x32xf32, #tpu.memory_space<vmem>>, vector<3x32xf32>
    %c0_300 = arith.constant 0 : index
    %c0_301 = arith.constant 0 : index
    %748 = vector.load %arg29[%c0_300, %c0_301] : memref<8x32xf32, #tpu.memory_space<vmem>>, vector<3x32xf32>
    %749 = vector.extract_strided_slice %585 {offsets = [3, 0], sizes = [1, 32], strides = [1, 1]} : vector<8x32xf32> to vector<1x32xf32>
    %750 = vector.broadcast %749 : vector<1x32xf32> to vector<3x32xf32>
    %751 = arith.mulf %748, %750 : vector<3x32xf32>
    %cst_302 = arith.constant dense<0.000000e+00> : vector<3xf32>
    %752 = vector.multi_reduction <add>, %751, %cst_302 [1] : vector<3x32xf32> to vector<3xf32>
    %753 = vector.shape_cast %752 : vector<3xf32> to vector<3x1xf32>
    %754 = vector.extract_strided_slice %3 {offsets = [0, 3], sizes = [3, 1], strides = [1, 1]} : vector<8x8xf32> to vector<3x1xf32>
    %cst_303 = arith.constant 1.000000e+00 : f32
    %755 = vector.broadcast %cst_303 : f32 to vector<3x1xf32>
    %756 = arith.subf %755, %754 : vector<3x1xf32>
    %cst_304 = arith.constant 1.000000e+30 : f32
    %757 = vector.broadcast %cst_304 : f32 to vector<3x1xf32>
    %758 = arith.mulf %756, %757 : vector<3x1xf32>
    %759 = arith.subf %753, %758 : vector<3x1xf32>
    %cst_305 = arith.constant dense<0xFF800000> : vector<1xf32>
    %760 = vector.multi_reduction <maximumf>, %759, %cst_305 [0] : vector<3x1xf32> to vector<1xf32>
    %761 = vector.shape_cast %760 : vector<1xf32> to vector<1x1xf32>
    %762 = vector.broadcast %761 : vector<1x1xf32> to vector<3x1xf32>
    %763 = arith.subf %759, %762 : vector<3x1xf32>
    %764 = math.exp %763 : vector<3x1xf32>
    %cst_306 = arith.constant dense<0.000000e+00> : vector<1xf32>
    %765 = vector.multi_reduction <add>, %764, %cst_306 [0] : vector<3x1xf32> to vector<1xf32>
    %766 = vector.shape_cast %765 : vector<1xf32> to vector<1x1xf32>
    %767 = tpu.reciprocal %766 {approx = true} : vector<1x1xf32> -> vector<1x1xf32>
    %768 = vector.broadcast %767 : vector<1x1xf32> to vector<3x1xf32>
    %769 = arith.mulf %764, %768 : vector<3x1xf32>
    %770 = vector.broadcast %769 : vector<3x1xf32> to vector<3x32xf32>
    %771 = arith.mulf %770, %747 : vector<3x32xf32>
    %cst_307 = arith.constant dense<0.000000e+00> : vector<32xf32>
    %772 = vector.multi_reduction <add>, %771, %cst_307 [0] : vector<3x32xf32> to vector<32xf32>
    %773 = vector.shape_cast %772 : vector<32xf32> to vector<1x32xf32>
    %cst_308 = arith.constant dense<0.000000e+00> : vector<1x32xf32>
    %774 = tpu.matmul %773, %569, %cst_308 {dimension_numbers = #tpu.dot_dimension_numbers<[1], [0], [0], [1], [0, 0, 1, 1], [], []>} : vector<1x32xf32>, vector<32x32xf32>, vector<1x32xf32> -> vector<1x32xf32>
    %775 = vector.extract_strided_slice %588 {offsets = [3, 0], sizes = [1, 32], strides = [1, 1]} : vector<8x32xf32> to vector<1x32xf32>
    %776 = arith.addf %774, %775 : vector<1x32xf32>
    %cst_309 = arith.constant dense<0.000000e+00> : vector<1x96xf32>
    %777 = tpu.matmul %776, %577, %cst_309 {dimension_numbers = #tpu.dot_dimension_numbers<[1], [0], [0], [1], [0, 0, 1, 1], [], []>} : vector<1x32xf32>, vector<32x96xf32>, vector<1x96xf32> -> vector<1x96xf32>
    %778 = arith.addf %777, %581 : vector<1x96xf32>
    %779 = vector.extract_strided_slice %591 {offsets = [3, 0], sizes = [1, 96], strides = [1, 1]} : vector<8x96xf32> to vector<1x96xf32>
    %780 = vector.extract_strided_slice %779 {offsets = [0, 0], sizes = [1, 32], strides = [1, 1]} : vector<1x96xf32> to vector<1x32xf32>
    %781 = vector.extract_strided_slice %778 {offsets = [0, 0], sizes = [1, 32], strides = [1, 1]} : vector<1x96xf32> to vector<1x32xf32>
    %782 = arith.addf %780, %781 : vector<1x32xf32>
    %783 = arith.negf %782 : vector<1x32xf32>
    %784 = math.exp %783 : vector<1x32xf32>
    %cst_310 = arith.constant 1.000000e+00 : f32
    %785 = vector.broadcast %cst_310 : f32 to vector<1x32xf32>
    %786 = arith.addf %785, %784 : vector<1x32xf32>
    %787 = arith.divf %785, %786 : vector<1x32xf32>
    %788 = vector.extract_strided_slice %779 {offsets = [0, 32], sizes = [1, 32], strides = [1, 1]} : vector<1x96xf32> to vector<1x32xf32>
    %789 = vector.extract_strided_slice %778 {offsets = [0, 32], sizes = [1, 32], strides = [1, 1]} : vector<1x96xf32> to vector<1x32xf32>
    %790 = arith.addf %788, %789 : vector<1x32xf32>
    %791 = arith.negf %790 : vector<1x32xf32>
    %792 = math.exp %791 : vector<1x32xf32>
    %cst_311 = arith.constant 1.000000e+00 : f32
    %793 = vector.broadcast %cst_311 : f32 to vector<1x32xf32>
    %794 = arith.addf %793, %792 : vector<1x32xf32>
    %795 = arith.divf %793, %794 : vector<1x32xf32>
    %796 = vector.extract_strided_slice %779 {offsets = [0, 64], sizes = [1, 32], strides = [1, 1]} : vector<1x96xf32> to vector<1x32xf32>
    %797 = vector.extract_strided_slice %778 {offsets = [0, 64], sizes = [1, 32], strides = [1, 1]} : vector<1x96xf32> to vector<1x32xf32>
    %798 = arith.mulf %787, %797 : vector<1x32xf32>
    %799 = arith.addf %796, %798 : vector<1x32xf32>
    %800 = math.tanh %799 : vector<1x32xf32>
    %cst_312 = arith.constant 1.000000e+00 : f32
    %801 = vector.broadcast %cst_312 : f32 to vector<1x32xf32>
    %802 = arith.subf %801, %795 : vector<1x32xf32>
    %803 = arith.mulf %802, %800 : vector<1x32xf32>
    %804 = arith.mulf %795, %776 : vector<1x32xf32>
    %805 = arith.addf %803, %804 : vector<1x32xf32>
    %c3_313 = arith.constant 3 : index
    %c0_314 = arith.constant 0 : index
    %806 = vector.load %arg28[%c3_313, %c0_314] : memref<8x32xf32, #tpu.memory_space<vmem>>, vector<1x32xf32>
    tpu.vector_store %arg28[%c3_313, %c0_314], %805 {strides = array<i32>} : memref<8x32xf32, #tpu.memory_space<vmem>>, vector<1x32xf32>,
    %cst_315 = arith.constant dense<0.000000e+00> : vector<1x32xf32>
    %807 = tpu.matmul %805, %565, %cst_315 {dimension_numbers = #tpu.dot_dimension_numbers<[1], [0], [0], [1], [0, 0, 1, 1], [], []>} : vector<1x32xf32>, vector<32x32xf32>, vector<1x32xf32> -> vector<1x32xf32>
    %808 = arith.addf %807, %567 : vector<1x32xf32>
    %c3_316 = arith.constant 3 : index
    %c0_317 = arith.constant 0 : index
    %809 = vector.load %arg29[%c3_316, %c0_317] : memref<8x32xf32, #tpu.memory_space<vmem>>, vector<1x32xf32>
    tpu.vector_store %arg29[%c3_316, %c0_317], %808 {strides = array<i32>} : memref<8x32xf32, #tpu.memory_space<vmem>>, vector<1x32xf32>,
    %c0_318 = arith.constant 0 : index
    %c0_319 = arith.constant 0 : index
    %810 = vector.load %arg28[%c0_318, %c0_319] : memref<8x32xf32, #tpu.memory_space<vmem>>, vector<4x32xf32>
    %c0_320 = arith.constant 0 : index
    %c0_321 = arith.constant 0 : index
    %811 = vector.load %arg29[%c0_320, %c0_321] : memref<8x32xf32, #tpu.memory_space<vmem>>, vector<4x32xf32>
    %812 = vector.extract_strided_slice %585 {offsets = [4, 0], sizes = [1, 32], strides = [1, 1]} : vector<8x32xf32> to vector<1x32xf32>
    %813 = vector.broadcast %812 : vector<1x32xf32> to vector<4x32xf32>
    %814 = arith.mulf %811, %813 : vector<4x32xf32>
    %cst_322 = arith.constant dense<0.000000e+00> : vector<4xf32>
    %815 = vector.multi_reduction <add>, %814, %cst_322 [1] : vector<4x32xf32> to vector<4xf32>
    %816 = vector.shape_cast %815 : vector<4xf32> to vector<4x1xf32>
    %817 = vector.extract_strided_slice %3 {offsets = [0, 4], sizes = [4, 1], strides = [1, 1]} : vector<8x8xf32> to vector<4x1xf32>
    %cst_323 = arith.constant 1.000000e+00 : f32
    %818 = vector.broadcast %cst_323 : f32 to vector<4x1xf32>
    %819 = arith.subf %818, %817 : vector<4x1xf32>
    %cst_324 = arith.constant 1.000000e+30 : f32
    %820 = vector.broadcast %cst_324 : f32 to vector<4x1xf32>
    %821 = arith.mulf %819, %820 : vector<4x1xf32>
    %822 = arith.subf %816, %821 : vector<4x1xf32>
    %cst_325 = arith.constant dense<0xFF800000> : vector<1xf32>
    %823 = vector.multi_reduction <maximumf>, %822, %cst_325 [0] : vector<4x1xf32> to vector<1xf32>
    %824 = vector.shape_cast %823 : vector<1xf32> to vector<1x1xf32>
    %825 = vector.broadcast %824 : vector<1x1xf32> to vector<4x1xf32>
    %826 = arith.subf %822, %825 : vector<4x1xf32>
    %827 = math.exp %826 : vector<4x1xf32>
    %cst_326 = arith.constant dense<0.000000e+00> : vector<1xf32>
    %828 = vector.multi_reduction <add>, %827, %cst_326 [0] : vector<4x1xf32> to vector<1xf32>
    %829 = vector.shape_cast %828 : vector<1xf32> to vector<1x1xf32>
    %830 = tpu.reciprocal %829 {approx = true} : vector<1x1xf32> -> vector<1x1xf32>
    %831 = vector.broadcast %830 : vector<1x1xf32> to vector<4x1xf32>
    %832 = arith.mulf %827, %831 : vector<4x1xf32>
    %833 = vector.broadcast %832 : vector<4x1xf32> to vector<4x32xf32>
    %834 = arith.mulf %833, %810 : vector<4x32xf32>
    %cst_327 = arith.constant dense<0.000000e+00> : vector<32xf32>
    %835 = vector.multi_reduction <add>, %834, %cst_327 [0] : vector<4x32xf32> to vector<32xf32>
    %836 = vector.shape_cast %835 : vector<32xf32> to vector<1x32xf32>
    %cst_328 = arith.constant dense<0.000000e+00> : vector<1x32xf32>
    %837 = tpu.matmul %836, %569, %cst_328 {dimension_numbers = #tpu.dot_dimension_numbers<[1], [0], [0], [1], [0, 0, 1, 1], [], []>} : vector<1x32xf32>, vector<32x32xf32>, vector<1x32xf32> -> vector<1x32xf32>
    %838 = vector.extract_strided_slice %588 {offsets = [4, 0], sizes = [1, 32], strides = [1, 1]} : vector<8x32xf32> to vector<1x32xf32>
    %839 = arith.addf %837, %838 : vector<1x32xf32>
    %cst_329 = arith.constant dense<0.000000e+00> : vector<1x96xf32>
    %840 = tpu.matmul %839, %577, %cst_329 {dimension_numbers = #tpu.dot_dimension_numbers<[1], [0], [0], [1], [0, 0, 1, 1], [], []>} : vector<1x32xf32>, vector<32x96xf32>, vector<1x96xf32> -> vector<1x96xf32>
    %841 = arith.addf %840, %581 : vector<1x96xf32>
    %842 = vector.extract_strided_slice %591 {offsets = [4, 0], sizes = [1, 96], strides = [1, 1]} : vector<8x96xf32> to vector<1x96xf32>
    %843 = vector.extract_strided_slice %842 {offsets = [0, 0], sizes = [1, 32], strides = [1, 1]} : vector<1x96xf32> to vector<1x32xf32>
    %844 = vector.extract_strided_slice %841 {offsets = [0, 0], sizes = [1, 32], strides = [1, 1]} : vector<1x96xf32> to vector<1x32xf32>
    %845 = arith.addf %843, %844 : vector<1x32xf32>
    %846 = arith.negf %845 : vector<1x32xf32>
    %847 = math.exp %846 : vector<1x32xf32>
    %cst_330 = arith.constant 1.000000e+00 : f32
    %848 = vector.broadcast %cst_330 : f32 to vector<1x32xf32>
    %849 = arith.addf %848, %847 : vector<1x32xf32>
    %850 = arith.divf %848, %849 : vector<1x32xf32>
    %851 = vector.extract_strided_slice %842 {offsets = [0, 32], sizes = [1, 32], strides = [1, 1]} : vector<1x96xf32> to vector<1x32xf32>
    %852 = vector.extract_strided_slice %841 {offsets = [0, 32], sizes = [1, 32], strides = [1, 1]} : vector<1x96xf32> to vector<1x32xf32>
    %853 = arith.addf %851, %852 : vector<1x32xf32>
    %854 = arith.negf %853 : vector<1x32xf32>
    %855 = math.exp %854 : vector<1x32xf32>
    %cst_331 = arith.constant 1.000000e+00 : f32
    %856 = vector.broadcast %cst_331 : f32 to vector<1x32xf32>
    %857 = arith.addf %856, %855 : vector<1x32xf32>
    %858 = arith.divf %856, %857 : vector<1x32xf32>
    %859 = vector.extract_strided_slice %842 {offsets = [0, 64], sizes = [1, 32], strides = [1, 1]} : vector<1x96xf32> to vector<1x32xf32>
    %860 = vector.extract_strided_slice %841 {offsets = [0, 64], sizes = [1, 32], strides = [1, 1]} : vector<1x96xf32> to vector<1x32xf32>
    %861 = arith.mulf %850, %860 : vector<1x32xf32>
    %862 = arith.addf %859, %861 : vector<1x32xf32>
    %863 = math.tanh %862 : vector<1x32xf32>
    %cst_332 = arith.constant 1.000000e+00 : f32
    %864 = vector.broadcast %cst_332 : f32 to vector<1x32xf32>
    %865 = arith.subf %864, %858 : vector<1x32xf32>
    %866 = arith.mulf %865, %863 : vector<1x32xf32>
    %867 = arith.mulf %858, %839 : vector<1x32xf32>
    %868 = arith.addf %866, %867 : vector<1x32xf32>
    %c4_333 = arith.constant 4 : index
    %c0_334 = arith.constant 0 : index
    %869 = vector.load %arg28[%c4_333, %c0_334] : memref<8x32xf32, #tpu.memory_space<vmem>>, vector<1x32xf32>
    tpu.vector_store %arg28[%c4_333, %c0_334], %868 {strides = array<i32>} : memref<8x32xf32, #tpu.memory_space<vmem>>, vector<1x32xf32>,
    %cst_335 = arith.constant dense<0.000000e+00> : vector<1x32xf32>
    %870 = tpu.matmul %868, %565, %cst_335 {dimension_numbers = #tpu.dot_dimension_numbers<[1], [0], [0], [1], [0, 0, 1, 1], [], []>} : vector<1x32xf32>, vector<32x32xf32>, vector<1x32xf32> -> vector<1x32xf32>
    %871 = arith.addf %870, %567 : vector<1x32xf32>
    %c4_336 = arith.constant 4 : index
    %c0_337 = arith.constant 0 : index
    %872 = vector.load %arg29[%c4_336, %c0_337] : memref<8x32xf32, #tpu.memory_space<vmem>>, vector<1x32xf32>
    tpu.vector_store %arg29[%c4_336, %c0_337], %871 {strides = array<i32>} : memref<8x32xf32, #tpu.memory_space<vmem>>, vector<1x32xf32>,
    %c0_338 = arith.constant 0 : index
    %c0_339 = arith.constant 0 : index
    %873 = vector.load %arg28[%c0_338, %c0_339] : memref<8x32xf32, #tpu.memory_space<vmem>>, vector<5x32xf32>
    %c0_340 = arith.constant 0 : index
    %c0_341 = arith.constant 0 : index
    %874 = vector.load %arg29[%c0_340, %c0_341] : memref<8x32xf32, #tpu.memory_space<vmem>>, vector<5x32xf32>
    %875 = vector.extract_strided_slice %585 {offsets = [5, 0], sizes = [1, 32], strides = [1, 1]} : vector<8x32xf32> to vector<1x32xf32>
    %876 = vector.broadcast %875 : vector<1x32xf32> to vector<5x32xf32>
    %877 = arith.mulf %874, %876 : vector<5x32xf32>
    %cst_342 = arith.constant dense<0.000000e+00> : vector<5xf32>
    %878 = vector.multi_reduction <add>, %877, %cst_342 [1] : vector<5x32xf32> to vector<5xf32>
    %879 = vector.shape_cast %878 : vector<5xf32> to vector<5x1xf32>
    %880 = vector.extract_strided_slice %3 {offsets = [0, 5], sizes = [5, 1], strides = [1, 1]} : vector<8x8xf32> to vector<5x1xf32>
    %cst_343 = arith.constant 1.000000e+00 : f32
    %881 = vector.broadcast %cst_343 : f32 to vector<5x1xf32>
    %882 = arith.subf %881, %880 : vector<5x1xf32>
    %cst_344 = arith.constant 1.000000e+30 : f32
    %883 = vector.broadcast %cst_344 : f32 to vector<5x1xf32>
    %884 = arith.mulf %882, %883 : vector<5x1xf32>
    %885 = arith.subf %879, %884 : vector<5x1xf32>
    %cst_345 = arith.constant dense<0xFF800000> : vector<1xf32>
    %886 = vector.multi_reduction <maximumf>, %885, %cst_345 [0] : vector<5x1xf32> to vector<1xf32>
    %887 = vector.shape_cast %886 : vector<1xf32> to vector<1x1xf32>
    %888 = vector.broadcast %887 : vector<1x1xf32> to vector<5x1xf32>
    %889 = arith.subf %885, %888 : vector<5x1xf32>
    %890 = math.exp %889 : vector<5x1xf32>
    %cst_346 = arith.constant dense<0.000000e+00> : vector<1xf32>
    %891 = vector.multi_reduction <add>, %890, %cst_346 [0] : vector<5x1xf32> to vector<1xf32>
    %892 = vector.shape_cast %891 : vector<1xf32> to vector<1x1xf32>
    %893 = tpu.reciprocal %892 {approx = true} : vector<1x1xf32> -> vector<1x1xf32>
    %894 = vector.broadcast %893 : vector<1x1xf32> to vector<5x1xf32>
    %895 = arith.mulf %890, %894 : vector<5x1xf32>
    %896 = vector.broadcast %895 : vector<5x1xf32> to vector<5x32xf32>
    %897 = arith.mulf %896, %873 : vector<5x32xf32>
    %cst_347 = arith.constant dense<0.000000e+00> : vector<32xf32>
    %898 = vector.multi_reduction <add>, %897, %cst_347 [0] : vector<5x32xf32> to vector<32xf32>
    %899 = vector.shape_cast %898 : vector<32xf32> to vector<1x32xf32>
    %cst_348 = arith.constant dense<0.000000e+00> : vector<1x32xf32>
    %900 = tpu.matmul %899, %569, %cst_348 {dimension_numbers = #tpu.dot_dimension_numbers<[1], [0], [0], [1], [0, 0, 1, 1], [], []>} : vector<1x32xf32>, vector<32x32xf32>, vector<1x32xf32> -> vector<1x32xf32>
    %901 = vector.extract_strided_slice %588 {offsets = [5, 0], sizes = [1, 32], strides = [1, 1]} : vector<8x32xf32> to vector<1x32xf32>
    %902 = arith.addf %900, %901 : vector<1x32xf32>
    %cst_349 = arith.constant dense<0.000000e+00> : vector<1x96xf32>
    %903 = tpu.matmul %902, %577, %cst_349 {dimension_numbers = #tpu.dot_dimension_numbers<[1], [0], [0], [1], [0, 0, 1, 1], [], []>} : vector<1x32xf32>, vector<32x96xf32>, vector<1x96xf32> -> vector<1x96xf32>
    %904 = arith.addf %903, %581 : vector<1x96xf32>
    %905 = vector.extract_strided_slice %591 {offsets = [5, 0], sizes = [1, 96], strides = [1, 1]} : vector<8x96xf32> to vector<1x96xf32>
    %906 = vector.extract_strided_slice %905 {offsets = [0, 0], sizes = [1, 32], strides = [1, 1]} : vector<1x96xf32> to vector<1x32xf32>
    %907 = vector.extract_strided_slice %904 {offsets = [0, 0], sizes = [1, 32], strides = [1, 1]} : vector<1x96xf32> to vector<1x32xf32>
    %908 = arith.addf %906, %907 : vector<1x32xf32>
    %909 = arith.negf %908 : vector<1x32xf32>
    %910 = math.exp %909 : vector<1x32xf32>
    %cst_350 = arith.constant 1.000000e+00 : f32
    %911 = vector.broadcast %cst_350 : f32 to vector<1x32xf32>
    %912 = arith.addf %911, %910 : vector<1x32xf32>
    %913 = arith.divf %911, %912 : vector<1x32xf32>
    %914 = vector.extract_strided_slice %905 {offsets = [0, 32], sizes = [1, 32], strides = [1, 1]} : vector<1x96xf32> to vector<1x32xf32>
    %915 = vector.extract_strided_slice %904 {offsets = [0, 32], sizes = [1, 32], strides = [1, 1]} : vector<1x96xf32> to vector<1x32xf32>
    %916 = arith.addf %914, %915 : vector<1x32xf32>
    %917 = arith.negf %916 : vector<1x32xf32>
    %918 = math.exp %917 : vector<1x32xf32>
    %cst_351 = arith.constant 1.000000e+00 : f32
    %919 = vector.broadcast %cst_351 : f32 to vector<1x32xf32>
    %920 = arith.addf %919, %918 : vector<1x32xf32>
    %921 = arith.divf %919, %920 : vector<1x32xf32>
    %922 = vector.extract_strided_slice %905 {offsets = [0, 64], sizes = [1, 32], strides = [1, 1]} : vector<1x96xf32> to vector<1x32xf32>
    %923 = vector.extract_strided_slice %904 {offsets = [0, 64], sizes = [1, 32], strides = [1, 1]} : vector<1x96xf32> to vector<1x32xf32>
    %924 = arith.mulf %913, %923 : vector<1x32xf32>
    %925 = arith.addf %922, %924 : vector<1x32xf32>
    %926 = math.tanh %925 : vector<1x32xf32>
    %cst_352 = arith.constant 1.000000e+00 : f32
    %927 = vector.broadcast %cst_352 : f32 to vector<1x32xf32>
    %928 = arith.subf %927, %921 : vector<1x32xf32>
    %929 = arith.mulf %928, %926 : vector<1x32xf32>
    %930 = arith.mulf %921, %902 : vector<1x32xf32>
    %931 = arith.addf %929, %930 : vector<1x32xf32>
    %c5_353 = arith.constant 5 : index
    %c0_354 = arith.constant 0 : index
    %932 = vector.load %arg28[%c5_353, %c0_354] : memref<8x32xf32, #tpu.memory_space<vmem>>, vector<1x32xf32>
    tpu.vector_store %arg28[%c5_353, %c0_354], %931 {strides = array<i32>} : memref<8x32xf32, #tpu.memory_space<vmem>>, vector<1x32xf32>,
    %cst_355 = arith.constant dense<0.000000e+00> : vector<1x32xf32>
    %933 = tpu.matmul %931, %565, %cst_355 {dimension_numbers = #tpu.dot_dimension_numbers<[1], [0], [0], [1], [0, 0, 1, 1], [], []>} : vector<1x32xf32>, vector<32x32xf32>, vector<1x32xf32> -> vector<1x32xf32>
    %934 = arith.addf %933, %567 : vector<1x32xf32>
    %c5_356 = arith.constant 5 : index
    %c0_357 = arith.constant 0 : index
    %935 = vector.load %arg29[%c5_356, %c0_357] : memref<8x32xf32, #tpu.memory_space<vmem>>, vector<1x32xf32>
    tpu.vector_store %arg29[%c5_356, %c0_357], %934 {strides = array<i32>} : memref<8x32xf32, #tpu.memory_space<vmem>>, vector<1x32xf32>,
    %c0_358 = arith.constant 0 : index
    %c0_359 = arith.constant 0 : index
    %936 = vector.load %arg28[%c0_358, %c0_359] : memref<8x32xf32, #tpu.memory_space<vmem>>, vector<6x32xf32>
    %c0_360 = arith.constant 0 : index
    %c0_361 = arith.constant 0 : index
    %937 = vector.load %arg29[%c0_360, %c0_361] : memref<8x32xf32, #tpu.memory_space<vmem>>, vector<6x32xf32>
    %938 = vector.extract_strided_slice %585 {offsets = [6, 0], sizes = [1, 32], strides = [1, 1]} : vector<8x32xf32> to vector<1x32xf32>
    %939 = vector.broadcast %938 : vector<1x32xf32> to vector<6x32xf32>
    %940 = arith.mulf %937, %939 : vector<6x32xf32>
    %cst_362 = arith.constant dense<0.000000e+00> : vector<6xf32>
    %941 = vector.multi_reduction <add>, %940, %cst_362 [1] : vector<6x32xf32> to vector<6xf32>
    %942 = vector.shape_cast %941 : vector<6xf32> to vector<6x1xf32>
    %943 = vector.extract_strided_slice %3 {offsets = [0, 6], sizes = [6, 1], strides = [1, 1]} : vector<8x8xf32> to vector<6x1xf32>
    %cst_363 = arith.constant 1.000000e+00 : f32
    %944 = vector.broadcast %cst_363 : f32 to vector<6x1xf32>
    %945 = arith.subf %944, %943 : vector<6x1xf32>
    %cst_364 = arith.constant 1.000000e+30 : f32
    %946 = vector.broadcast %cst_364 : f32 to vector<6x1xf32>
    %947 = arith.mulf %945, %946 : vector<6x1xf32>
    %948 = arith.subf %942, %947 : vector<6x1xf32>
    %cst_365 = arith.constant dense<0xFF800000> : vector<1xf32>
    %949 = vector.multi_reduction <maximumf>, %948, %cst_365 [0] : vector<6x1xf32> to vector<1xf32>
    %950 = vector.shape_cast %949 : vector<1xf32> to vector<1x1xf32>
    %951 = vector.broadcast %950 : vector<1x1xf32> to vector<6x1xf32>
    %952 = arith.subf %948, %951 : vector<6x1xf32>
    %953 = math.exp %952 : vector<6x1xf32>
    %cst_366 = arith.constant dense<0.000000e+00> : vector<1xf32>
    %954 = vector.multi_reduction <add>, %953, %cst_366 [0] : vector<6x1xf32> to vector<1xf32>
    %955 = vector.shape_cast %954 : vector<1xf32> to vector<1x1xf32>
    %956 = tpu.reciprocal %955 {approx = true} : vector<1x1xf32> -> vector<1x1xf32>
    %957 = vector.broadcast %956 : vector<1x1xf32> to vector<6x1xf32>
    %958 = arith.mulf %953, %957 : vector<6x1xf32>
    %959 = vector.broadcast %958 : vector<6x1xf32> to vector<6x32xf32>
    %960 = arith.mulf %959, %936 : vector<6x32xf32>
    %cst_367 = arith.constant dense<0.000000e+00> : vector<32xf32>
    %961 = vector.multi_reduction <add>, %960, %cst_367 [0] : vector<6x32xf32> to vector<32xf32>
    %962 = vector.shape_cast %961 : vector<32xf32> to vector<1x32xf32>
    %cst_368 = arith.constant dense<0.000000e+00> : vector<1x32xf32>
    %963 = tpu.matmul %962, %569, %cst_368 {dimension_numbers = #tpu.dot_dimension_numbers<[1], [0], [0], [1], [0, 0, 1, 1], [], []>} : vector<1x32xf32>, vector<32x32xf32>, vector<1x32xf32> -> vector<1x32xf32>
    %964 = vector.extract_strided_slice %588 {offsets = [6, 0], sizes = [1, 32], strides = [1, 1]} : vector<8x32xf32> to vector<1x32xf32>
    %965 = arith.addf %963, %964 : vector<1x32xf32>
    %cst_369 = arith.constant dense<0.000000e+00> : vector<1x96xf32>
    %966 = tpu.matmul %965, %577, %cst_369 {dimension_numbers = #tpu.dot_dimension_numbers<[1], [0], [0], [1], [0, 0, 1, 1], [], []>} : vector<1x32xf32>, vector<32x96xf32>, vector<1x96xf32> -> vector<1x96xf32>
    %967 = arith.addf %966, %581 : vector<1x96xf32>
    %968 = vector.extract_strided_slice %591 {offsets = [6, 0], sizes = [1, 96], strides = [1, 1]} : vector<8x96xf32> to vector<1x96xf32>
    %969 = vector.extract_strided_slice %968 {offsets = [0, 0], sizes = [1, 32], strides = [1, 1]} : vector<1x96xf32> to vector<1x32xf32>
    %970 = vector.extract_strided_slice %967 {offsets = [0, 0], sizes = [1, 32], strides = [1, 1]} : vector<1x96xf32> to vector<1x32xf32>
    %971 = arith.addf %969, %970 : vector<1x32xf32>
    %972 = arith.negf %971 : vector<1x32xf32>
    %973 = math.exp %972 : vector<1x32xf32>
    %cst_370 = arith.constant 1.000000e+00 : f32
    %974 = vector.broadcast %cst_370 : f32 to vector<1x32xf32>
    %975 = arith.addf %974, %973 : vector<1x32xf32>
    %976 = arith.divf %974, %975 : vector<1x32xf32>
    %977 = vector.extract_strided_slice %968 {offsets = [0, 32], sizes = [1, 32], strides = [1, 1]} : vector<1x96xf32> to vector<1x32xf32>
    %978 = vector.extract_strided_slice %967 {offsets = [0, 32], sizes = [1, 32], strides = [1, 1]} : vector<1x96xf32> to vector<1x32xf32>
    %979 = arith.addf %977, %978 : vector<1x32xf32>
    %980 = arith.negf %979 : vector<1x32xf32>
    %981 = math.exp %980 : vector<1x32xf32>
    %cst_371 = arith.constant 1.000000e+00 : f32
    %982 = vector.broadcast %cst_371 : f32 to vector<1x32xf32>
    %983 = arith.addf %982, %981 : vector<1x32xf32>
    %984 = arith.divf %982, %983 : vector<1x32xf32>
    %985 = vector.extract_strided_slice %968 {offsets = [0, 64], sizes = [1, 32], strides = [1, 1]} : vector<1x96xf32> to vector<1x32xf32>
    %986 = vector.extract_strided_slice %967 {offsets = [0, 64], sizes = [1, 32], strides = [1, 1]} : vector<1x96xf32> to vector<1x32xf32>
    %987 = arith.mulf %976, %986 : vector<1x32xf32>
    %988 = arith.addf %985, %987 : vector<1x32xf32>
    %989 = math.tanh %988 : vector<1x32xf32>
    %cst_372 = arith.constant 1.000000e+00 : f32
    %990 = vector.broadcast %cst_372 : f32 to vector<1x32xf32>
    %991 = arith.subf %990, %984 : vector<1x32xf32>
    %992 = arith.mulf %991, %989 : vector<1x32xf32>
    %993 = arith.mulf %984, %965 : vector<1x32xf32>
    %994 = arith.addf %992, %993 : vector<1x32xf32>
    %c6_373 = arith.constant 6 : index
    %c0_374 = arith.constant 0 : index
    %995 = vector.load %arg28[%c6_373, %c0_374] : memref<8x32xf32, #tpu.memory_space<vmem>>, vector<1x32xf32>
    tpu.vector_store %arg28[%c6_373, %c0_374], %994 {strides = array<i32>} : memref<8x32xf32, #tpu.memory_space<vmem>>, vector<1x32xf32>,
    %cst_375 = arith.constant dense<0.000000e+00> : vector<1x32xf32>
    %996 = tpu.matmul %994, %565, %cst_375 {dimension_numbers = #tpu.dot_dimension_numbers<[1], [0], [0], [1], [0, 0, 1, 1], [], []>} : vector<1x32xf32>, vector<32x32xf32>, vector<1x32xf32> -> vector<1x32xf32>
    %997 = arith.addf %996, %567 : vector<1x32xf32>
    %c6_376 = arith.constant 6 : index
    %c0_377 = arith.constant 0 : index
    %998 = vector.load %arg29[%c6_376, %c0_377] : memref<8x32xf32, #tpu.memory_space<vmem>>, vector<1x32xf32>
    tpu.vector_store %arg29[%c6_376, %c0_377], %997 {strides = array<i32>} : memref<8x32xf32, #tpu.memory_space<vmem>>, vector<1x32xf32>,
    %c0_378 = arith.constant 0 : index
    %c0_379 = arith.constant 0 : index
    %999 = vector.load %arg28[%c0_378, %c0_379] : memref<8x32xf32, #tpu.memory_space<vmem>>, vector<7x32xf32>
    %c0_380 = arith.constant 0 : index
    %c0_381 = arith.constant 0 : index
    %1000 = vector.load %arg29[%c0_380, %c0_381] : memref<8x32xf32, #tpu.memory_space<vmem>>, vector<7x32xf32>
    %1001 = vector.extract_strided_slice %585 {offsets = [7, 0], sizes = [1, 32], strides = [1, 1]} : vector<8x32xf32> to vector<1x32xf32>
    %1002 = vector.broadcast %1001 : vector<1x32xf32> to vector<7x32xf32>
    %1003 = arith.mulf %1000, %1002 : vector<7x32xf32>
    %cst_382 = arith.constant dense<0.000000e+00> : vector<7xf32>
    %1004 = vector.multi_reduction <add>, %1003, %cst_382 [1] : vector<7x32xf32> to vector<7xf32>
    %1005 = vector.shape_cast %1004 : vector<7xf32> to vector<7x1xf32>
    %1006 = vector.extract_strided_slice %3 {offsets = [0, 7], sizes = [7, 1], strides = [1, 1]} : vector<8x8xf32> to vector<7x1xf32>
    %cst_383 = arith.constant 1.000000e+00 : f32
    %1007 = vector.broadcast %cst_383 : f32 to vector<7x1xf32>
    %1008 = arith.subf %1007, %1006 : vector<7x1xf32>
    %cst_384 = arith.constant 1.000000e+30 : f32
    %1009 = vector.broadcast %cst_384 : f32 to vector<7x1xf32>
    %1010 = arith.mulf %1008, %1009 : vector<7x1xf32>
    %1011 = arith.subf %1005, %1010 : vector<7x1xf32>
    %cst_385 = arith.constant dense<0xFF800000> : vector<1xf32>
    %1012 = vector.multi_reduction <maximumf>, %1011, %cst_385 [0] : vector<7x1xf32> to vector<1xf32>
    %1013 = vector.shape_cast %1012 : vector<1xf32> to vector<1x1xf32>
    %1014 = vector.broadcast %1013 : vector<1x1xf32> to vector<7x1xf32>
    %1015 = arith.subf %1011, %1014 : vector<7x1xf32>
    %1016 = math.exp %1015 : vector<7x1xf32>
    %cst_386 = arith.constant dense<0.000000e+00> : vector<1xf32>
    %1017 = vector.multi_reduction <add>, %1016, %cst_386 [0] : vector<7x1xf32> to vector<1xf32>
    %1018 = vector.shape_cast %1017 : vector<1xf32> to vector<1x1xf32>
    %1019 = tpu.reciprocal %1018 {approx = true} : vector<1x1xf32> -> vector<1x1xf32>
    %1020 = vector.broadcast %1019 : vector<1x1xf32> to vector<7x1xf32>
    %1021 = arith.mulf %1016, %1020 : vector<7x1xf32>
    %1022 = vector.broadcast %1021 : vector<7x1xf32> to vector<7x32xf32>
    %1023 = arith.mulf %1022, %999 : vector<7x32xf32>
    %cst_387 = arith.constant dense<0.000000e+00> : vector<32xf32>
    %1024 = vector.multi_reduction <add>, %1023, %cst_387 [0] : vector<7x32xf32> to vector<32xf32>
    %1025 = vector.shape_cast %1024 : vector<32xf32> to vector<1x32xf32>
    %cst_388 = arith.constant dense<0.000000e+00> : vector<1x32xf32>
    %1026 = tpu.matmul %1025, %569, %cst_388 {dimension_numbers = #tpu.dot_dimension_numbers<[1], [0], [0], [1], [0, 0, 1, 1], [], []>} : vector<1x32xf32>, vector<32x32xf32>, vector<1x32xf32> -> vector<1x32xf32>
    %1027 = vector.extract_strided_slice %588 {offsets = [7, 0], sizes = [1, 32], strides = [1, 1]} : vector<8x32xf32> to vector<1x32xf32>
    %1028 = arith.addf %1026, %1027 : vector<1x32xf32>
    %cst_389 = arith.constant dense<0.000000e+00> : vector<1x96xf32>
    %1029 = tpu.matmul %1028, %577, %cst_389 {dimension_numbers = #tpu.dot_dimension_numbers<[1], [0], [0], [1], [0, 0, 1, 1], [], []>} : vector<1x32xf32>, vector<32x96xf32>, vector<1x96xf32> -> vector<1x96xf32>
    %1030 = arith.addf %1029, %581 : vector<1x96xf32>
    %1031 = vector.extract_strided_slice %591 {offsets = [7, 0], sizes = [1, 96], strides = [1, 1]} : vector<8x96xf32> to vector<1x96xf32>
    %1032 = vector.extract_strided_slice %1031 {offsets = [0, 0], sizes = [1, 32], strides = [1, 1]} : vector<1x96xf32> to vector<1x32xf32>
    %1033 = vector.extract_strided_slice %1030 {offsets = [0, 0], sizes = [1, 32], strides = [1, 1]} : vector<1x96xf32> to vector<1x32xf32>
    %1034 = arith.addf %1032, %1033 : vector<1x32xf32>
    %1035 = arith.negf %1034 : vector<1x32xf32>
    %1036 = math.exp %1035 : vector<1x32xf32>
    %cst_390 = arith.constant 1.000000e+00 : f32
    %1037 = vector.broadcast %cst_390 : f32 to vector<1x32xf32>
    %1038 = arith.addf %1037, %1036 : vector<1x32xf32>
    %1039 = arith.divf %1037, %1038 : vector<1x32xf32>
    %1040 = vector.extract_strided_slice %1031 {offsets = [0, 32], sizes = [1, 32], strides = [1, 1]} : vector<1x96xf32> to vector<1x32xf32>
    %1041 = vector.extract_strided_slice %1030 {offsets = [0, 32], sizes = [1, 32], strides = [1, 1]} : vector<1x96xf32> to vector<1x32xf32>
    %1042 = arith.addf %1040, %1041 : vector<1x32xf32>
    %1043 = arith.negf %1042 : vector<1x32xf32>
    %1044 = math.exp %1043 : vector<1x32xf32>
    %cst_391 = arith.constant 1.000000e+00 : f32
    %1045 = vector.broadcast %cst_391 : f32 to vector<1x32xf32>
    %1046 = arith.addf %1045, %1044 : vector<1x32xf32>
    %1047 = arith.divf %1045, %1046 : vector<1x32xf32>
    %1048 = vector.extract_strided_slice %1031 {offsets = [0, 64], sizes = [1, 32], strides = [1, 1]} : vector<1x96xf32> to vector<1x32xf32>
    %1049 = vector.extract_strided_slice %1030 {offsets = [0, 64], sizes = [1, 32], strides = [1, 1]} : vector<1x96xf32> to vector<1x32xf32>
    %1050 = arith.mulf %1039, %1049 : vector<1x32xf32>
    %1051 = arith.addf %1048, %1050 : vector<1x32xf32>
    %1052 = math.tanh %1051 : vector<1x32xf32>
    %cst_392 = arith.constant 1.000000e+00 : f32
    %1053 = vector.broadcast %cst_392 : f32 to vector<1x32xf32>
    %1054 = arith.subf %1053, %1047 : vector<1x32xf32>
    %1055 = arith.mulf %1054, %1052 : vector<1x32xf32>
    %1056 = arith.mulf %1047, %1028 : vector<1x32xf32>
    %1057 = arith.addf %1055, %1056 : vector<1x32xf32>
    %c7_393 = arith.constant 7 : index
    %c0_394 = arith.constant 0 : index
    %1058 = vector.load %arg28[%c7_393, %c0_394] : memref<8x32xf32, #tpu.memory_space<vmem>>, vector<1x32xf32>
    tpu.vector_store %arg28[%c7_393, %c0_394], %1057 {strides = array<i32>} : memref<8x32xf32, #tpu.memory_space<vmem>>, vector<1x32xf32>,
    %cst_395 = arith.constant dense<0.000000e+00> : vector<1x32xf32>
    %1059 = tpu.matmul %1057, %565, %cst_395 {dimension_numbers = #tpu.dot_dimension_numbers<[1], [0], [0], [1], [0, 0, 1, 1], [], []>} : vector<1x32xf32>, vector<32x32xf32>, vector<1x32xf32> -> vector<1x32xf32>
    %1060 = arith.addf %1059, %567 : vector<1x32xf32>
    %c7_396 = arith.constant 7 : index
    %c0_397 = arith.constant 0 : index
    %1061 = vector.load %arg29[%c7_396, %c0_397] : memref<8x32xf32, #tpu.memory_space<vmem>>, vector<1x32xf32>
    tpu.vector_store %arg29[%c7_396, %c0_397], %1060 {strides = array<i32>} : memref<8x32xf32, #tpu.memory_space<vmem>>, vector<1x32xf32>,
    %c0_398 = arith.constant 0 : index
    %c0_399 = arith.constant 0 : index
    %1062 = vector.load %arg28[%c0_398, %c0_399] : memref<8x32xf32, #tpu.memory_space<vmem>>, vector<8x32xf32>
    %c0_400 = arith.constant 0 : index
    %c0_401 = arith.constant 0 : index
    %1063 = vector.load %arg22[%c0_400, %c0_401] : memref<1x32xf32, #tpu.memory_space<vmem>>, vector<1x32xf32>
    %c0_402 = arith.constant 0 : index
    %c0_403 = arith.constant 0 : index
    %1064 = vector.load %arg21[%c0_402, %c0_403] : memref<128x32xf32, #tpu.memory_space<vmem>>, vector<32x32xf32>
    %cst_404 = arith.constant dense<0.000000e+00> : vector<8x32xf32>
    %1065 = tpu.matmul %16, %1064, %cst_404 {dimension_numbers = #tpu.dot_dimension_numbers<[1], [0], [0], [1], [0, 0, 1, 1], [], []>} : vector<8x32xf32>, vector<32x32xf32>, vector<8x32xf32> -> vector<8x32xf32>
    %1066 = vector.broadcast %1063 : vector<1x32xf32> to vector<8x32xf32>
    %1067 = arith.addf %1066, %1065 : vector<8x32xf32>
    %c32 = arith.constant 32 : index
    %c0_405 = arith.constant 0 : index
    %1068 = vector.load %arg21[%c32, %c0_405] : memref<128x32xf32, #tpu.memory_space<vmem>>, vector<32x32xf32>
    %cst_406 = arith.constant dense<0.000000e+00> : vector<8x32xf32>
    %1069 = tpu.matmul %526, %1068, %cst_406 {dimension_numbers = #tpu.dot_dimension_numbers<[1], [0], [0], [1], [0, 0, 1, 1], [], []>} : vector<8x32xf32>, vector<32x32xf32>, vector<8x32xf32> -> vector<8x32xf32>
    %1070 = arith.addf %1067, %1069 : vector<8x32xf32>
    %c64 = arith.constant 64 : index
    %c0_407 = arith.constant 0 : index
    %1071 = vector.load %arg21[%c64, %c0_407] : memref<128x32xf32, #tpu.memory_space<vmem>>, vector<32x32xf32>
    %cst_408 = arith.constant dense<0.000000e+00> : vector<8x32xf32>
    %1072 = tpu.matmul %1062, %1071, %cst_408 {dimension_numbers = #tpu.dot_dimension_numbers<[1], [0], [0], [1], [0, 0, 1, 1], [], []>} : vector<8x32xf32>, vector<32x32xf32>, vector<8x32xf32> -> vector<8x32xf32>
    %1073 = arith.addf %1070, %1072 : vector<8x32xf32>
    %c96 = arith.constant 96 : index
    %c0_409 = arith.constant 0 : index
    %1074 = vector.load %arg21[%c96, %c0_409] : memref<128x32xf32, #tpu.memory_space<vmem>>, vector<32x32xf32>
    %cst_410 = arith.constant dense<0.000000e+00> : vector<8x32xf32>
    %1075 = tpu.matmul %1, %1074, %cst_410 {dimension_numbers = #tpu.dot_dimension_numbers<[1], [0], [0], [1], [0, 0, 1, 1], [], []>} : vector<8x32xf32>, vector<32x32xf32>, vector<8x32xf32> -> vector<8x32xf32>
    %1076 = arith.addf %1073, %1075 : vector<8x32xf32>
    %cst_411 = arith.constant 0.000000e+00 : f32
    %1077 = vector.broadcast %cst_411 : f32 to vector<8x32xf32>
    %1078 = arith.maximumf %1076, %1077 : vector<8x32xf32>
    %c0_412 = arith.constant 0 : index
    %c0_413 = arith.constant 0 : index
    %c0_414 = arith.constant 0 : index
    %1079 = vector.load %arg23[%c0_412, %c0_413, %c0_414] : memref<1x32x32xf32, #tpu.memory_space<vmem>>, vector<1x32x32xf32>
    %1080 = vector.shape_cast %1079 : vector<1x32x32xf32> to vector<32x32xf32>
    %cst_415 = arith.constant dense<0.000000e+00> : vector<8x32xf32>
    %1081 = tpu.matmul %1078, %1080, %cst_415 {dimension_numbers = #tpu.dot_dimension_numbers<[1], [0], [0], [1], [0, 0, 1, 1], [], []>} : vector<8x32xf32>, vector<32x32xf32>, vector<8x32xf32> -> vector<8x32xf32>
    %c0_416 = arith.constant 0 : index
    %c0_417 = arith.constant 0 : index
    %c0_418 = arith.constant 0 : index
    %1082 = vector.load %arg24[%c0_416, %c0_417, %c0_418] : memref<1x1x32xf32, #tpu.memory_space<vmem>>, vector<1x1x32xf32>
    %1083 = vector.shape_cast %1082 : vector<1x1x32xf32> to vector<1x32xf32>
    %1084 = vector.broadcast %1083 : vector<1x32xf32> to vector<8x32xf32>
    %1085 = arith.addf %1081, %1084 : vector<8x32xf32>
    %cst_419 = arith.constant 0.000000e+00 : f32
    %1086 = vector.broadcast %cst_419 : f32 to vector<8x32xf32>
    %1087 = arith.maximumf %1085, %1086 : vector<8x32xf32>
    %c0_420 = arith.constant 0 : index
    %c0_421 = arith.constant 0 : index
    %1088 = vector.load %arg25[%c0_420, %c0_421] : memref<32x4xf32, #tpu.memory_space<vmem>>, vector<32x4xf32>
    %cst_422 = arith.constant dense<0.000000e+00> : vector<8x4xf32>
    %1089 = tpu.matmul %1087, %1088, %cst_422 {dimension_numbers = #tpu.dot_dimension_numbers<[1], [0], [0], [1], [0, 0, 1, 1], [], []>} : vector<8x32xf32>, vector<32x4xf32>, vector<8x4xf32> -> vector<8x4xf32>
    %c0_423 = arith.constant 0 : index
    %c0_424 = arith.constant 0 : index
    %1090 = vector.load %arg26[%c0_423, %c0_424] : memref<1x4xf32, #tpu.memory_space<vmem>>, vector<1x4xf32>
    %1091 = vector.broadcast %1090 : vector<1x4xf32> to vector<8x4xf32>
    %1092 = arith.addf %1089, %1091 : vector<8x4xf32>
    %c0_425 = arith.constant 0 : index
    %c0_426 = arith.constant 0 : index
    %c0_427 = arith.constant 0 : index
    %1093 = vector.load %arg27[%c0_425, %c0_426, %c0_427] : memref<1x8x4xf32, #tpu.memory_space<vmem>>, vector<1x8x4xf32>
    %1094 = vector.shape_cast %1093 : vector<1x8x4xf32> to vector<8x4xf32>
    %1095 = vector.shape_cast %1092 : vector<8x4xf32> to vector<1x8x4xf32>
    tpu.vector_store %arg27[%c0_425, %c0_426, %c0_427], %1095 {strides = array<i32>} : memref<1x8x4xf32, #tpu.memory_space<vmem>>, vector<1x8x4xf32>,
    return
  }
  func.func @transform_0(%arg0: i32) -> (i32, i32, i32) {
    %c0_i32 = arith.constant 0 : i32
    %c0_i32_0 = arith.constant 0 : i32
    %c0_i32_1 = arith.constant 0 : i32
    return %arg0, %c0_i32, %c0_i32_0 : i32, i32, i32
  }
  func.func @transform_1(%arg0: i32) -> (i32, i32, i32) {
    %c0_i32 = arith.constant 0 : i32
    %c0_i32_0 = arith.constant 0 : i32
    %c0_i32_1 = arith.constant 0 : i32
    return %arg0, %c0_i32, %c0_i32_0 : i32, i32, i32
  }
  func.func @transform_2(%arg0: i32) -> (i32, i32, i32) {
    %c0_i32 = arith.constant 0 : i32
    %c0_i32_0 = arith.constant 0 : i32
    %c0_i32_1 = arith.constant 0 : i32
    return %arg0, %c0_i32, %c0_i32_0 : i32, i32, i32
  }
  func.func @transform_3(%arg0: i32) -> (i32, i32, i32) {
    %c0_i32 = arith.constant 0 : i32
    %c0_i32_0 = arith.constant 0 : i32
    %c0_i32_1 = arith.constant 0 : i32
    return %arg0, %c0_i32, %c0_i32_0 : i32, i32, i32
  }
  func.func @transform_4(%arg0: i32) -> (i32, i32, i32) {
    %c0_i32 = arith.constant 0 : i32
    %c0_i32_0 = arith.constant 0 : i32
    %c0_i32_1 = arith.constant 0 : i32
    return %arg0, %c0_i32, %c0_i32_0 : i32, i32, i32
  }
  func.func @transform_5(%arg0: i32) -> (i32, i32) {
    %c0_i32 = arith.constant 0 : i32
    %c0_i32_0 = arith.constant 0 : i32
    %c0_i32_1 = arith.constant 0 : i32
    return %c0_i32, %c0_i32_0 : i32, i32
  }
  func.func @transform_6(%arg0: i32) -> (i32, i32) {
    %c0_i32 = arith.constant 0 : i32
    %c0_i32_0 = arith.constant 0 : i32
    %c0_i32_1 = arith.constant 0 : i32
    return %c0_i32, %c0_i32_0 : i32, i32
  }
  func.func @transform_7(%arg0: i32) -> (i32, i32) {
    %c0_i32 = arith.constant 0 : i32
    %c0_i32_0 = arith.constant 0 : i32
    %c0_i32_1 = arith.constant 0 : i32
    return %c0_i32, %c0_i32_0 : i32, i32
  }
  func.func @transform_8(%arg0: i32) -> (i32, i32) {
    %c0_i32 = arith.constant 0 : i32
    %c0_i32_0 = arith.constant 0 : i32
    %c0_i32_1 = arith.constant 0 : i32
    return %c0_i32, %c0_i32_0 : i32, i32
  }
  func.func @transform_9(%arg0: i32) -> (i32, i32, i32) {
    %c0_i32 = arith.constant 0 : i32
    %c0_i32_0 = arith.constant 0 : i32
    %c0_i32_1 = arith.constant 0 : i32
    %c0_i32_2 = arith.constant 0 : i32
    return %c0_i32, %c0_i32_0, %c0_i32_1 : i32, i32, i32
  }
  func.func @transform_10(%arg0: i32) -> (i32, i32, i32) {
    %c0_i32 = arith.constant 0 : i32
    %c0_i32_0 = arith.constant 0 : i32
    %c0_i32_1 = arith.constant 0 : i32
    %c0_i32_2 = arith.constant 0 : i32
    return %c0_i32, %c0_i32_0, %c0_i32_1 : i32, i32, i32
  }
  func.func @transform_11(%arg0: i32) -> (i32, i32, i32) {
    %c0_i32 = arith.constant 0 : i32
    %c0_i32_0 = arith.constant 0 : i32
    %c0_i32_1 = arith.constant 0 : i32
    %c0_i32_2 = arith.constant 0 : i32
    return %c0_i32, %c0_i32_0, %c0_i32_1 : i32, i32, i32
  }
  func.func @transform_12(%arg0: i32) -> (i32, i32, i32) {
    %c0_i32 = arith.constant 0 : i32
    %c0_i32_0 = arith.constant 0 : i32
    %c0_i32_1 = arith.constant 0 : i32
    %c0_i32_2 = arith.constant 0 : i32
    return %c0_i32, %c0_i32_0, %c0_i32_1 : i32, i32, i32
  }
  func.func @transform_13(%arg0: i32) -> (i32, i32, i32) {
    %c0_i32 = arith.constant 0 : i32
    %c0_i32_0 = arith.constant 0 : i32
    %c0_i32_1 = arith.constant 0 : i32
    %c0_i32_2 = arith.constant 0 : i32
    return %c0_i32, %c0_i32_0, %c0_i32_1 : i32, i32, i32
  }
  func.func @transform_14(%arg0: i32) -> (i32, i32, i32) {
    %c0_i32 = arith.constant 0 : i32
    %c0_i32_0 = arith.constant 0 : i32
    %c0_i32_1 = arith.constant 0 : i32
    %c0_i32_2 = arith.constant 0 : i32
    return %c0_i32, %c0_i32_0, %c0_i32_1 : i32, i32, i32
  }
  func.func @transform_15(%arg0: i32) -> (i32, i32, i32) {
    %c0_i32 = arith.constant 0 : i32
    %c0_i32_0 = arith.constant 0 : i32
    %c0_i32_1 = arith.constant 0 : i32
    %c0_i32_2 = arith.constant 0 : i32
    return %c0_i32, %c0_i32_0, %c0_i32_1 : i32, i32, i32
  }
  func.func @transform_16(%arg0: i32) -> (i32, i32, i32) {
    %c0_i32 = arith.constant 0 : i32
    %c0_i32_0 = arith.constant 0 : i32
    %c0_i32_1 = arith.constant 0 : i32
    %c0_i32_2 = arith.constant 0 : i32
    return %c0_i32, %c0_i32_0, %c0_i32_1 : i32, i32, i32
  }
  func.func @transform_17(%arg0: i32) -> (i32, i32, i32) {
    %c0_i32 = arith.constant 0 : i32
    %c0_i32_0 = arith.constant 0 : i32
    %c0_i32_1 = arith.constant 0 : i32
    %c0_i32_2 = arith.constant 0 : i32
    return %c0_i32, %c0_i32_0, %c0_i32_1 : i32, i32, i32
  }
  func.func @transform_18(%arg0: i32) -> (i32, i32, i32) {
    %c0_i32 = arith.constant 0 : i32
    %c0_i32_0 = arith.constant 0 : i32
    %c0_i32_1 = arith.constant 0 : i32
    %c0_i32_2 = arith.constant 0 : i32
    return %c0_i32, %c0_i32_0, %c0_i32_1 : i32, i32, i32
  }
  func.func @transform_19(%arg0: i32) -> (i32, i32, i32) {
    %c0_i32 = arith.constant 0 : i32
    %c0_i32_0 = arith.constant 0 : i32
    %c0_i32_1 = arith.constant 0 : i32
    %c0_i32_2 = arith.constant 0 : i32
    return %c0_i32, %c0_i32_0, %c0_i32_1 : i32, i32, i32
  }
  func.func @transform_20(%arg0: i32) -> (i32, i32) {
    %c0_i32 = arith.constant 0 : i32
    %c0_i32_0 = arith.constant 0 : i32
    %c0_i32_1 = arith.constant 0 : i32
    return %c0_i32, %c0_i32_0 : i32, i32
  }
  func.func @transform_21(%arg0: i32) -> (i32, i32) {
    %c0_i32 = arith.constant 0 : i32
    %c0_i32_0 = arith.constant 0 : i32
    %c0_i32_1 = arith.constant 0 : i32
    return %c0_i32, %c0_i32_0 : i32, i32
  }
  func.func @transform_22(%arg0: i32) -> (i32, i32, i32) {
    %c0_i32 = arith.constant 0 : i32
    %c0_i32_0 = arith.constant 0 : i32
    %c0_i32_1 = arith.constant 0 : i32
    %c0_i32_2 = arith.constant 0 : i32
    return %c0_i32, %c0_i32_0, %c0_i32_1 : i32, i32, i32
  }
  func.func @transform_23(%arg0: i32) -> (i32, i32, i32) {
    %c0_i32 = arith.constant 0 : i32
    %c0_i32_0 = arith.constant 0 : i32
    %c0_i32_1 = arith.constant 0 : i32
    %c0_i32_2 = arith.constant 0 : i32
    return %c0_i32, %c0_i32_0, %c0_i32_1 : i32, i32, i32
  }
  func.func @transform_24(%arg0: i32) -> (i32, i32) {
    %c0_i32 = arith.constant 0 : i32
    %c0_i32_0 = arith.constant 0 : i32
    %c0_i32_1 = arith.constant 0 : i32
    return %c0_i32, %c0_i32_0 : i32, i32
  }
  func.func @transform_25(%arg0: i32) -> (i32, i32) {
    %c0_i32 = arith.constant 0 : i32
    %c0_i32_0 = arith.constant 0 : i32
    %c0_i32_1 = arith.constant 0 : i32
    return %c0_i32, %c0_i32_0 : i32, i32
  }
  func.func @transform_26(%arg0: i32) -> (i32, i32, i32) {
    %c0_i32 = arith.constant 0 : i32
    %c0_i32_0 = arith.constant 0 : i32
    %c0_i32_1 = arith.constant 0 : i32
    return %arg0, %c0_i32, %c0_i32_0 : i32, i32, i32
  }
}

</mosaic_0001>

<llo_original>
// kernel: dagerc_forward.1
$region0: #{dagerc_forward.1}
  #allocation0 [shape = 'u32[]', space=smem, size = 0x4, offset = 0x4, fixed_abs, tag = 'smem constant byte address 0x4 - core index']
  #allocation1 [shape = 'u32[144,128]{1,0:T(1,128)}', space=vmem, size = 0x12000, scoped, tag = 'internal scratch']
  #allocation2 [shape = 'f32[8,32]{1,0:T(8,128)}', space=vmem, size = 0x1000, scoped, tag = 'scratch operand']
  #allocation3 [shape = 'f32[8,32]{1,0:T(8,128)}', space=vmem, size = 0x1000, scoped, tag = 'scratch operand']
  %s0 = inlined_call_operand.hbm [shape: f32[2,8,32], index: 0, kind: input, shape index: {}]
  %s1 = inlined_call_operand.vmem [shape: f32[2,8,8], index: 1, kind: input, shape index: {}]
  %s2 = inlined_call_operand.vmem [shape: f32[2,4,32], index: 2, kind: input, shape index: {}]
  %s3 = inlined_call_operand.vmem [shape: f32[2,4,8], index: 3, kind: input, shape index: {}]
  %s4 = inlined_call_operand.vmem [shape: f32[2,8,4], index: 4, kind: input, shape index: {}]
  %s5 = inlined_call_operand.hbm [shape: f32[32,32], index: 5, kind: input, shape index: {}]
  %s6 = inlined_call_operand.hbm [shape: f32[1,32], index: 6, kind: input, shape index: {}]
  %s7 = inlined_call_operand.hbm [shape: f32[32,32], index: 7, kind: input, shape index: {}]
  %s8 = inlined_call_operand.hbm [shape: f32[1,32], index: 8, kind: input, shape index: {}]
  %s9 = inlined_call_operand.vmem [shape: f32[2,32,32], index: 9, kind: input, shape index: {}]
  %s10 = inlined_call_operand.hbm [shape: f32[2,1,32], index: 10, kind: input, shape index: {}]
  %s11 = inlined_call_operand.vmem [shape: f32[2,32,32], index: 11, kind: input, shape index: {}]
  %s12 = inlined_call_operand.hbm [shape: f32[2,1,32], index: 12, kind: input, shape index: {}]
  %s13 = inlined_call_operand.vmem [shape: f32[2,32,32], index: 13, kind: input, shape index: {}]
  %s14 = inlined_call_operand.vmem [shape: f32[2,32,32], index: 14, kind: input, shape index: {}]
  %s15 = inlined_call_operand.hbm [shape: f32[2,1,32], index: 15, kind: input, shape index: {}]
  %s16 = inlined_call_operand.vmem [shape: f32[2,32,96], index: 16, kind: input, shape index: {}]
  %s17 = inlined_call_operand.hbm [shape: f32[2,32,96], index: 17, kind: input, shape index: {}]
  %s18 = inlined_call_operand.hbm [shape: f32[2,1,96], index: 18, kind: input, shape index: {}]
  %s19 = inlined_call_operand.hbm [shape: f32[2,1,96], index: 19, kind: input, shape index: {}]
  %s20 = inlined_call_operand.vmem [shape: f32[128,32], index: 20, kind: input, shape index: {}]
  %s21 = inlined_call_operand.hbm [shape: f32[1,32], index: 21, kind: input, shape index: {}]
  %s22 = inlined_call_operand.hbm [shape: f32[1,32,32], index: 22, kind: input, shape index: {}]
  %s23 = inlined_call_operand.hbm [shape: f32[1,1,32], index: 23, kind: input, shape index: {}]
  %s24 = inlined_call_operand.vmem [shape: f32[32,4], index: 24, kind: input, shape index: {}]
  %s25 = inlined_call_operand.hbm [shape: f32[1,4], index: 25, kind: input, shape index: {}]
  %s26 = inlined_call_operand.vmem [shape: f32[2,8,4], index: 26, kind: output, shape index: {}]
  %s27 = sld [smem:[#allocation0]]
  $region197: #{dagerc_forward.1} parent=0
    _
  %s29 = ssub.s32 1, %s27
  %s30 = scalar_select 0, %s29, %s27
  $region1: #{dagerc_forward.1} parent=0
    #allocation4 [shape = 'u8[8192]{0}', space=vmem, size = 0x2000, scoped, tag = 'input window, operand 0']
    #allocation5 [shape = 's32[2]{0}', space=sflag, size = 0x8, scoped, tag = 'scoped memory for dagerc_forward.1']
    #allocation6 [shape = 'u8[16384]{0}', space=vmem, size = 0x4000, scoped, tag = 'input window, operand 5, single buffered']
    #allocation7 [shape = 's32[1]{0}', space=sflag, size = 0x4, scoped, tag = 'scoped memory for dagerc_forward.1']
    #allocation8 [shape = 'u8[512]{0}', space=vmem, size = 0x400, scoped, tag = 'input window, operand 6, single buffered']
    #allocation9 [shape = 'u8[16384]{0}', space=vmem, size = 0x4000, scoped, tag = 'input window, operand 7, single buffered']
    #allocation10 [shape = 's32[1]{0}', space=sflag, size = 0x4, scoped, tag = 'scoped memory for dagerc_forward.1']
    #allocation11 [shape = 'u8[512]{0}', space=vmem, size = 0x400, scoped, tag = 'input window, operand 8, single buffered']
    #allocation12 [shape = 'u8[1024]{0}', space=vmem, size = 0x400, scoped, tag = 'input window, operand 10, single buffered']
    #allocation13 [shape = 's32[1]{0}', space=sflag, size = 0x4, scoped, tag = 'scoped memory for dagerc_forward.1']
    #allocation14 [shape = 'u8[1024]{0}', space=vmem, size = 0x400, scoped, tag = 'input window, operand 12, single buffered']
    #allocation15 [shape = 'u8[1024]{0}', space=vmem, size = 0x400, scoped, tag = 'input window, operand 15, single buffered']
    #allocation16 [shape = 's32[1]{0}', space=sflag, size = 0x4, scoped, tag = 'scoped memory for dagerc_forward.1']
    #allocation17 [shape = 'u8[32768]{0}', space=vmem, size = 0x8000, scoped, tag = 'input window, operand 17, single buffered']
    #allocation18 [shape = 'u8[1024]{0}', space=vmem, size = 0x400, scoped, tag = 'input window, operand 18, single buffered']
    #allocation19 [shape = 's32[1]{0}', space=sflag, size = 0x4, scoped, tag = 'scoped memory for dagerc_forward.1']
    #allocation20 [shape = 'u8[1024]{0}', space=vmem, size = 0x400, scoped, tag = 'input window, operand 19, single buffered']
    #allocation21 [shape = 'u8[512]{0}', space=vmem, size = 0x400, scoped, tag = 'input window, operand 21, single buffered']
    #allocation22 [shape = 's32[1]{0}', space=sflag, size = 0x4, scoped, tag = 'scoped memory for dagerc_forward.1']
    #allocation23 [shape = 'u8[16384]{0}', space=vmem, size = 0x4000, scoped, tag = 'input window, operand 22, single buffered']
    #allocation24 [shape = 'u8[512]{0}', space=vmem, size = 0x400, scoped, tag = 'input window, operand 23, single buffered']
    #allocation25 [shape = 's32[1]{0}', space=sflag, size = 0x4, scoped, tag = 'scoped memory for dagerc_forward.1']
    #allocation26 [shape = 'u8[512]{0}', space=vmem, size = 0x400, scoped, tag = 'input window, operand 25, single buffered']
    %31 = vsyncpa [#allocation5], 0
    %s32 = scalar_lea.sflag [#allocation5], 1
    %33 = vsyncpa %s32, 0
    %34 = vsyncpa [#allocation7], 0
    %35 = vsyncpa [#allocation10], 0
    %36 = vsyncpa [#allocation13], 0
    %37 = vsyncpa [#allocation16], 0
    %38 = vsyncpa [#allocation19], 0
    %39 = vsyncpa [#allocation22], 0
    %40 = vsyncpa [#allocation25], 0
    loop: start=0, step=1, limit=4
    $region2: #{dagerc_forward.1} parent=1 // loop_pre_header
      _
    $region3: #{dagerc_forward.1} parent=1 // loop_header
      %s42 = sphi 0, %s46
      %p43 = scmp.ge.s32.totalorder %s42, 4
      %s52 = sphi 0, %s54
      %s55 = sphi 0, %s52
      %s56 = sphi 0, %s55
      %s72 = sphi 0, %s56
      %s78 = sphi 0, %s80
      %s81 = sphi 0, %s78
      %s82 = sphi 0, %s81
      %s98 = sphi 0, %s82
      %s104 = sphi 0, %s106
      %s107 = sphi 0, %s104
      %s108 = sphi 0, %s107
      %s124 = sphi 0, %s108
      %s130 = sphi 0, %s132
      %s133 = sphi 0, %s130
      %s134 = sphi 0, %s133
      %s150 = sphi 0, %s134
      %s156 = sphi 0, %s158
      %s159 = sphi 0, %s156
      %s160 = sphi 0, %s159
      %s176 = sphi 0, %s160
      %s180 = sphi 0, %s180
      %s182 = sphi 0, %s180
      %s183 = sphi 0, %s182
      %s197 = sphi 0, %s183
      %s201 = sphi 0, %s201
      %s203 = sphi 0, %s201
      %s204 = sphi 0, %s203
      %s218 = sphi 0, %s204
      %s222 = sphi 0, %s222
      %s224 = sphi 0, %s222
      %s225 = sphi 0, %s224
      %s239 = sphi 0, %s225
      %s243 = sphi 0, %s243
      %s245 = sphi 0, %s243
      %s246 = sphi 0, %s245
      %s260 = sphi 0, %s246
      %s264 = sphi 0, %s264
      %s266 = sphi 0, %s264
      %s267 = sphi 0, %s266
      %s281 = sphi 0, %s267
      %s285 = sphi 0, %s285
      %s287 = sphi 0, %s285
      %s288 = sphi 0, %s287
      %s302 = sphi 0, %s288
      %s306 = sphi 0, %s306
      %s308 = sphi 0, %s306
      %s309 = sphi 0, %s308
      %s323 = sphi 0, %s309
      %s327 = sphi 0, %s327
      %s329 = sphi 0, %s327
      %s330 = sphi 0, %s329
      %s344 = sphi 0, %s330
      %s348 = sphi 0, %s348
      %s350 = sphi 0, %s348
      %s351 = sphi 0, %s350
      %s365 = sphi 0, %s351
      %s369 = sphi 0, %s369
      %s371 = sphi 0, %s369
      %s372 = sphi 0, %s371
      %s386 = sphi 0, %s372
      %s390 = sphi 0, %s390
      %s392 = sphi 0, %s390
      %s393 = sphi 0, %s392
      %s407 = sphi 0, %s393
      %s411 = sphi 0, %s411
      %s413 = sphi 0, %s411
      %s414 = sphi 0, %s413
      %s428 = sphi 0, %s414
      %s432 = sphi 0, %s432
      %s434 = sphi 0, %s432
      %s435 = sphi 0, %s434
      %s449 = sphi 0, %s435
      %s453 = sphi 0, %s453
      %s455 = sphi 0, %s453
      %s456 = sphi 0, %s455
      %s470 = sphi 0, %s456
      %s474 = sphi 0, %s474
      %s476 = sphi 0, %s474
      %s477 = sphi 0, %s476
      %s491 = sphi 0, %s477
      %s495 = sphi 0, %s495
      %s497 = sphi 0, %s495
      %s498 = sphi 0, %s497
      %s512 = sphi 0, %s498
      %s516 = sphi 0, %s516
      %s518 = sphi 0, %s516
      %s519 = sphi 0, %s518
      %s533 = sphi 0, %s519
      %s537 = sphi 0, %s537
      %s539 = sphi 0, %s537
      %s540 = sphi 0, %s539
      %s554 = sphi 0, %s540
      %s558 = sphi 0, %s558
      %s560 = sphi 0, %s558
      %s561 = sphi 0, %s560
      %s575 = sphi 0, %s561
      %s579 = sphi 0, %s579
      %s581 = sphi 0, %s579
      %s582 = sphi 0, %s581
      %s596 = sphi 0, %s582
      %s600 = sphi 0, %s600
      %s602 = sphi 0, %s600
      %s603 = sphi 0, %s602
      %s617 = sphi 0, %s603
      %s623 = sphi 0, %s625
      %s626 = sphi 0, %s623
      %s627 = sphi 0, %s626
      %s643 = sphi 0, %s627
    $region4: #{dagerc_forward.1} parent=1 // loop_header_branch
      %45 = sbr.rel (%p43) target = $region8
    $region5: #{dagerc_forward.1} parent=1 // loop_body
      %s47 = ssub.s32 %s42, 1
      %s48 = ssub.s32 %s42, 2
      %s49 = sadd.s32 %s42, 1
      %s50 = ssub.s32 %s42, %s49
      %p51 = scmp.eq.s32.totalorder %s50, 0
      %s53 = sadd.s32 %s52, 1
      %s54 = scalar_select %p51, %s52, %s53
      %p57 = pneg %p51
      %p58 = scmp.eq.s32.totalorder %s42, 1
      %p59 = por %p57, %p58
      %p60 = scmp.ne.s32.totalorder %s52, %s55
      %p61 = scmp.eq.s32.totalorder %s42, 0
      %p62 = por %p60, %p61
      %p63 = scmp.ne.s32.totalorder %s52, %s55
      %p64 = scmp.eq.s32.totalorder %s47, 1
      %p65 = por %p63, %p64
      %p66 = scmp.ne.s32.totalorder %s55, %s56
      %p67 = scmp.eq.s32.totalorder %s47, 0
      %p68 = por %p66, %p67
      %p69 = scmp.ne.s32.totalorder %s55, %s56
      %p70 = scmp.eq.s32.totalorder %s48, 1
      %p71 = por %p69, %p70
      %p73 = scmp.ne.s32.totalorder %s56, %s72
      %p74 = scmp.eq.s32.totalorder %s48, 0
      %p75 = por %p73, %p74
      %s76 = ssub.s32 %s42, %s49
      %p77 = scmp.eq.s32.totalorder %s76, 0
      %s79 = sadd.s32 %s78, 1
      %s80 = scalar_select %p77, %s78, %s79
      %p83 = pneg %p77
      %p84 = scmp.eq.s32.totalorder %s42, 1
      %p85 = por %p83, %p84
      %p86 = scmp.ne.s32.totalorder %s78, %s81
      %p87 = scmp.eq.s32.totalorder %s42, 0
      %p88 = por %p86, %p87
      %p89 = scmp.ne.s32.totalorder %s78, %s81
      %p90 = scmp.eq.s32.totalorder %s47, 1
      %p91 = por %p89, %p90
      %p92 = scmp.ne.s32.totalorder %s81, %s82
      %p93 = scmp.eq.s32.totalorder %s47, 0
      %p94 = por %p92, %p93
      %p95 = scmp.ne.s32.totalorder %s81, %s82
      %p96 = scmp.eq.s32.totalorder %s48, 1
      %p97 = por %p95, %p96
      %p99 = scmp.ne.s32.totalorder %s82, %s98
      %p100 = scmp.eq.s32.totalorder %s48, 0
      %p101 = por %p99, %p100
      %s102 = ssub.s32 %s42, %s49
      %p103 = scmp.eq.s32.totalorder %s102, 0
      %s105 = sadd.s32 %s104, 1
      %s106 = scalar_select %p103, %s104, %s105
      %p109 = pneg %p103
      %p110 = scmp.eq.s32.totalorder %s42, 1
      %p111 = por %p109, %p110
      %p112 = scmp.ne.s32.totalorder %s104, %s107
      %p113 = scmp.eq.s32.totalorder %s42, 0
      %p114 = por %p112, %p113
      %p115 = scmp.ne.s32.totalorder %s104, %s107
      %p116 = scmp.eq.s32.totalorder %s47, 1
      %p117 = por %p115, %p116
      %p118 = scmp.ne.s32.totalorder %s107, %s108
      %p119 = scmp.eq.s32.totalorder %s47, 0
      %p120 = por %p118, %p119
      %p121 = scmp.ne.s32.totalorder %s107, %s108
      %p122 = scmp.eq.s32.totalorder %s48, 1
      %p123 = por %p121, %p122
      %p125 = scmp.ne.s32.totalorder %s108, %s124
      %p126 = scmp.eq.s32.totalorder %s48, 0
      %p127 = por %p125, %p126
      %s128 = ssub.s32 %s42, %s49
      %p129 = scmp.eq.s32.totalorder %s128, 0
      %s131 = sadd.s32 %s130, 1
      %s132 = scalar_select %p129, %s130, %s131
      %p135 = pneg %p129
      %p136 = scmp.eq.s32.totalorder %s42, 1
      %p137 = por %p135, %p136
      %p138 = scmp.ne.s32.totalorder %s130, %s133
      %p139 = scmp.eq.s32.totalorder %s42, 0
      %p140 = por %p138, %p139
      %p141 = scmp.ne.s32.totalorder %s130, %s133
      %p142 = scmp.eq.s32.totalorder %s47, 1
      %p143 = por %p141, %p142
      %p144 = scmp.ne.s32.totalorder %s133, %s134
      %p145 = scmp.eq.s32.totalorder %s47, 0
      %p146 = por %p144, %p145
      %p147 = scmp.ne.s32.totalorder %s133, %s134
      %p148 = scmp.eq.s32.totalorder %s48, 1
      %p149 = por %p147, %p148
      %p151 = scmp.ne.s32.totalorder %s134, %s150
      %p152 = scmp.eq.s32.totalorder %s48, 0
      %p153 = por %p151, %p152
      %s154 = ssub.s32 %s42, %s49
      %p155 = scmp.eq.s32.totalorder %s154, 0
      %s157 = sadd.s32 %s156, 1
      %s158 = scalar_select %p155, %s156, %s157
      %p161 = pneg %p155
      %p162 = scmp.eq.s32.totalorder %s42, 1
      %p163 = por %p161, %p162
      %p164 = scmp.ne.s32.totalorder %s156, %s159
      %p165 = scmp.eq.s32.totalorder %s42, 0
      %p166 = por %p164, %p165
      %p167 = scmp.ne.s32.totalorder %s156, %s159
      %p168 = scmp.eq.s32.totalorder %s47, 1
      %p169 = por %p167, %p168
      %p170 = scmp.ne.s32.totalorder %s159, %s160
      %p171 = scmp.eq.s32.totalorder %s47, 0
      %p172 = por %p170, %p171
      %p173 = scmp.ne.s32.totalorder %s159, %s160
      %p174 = scmp.eq.s32.totalorder %s48, 1
      %p175 = por %p173, %p174
      %p177 = scmp.ne.s32.totalorder %s160, %s176
      %p178 = scmp.eq.s32.totalorder %s48, 0
      %p179 = por %p177, %p178
      %s181 = sadd.s32 %s180, 1
      %p184 = scmp.eq.s32.totalorder %s42, 1
      %p185 = scmp.ne.s32.totalorder %s180, %s182
      %p186 = scmp.eq.s32.totalorder %s42, 0
      %p187 = por %p185, %p186
      %p188 = scmp.ne.s32.totalorder %s180, %s182
      %p189 = scmp.eq.s32.totalorder %s47, 1
      %p190 = por %p188, %p189
      %p191 = scmp.ne.s32.totalorder %s182, %s183
      %p192 = scmp.eq.s32.totalorder %s47, 0
      %p193 = por %p191, %p192
      %p194 = scmp.ne.s32.totalorder %s182, %s183
      %p195 = scmp.eq.s32.totalorder %s48, 1
      %p196 = por %p194, %p195
      %p198 = scmp.ne.s32.totalorder %s183, %s197
      %p199 = scmp.eq.s32.totalorder %s48, 0
      %p200 = por %p198, %p199
      %s202 = sadd.s32 %s201, 1
      %p205 = scmp.eq.s32.totalorder %s42, 1
      %p206 = scmp.ne.s32.totalorder %s201, %s203
      %p207 = scmp.eq.s32.totalorder %s42, 0
      %p208 = por %p206, %p207
      %p209 = scmp.ne.s32.totalorder %s201, %s203
      %p210 = scmp.eq.s32.totalorder %s47, 1
      %p211 = por %p209, %p210
      %p212 = scmp.ne.s32.totalorder %s203, %s204
      %p213 = scmp.eq.s32.totalorder %s47, 0
      %p214 = por %p212, %p213
      %p215 = scmp.ne.s32.totalorder %s203, %s204
      %p216 = scmp.eq.s32.totalorder %s48, 1
      %p217 = por %p215, %p216
      %p219 = scmp.ne.s32.totalorder %s204, %s218
      %p220 = scmp.eq.s32.totalorder %s48, 0
      %p221 = por %p219, %p220
      %s223 = sadd.s32 %s222, 1
      %p226 = scmp.eq.s32.totalorder %s42, 1
      %p227 = scmp.ne.s32.totalorder %s222, %s224
      %p228 = scmp.eq.s32.totalorder %s42, 0
      %p229 = por %p227, %p228
      %p230 = scmp.ne.s32.totalorder %s222, %s224
      %p231 = scmp.eq.s32.totalorder %s47, 1
      %p232 = por %p230, %p231
      %p233 = scmp.ne.s32.totalorder %s224, %s225
      %p234 = scmp.eq.s32.totalorder %s47, 0
      %p235 = por %p233, %p234
      %p236 = scmp.ne.s32.totalorder %s224, %s225
      %p237 = scmp.eq.s32.totalorder %s48, 1
      %p238 = por %p236, %p237
      %p240 = scmp.ne.s32.totalorder %s225, %s239
      %p241 = scmp.eq.s32.totalorder %s48, 0
      %p242 = por %p240, %p241
      %s244 = sadd.s32 %s243, 1
      %p247 = scmp.eq.s32.totalorder %s42, 1
      %p248 = scmp.ne.s32.totalorder %s243, %s245
      %p249 = scmp.eq.s32.totalorder %s42, 0
      %p250 = por %p248, %p249
      %p251 = scmp.ne.s32.totalorder %s243, %s245
      %p252 = scmp.eq.s32.totalorder %s47, 1
      %p253 = por %p251, %p252
      %p254 = scmp.ne.s32.totalorder %s245, %s246
      %p255 = scmp.eq.s32.totalorder %s47, 0
      %p256 = por %p254, %p255
      %p257 = scmp.ne.s32.totalorder %s245, %s246
      %p258 = scmp.eq.s32.totalorder %s48, 1
      %p259 = por %p257, %p258
      %p261 = scmp.ne.s32.totalorder %s246, %s260
      %p262 = scmp.eq.s32.totalorder %s48, 0
      %p263 = por %p261, %p262
      %s265 = sadd.s32 %s264, 1
      %p268 = scmp.eq.s32.totalorder %s42, 1
      %p269 = scmp.ne.s32.totalorder %s264, %s266
      %p270 = scmp.eq.s32.totalorder %s42, 0
      %p271 = por %p269, %p270
      %p272 = scmp.ne.s32.totalorder %s264, %s266
      %p273 = scmp.eq.s32.totalorder %s47, 1
      %p274 = por %p272, %p273
      %p275 = scmp.ne.s32.totalorder %s266, %s267
      %p276 = scmp.eq.s32.totalorder %s47, 0
      %p277 = por %p275, %p276
      %p278 = scmp.ne.s32.totalorder %s266, %s267
      %p279 = scmp.eq.s32.totalorder %s48, 1
      %p280 = por %p278, %p279
      %p282 = scmp.ne.s32.totalorder %s267, %s281
      %p283 = scmp.eq.s32.totalorder %s48, 0
      %p284 = por %p282, %p283
      %s286 = sadd.s32 %s285, 1
      %p289 = scmp.eq.s32.totalorder %s42, 1
      %p290 = scmp.ne.s32.totalorder %s285, %s287
      %p291 = scmp.eq.s32.totalorder %s42, 0
      %p292 = por %p290, %p291
      %p293 = scmp.ne.s32.totalorder %s285, %s287
      %p294 = scmp.eq.s32.totalorder %s47, 1
      %p295 = por %p293, %p294
      %p296 = scmp.ne.s32.totalorder %s287, %s288
      %p297 = scmp.eq.s32.totalorder %s47, 0
      %p298 = por %p296, %p297
      %p299 = scmp.ne.s32.totalorder %s287, %s288
      %p300 = scmp.eq.s32.totalorder %s48, 1
      %p301 = por %p299, %p300
      %p303 = scmp.ne.s32.totalorder %s288, %s302
      %p304 = scmp.eq.s32.totalorder %s48, 0
      %p305 = por %p303, %p304
      %s307 = sadd.s32 %s306, 1
      %p310 = scmp.eq.s32.totalorder %s42, 1
      %p311 = scmp.ne.s32.totalorder %s306, %s308
      %p312 = scmp.eq.s32.totalorder %s42, 0
      %p313 = por %p311, %p312
      %p314 = scmp.ne.s32.totalorder %s306, %s308
      %p315 = scmp.eq.s32.totalorder %s47, 1
      %p316 = por %p314, %p315
      %p317 = scmp.ne.s32.totalorder %s308, %s309
      %p318 = scmp.eq.s32.totalorder %s47, 0
      %p319 = por %p317, %p318
      %p320 = scmp.ne.s32.totalorder %s308, %s309
      %p321 = scmp.eq.s32.totalorder %s48, 1
      %p322 = por %p320, %p321
      %p324 = scmp.ne.s32.totalorder %s309, %s323
      %p325 = scmp.eq.s32.totalorder %s48, 0
      %p326 = por %p324, %p325
      %s328 = sadd.s32 %s327, 1
      %p331 = scmp.eq.s32.totalorder %s42, 1
      %p332 = scmp.ne.s32.totalorder %s327, %s329
      %p333 = scmp.eq.s32.totalorder %s42, 0
      %p334 = por %p332, %p333
      %p335 = scmp.ne.s32.totalorder %s327, %s329
      %p336 = scmp.eq.s32.totalorder %s47, 1
      %p337 = por %p335, %p336
      %p338 = scmp.ne.s32.totalorder %s329, %s330
      %p339 = scmp.eq.s32.totalorder %s47, 0
      %p340 = por %p338, %p339
      %p341 = scmp.ne.s32.totalorder %s329, %s330
      %p342 = scmp.eq.s32.totalorder %s48, 1
      %p343 = por %p341, %p342
      %p345 = scmp.ne.s32.totalorder %s330, %s344
      %p346 = scmp.eq.s32.totalorder %s48, 0
      %p347 = por %p345, %p346
      %s349 = sadd.s32 %s348, 1
      %p352 = scmp.eq.s32.totalorder %s42, 1
      %p353 = scmp.ne.s32.totalorder %s348, %s350
      %p354 = scmp.eq.s32.totalorder %s42, 0
      %p355 = por %p353, %p354
      %p356 = scmp.ne.s32.totalorder %s348, %s350
      %p357 = scmp.eq.s32.totalorder %s47, 1
      %p358 = por %p356, %p357
      %p359 = scmp.ne.s32.totalorder %s350, %s351
      %p360 = scmp.eq.s32.totalorder %s47, 0
      %p361 = por %p359, %p360
      %p362 = scmp.ne.s32.totalorder %s350, %s351
      %p363 = scmp.eq.s32.totalorder %s48, 1
      %p364 = por %p362, %p363
      %p366 = scmp.ne.s32.totalorder %s351, %s365
      %p367 = scmp.eq.s32.totalorder %s48, 0
      %p368 = por %p366, %p367
      %s370 = sadd.s32 %s369, 1
      %p373 = scmp.eq.s32.totalorder %s42, 1
      %p374 = scmp.ne.s32.totalorder %s369, %s371
      %p375 = scmp.eq.s32.totalorder %s42, 0
      %p376 = por %p374, %p375
      %p377 = scmp.ne.s32.totalorder %s369, %s371
      %p378 = scmp.eq.s32.totalorder %s47, 1
      %p379 = por %p377, %p378
      %p380 = scmp.ne.s32.totalorder %s371, %s372
      %p381 = scmp.eq.s32.totalorder %s47, 0
      %p382 = por %p380, %p381
      %p383 = scmp.ne.s32.totalorder %s371, %s372
      %p384 = scmp.eq.s32.totalorder %s48, 1
      %p385 = por %p383, %p384
      %p387 = scmp.ne.s32.totalorder %s372, %s386
      %p388 = scmp.eq.s32.totalorder %s48, 0
      %p389 = por %p387, %p388
      %s391 = sadd.s32 %s390, 1
      %p394 = scmp.eq.s32.totalorder %s42, 1
      %p395 = scmp.ne.s32.totalorder %s390, %s392
      %p396 = scmp.eq.s32.totalorder %s42, 0
      %p397 = por %p395, %p396
      %p398 = scmp.ne.s32.totalorder %s390, %s392
      %p399 = scmp.eq.s32.totalorder %s47, 1
      %p400 = por %p398, %p399
      %p401 = scmp.ne.s32.totalorder %s392, %s393
      %p402 = scmp.eq.s32.totalorder %s47, 0
      %p403 = por %p401, %p402
      %p404 = scmp.ne.s32.totalorder %s392, %s393
      %p405 = scmp.eq.s32.totalorder %s48, 1
      %p406 = por %p404, %p405
      %p408 = scmp.ne.s32.totalorder %s393, %s407
      %p409 = scmp.eq.s32.totalorder %s48, 0
      %p410 = por %p408, %p409
      %s412 = sadd.s32 %s411, 1
      %p415 = scmp.eq.s32.totalorder %s42, 1
      %p416 = scmp.ne.s32.totalorder %s411, %s413
      %p417 = scmp.eq.s32.totalorder %s42, 0
      %p418 = por %p416, %p417
      %p419 = scmp.ne.s32.totalorder %s411, %s413
      %p420 = scmp.eq.s32.totalorder %s47, 1
      %p421 = por %p419, %p420
      %p422 = scmp.ne.s32.totalorder %s413, %s414
      %p423 = scmp.eq.s32.totalorder %s47, 0
      %p424 = por %p422, %p423
      %p425 = scmp.ne.s32.totalorder %s413, %s414
      %p426 = scmp.eq.s32.totalorder %s48, 1
      %p427 = por %p425, %p426
      %p429 = scmp.ne.s32.totalorder %s414, %s428
      %p430 = scmp.eq.s32.totalorder %s48, 0
      %p431 = por %p429, %p430
      %s433 = sadd.s32 %s432, 1
      %p436 = scmp.eq.s32.totalorder %s42, 1
      %p437 = scmp.ne.s32.totalorder %s432, %s434
      %p438 = scmp.eq.s32.totalorder %s42, 0
      %p439 = por %p437, %p438
      %p440 = scmp.ne.s32.totalorder %s432, %s434
      %p441 = scmp.eq.s32.totalorder %s47, 1
      %p442 = por %p440, %p441
      %p443 = scmp.ne.s32.totalorder %s434, %s435
      %p444 = scmp.eq.s32.totalorder %s47, 0
      %p445 = por %p443, %p444
      %p446 = scmp.ne.s32.totalorder %s434, %s435
      %p447 = scmp.eq.s32.totalorder %s48, 1
      %p448 = por %p446, %p447
      %p450 = scmp.ne.s32.totalorder %s435, %s449
      %p451 = scmp.eq.s32.totalorder %s48, 0
      %p452 = por %p450, %p451
      %s454 = sadd.s32 %s453, 1
      %p457 = scmp.eq.s32.totalorder %s42, 1
      %p458 = scmp.ne.s32.totalorder %s453, %s455
      %p459 = scmp.eq.s32.totalorder %s42, 0
      %p460 = por %p458, %p459
      %p461 = scmp.ne.s32.totalorder %s453, %s455
      %p462 = scmp.eq.s32.totalorder %s47, 1
      %p463 = por %p461, %p462
      %p464 = scmp.ne.s32.totalorder %s455, %s456
      %p465 = scmp.eq.s32.totalorder %s47, 0
      %p466 = por %p464, %p465
      %p467 = scmp.ne.s32.totalorder %s455, %s456
      %p468 = scmp.eq.s32.totalorder %s48, 1
      %p469 = por %p467, %p468
      %p471 = scmp.ne.s32.totalorder %s456, %s470
      %p472 = scmp.eq.s32.totalorder %s48, 0
      %p473 = por %p471, %p472
      %s475 = sadd.s32 %s474, 1
      %p478 = scmp.eq.s32.totalorder %s42, 1
      %p479 = scmp.ne.s32.totalorder %s474, %s476
      %p480 = scmp.eq.s32.totalorder %s42, 0
      %p481 = por %p479, %p480
      %p482 = scmp.ne.s32.totalorder %s474, %s476
      %p483 = scmp.eq.s32.totalorder %s47, 1
      %p484 = por %p482, %p483
      %p485 = scmp.ne.s32.totalorder %s476, %s477
      %p486 = scmp.eq.s32.totalorder %s47, 0
      %p487 = por %p485, %p486
      %p488 = scmp.ne.s32.totalorder %s476, %s477
      %p489 = scmp.eq.s32.totalorder %s48, 1
      %p490 = por %p488, %p489
      %p492 = scmp.ne.s32.totalorder %s477, %s491
      %p493 = scmp.eq.s32.totalorder %s48, 0
      %p494 = por %p492, %p493
      %s496 = sadd.s32 %s495, 1
      %p499 = scmp.eq.s32.totalorder %s42, 1
      %p500 = scmp.ne.s32.totalorder %s495, %s497
      %p501 = scmp.eq.s32.totalorder %s42, 0
      %p502 = por %p500, %p501
      %p503 = scmp.ne.s32.totalorder %s495, %s497
      %p504 = scmp.eq.s32.totalorder %s47, 1
      %p505 = por %p503, %p504
      %p506 = scmp.ne.s32.totalorder %s497, %s498
      %p507 = scmp.eq.s32.totalorder %s47, 0
      %p508 = por %p506, %p507
      %p509 = scmp.ne.s32.totalorder %s497, %s498
      %p510 = scmp.eq.s32.totalorder %s48, 1
      %p511 = por %p509, %p510
      %p513 = scmp.ne.s32.totalorder %s498, %s512
      %p514 = scmp.eq.s32.totalorder %s48, 0
      %p515 = por %p513, %p514
      %s517 = sadd.s32 %s516, 1
      %p520 = scmp.eq.s32.totalorder %s42, 1
      %p521 = scmp.ne.s32.totalorder %s516, %s518
      %p522 = scmp.eq.s32.totalorder %s42, 0
      %p523 = por %p521, %p522
      %p524 = scmp.ne.s32.totalorder %s516, %s518
      %p525 = scmp.eq.s32.totalorder %s47, 1
      %p526 = por %p524, %p525
      %p527 = scmp.ne.s32.totalorder %s518, %s519
      %p528 = scmp.eq.s32.totalorder %s47, 0
      %p529 = por %p527, %p528
      %p530 = scmp.ne.s32.totalorder %s518, %s519
      %p531 = scmp.eq.s32.totalorder %s48, 1
      %p532 = por %p530, %p531
      %p534 = scmp.ne.s32.totalorder %s519, %s533
      %p535 = scmp.eq.s32.totalorder %s48, 0
      %p536 = por %p534, %p535
      %s538 = sadd.s32 %s537, 1
      %p541 = scmp.eq.s32.totalorder %s42, 1
      %p542 = scmp.ne.s32.totalorder %s537, %s539
      %p543 = scmp.eq.s32.totalorder %s42, 0
      %p544 = por %p542, %p543
      %p545 = scmp.ne.s32.totalorder %s537, %s539
      %p546 = scmp.eq.s32.totalorder %s47, 1
      %p547 = por %p545, %p546
      %p548 = scmp.ne.s32.totalorder %s539, %s540
      %p549 = scmp.eq.s32.totalorder %s47, 0
      %p550 = por %p548, %p549
      %p551 = scmp.ne.s32.totalorder %s539, %s540
      %p552 = scmp.eq.s32.totalorder %s48, 1
      %p553 = por %p551, %p552
      %p555 = scmp.ne.s32.totalorder %s540, %s554
      %p556 = scmp.eq.s32.totalorder %s48, 0
      %p557 = por %p555, %p556
      %s559 = sadd.s32 %s558, 1
      %p562 = scmp.eq.s32.totalorder %s42, 1
      %p563 = scmp.ne.s32.totalorder %s558, %s560
      %p564 = scmp.eq.s32.totalorder %s42, 0
      %p565 = por %p563, %p564
      %p566 = scmp.ne.s32.totalorder %s558, %s560
      %p567 = scmp.eq.s32.totalorder %s47, 1
      %p568 = por %p566, %p567
      %p569 = scmp.ne.s32.totalorder %s560, %s561
      %p570 = scmp.eq.s32.totalorder %s47, 0
      %p571 = por %p569, %p570
      %p572 = scmp.ne.s32.totalorder %s560, %s561
      %p573 = scmp.eq.s32.totalorder %s48, 1
      %p574 = por %p572, %p573
      %p576 = scmp.ne.s32.totalorder %s561, %s575
      %p577 = scmp.eq.s32.totalorder %s48, 0
      %p578 = por %p576, %p577
      %s580 = sadd.s32 %s579, 1
      %p583 = scmp.eq.s32.totalorder %s42, 1
      %p584 = scmp.ne.s32.totalorder %s579, %s581
      %p585 = scmp.eq.s32.totalorder %s42, 0
      %p586 = por %p584, %p585
      %p587 = scmp.ne.s32.totalorder %s579, %s581
      %p588 = scmp.eq.s32.totalorder %s47, 1
      %p589 = por %p587, %p588
      %p590 = scmp.ne.s32.totalorder %s581, %s582
      %p591 = scmp.eq.s32.totalorder %s47, 0
      %p592 = por %p590, %p591
      %p593 = scmp.ne.s32.totalorder %s581, %s582
      %p594 = scmp.eq.s32.totalorder %s48, 1
      %p595 = por %p593, %p594
      %p597 = scmp.ne.s32.totalorder %s582, %s596
      %p598 = scmp.eq.s32.totalorder %s48, 0
      %p599 = por %p597, %p598
      %s601 = sadd.s32 %s600, 1
      %p604 = scmp.eq.s32.totalorder %s42, 1
      %p605 = scmp.ne.s32.totalorder %s600, %s602
      %p606 = scmp.eq.s32.totalorder %s42, 0
      %p607 = por %p605, %p606
      %p608 = scmp.ne.s32.totalorder %s600, %s602
      %p609 = scmp.eq.s32.totalorder %s47, 1
      %p610 = por %p608, %p609
      %p611 = scmp.ne.s32.totalorder %s602, %s603
      %p612 = scmp.eq.s32.totalorder %s47, 0
      %p613 = por %p611, %p612
      %p614 = scmp.ne.s32.totalorder %s602, %s603
      %p615 = scmp.eq.s32.totalorder %s48, 1
      %p616 = por %p614, %p615
      %p618 = scmp.ne.s32.totalorder %s603, %s617
      %p619 = scmp.eq.s32.totalorder %s48, 0
      %p620 = por %p618, %p619
      %s621 = ssub.s32 %s42, %s49
      %p622 = scmp.eq.s32.totalorder %s621, 0
      %s624 = sadd.s32 %s623, 1
      %s625 = scalar_select %p622, %s623, %s624
      %p628 = pneg %p622
      %p629 = scmp.eq.s32.totalorder %s42, 1
      %p630 = por %p628, %p629
      %p631 = scmp.ne.s32.totalorder %s623, %s626
      %p632 = scmp.eq.s32.totalorder %s42, 0
      %p633 = por %p631, %p632
      %p634 = scmp.ne.s32.totalorder %s623, %s626
      %p635 = scmp.eq.s32.totalorder %s47, 1
      %p636 = por %p634, %p635
      %p637 = scmp.ne.s32.totalorder %s626, %s627
      %p638 = scmp.eq.s32.totalorder %s47, 0
      %p639 = por %p637, %p638
      %p640 = scmp.ne.s32.totalorder %s626, %s627
      %p641 = scmp.eq.s32.totalorder %s48, 1
      %p642 = por %p640, %p641
      %p644 = scmp.ne.s32.totalorder %s627, %s643
      %p645 = scmp.eq.s32.totalorder %s48, 0
      %p646 = por %p644, %p645
      %p647 = scmp.le.s32.totalorder 1, %s42
      %p648 = scmp.lt.s32.totalorder %s42, 3
      %p649 = pnand %p647, %p648
      %p650 = pneg %p649
      // Predicated region
      $region9: #{dagerc_forward.1} parent=5 // pred_check
        _
      $region10: #{dagerc_forward.1} parent=5 // pred_check_branch
        %652 = sbr.rel (%p649) target = $region12
      $region11: #{dagerc_forward.1} parent=5 // pred_region
        %s653 = ssub.s32 %s42, 1
        // Predicated region
        $region13: #{dagerc_forward.1} parent=11 // pred_check
          %p654 = pneg %p193
        $region14: #{dagerc_forward.1} parent=11 // pred_check_branch
          %656 = sbr.rel (%p654) target = $region16
        $region15: #{dagerc_forward.1} parent=11 // pred_region
          %s658 = ssub.s32 512, 512
          %659 = vsyncadd [#allocation7], %s658
          %s660 = sshll.u32 [#allocation6], 4
          %s661 = int_to_ptr.vmem [resolvable:$true] %s660
          %666 = dma.hbm_to_vmem [thread:$0]  %s5, 512, %s661, [#allocation7], 128, 128, 8
        $region16: #{dagerc_forward.1} parent=11 // pred_fallthru
          _
        // Predicated region
        $region17: #{dagerc_forward.1} parent=11 // pred_check
          %p667 = pneg %p214
        $region18: #{dagerc_forward.1} parent=11 // pred_check_branch
          %669 = sbr.rel (%p667) target = $region20
        $region19: #{dagerc_forward.1} parent=11 // pred_region
          %s671 = ssub.s32 16, 16
          %672 = vsyncadd [#allocation7], %s671
          %s674 = sshll.u32 [#allocation8], 4
          %s675 = int_to_ptr.vmem [resolvable:$true] %s674
          %677 = dma.hbm_to_vmem [thread:$0]  %s6, 16, %s675, [#allocation7]
        $region20: #{dagerc_forward.1} parent=11 // pred_fallthru
          _
        // Predicated region
        $region21: #{dagerc_forward.1} parent=11 // pred_check
          %p678 = pneg %p235
        $region22: #{dagerc_forward.1} parent=11 // pred_check_branch
          %680 = sbr.rel (%p678) target = $region24
        $region23: #{dagerc_forward.1} parent=11 // pred_region
          %s682 = ssub.s32 512, 512
          %683 = vsyncadd [#allocation10], %s682
          %s684 = sshll.u32 [#allocation9], 4
          %s685 = int_to_ptr.vmem [resolvable:$true] %s684
          %690 = dma.hbm_to_vmem [thread:$0]  %s7, 512, %s685, [#allocation10], 128, 128, 8
        $region24: #{dagerc_forward.1} parent=11 // pred_fallthru
          _
        // Predicated region
        $region25: #{dagerc_forward.1} parent=11 // pred_check
          %p691 = pneg %p256
        $region26: #{dagerc_forward.1} parent=11 // pred_check_branch
          %693 = sbr.rel (%p691) target = $region28
        $region27: #{dagerc_forward.1} parent=11 // pred_region
          %s695 = ssub.s32 16, 16
          %696 = vsyncadd [#allocation10], %s695
          %s698 = sshll.u32 [#allocation11], 4
          %s699 = int_to_ptr.vmem [resolvable:$true] %s698
          %701 = dma.hbm_to_vmem [thread:$0]  %s8, 16, %s699, [#allocation10]
        $region28: #{dagerc_forward.1} parent=11 // pred_fallthru
          _
        // Predicated region
        $region29: #{dagerc_forward.1} parent=11 // pred_check
          %p702 = pneg %p277
        $region30: #{dagerc_forward.1} parent=11 // pred_check_branch
          %704 = sbr.rel (%p702) target = $region32
        $region31: #{dagerc_forward.1} parent=11 // pred_region
          _
        $region32: #{dagerc_forward.1} parent=11 // pred_fallthru
          _
        // Predicated region
        $region33: #{dagerc_forward.1} parent=11 // pred_check
          %p705 = pneg %p298
        $region34: #{dagerc_forward.1} parent=11 // pred_check_branch
          %707 = sbr.rel (%p705) target = $region36
        $region35: #{dagerc_forward.1} parent=11 // pred_region
          %s709 = ssub.s32 32, 32
          %710 = vsyncadd [#allocation13], %s709
          %s711 = sshll.u32 [#allocation12], 4
          %s712 = int_to_ptr.vmem [resolvable:$true] %s711
          %717 = dma.hbm_to_vmem [thread:$0]  %s10, 32, %s712, [#allocation13], 16, 16, 1
        $region36: #{dagerc_forward.1} parent=11 // pred_fallthru
          _
        // Predicated region
        $region37: #{dagerc_forward.1} parent=11 // pred_check
          %p718 = pneg %p319
        $region38: #{dagerc_forward.1} parent=11 // pred_check_branch
          %720 = sbr.rel (%p718) target = $region40
        $region39: #{dagerc_forward.1} parent=11 // pred_region
          _
        $region40: #{dagerc_forward.1} parent=11 // pred_fallthru
          _
        // Predicated region
        $region41: #{dagerc_forward.1} parent=11 // pred_check
          %p721 = pneg %p340
        $region42: #{dagerc_forward.1} parent=11 // pred_check_branch
          %723 = sbr.rel (%p721) target = $region44
        $region43: #{dagerc_forward.1} parent=11 // pred_region
          %s725 = ssub.s32 32, 32
          %726 = vsyncadd [#allocation13], %s725
          %s727 = sshll.u32 [#allocation14], 4
          %s728 = int_to_ptr.vmem [resolvable:$true] %s727
          %733 = dma.hbm_to_vmem [thread:$0]  %s12, 32, %s728, [#allocation13], 16, 16, 1
        $region44: #{dagerc_forward.1} parent=11 // pred_fallthru
          _
        // Predicated region
        $region45: #{dagerc_forward.1} parent=11 // pred_check
          %p734 = pneg %p361
        $region46: #{dagerc_forward.1} parent=11 // pred_check_branch
          %736 = sbr.rel (%p734) target = $region48
        $region47: #{dagerc_forward.1} parent=11 // pred_region
          _
        $region48: #{dagerc_forward.1} parent=11 // pred_fallthru
          _
        // Predicated region
        $region49: #{dagerc_forward.1} parent=11 // pred_check
          %p737 = pneg %p382
        $region50: #{dagerc_forward.1} parent=11 // pred_check_branch
          %739 = sbr.rel (%p737) target = $region52
        $region51: #{dagerc_forward.1} parent=11 // pred_region
          _
        $region52: #{dagerc_forward.1} parent=11 // pred_fallthru
          _
        // Predicated region
        $region53: #{dagerc_forward.1} parent=11 // pred_check
          %p740 = pneg %p403
        $region54: #{dagerc_forward.1} parent=11 // pred_check_branch
          %742 = sbr.rel (%p740) target = $region56
        $region55: #{dagerc_forward.1} parent=11 // pred_region
          %s744 = ssub.s32 32, 32
          %745 = vsyncadd [#allocation16], %s744
          %s746 = sshll.u32 [#allocation15], 4
          %s747 = int_to_ptr.vmem [resolvable:$true] %s746
          %752 = dma.hbm_to_vmem [thread:$0]  %s15, 32, %s747, [#allocation16], 16, 16, 1
        $region56: #{dagerc_forward.1} parent=11 // pred_fallthru
          _
        // Predicated region
        $region57: #{dagerc_forward.1} parent=11 // pred_check
          %p753 = pneg %p424
        $region58: #{dagerc_forward.1} parent=11 // pred_check_branch
          %755 = sbr.rel (%p753) target = $region60
        $region59: #{dagerc_forward.1} parent=11 // pred_region
          _
        $region60: #{dagerc_forward.1} parent=11 // pred_fallthru
          _
        // Predicated region
        $region61: #{dagerc_forward.1} parent=11 // pred_check
          %p756 = pneg %p445
        $region62: #{dagerc_forward.1} parent=11 // pred_check_branch
          %758 = sbr.rel (%p756) target = $region64
        $region63: #{dagerc_forward.1} parent=11 // pred_region
          %s760 = ssub.s32 1024, 1024
          %761 = vsyncadd [#allocation16], %s760
          %s762 = sshll.u32 [#allocation17], 4
          %s763 = int_to_ptr.vmem [resolvable:$true] %s762
          %768 = dma.hbm_to_vmem [thread:$0]  %s17, 1024, %s763, [#allocation16], 128, 128, 8
        $region64: #{dagerc_forward.1} parent=11 // pred_fallthru
          _
        // Predicated region
        $region65: #{dagerc_forward.1} parent=11 // pred_check
          %p769 = pneg %p466
        $region66: #{dagerc_forward.1} parent=11 // pred_check_branch
          %771 = sbr.rel (%p769) target = $region68
        $region67: #{dagerc_forward.1} parent=11 // pred_region
          %s773 = ssub.s32 32, 32
          %774 = vsyncadd [#allocation19], %s773
          %s775 = sshll.u32 [#allocation18], 4
          %s776 = int_to_ptr.vmem [resolvable:$true] %s775
          %781 = dma.hbm_to_vmem [thread:$0]  %s18, 32, %s776, [#allocation19], 16, 16, 1
        $region68: #{dagerc_forward.1} parent=11 // pred_fallthru
          _
        // Predicated region
        $region69: #{dagerc_forward.1} parent=11 // pred_check
          %p782 = pneg %p487
        $region70: #{dagerc_forward.1} parent=11 // pred_check_branch
          %784 = sbr.rel (%p782) target = $region72
        $region71: #{dagerc_forward.1} parent=11 // pred_region
          %s786 = ssub.s32 32, 32
          %787 = vsyncadd [#allocation19], %s786
          %s788 = sshll.u32 [#allocation20], 4
          %s789 = int_to_ptr.vmem [resolvable:$true] %s788
          %794 = dma.hbm_to_vmem [thread:$0]  %s19, 32, %s789, [#allocation19], 16, 16, 1
        $region72: #{dagerc_forward.1} parent=11 // pred_fallthru
          _
        // Predicated region
        $region73: #{dagerc_forward.1} parent=11 // pred_check
          %p795 = pneg %p508
        $region74: #{dagerc_forward.1} parent=11 // pred_check_branch
          %797 = sbr.rel (%p795) target = $region76
        $region75: #{dagerc_forward.1} parent=11 // pred_region
          _
        $region76: #{dagerc_forward.1} parent=11 // pred_fallthru
          _
        // Predicated region
        $region77: #{dagerc_forward.1} parent=11 // pred_check
          %p798 = pneg %p529
        $region78: #{dagerc_forward.1} parent=11 // pred_check_branch
          %800 = sbr.rel (%p798) target = $region80
        $region79: #{dagerc_forward.1} parent=11 // pred_region
          %s802 = ssub.s32 16, 16
          %803 = vsyncadd [#allocation22], %s802
          %s805 = sshll.u32 [#allocation21], 4
          %s806 = int_to_ptr.vmem [resolvable:$true] %s805
          %808 = dma.hbm_to_vmem [thread:$0]  %s21, 16, %s806, [#allocation22]
        $region80: #{dagerc_forward.1} parent=11 // pred_fallthru
          _
        // Predicated region
        $region81: #{dagerc_forward.1} parent=11 // pred_check
          %p809 = pneg %p550
        $region82: #{dagerc_forward.1} parent=11 // pred_check_branch
          %811 = sbr.rel (%p809) target = $region84
        $region83: #{dagerc_forward.1} parent=11 // pred_region
          %s813 = ssub.s32 512, 512
          %814 = vsyncadd [#allocation22], %s813
          %s815 = sshll.u32 [#allocation23], 4
          %s816 = int_to_ptr.vmem [resolvable:$true] %s815
          %821 = dma.hbm_to_vmem [thread:$0]  %s22, 512, %s816, [#allocation22], 128, 128, 8
        $region84: #{dagerc_forward.1} parent=11 // pred_fallthru
          _
        // Predicated region
        $region85: #{dagerc_forward.1} parent=11 // pred_check
          %p822 = pneg %p571
        $region86: #{dagerc_forward.1} parent=11 // pred_check_branch
          %824 = sbr.rel (%p822) target = $region88
        $region87: #{dagerc_forward.1} parent=11 // pred_region
          %s826 = ssub.s32 16, 16
          %827 = vsyncadd [#allocation25], %s826
          %s829 = sshll.u32 [#allocation24], 4
          %s830 = int_to_ptr.vmem [resolvable:$true] %s829
          %832 = dma.hbm_to_vmem [thread:$0]  %s23, 16, %s830, [#allocation25]
        $region88: #{dagerc_forward.1} parent=11 // pred_fallthru
          _
        // Predicated region
        $region89: #{dagerc_forward.1} parent=11 // pred_check
          %p833 = pneg %p592
        $region90: #{dagerc_forward.1} parent=11 // pred_check_branch
          %835 = sbr.rel (%p833) target = $region92
        $region91: #{dagerc_forward.1} parent=11 // pred_region
          _
        $region92: #{dagerc_forward.1} parent=11 // pred_fallthru
          _
        // Predicated region
        $region93: #{dagerc_forward.1} parent=11 // pred_check
          %p836 = pneg %p613
        $region94: #{dagerc_forward.1} parent=11 // pred_check_branch
          %838 = sbr.rel (%p836) target = $region96
        $region95: #{dagerc_forward.1} parent=11 // pred_region
          %s840 = ssub.s32 16, 16
          %841 = vsyncadd [#allocation25], %s840
          %s843 = sshll.u32 [#allocation26], 4
          %s844 = int_to_ptr.vmem [resolvable:$true] %s843
          %846 = dma.hbm_to_vmem [thread:$0]  %s25, 16, %s844, [#allocation25]
        $region96: #{dagerc_forward.1} parent=11 // pred_fallthru
          _
      $region12: #{dagerc_forward.1} parent=5 // pred_fallthru
        _
      %p847 = scmp.lt.s32.totalorder %s42, 2
      // Predicated region
      $region97: #{dagerc_forward.1} parent=5 // pred_check
        %p848 = pneg %p847
      $region98: #{dagerc_forward.1} parent=5 // pred_check_branch
        %850 = sbr.rel (%p848) target = $region100
      $region99: #{dagerc_forward.1} parent=5 // pred_region
        // Predicated region
        $region101: #{dagerc_forward.1} parent=99 // pred_check
          %p851 = pneg %p62
        $region102: #{dagerc_forward.1} parent=99 // pred_check_branch
          %853 = sbr.rel (%p851) target = $region104
        $region103: #{dagerc_forward.1} parent=99 // pred_region
          %s854 = sand.u32 %s52, 1
          %s855 = scalar_lea.sflag [#allocation5], %s854
          %s856 = sand.u32 %s52, 1
          %s857 = smul.addr %s856, 8
          %s858 = scalar_lea.vmem [#allocation4], %s857
          %s860 = ssub.s32 128, 128
          %861 = vsyncadd %s855, %s860
          %s862 = smul.addr %s42, 128
          %s863 = scalar_lea.hbm %s0, %s862
          %s865 = sshll.u32 %s858, 4
          %s866 = int_to_ptr.vmem [resolvable:$true] %s865
          %868 = dma.hbm_to_vmem [thread:$0]  %s863, 128, %s866, %s855
        $region104: #{dagerc_forward.1} parent=99 // pred_fallthru
          _
        // Predicated region
        $region105: #{dagerc_forward.1} parent=99 // pred_check
          %p869 = pneg %p88
        $region106: #{dagerc_forward.1} parent=99 // pred_check_branch
          %871 = sbr.rel (%p869) target = $region108
        $region107: #{dagerc_forward.1} parent=99 // pred_region
          %p872 = scmp.lt.s32.totalorder %s42, 1
          %s873 = scalar_select %p872, %s42, 1
          %s874 = smul.addr %s873, 8
          %s875 = scalar_lea.vmem %s1, %s874
        $region108: #{dagerc_forward.1} parent=99 // pred_fallthru
          _
        // Predicated region
        $region109: #{dagerc_forward.1} parent=99 // pred_check
          %p876 = pneg %p114
        $region110: #{dagerc_forward.1} parent=99 // pred_check_branch
          %878 = sbr.rel (%p876) target = $region112
        $region111: #{dagerc_forward.1} parent=99 // pred_region
          %p879 = scmp.lt.s32.totalorder %s42, 1
          %s880 = scalar_select %p879, %s42, 1
          %s881 = smul.addr %s880, 4
          %s882 = scalar_lea.vmem %s2, %s881
        $region112: #{dagerc_forward.1} parent=99 // pred_fallthru
          _
        // Predicated region
        $region113: #{dagerc_forward.1} parent=99 // pred_check
          %p883 = pneg %p140
        $region114: #{dagerc_forward.1} parent=99 // pred_check_branch
          %885 = sbr.rel (%p883) target = $region116
        $region115: #{dagerc_forward.1} parent=99 // pred_region
          %p886 = scmp.lt.s32.totalorder %s42, 1
          %s887 = scalar_select %p886, %s42, 1
          %s888 = smul.addr %s887, 4
          %s889 = scalar_lea.vmem %s3, %s888
        $region116: #{dagerc_forward.1} parent=99 // pred_fallthru
          _
        // Predicated region
        $region117: #{dagerc_forward.1} parent=99 // pred_check
          %p890 = pneg %p166
        $region118: #{dagerc_forward.1} parent=99 // pred_check_branch
          %892 = sbr.rel (%p890) target = $region120
        $region119: #{dagerc_forward.1} parent=99 // pred_region
          %p893 = scmp.lt.s32.totalorder %s42, 1
          %s894 = scalar_select %p893, %s42, 1
          %s895 = smul.addr %s894, 8
          %s896 = scalar_lea.vmem %s4, %s895
        $region120: #{dagerc_forward.1} parent=99 // pred_fallthru
          _
      $region100: #{dagerc_forward.1} parent=5 // pred_fallthru
        _
      %p897 = scmp.le.s32.totalorder 1, %s42
      %p898 = scmp.lt.s32.totalorder %s42, 3
      %p899 = pnand %p897, %p898
      %p900 = pneg %p899
      // Predicated region
      $region121: #{dagerc_forward.1} parent=5 // pred_check
        _
      $region122: #{dagerc_forward.1} parent=5 // pred_check_branch
        %902 = sbr.rel (%p899) target = $region124
      $region123: #{dagerc_forward.1} parent=5 // pred_region
        %s903 = ssub.s32 %s42, 1
        %s904 = sand.u32 %s55, 1
        %s905 = scalar_lea.sflag [#allocation5], %s904
        %s906 = sand.u32 %s55, 1
        %s907 = smul.addr %s906, 8
        %s908 = scalar_lea.vmem [#allocation4], %s907
        // Predicated region
        $region125: #{dagerc_forward.1} parent=123 // pred_check
          %p909 = pneg %p68
        $region126: #{dagerc_forward.1} parent=123 // pred_check_branch
          %911 = sbr.rel (%p909) target = $region128
        $region127: #{dagerc_forward.1} parent=123 // pred_region
          %912 = dma.done %s905, 128
        $region128: #{dagerc_forward.1} parent=123 // pred_fallthru
          _
        // Predicated region
        $region129: #{dagerc_forward.1} parent=123 // pred_check
          %p913 = pneg %p193
        $region130: #{dagerc_forward.1} parent=123 // pred_check_branch
          %915 = sbr.rel (%p913) target = $region132
        $region131: #{dagerc_forward.1} parent=123 // pred_region
          %916 = dma.done [#allocation7], 512
        $region132: #{dagerc_forward.1} parent=123 // pred_fallthru
          _
        // Predicated region
        $region133: #{dagerc_forward.1} parent=123 // pred_check
          %p917 = pneg %p214
        $region134: #{dagerc_forward.1} parent=123 // pred_check_branch
          %919 = sbr.rel (%p917) target = $region136
        $region135: #{dagerc_forward.1} parent=123 // pred_region
          %920 = dma.done [#allocation7], 16
        $region136: #{dagerc_forward.1} parent=123 // pred_fallthru
          _
        // Predicated region
        $region137: #{dagerc_forward.1} parent=123 // pred_check
          %p921 = pneg %p235
        $region138: #{dagerc_forward.1} parent=123 // pred_check_branch
          %923 = sbr.rel (%p921) target = $region140
        $region139: #{dagerc_forward.1} parent=123 // pred_region
          %924 = dma.done [#allocation10], 512
        $region140: #{dagerc_forward.1} parent=123 // pred_fallthru
          _
        // Predicated region
        $region141: #{dagerc_forward.1} parent=123 // pred_check
          %p925 = pneg %p256
        $region142: #{dagerc_forward.1} parent=123 // pred_check_branch
          %927 = sbr.rel (%p925) target = $region144
        $region143: #{dagerc_forward.1} parent=123 // pred_region
          %928 = dma.done [#allocation10], 16
        $region144: #{dagerc_forward.1} parent=123 // pred_fallthru
          _
        // Predicated region
        $region145: #{dagerc_forward.1} parent=123 // pred_check
          %p929 = pneg %p298
        $region146: #{dagerc_forward.1} parent=123 // pred_check_branch
          %931 = sbr.rel (%p929) target = $region148
        $region147: #{dagerc_forward.1} parent=123 // pred_region
          %932 = dma.done [#allocation13], 32
        $region148: #{dagerc_forward.1} parent=123 // pred_fallthru
          _
        // Predicated region
        $region149: #{dagerc_forward.1} parent=123 // pred_check
          %p933 = pneg %p340
        $region150: #{dagerc_forward.1} parent=123 // pred_check_branch
          %935 = sbr.rel (%p933) target = $region152
        $region151: #{dagerc_forward.1} parent=123 // pred_region
          %936 = dma.done [#allocation13], 32
        $region152: #{dagerc_forward.1} parent=123 // pred_fallthru
          _
        // Predicated region
        $region153: #{dagerc_forward.1} parent=123 // pred_check
          %p937 = pneg %p403
        $region154: #{dagerc_forward.1} parent=123 // pred_check_branch
          %939 = sbr.rel (%p937) target = $region156
        $region155: #{dagerc_forward.1} parent=123 // pred_region
          %940 = dma.done [#allocation16], 32
        $region156: #{dagerc_forward.1} parent=123 // pred_fallthru
          _
        // Predicated region
        $region157: #{dagerc_forward.1} parent=123 // pred_check
          %p941 = pneg %p445
        $region158: #{dagerc_forward.1} parent=123 // pred_check_branch
          %943 = sbr.rel (%p941) target = $region160
        $region159: #{dagerc_forward.1} parent=123 // pred_region
          %944 = dma.done [#allocation16], 1024
        $region160: #{dagerc_forward.1} parent=123 // pred_fallthru
          _
        // Predicated region
        $region161: #{dagerc_forward.1} parent=123 // pred_check
          %p945 = pneg %p466
        $region162: #{dagerc_forward.1} parent=123 // pred_check_branch
          %947 = sbr.rel (%p945) target = $region164
        $region163: #{dagerc_forward.1} parent=123 // pred_region
          %948 = dma.done [#allocation19], 32
        $region164: #{dagerc_forward.1} parent=123 // pred_fallthru
          _
        // Predicated region
        $region165: #{dagerc_forward.1} parent=123 // pred_check
          %p949 = pneg %p487
        $region166: #{dagerc_forward.1} parent=123 // pred_check_branch
          %951 = sbr.rel (%p949) target = $region168
        $region167: #{dagerc_forward.1} parent=123 // pred_region
          %952 = dma.done [#allocation19], 32
        $region168: #{dagerc_forward.1} parent=123 // pred_fallthru
          _
        // Predicated region
        $region169: #{dagerc_forward.1} parent=123 // pred_check
          %p953 = pneg %p529
        $region170: #{dagerc_forward.1} parent=123 // pred_check_branch
          %955 = sbr.rel (%p953) target = $region172
        $region171: #{dagerc_forward.1} parent=123 // pred_region
          %956 = dma.done [#allocation22], 16
        $region172: #{dagerc_forward.1} parent=123 // pred_fallthru
          _
        // Predicated region
        $region173: #{dagerc_forward.1} parent=123 // pred_check
          %p957 = pneg %p550
        $region174: #{dagerc_forward.1} parent=123 // pred_check_branch
          %959 = sbr.rel (%p957) target = $region176
        $region175: #{dagerc_forward.1} parent=123 // pred_region
          %960 = dma.done [#allocation22], 512
        $region176: #{dagerc_forward.1} parent=123 // pred_fallthru
          _
        // Predicated region
        $region177: #{dagerc_forward.1} parent=123 // pred_check
          %p961 = pneg %p571
        $region178: #{dagerc_forward.1} parent=123 // pred_check_branch
          %963 = sbr.rel (%p961) target = $region180
        $region179: #{dagerc_forward.1} parent=123 // pred_region
          %964 = dma.done [#allocation25], 16
        $region180: #{dagerc_forward.1} parent=123 // pred_fallthru
          _
        // Predicated region
        $region181: #{dagerc_forward.1} parent=123 // pred_check
          %p965 = pneg %p613
        $region182: #{dagerc_forward.1} parent=123 // pred_check_branch
          %967 = sbr.rel (%p965) target = $region184
        $region183: #{dagerc_forward.1} parent=123 // pred_region
          %968 = dma.done [#allocation25], 16
        $region184: #{dagerc_forward.1} parent=123 // pred_fallthru
          _
        %s969 = sand.u32 %s55, 1
        %s970 = scalar_lea.sflag [#allocation5], %s969
        %s971 = sand.u32 %s55, 1
        %s972 = smul.addr %s971, 8
        %s973 = scalar_lea.vmem [#allocation4], %s972
        %p974 = pneg %p68
        %p975 = pneg %p65
        %p976 = scmp.lt.s32.totalorder %s47, 1
        %s977 = scalar_select %p976, %s47, 1
        %s978 = smul.addr %s977, 8
        %s979 = scalar_lea.vmem %s1, %s978
        %p980 = pneg %p94
        %p981 = pneg %p91
        %p982 = scmp.lt.s32.totalorder %s47, 1
        %s983 = scalar_select %p982, %s47, 1
        %s984 = smul.addr %s983, 4
        %s985 = scalar_lea.vmem %s2, %s984
        %p986 = pneg %p120
        %p987 = pneg %p117
        %p988 = scmp.lt.s32.totalorder %s47, 1
        %s989 = scalar_select %p988, %s47, 1
        %s990 = smul.addr %s989, 4
        %s991 = scalar_lea.vmem %s3, %s990
        %p992 = pneg %p146
        %p993 = pneg %p143
        %p994 = scmp.lt.s32.totalorder %s47, 1
        %s995 = scalar_select %p994, %s47, 1
        %s996 = smul.addr %s995, 8
        %s997 = scalar_lea.vmem %s4, %s996
        %p998 = pneg %p172
        %p999 = pneg %p169
        %p1000 = pneg %p193
        %p1001 = pneg %p190
        %p1002 = pneg %p214
        %p1003 = pneg %p211
        %p1004 = pneg %p235
        %p1005 = pneg %p232
        %p1006 = pneg %p256
        %p1007 = pneg %p253
        %p1008 = pneg %p277
        %p1009 = pneg %p274
        %p1010 = pneg %p298
        %p1011 = pneg %p295
        %p1012 = pneg %p319
        %p1013 = pneg %p316
        %p1014 = pneg %p340
        %p1015 = pneg %p337
        %p1016 = pneg %p361
        %p1017 = pneg %p358
        %p1018 = pneg %p382
        %p1019 = pneg %p379
        %p1020 = pneg %p403
        %p1021 = pneg %p400
        %p1022 = pneg %p424
        %p1023 = pneg %p421
        %p1024 = pneg %p445
        %p1025 = pneg %p442
        %p1026 = pneg %p466
        %p1027 = pneg %p463
        %p1028 = pneg %p487
        %p1029 = pneg %p484
        %p1030 = pneg %p508
        %p1031 = pneg %p505
        %p1032 = pneg %p529
        %p1033 = pneg %p526
        %p1034 = pneg %p550
        %p1035 = pneg %p547
        %p1036 = pneg %p571
        %p1037 = pneg %p568
        %p1038 = pneg %p592
        %p1039 = pneg %p589
        %p1040 = pneg %p613
        %p1041 = pneg %p610
        %p1042 = pneg %p639
        %p1043 = pneg %p636
        %p1044 = scmp.lt.s32.totalorder %s47, 1
        %s1045 = scalar_select %p1044, %s47, 1
        %s1046 = smul.addr %s1045, 8
        %s1047 = scalar_lea.vmem %s26, %s1046
        %p1048 = scmp.lt.s32.totalorder %s47, 1
        %s1049 = scalar_select %p1048, %s47, 1
        %s1050 = smul.addr %s1049, 8
        %s1051 = scalar_lea.vmem %s1, %s1050
        %p1052 = scmp.lt.s32.totalorder %s47, 1
        %s1053 = scalar_select %p1052, %s47, 1
        %s1054 = smul.addr %s1053, 4
        %s1055 = scalar_lea.vmem %s2, %s1054
        %p1056 = scmp.lt.s32.totalorder %s47, 1
        %s1057 = scalar_select %p1056, %s47, 1
        %s1058 = smul.addr %s1057, 4
        %s1059 = scalar_lea.vmem %s3, %s1058
        %p1060 = scmp.lt.s32.totalorder %s47, 1
        %s1061 = scalar_select %p1060, %s47, 1
        %s1062 = smul.addr %s1061, 8
        %s1063 = scalar_lea.vmem %s4, %s1062
        %p1064 = scmp.lt.s32.totalorder %s47, 1
        %s1065 = scalar_select %p1064, %s47, 1
        %s1066 = smul.addr %s1065, 8
        %s1067 = scalar_lea.vmem %s26, %s1066
        %v1068 = vld [vmem:[%s908] sm:$0xff]
        %v1069 = vld [vmem:[%s1051] sm:$0xff]
        %v1070 = vld [vmem:[%s1055] sm:$0xf]
        %v1071 = vld [vmem:[%s1059] sm:$0xf]
        %v1072 = vld [vmem:[%s1063] sm:$0xff]
        %v1073 = vld [vmem:[#allocation6] sm:$0xff]
        %v1074 = vld [vmem:[#allocation6 + $0x8] sm:$0xff]
        %v1075 = vld [vmem:[#allocation6 + $0x10] sm:$0xff]
        %v1076 = vld [vmem:[#allocation6 + $0x18] sm:$0xff]
        %v1077 = vld [vmem:[#allocation8] sm:$0x1]
        %v1079 = vlaneseq
        %v1080 = vshrl.u32 %v1079, 7
        %v1081 = vsub.s32 0, %v1080
        %v1082 = vrot.slane %v1077, %v1081
        %vm1084 = vcmask 261120
        %v1086 = vsel %vm1084, %v1068, 0
        %1088 = vmatprep.subr.mxu0 0.0
        %1089 = vmatpush1.msra.mxu0 %v1073
        %1090 = vmatprep.subr.mxu0 0.0
        %1091 = vmatpush1.msra.mxu0 %v1074
        %1092 = vmatprep.subr.mxu0 0.0
        %1093 = vmatpush1.msra.mxu0 %v1075
        %1094 = vmatprep.subr.mxu0 0.0
        %1095 = vmatpush1.msra.mxu0 %v1076
        %1096 = vmatprep.subr.mxu0 0.0
        %1097 = vmatpush1.msra.mxu0 0.0
        %1098 = vmatprep.subr.mxu0 0.0
        %1099 = vmatpush1.msra.mxu0 0.0
        %1100 = vmatprep.subr.mxu0 0.0
        %1101 = vmatpush1.msra.mxu0 0.0
        %1102 = vmatprep.subr.mxu0 0.0
        %1103 = vmatpush1.msra.mxu0 0.0
        %1104 = vmatprep.subr.mxu0 0.0
        %1105 = vmatpush1.msra.mxu0 0.0
        %1106 = vmatprep.subr.mxu0 0.0
        %1107 = vmatpush1.msra.mxu0 0.0
        %1108 = vmatprep.subr.mxu0 0.0
        %1109 = vmatpush1.msra.mxu0 0.0
        %1110 = vmatprep.subr.mxu0 0.0
        %1111 = vmatpush1.msra.mxu0 0.0
        %1112 = vmatprep.subr.mxu0 0.0
        %1113 = vmatpush1.msra.mxu0 0.0
        %1114 = vmatprep.subr.mxu0 0.0
        %1115 = vmatpush1.msra.mxu0 0.0
        %1116 = vmatprep.subr.mxu0 0.0
        %1117 = vmatpush1.msra.mxu0 0.0
        %1118 = vmatprep.subr.mxu0 0.0
        %1119 = vmatpush1.msra.mxu0 0.0
        %1120 = vmatprep.subr.mxu0 0.0
        %1121 = vmatpush1.msra.mxu0 0.0
        %1122 = vmatprep.subr.mxu0 0.0
        %1123 = vmatpush1.msra.mxu0 0.0
        %1124 = vmatprep.subr.mxu0 0.0
        %1125 = vmatpush1.msra.mxu0 0.0
        %1126 = vmatprep.subr.mxu0 0.0
        %1127 = vmatpush1.msra.mxu0 0.0
        %1128 = vmatprep.subr.mxu0 0.0
        %1129 = vmatpush1.msra.mxu0 0.0
        %1130 = vmatprep.subr.mxu0 0.0
        %1131 = vmatpush1.msra.mxu0 0.0
        %1132 = vmatprep.subr.mxu0 0.0
        %1133 = vmatpush1.msra.mxu0 0.0
        %1134 = vmatprep.subr.mxu0 0.0
        %1135 = vmatpush1.msra.mxu0 0.0
        %1136 = vmatprep.subr.mxu0 0.0
        %1137 = vmatpush1.msra.mxu0 0.0
        %1138 = vmatprep.subr.mxu0 0.0
        %1139 = vmatpush1.msra.mxu0 0.0
        %1140 = vmatprep.subr.mxu0 0.0
        %1141 = vmatpush1.msra.mxu0 0.0
        %1142 = vmatprep.subr.mxu0 0.0
        %1143 = vmatpush1.msra.mxu0 0.0
        %1144 = vmatprep.subr.mxu0 0.0
        %1145 = vmatpush1.msra.mxu0 0.0
        %1146 = vmatprep.subr.mxu0 0.0
        %1147 = vmatpush1.msra.mxu0 0.0
        %1148 = vmatprep.subr.mxu0 0.0
        %1149 = vmatpush1.msra.mxu0 0.0
        %1150 = vmatprep.subr.mxu0 0.0
        %1151 = vmatpush1.msra.mxu0 0.0
        %1152 = vmatprep.mubr.f32.mxu0 0.0
        %1153 = vmatmul.mubr.f32.gmra.mrb[0].mxu0 %v1086
        %v1154 = vpop.f32.mrb[0].mxu0
        %v1155 = vadd.f32 %v1082, %v1154
        %v1156 = vpop.f32.mrb[0].mxu0
        %1157 = vdwg.mxu0
        %v1158 = vmax.f32 %v1155, 0.0
        %v1159 = vld [vmem:[#allocation9] sm:$0xff]
        %v1160 = vld [vmem:[#allocation9 + $0x8] sm:$0xff]
        %v1161 = vld [vmem:[#allocation9 + $0x10] sm:$0xff]
        %v1162 = vld [vmem:[#allocation9 + $0x18] sm:$0xff]
        %v1163 = vld [vmem:[#allocation11] sm:$0x1]
        %v1165 = vlaneseq
        %v1166 = vshrl.u32 %v1165, 7
        %v1167 = vsub.s32 0, %v1166
        %v1168 = vrot.slane %v1163, %v1167
        %v1171 = vsel %vm1084, %v1070, 0
        %1173 = vmatprep.subr.mxu0 0.0
        %1174 = vmatpush1.msra.mxu0 %v1159
        %1175 = vmatprep.subr.mxu0 0.0
        %1176 = vmatpush1.msra.mxu0 %v1160
        %1177 = vmatprep.subr.mxu0 0.0
        %1178 = vmatpush1.msra.mxu0 %v1161
        %1179 = vmatprep.subr.mxu0 0.0
        %1180 = vmatpush1.msra.mxu0 %v1162
        %1181 = vmatprep.subr.mxu0 0.0
        %1182 = vmatpush1.msra.mxu0 0.0
        %1183 = vmatprep.subr.mxu0 0.0
        %1184 = vmatpush1.msra.mxu0 0.0
        %1185 = vmatprep.subr.mxu0 0.0
        %1186 = vmatpush1.msra.mxu0 0.0
        %1187 = vmatprep.subr.mxu0 0.0
        %1188 = vmatpush1.msra.mxu0 0.0
        %1189 = vmatprep.subr.mxu0 0.0
        %1190 = vmatpush1.msra.mxu0 0.0
        %1191 = vmatprep.subr.mxu0 0.0
        %1192 = vmatpush1.msra.mxu0 0.0
        %1193 = vmatprep.subr.mxu0 0.0
        %1194 = vmatpush1.msra.mxu0 0.0
        %1195 = vmatprep.subr.mxu0 0.0
        %1196 = vmatpush1.msra.mxu0 0.0
        %1197 = vmatprep.subr.mxu0 0.0
        %1198 = vmatpush1.msra.mxu0 0.0
        %1199 = vmatprep.subr.mxu0 0.0
        %1200 = vmatpush1.msra.mxu0 0.0
        %1201 = vmatprep.subr.mxu0 0.0
        %1202 = vmatpush1.msra.mxu0 0.0
        %1203 = vmatprep.subr.mxu0 0.0
        %1204 = vmatpush1.msra.mxu0 0.0
        %1205 = vmatprep.subr.mxu0 0.0
        %1206 = vmatpush1.msra.mxu0 0.0
        %1207 = vmatprep.subr.mxu0 0.0
        %1208 = vmatpush1.msra.mxu0 0.0
        %1209 = vmatprep.subr.mxu0 0.0
        %1210 = vmatpush1.msra.mxu0 0.0
        %1211 = vmatprep.subr.mxu0 0.0
        %1212 = vmatpush1.msra.mxu0 0.0
        %1213 = vmatprep.subr.mxu0 0.0
        %1214 = vmatpush1.msra.mxu0 0.0
        %1215 = vmatprep.subr.mxu0 0.0
        %1216 = vmatpush1.msra.mxu0 0.0
        %1217 = vmatprep.subr.mxu0 0.0
        %1218 = vmatpush1.msra.mxu0 0.0
        %1219 = vmatprep.subr.mxu0 0.0
        %1220 = vmatpush1.msra.mxu0 0.0
        %1221 = vmatprep.subr.mxu0 0.0
        %1222 = vmatpush1.msra.mxu0 0.0
        %1223 = vmatprep.subr.mxu0 0.0
        %1224 = vmatpush1.msra.mxu0 0.0
        %1225 = vmatprep.subr.mxu0 0.0
        %1226 = vmatpush1.msra.mxu0 0.0
        %1227 = vmatprep.subr.mxu0 0.0
        %1228 = vmatpush1.msra.mxu0 0.0
        %1229 = vmatprep.subr.mxu0 0.0
        %1230 = vmatpush1.msra.mxu0 0.0
        %1231 = vmatprep.subr.mxu0 0.0
        %1232 = vmatpush1.msra.mxu0 0.0
        %1233 = vmatprep.subr.mxu0 0.0
        %1234 = vmatpush1.msra.mxu0 0.0
        %1235 = vmatprep.subr.mxu0 0.0
        %1236 = vmatpush1.msra.mxu0 0.0
        %1237 = vmatprep.mubr.f32.mxu0 0.0
        %1238 = vmatmul.mubr.f32.gmra.mrb[0].mxu0 %v1171
        %v1239 = vpop.f32.mrb[0].mxu0
        %v1240 = vadd.f32 %v1168, %v1239
        %v1241 = vpop.f32.mrb[0].mxu0
        %1242 = vdwg.mxu0
        %v1243 = vmax.f32 %v1240, 0.0
        %v1244 = vld [vmem:[%s9] sm:$0xff]
        %v1245 = vld [vmem:[%s9 + $0x8] sm:$0xff]
        %v1246 = vld [vmem:[%s9 + $0x10] sm:$0xff]
        %v1247 = vld [vmem:[%s9 + $0x18] sm:$0xff]
        %v1248 = vld [vmem:[#allocation12] sm:$0x1]
        %v1249 = vld [vmem:[%s11] sm:$0xff]
        %v1250 = vld [vmem:[%s11 + $0x8] sm:$0xff]
        %v1251 = vld [vmem:[%s11 + $0x10] sm:$0xff]
        %v1252 = vld [vmem:[%s11 + $0x18] sm:$0xff]
        %v1253 = vld [vmem:[#allocation14] sm:$0x1]
        %v1254 = vld [vmem:[%s13] sm:$0xff]
        %v1255 = vld [vmem:[%s13 + $0x8] sm:$0xff]
        %v1256 = vld [vmem:[%s13 + $0x10] sm:$0xff]
        %v1257 = vld [vmem:[%s13 + $0x18] sm:$0xff]
        %v1258 = vld [vmem:[%s14] sm:$0xff]
        %v1259 = vld [vmem:[%s14 + $0x8] sm:$0xff]
        %v1260 = vld [vmem:[%s14 + $0x10] sm:$0xff]
        %v1261 = vld [vmem:[%s14 + $0x18] sm:$0xff]
        %v1262 = vld [vmem:[#allocation15] sm:$0x1]
        %v1263 = vld [vmem:[%s16] sm:$0xff]
        %v1264 = vld [vmem:[%s16 + $0x8] sm:$0xff]
        %v1265 = vld [vmem:[%s16 + $0x10] sm:$0xff]
        %v1266 = vld [vmem:[%s16 + $0x18] sm:$0xff]
        %v1267 = vld [vmem:[#allocation17] sm:$0xff]
        %v1268 = vld [vmem:[#allocation17 + $0x8] sm:$0xff]
        %v1269 = vld [vmem:[#allocation17 + $0x10] sm:$0xff]
        %v1270 = vld [vmem:[#allocation17 + $0x18] sm:$0xff]
        %v1271 = vld [vmem:[#allocation18] sm:$0x1]
        %v1272 = vld [vmem:[#allocation20] sm:$0x1]
        %vm1273 = vcmask 31744
        %v1275 = vsel %vm1273, %v1072, 0
        %vm1277 = vcmask 1043456
        %v1279 = vsel %vm1277, %v1243, 0
        %1281 = vmatprep.subr.mxu0 0.0
        %1282 = vmatpush1.msra.mxu0 %v1279
        %1283 = vmatprep.subr.mxu0 0.0
        %1284 = vmatpush1.msra.mxu0 0.0
        %1285 = vmatprep.subr.mxu0 0.0
        %1286 = vmatpush1.msra.mxu0 0.0
        %1287 = vmatprep.subr.mxu0 0.0
        %1288 = vmatpush1.msra.mxu0 0.0
        %1289 = vmatprep.subr.mxu0 0.0
        %1290 = vmatpush1.msra.mxu0 0.0
        %1291 = vmatprep.subr.mxu0 0.0
        %1292 = vmatpush1.msra.mxu0 0.0
        %1293 = vmatprep.subr.mxu0 0.0
        %1294 = vmatpush1.msra.mxu0 0.0
        %1295 = vmatprep.subr.mxu0 0.0
        %1296 = vmatpush1.msra.mxu0 0.0
        %1297 = vmatprep.subr.mxu0 0.0
        %1298 = vmatpush1.msra.mxu0 0.0
        %1299 = vmatprep.subr.mxu0 0.0
        %1300 = vmatpush1.msra.mxu0 0.0
        %1301 = vmatprep.subr.mxu0 0.0
        %1302 = vmatpush1.msra.mxu0 0.0
        %1303 = vmatprep.subr.mxu0 0.0
        %1304 = vmatpush1.msra.mxu0 0.0
        %1305 = vmatprep.subr.mxu0 0.0
        %1306 = vmatpush1.msra.mxu0 0.0
        %1307 = vmatprep.subr.mxu0 0.0
        %1308 = vmatpush1.msra.mxu0 0.0
        %1309 = vmatprep.subr.mxu0 0.0
        %1310 = vmatpush1.msra.mxu0 0.0
        %1311 = vmatprep.subr.mxu0 0.0
        %1312 = vmatpush1.msra.mxu0 0.0
        %1313 = vmatprep.subr.mxu0 0.0
        %1314 = vmatpush1.msra.mxu0 0.0
        %1315 = vmatprep.subr.mxu0 0.0
        %1316 = vmatpush1.msra.mxu0 0.0
        %1317 = vmatprep.subr.mxu0 0.0
        %1318 = vmatpush1.msra.mxu0 0.0
        %1319 = vmatprep.subr.mxu0 0.0
        %1320 = vmatpush1.msra.mxu0 0.0
        %1321 = vmatprep.subr.mxu0 0.0
        %1322 = vmatpush1.msra.mxu0 0.0
        %1323 = vmatprep.subr.mxu0 0.0
        %1324 = vmatpush1.msra.mxu0 0.0
        %1325 = vmatprep.subr.mxu0 0.0
        %1326 = vmatpush1.msra.mxu0 0.0
        %1327 = vmatprep.subr.mxu0 0.0
        %1328 = vmatpush1.msra.mxu0 0.0
        %1329 = vmatprep.subr.mxu0 0.0
        %1330 = vmatpush1.msra.mxu0 0.0
        %1331 = vmatprep.subr.mxu0 0.0
        %1332 = vmatpush1.msra.mxu0 0.0
        %1333 = vmatprep.subr.mxu0 0.0
        %1334 = vmatpush1.msra.mxu0 0.0
        %1335 = vmatprep.subr.mxu0 0.0
        %1336 = vmatpush1.msra.mxu0 0.0
        %1337 = vmatprep.subr.mxu0 0.0
        %1338 = vmatpush1.msra.mxu0 0.0
        %1339 = vmatprep.subr.mxu0 0.0
        %1340 = vmatpush1.msra.mxu0 0.0
        %1341 = vmatprep.subr.mxu0 0.0
        %1342 = vmatpush1.msra.mxu0 0.0
        %1343 = vmatprep.subr.mxu0 0.0
        %1344 = vmatpush1.msra.mxu0 0.0
        %1345 = vmatprep.mubr.f32.mxu0 0.0
        %1346 = vmatmul.mubr.f32.gmra.mrb[0].mxu0 %v1275
        %v1347 = vpop.f32.mrb[0].mxu0
        %v1348 = vadd.f32 0.0, %v1347
        %v1349 = vpop.f32.mrb[0].mxu0
        %1350 = vdwg.mxu0
        %v1352 = vlaneseq
        %v1353 = vshrl.u32 %v1352, 7
        %v1354 = vsub.s32 0, %v1353
        %v1355 = vrot.slane %v1248, %v1354
        %v1358 = vsel %vm1084, %v1158, 0
        %1360 = vmatprep.subr.mxu0 0.0
        %1361 = vmatpush1.msra.mxu0 %v1244
        %1362 = vmatprep.subr.mxu0 0.0
        %1363 = vmatpush1.msra.mxu0 %v1245
        %1364 = vmatprep.subr.mxu0 0.0
        %1365 = vmatpush1.msra.mxu0 %v1246
        %1366 = vmatprep.subr.mxu0 0.0
        %1367 = vmatpush1.msra.mxu0 %v1247
        %1368 = vmatprep.subr.mxu0 0.0
        %1369 = vmatpush1.msra.mxu0 0.0
        %1370 = vmatprep.subr.mxu0 0.0
        %1371 = vmatpush1.msra.mxu0 0.0
        %1372 = vmatprep.subr.mxu0 0.0
        %1373 = vmatpush1.msra.mxu0 0.0
        %1374 = vmatprep.subr.mxu0 0.0
        %1375 = vmatpush1.msra.mxu0 0.0
        %1376 = vmatprep.subr.mxu0 0.0
        %1377 = vmatpush1.msra.mxu0 0.0
        %1378 = vmatprep.subr.mxu0 0.0
        %1379 = vmatpush1.msra.mxu0 0.0
        %1380 = vmatprep.subr.mxu0 0.0
        %1381 = vmatpush1.msra.mxu0 0.0
        %1382 = vmatprep.subr.mxu0 0.0
        %1383 = vmatpush1.msra.mxu0 0.0
        %1384 = vmatprep.subr.mxu0 0.0
        %1385 = vmatpush1.msra.mxu0 0.0
        %1386 = vmatprep.subr.mxu0 0.0
        %1387 = vmatpush1.msra.mxu0 0.0
        %1388 = vmatprep.subr.mxu0 0.0
        %1389 = vmatpush1.msra.mxu0 0.0
        %1390 = vmatprep.subr.mxu0 0.0
        %1391 = vmatpush1.msra.mxu0 0.0
        %1392 = vmatprep.subr.mxu0 0.0
        %1393 = vmatpush1.msra.mxu0 0.0
        %1394 = vmatprep.subr.mxu0 0.0
        %1395 = vmatpush1.msra.mxu0 0.0
        %1396 = vmatprep.subr.mxu0 0.0
        %1397 = vmatpush1.msra.mxu0 0.0
        %1398 = vmatprep.subr.mxu0 0.0
        %1399 = vmatpush1.msra.mxu0 0.0
        %1400 = vmatprep.subr.mxu0 0.0
        %1401 = vmatpush1.msra.mxu0 0.0
        %1402 = vmatprep.subr.mxu0 0.0
        %1403 = vmatpush1.msra.mxu0 0.0
        %1404 = vmatprep.subr.mxu0 0.0
        %1405 = vmatpush1.msra.mxu0 0.0
        %1406 = vmatprep.subr.mxu0 0.0
        %1407 = vmatpush1.msra.mxu0 0.0
        %1408 = vmatprep.subr.mxu0 0.0
        %1409 = vmatpush1.msra.mxu0 0.0
        %1410 = vmatprep.subr.mxu0 0.0
        %1411 = vmatpush1.msra.mxu0 0.0
        %1412 = vmatprep.subr.mxu0 0.0
        %1413 = vmatpush1.msra.mxu0 0.0
        %1414 = vmatprep.subr.mxu0 0.0
        %1415 = vmatpush1.msra.mxu0 0.0
        %1416 = vmatprep.subr.mxu0 0.0
        %1417 = vmatpush1.msra.mxu0 0.0
        %1418 = vmatprep.subr.mxu0 0.0
        %1419 = vmatpush1.msra.mxu0 0.0
        %1420 = vmatprep.subr.mxu0 0.0
        %1421 = vmatpush1.msra.mxu0 0.0
        %1422 = vmatprep.subr.mxu0 0.0
        %1423 = vmatpush1.msra.mxu0 0.0
        %1424 = vmatprep.mubr.f32.mxu0 0.0
        %1425 = vmatmul.mubr.f32.gmra.mrb[0].mxu0 %v1358
        %v1426 = vpop.f32.mrb[0].mxu0
        %v1427 = vadd.f32 %v1355, %v1426
        %v1428 = vpop.f32.mrb[0].mxu0
        %1429 = vdwg.mxu0
        %v1431 = vlaneseq
        %v1432 = vshrl.u32 %v1431, 7
        %v1433 = vsub.s32 0, %v1432
        %v1434 = vrot.slane %v1262, %v1433
        %v1437 = vsel %vm1084, %v1348, 0
        %1439 = vmatprep.subr.mxu0 0.0
        %1440 = vmatpush1.msra.mxu0 %v1258
        %1441 = vmatprep.subr.mxu0 0.0
        %1442 = vmatpush1.msra.mxu0 %v1259
        %1443 = vmatprep.subr.mxu0 0.0
        %1444 = vmatpush1.msra.mxu0 %v1260
        %1445 = vmatprep.subr.mxu0 0.0
        %1446 = vmatpush1.msra.mxu0 %v1261
        %1447 = vmatprep.subr.mxu0 0.0
        %1448 = vmatpush1.msra.mxu0 0.0
        %1449 = vmatprep.subr.mxu0 0.0
        %1450 = vmatpush1.msra.mxu0 0.0
        %1451 = vmatprep.subr.mxu0 0.0
        %1452 = vmatpush1.msra.mxu0 0.0
        %1453 = vmatprep.subr.mxu0 0.0
        %1454 = vmatpush1.msra.mxu0 0.0
        %1455 = vmatprep.subr.mxu0 0.0
        %1456 = vmatpush1.msra.mxu0 0.0
        %1457 = vmatprep.subr.mxu0 0.0
        %1458 = vmatpush1.msra.mxu0 0.0
        %1459 = vmatprep.subr.mxu0 0.0
        %1460 = vmatpush1.msra.mxu0 0.0
        %1461 = vmatprep.subr.mxu0 0.0
        %1462 = vmatpush1.msra.mxu0 0.0
        %1463 = vmatprep.subr.mxu0 0.0
        %1464 = vmatpush1.msra.mxu0 0.0
        %1465 = vmatprep.subr.mxu0 0.0
        %1466 = vmatpush1.msra.mxu0 0.0
        %1467 = vmatprep.subr.mxu0 0.0
        %1468 = vmatpush1.msra.mxu0 0.0
        %1469 = vmatprep.subr.mxu0 0.0
        %1470 = vmatpush1.msra.mxu0 0.0
        %1471 = vmatprep.subr.mxu0 0.0
        %1472 = vmatpush1.msra.mxu0 0.0
        %1473 = vmatprep.subr.mxu0 0.0
        %1474 = vmatpush1.msra.mxu0 0.0
        %1475 = vmatprep.subr.mxu0 0.0
        %1476 = vmatpush1.msra.mxu0 0.0
        %1477 = vmatprep.subr.mxu0 0.0
        %1478 = vmatpush1.msra.mxu0 0.0
        %1479 = vmatprep.subr.mxu0 0.0
        %1480 = vmatpush1.msra.mxu0 0.0
        %1481 = vmatprep.subr.mxu0 0.0
        %1482 = vmatpush1.msra.mxu0 0.0
        %1483 = vmatprep.subr.mxu0 0.0
        %1484 = vmatpush1.msra.mxu0 0.0
        %1485 = vmatprep.subr.mxu0 0.0
        %1486 = vmatpush1.msra.mxu0 0.0
        %1487 = vmatprep.subr.mxu0 0.0
        %1488 = vmatpush1.msra.mxu0 0.0
        %1489 = vmatprep.subr.mxu0 0.0
        %1490 = vmatpush1.msra.mxu0 0.0
        %1491 = vmatprep.subr.mxu0 0.0
        %1492 = vmatpush1.msra.mxu0 0.0
        %1493 = vmatprep.subr.mxu0 0.0
        %1494 = vmatpush1.msra.mxu0 0.0
        %1495 = vmatprep.subr.mxu0 0.0
        %1496 = vmatpush1.msra.mxu0 0.0
        %1497 = vmatprep.subr.mxu0 0.0
        %1498 = vmatpush1.msra.mxu0 0.0
        %1499 = vmatprep.subr.mxu0 0.0
        %1500 = vmatpush1.msra.mxu0 0.0
        %1501 = vmatprep.subr.mxu0 0.0
        %1502 = vmatpush1.msra.mxu0 0.0
        %1503 = vmatprep.mubr.f32.mxu0 0.0
        %1504 = vmatmul.mubr.f32.gmra.mrb[0].mxu0 %v1437
        %v1505 = vpop.f32.mrb[0].mxu0
        %v1506 = vadd.f32 %v1434, %v1505
        %v1507 = vpop.f32.mrb[0].mxu0
        %1508 = vdwg.mxu0
        %v1510 = vlaneseq
        %v1511 = vshrl.u32 %v1510, 7
        %v1512 = vsub.s32 0, %v1511
        %v1513 = vrot.slane %v1271, %v1512
        %1515 = vmatprep.subr.mxu0 0.0
        %1516 = vmatpush1.msra.mxu0 %v1263
        %1517 = vmatprep.subr.mxu0 0.0
        %1518 = vmatpush1.msra.mxu0 %v1264
        %1519 = vmatprep.subr.mxu0 0.0
        %1520 = vmatpush1.msra.mxu0 %v1265
        %1521 = vmatprep.subr.mxu0 0.0
        %1522 = vmatpush1.msra.mxu0 %v1266
        %1523 = vmatprep.subr.mxu0 0.0
        %1524 = vmatpush1.msra.mxu0 0.0
        %1525 = vmatprep.subr.mxu0 0.0
        %1526 = vmatpush1.msra.mxu0 0.0
        %1527 = vmatprep.subr.mxu0 0.0
        %1528 = vmatpush1.msra.mxu0 0.0
        %1529 = vmatprep.subr.mxu0 0.0
        %1530 = vmatpush1.msra.mxu0 0.0
        %1531 = vmatprep.subr.mxu0 0.0
        %1532 = vmatpush1.msra.mxu0 0.0
        %1533 = vmatprep.subr.mxu0 0.0
        %1534 = vmatpush1.msra.mxu0 0.0
        %1535 = vmatprep.subr.mxu0 0.0
        %1536 = vmatpush1.msra.mxu0 0.0
        %1537 = vmatprep.subr.mxu0 0.0
        %1538 = vmatpush1.msra.mxu0 0.0
        %1539 = vmatprep.subr.mxu0 0.0
        %1540 = vmatpush1.msra.mxu0 0.0
        %1541 = vmatprep.subr.mxu0 0.0
        %1542 = vmatpush1.msra.mxu0 0.0
        %1543 = vmatprep.subr.mxu0 0.0
        %1544 = vmatpush1.msra.mxu0 0.0
        %1545 = vmatprep.subr.mxu0 0.0
        %1546 = vmatpush1.msra.mxu0 0.0
        %1547 = vmatprep.subr.mxu0 0.0
        %1548 = vmatpush1.msra.mxu0 0.0
        %1549 = vmatprep.subr.mxu0 0.0
        %1550 = vmatpush1.msra.mxu0 0.0
        %1551 = vmatprep.subr.mxu0 0.0
        %1552 = vmatpush1.msra.mxu0 0.0
        %1553 = vmatprep.subr.mxu0 0.0
        %1554 = vmatpush1.msra.mxu0 0.0
        %1555 = vmatprep.subr.mxu0 0.0
        %1556 = vmatpush1.msra.mxu0 0.0
        %1557 = vmatprep.subr.mxu0 0.0
        %1558 = vmatpush1.msra.mxu0 0.0
        %1559 = vmatprep.subr.mxu0 0.0
        %1560 = vmatpush1.msra.mxu0 0.0
        %1561 = vmatprep.subr.mxu0 0.0
        %1562 = vmatpush1.msra.mxu0 0.0
        %1563 = vmatprep.subr.mxu0 0.0
        %1564 = vmatpush1.msra.mxu0 0.0
        %1565 = vmatprep.subr.mxu0 0.0
        %1566 = vmatpush1.msra.mxu0 0.0
        %1567 = vmatprep.subr.mxu0 0.0
        %1568 = vmatpush1.msra.mxu0 0.0
        %1569 = vmatprep.subr.mxu0 0.0
        %1570 = vmatpush1.msra.mxu0 0.0
        %1571 = vmatprep.subr.mxu0 0.0
        %1572 = vmatpush1.msra.mxu0 0.0
        %1573 = vmatprep.subr.mxu0 0.0
        %1574 = vmatpush1.msra.mxu0 0.0
        %1575 = vmatprep.subr.mxu0 0.0
        %1576 = vmatpush1.msra.mxu0 0.0
        %1577 = vmatprep.subr.mxu0 0.0
        %1578 = vmatpush1.msra.mxu0 0.0
        %1579 = vmatprep.mubr.f32.mxu0 0.0
        %1580 = vmatmul.mubr.f32.gmra.mrb[0].mxu0 %v1358
        %v1581 = vpop.f32.mrb[0].mxu0
        %v1582 = vadd.f32 %v1513, %v1581
        %v1583 = vpop.f32.mrb[0].mxu0
        %1584 = vdwg.mxu0
        %v1585 = vadd.f32 %v1582, %v1272
        %v1586 = vxor.u32 %v1585, 2147483648
        %v1587 = vmul.f32 %v1586, 1.442695
        %v1588 = vpow.pop %v1587
        %v1589 = vadd.f32 %v1588, 1.0
        %v1590 = vrcp.pop %v1589
        %v1591 = vmul.f32 1.0, %v1590
        %v1593 = vlaneseq
        %v1594 = vshrl.u32 %v1593, 7
        %v1595 = vsub.s32 0, %v1594
        %v1596 = vrot.slane %v1272, %v1595
        %1597 = vrot.lane.b32.xlu0 %v1596, 64
        %v1598 = vpop.permute.xlu0 %1597
        %v1600 = vmul.f32 %v1591, %v1598
        %1602 = vrot.lane.b32.xlu0 %v1600, 64
        %v1603 = vpop.permute.xlu0 %1602
        %v1605 = vadd.f32 %v1582, %v1603
        %v1606 = vtanh.pop %v1605
        %v1607 = vsub.f32 1.0, %v1591
        %1609 = vrot.lane.b32.xlu0 %v1606, 96
        %v1610 = vpop.permute.xlu0 %1609
        %v1612 = vmul.f32 %v1607, %v1610
        %v1613 = vmul.f32 %v1591, 0.0
        %v1614 = vadd.f32 %v1612, %v1613
        %1616 = vrot.lane.b32.xlu0 %v1614, 96
        %v1617 = vpop.permute.xlu0 %1616
        %vm1619 = vcmask 253952
        %1620 = vst.msk [vmem:[#allocation2] sm:$0x1] %vm1619, %v1617
        %v1621 = vsel %vm1084, %v1617, 0
        %1623 = vmatprep.subr.mxu0 0.0
        %1624 = vmatpush1.msra.mxu0 %v1249
        %1625 = vmatprep.subr.mxu0 0.0
        %1626 = vmatpush1.msra.mxu0 %v1250
        %1627 = vmatprep.subr.mxu0 0.0
        %1628 = vmatpush1.msra.mxu0 %v1251
        %1629 = vmatprep.subr.mxu0 0.0
        %1630 = vmatpush1.msra.mxu0 %v1252
        %1631 = vmatprep.subr.mxu0 0.0
        %1632 = vmatpush1.msra.mxu0 0.0
        %1633 = vmatprep.subr.mxu0 0.0
        %1634 = vmatpush1.msra.mxu0 0.0
        %1635 = vmatprep.subr.mxu0 0.0
        %1636 = vmatpush1.msra.mxu0 0.0
        %1637 = vmatprep.subr.mxu0 0.0
        %1638 = vmatpush1.msra.mxu0 0.0
        %1639 = vmatprep.subr.mxu0 0.0
        %1640 = vmatpush1.msra.mxu0 0.0
        %1641 = vmatprep.subr.mxu0 0.0
        %1642 = vmatpush1.msra.mxu0 0.0
        %1643 = vmatprep.subr.mxu0 0.0
        %1644 = vmatpush1.msra.mxu0 0.0
        %1645 = vmatprep.subr.mxu0 0.0
        %1646 = vmatpush1.msra.mxu0 0.0
        %1647 = vmatprep.subr.mxu0 0.0
        %1648 = vmatpush1.msra.mxu0 0.0
        %1649 = vmatprep.subr.mxu0 0.0
        %1650 = vmatpush1.msra.mxu0 0.0
        %1651 = vmatprep.subr.mxu0 0.0
        %1652 = vmatpush1.msra.mxu0 0.0
        %1653 = vmatprep.subr.mxu0 0.0
        %1654 = vmatpush1.msra.mxu0 0.0
        %1655 = vmatprep.subr.mxu0 0.0
        %1656 = vmatpush1.msra.mxu0 0.0
        %1657 = vmatprep.subr.mxu0 0.0
        %1658 = vmatpush1.msra.mxu0 0.0
        %1659 = vmatprep.subr.mxu0 0.0
        %1660 = vmatpush1.msra.mxu0 0.0
        %1661 = vmatprep.subr.mxu0 0.0
        %1662 = vmatpush1.msra.mxu0 0.0
        %1663 = vmatprep.subr.mxu0 0.0
        %1664 = vmatpush1.msra.mxu0 0.0
        %1665 = vmatprep.subr.mxu0 0.0
        %1666 = vmatpush1.msra.mxu0 0.0
        %1667 = vmatprep.subr.mxu0 0.0
        %1668 = vmatpush1.msra.mxu0 0.0
        %1669 = vmatprep.subr.mxu0 0.0
        %1670 = vmatpush1.msra.mxu0 0.0
        %1671 = vmatprep.subr.mxu0 0.0
        %1672 = vmatpush1.msra.mxu0 0.0
        %1673 = vmatprep.subr.mxu0 0.0
        %1674 = vmatpush1.msra.mxu0 0.0
        %1675 = vmatprep.subr.mxu0 0.0
        %1676 = vmatpush1.msra.mxu0 0.0
        %1677 = vmatprep.subr.mxu0 0.0
        %1678 = vmatpush1.msra.mxu0 0.0
        %1679 = vmatprep.subr.mxu0 0.0
        %1680 = vmatpush1.msra.mxu0 0.0
        %1681 = vmatprep.subr.mxu0 0.0
        %1682 = vmatpush1.msra.mxu0 0.0
        %1683 = vmatprep.subr.mxu0 0.0
        %1684 = vmatpush1.msra.mxu0 0.0
        %1685 = vmatprep.subr.mxu0 0.0
        %1686 = vmatpush1.msra.mxu0 0.0
        %1687 = vmatprep.mubr.f32.mxu0 0.0
        %1688 = vmatmul.mubr.f32.gmra.mrb[0].mxu0 %v1621
        %v1689 = vpop.f32.mrb[0].mxu0
        %v1690 = vadd.f32 %v1253, %v1689
        %v1691 = vpop.f32.mrb[0].mxu0
        %1692 = vdwg.mxu0
        %1693 = vst.msk [vmem:[#allocation3] sm:$0x1] %vm1619, %v1690
        %v1694 = vld [vmem:[#allocation2] sm:$0x1]
        %v1695 = vld [vmem:[#allocation3] sm:$0x1]
        %v1697 = vrot.slane %v1427, 1
        %v1699 = vmul.f32 %v1695, %v1697
        %v1700 = vsel %vm1619, %v1699, 0.0
        %1701 = vadd.xlane.f32.xlu0 %v1700
        %v1702 = vpop.xlane.xlu0 %1701
        %v1703 = vsub.f32 1.0, %v1069
        %v1704 = vmul.f32 %v1703, 1e+30
        %v1705 = vsub.f32 %v1702, %v1704
        %v1706 = vsub.f32 %v1705, %v1705
        %v1707 = vmul.f32 %v1706, 1.442695
        %v1708 = vpow.pop %v1707
        %v1709 = vadd.f32 %v1708, 0.0
        %v1710 = vrcp.pop %v1709
        %v1711 = vmul.f32 %v1708, %v1710
        %1713 = vset.pattern.permute.xlu0 1
        %1714 = vperm.xlu0 %1713, %v1711
        %v1715 = vpop.permute.xlu0 %1714
        %v1717 = vmul.f32 %v1715, %v1694
        %v1718 = vadd.f32 %v1717, 0.0
        %v1720 = vrot.slane %v1506, 1
        %v1723 = vsel %vm1084, %v1718, 0
        %1725 = vmatprep.subr.mxu0 0.0
        %1726 = vmatpush1.msra.mxu0 %v1254
        %1727 = vmatprep.subr.mxu0 0.0
        %1728 = vmatpush1.msra.mxu0 %v1255
        %1729 = vmatprep.subr.mxu0 0.0
        %1730 = vmatpush1.msra.mxu0 %v1256
        %1731 = vmatprep.subr.mxu0 0.0
        %1732 = vmatpush1.msra.mxu0 %v1257
        %1733 = vmatprep.subr.mxu0 0.0
        %1734 = vmatpush1.msra.mxu0 0.0
        %1735 = vmatprep.subr.mxu0 0.0
        %1736 = vmatpush1.msra.mxu0 0.0
        %1737 = vmatprep.subr.mxu0 0.0
        %1738 = vmatpush1.msra.mxu0 0.0
        %1739 = vmatprep.subr.mxu0 0.0
        %1740 = vmatpush1.msra.mxu0 0.0
        %1741 = vmatprep.subr.mxu0 0.0
        %1742 = vmatpush1.msra.mxu0 0.0
        %1743 = vmatprep.subr.mxu0 0.0
        %1744 = vmatpush1.msra.mxu0 0.0
        %1745 = vmatprep.subr.mxu0 0.0
        %1746 = vmatpush1.msra.mxu0 0.0
        %1747 = vmatprep.subr.mxu0 0.0
        %1748 = vmatpush1.msra.mxu0 0.0
        %1749 = vmatprep.subr.mxu0 0.0
        %1750 = vmatpush1.msra.mxu0 0.0
        %1751 = vmatprep.subr.mxu0 0.0
        %1752 = vmatpush1.msra.mxu0 0.0
        %1753 = vmatprep.subr.mxu0 0.0
        %1754 = vmatpush1.msra.mxu0 0.0
        %1755 = vmatprep.subr.mxu0 0.0
        %1756 = vmatpush1.msra.mxu0 0.0
        %1757 = vmatprep.subr.mxu0 0.0
        %1758 = vmatpush1.msra.mxu0 0.0
        %1759 = vmatprep.subr.mxu0 0.0
        %1760 = vmatpush1.msra.mxu0 0.0
        %1761 = vmatprep.subr.mxu0 0.0
        %1762 = vmatpush1.msra.mxu0 0.0
        %1763 = vmatprep.subr.mxu0 0.0
        %1764 = vmatpush1.msra.mxu0 0.0
        %1765 = vmatprep.subr.mxu0 0.0
        %1766 = vmatpush1.msra.mxu0 0.0
        %1767 = vmatprep.subr.mxu0 0.0
        %1768 = vmatpush1.msra.mxu0 0.0
        %1769 = vmatprep.subr.mxu0 0.0
        %1770 = vmatpush1.msra.mxu0 0.0
        %1771 = vmatprep.subr.mxu0 0.0
        %1772 = vmatpush1.msra.mxu0 0.0
        %1773 = vmatprep.subr.mxu0 0.0
        %1774 = vmatpush1.msra.mxu0 0.0
        %1775 = vmatprep.subr.mxu0 0.0
        %1776 = vmatpush1.msra.mxu0 0.0
        %1777 = vmatprep.subr.mxu0 0.0
        %1778 = vmatpush1.msra.mxu0 0.0
        %1779 = vmatprep.subr.mxu0 0.0
        %1780 = vmatpush1.msra.mxu0 0.0
        %1781 = vmatprep.subr.mxu0 0.0
        %1782 = vmatpush1.msra.mxu0 0.0
        %1783 = vmatprep.subr.mxu0 0.0
        %1784 = vmatpush1.msra.mxu0 0.0
        %1785 = vmatprep.subr.mxu0 0.0
        %1786 = vmatpush1.msra.mxu0 0.0
        %1787 = vmatprep.subr.mxu0 0.0
        %1788 = vmatpush1.msra.mxu0 0.0
        %1789 = vmatprep.mubr.f32.mxu0 0.0
        %1790 = vmatmul.mubr.f32.gmra.mrb[0].mxu0 %v1723
        %v1791 = vpop.f32.mrb[0].mxu0
        %v1792 = vadd.f32 %v1720, %v1791
        %v1793 = vpop.f32.mrb[0].mxu0
        %1794 = vdwg.mxu0
        %v1796 = vsel %vm1084, %v1792, 0
        %1798 = vmatprep.subr.mxu0 0.0
        %1799 = vmatpush1.msra.mxu0 %v1267
        %1800 = vmatprep.subr.mxu0 0.0
        %1801 = vmatpush1.msra.mxu0 %v1268
        %1802 = vmatprep.subr.mxu0 0.0
        %1803 = vmatpush1.msra.mxu0 %v1269
        %1804 = vmatprep.subr.mxu0 0.0
        %1805 = vmatpush1.msra.mxu0 %v1270
        %1806 = vmatprep.subr.mxu0 0.0
        %1807 = vmatpush1.msra.mxu0 0.0
        %1808 = vmatprep.subr.mxu0 0.0
        %1809 = vmatpush1.msra.mxu0 0.0
        %1810 = vmatprep.subr.mxu0 0.0
        %1811 = vmatpush1.msra.mxu0 0.0
        %1812 = vmatprep.subr.mxu0 0.0
        %1813 = vmatpush1.msra.mxu0 0.0
        %1814 = vmatprep.subr.mxu0 0.0
        %1815 = vmatpush1.msra.mxu0 0.0
        %1816 = vmatprep.subr.mxu0 0.0
        %1817 = vmatpush1.msra.mxu0 0.0
        %1818 = vmatprep.subr.mxu0 0.0
        %1819 = vmatpush1.msra.mxu0 0.0
        %1820 = vmatprep.subr.mxu0 0.0
        %1821 = vmatpush1.msra.mxu0 0.0
        %1822 = vmatprep.subr.mxu0 0.0
        %1823 = vmatpush1.msra.mxu0 0.0
        %1824 = vmatprep.subr.mxu0 0.0
        %1825 = vmatpush1.msra.mxu0 0.0
        %1826 = vmatprep.subr.mxu0 0.0
        %1827 = vmatpush1.msra.mxu0 0.0
        %1828 = vmatprep.subr.mxu0 0.0
        %1829 = vmatpush1.msra.mxu0 0.0
        %1830 = vmatprep.subr.mxu0 0.0
        %1831 = vmatpush1.msra.mxu0 0.0
        %1832 = vmatprep.subr.mxu0 0.0
        %1833 = vmatpush1.msra.mxu0 0.0
        %1834 = vmatprep.subr.mxu0 0.0
        %1835 = vmatpush1.msra.mxu0 0.0
        %1836 = vmatprep.subr.mxu0 0.0
        %1837 = vmatpush1.msra.mxu0 0.0
        %1838 = vmatprep.subr.mxu0 0.0
        %1839 = vmatpush1.msra.mxu0 0.0
        %1840 = vmatprep.subr.mxu0 0.0
        %1841 = vmatpush1.msra.mxu0 0.0
        %1842 = vmatprep.subr.mxu0 0.0
        %1843 = vmatpush1.msra.mxu0 0.0
        %1844 = vmatprep.subr.mxu0 0.0
        %1845 = vmatpush1.msra.mxu0 0.0
        %1846 = vmatprep.subr.mxu0 0.0
        %1847 = vmatpush1.msra.mxu0 0.0
        %1848 = vmatprep.subr.mxu0 0.0
        %1849 = vmatpush1.msra.mxu0 0.0
        %1850 = vmatprep.subr.mxu0 0.0
        %1851 = vmatpush1.msra.mxu0 0.0
        %1852 = vmatprep.subr.mxu0 0.0
        %1853 = vmatpush1.msra.mxu0 0.0
        %1854 = vmatprep.subr.mxu0 0.0
        %1855 = vmatpush1.msra.mxu0 0.0
        %1856 = vmatprep.subr.mxu0 0.0
        %1857 = vmatpush1.msra.mxu0 0.0
        %1858 = vmatprep.subr.mxu0 0.0
        %1859 = vmatpush1.msra.mxu0 0.0
        %1860 = vmatprep.subr.mxu0 0.0
        %1861 = vmatpush1.msra.mxu0 0.0
        %1862 = vmatprep.mubr.f32.mxu0 0.0
        %1863 = vmatmul.mubr.f32.gmra.mrb[0].mxu0 %v1796
        %v1864 = vpop.f32.mrb[0].mxu0
        %v1865 = vadd.f32 %v1272, %v1864
        %v1866 = vpop.f32.mrb[0].mxu0
        %1867 = vdwg.mxu0
        %v1869 = vrot.slane %v1865, 7
        %v1871 = vadd.f32 %v1582, %v1869
        %v1872 = vxor.u32 %v1871, 2147483648
        %v1873 = vmul.f32 %v1872, 1.442695
        %v1874 = vpow.pop %v1873
        %v1875 = vadd.f32 %v1874, 1.0
        %v1876 = vrcp.pop %v1875
        %v1877 = vmul.f32 1.0, %v1876
        %1878 = vrot.lane.b32.xlu0 %v1869, 64
        %v1879 = vpop.permute.xlu0 %1878
        %v1881 = vmul.f32 %v1877, %v1879
        %1883 = vrot.lane.b32.xlu0 %v1881, 64
        %v1884 = vpop.permute.xlu0 %1883
        %v1886 = vadd.f32 %v1582, %v1884
        %v1887 = vtanh.pop %v1886
        %v1888 = vsub.f32 1.0, %v1877
        %1890 = vrot.lane.b32.xlu0 %v1887, 96
        %v1891 = vpop.permute.xlu0 %1890
        %v1893 = vmul.f32 %v1888, %v1891
        %v1894 = vrot.slane %v1792, 7
        %1895 = vrot.lane.b32.xlu0 %v1894, 32
        %v1896 = vpop.permute.xlu0 %1895
        %v1898 = vmul.f32 %v1877, %v1896
        %v1899 = vadd.f32 %v1893, %v1898
        %1901 = vrot.lane.b32.xlu0 %v1899, 96
        %v1902 = vpop.permute.xlu0 %1901
        %vm1904 = vcmask 254977
        %1905 = vst.msk [vmem:[#allocation2] sm:$0x2] %vm1904, %v1902
        %v1906 = vrot.slane %v1899, 1
        %1907 = vrot.lane.b32.xlu0 %v1906, 96
        %v1908 = vpop.permute.xlu0 %1907
        %v1909 = vsel %vm1084, %v1908, 0
        %1911 = vmatprep.subr.mxu0 0.0
        %1912 = vmatpush1.msra.mxu0 %v1249
        %1913 = vmatprep.subr.mxu0 0.0
        %1914 = vmatpush1.msra.mxu0 %v1250
        %1915 = vmatprep.subr.mxu0 0.0
        %1916 = vmatpush1.msra.mxu0 %v1251
        %1917 = vmatprep.subr.mxu0 0.0
        %1918 = vmatpush1.msra.mxu0 %v1252
        %1919 = vmatprep.subr.mxu0 0.0
        %1920 = vmatpush1.msra.mxu0 0.0
        %1921 = vmatprep.subr.mxu0 0.0
        %1922 = vmatpush1.msra.mxu0 0.0
        %1923 = vmatprep.subr.mxu0 0.0
        %1924 = vmatpush1.msra.mxu0 0.0
        %1925 = vmatprep.subr.mxu0 0.0
        %1926 = vmatpush1.msra.mxu0 0.0
        %1927 = vmatprep.subr.mxu0 0.0
        %1928 = vmatpush1.msra.mxu0 0.0
        %1929 = vmatprep.subr.mxu0 0.0
        %1930 = vmatpush1.msra.mxu0 0.0
        %1931 = vmatprep.subr.mxu0 0.0
        %1932 = vmatpush1.msra.mxu0 0.0
        %1933 = vmatprep.subr.mxu0 0.0
        %1934 = vmatpush1.msra.mxu0 0.0
        %1935 = vmatprep.subr.mxu0 0.0
        %1936 = vmatpush1.msra.mxu0 0.0
        %1937 = vmatprep.subr.mxu0 0.0
        %1938 = vmatpush1.msra.mxu0 0.0
        %1939 = vmatprep.subr.mxu0 0.0
        %1940 = vmatpush1.msra.mxu0 0.0
        %1941 = vmatprep.subr.mxu0 0.0
        %1942 = vmatpush1.msra.mxu0 0.0
        %1943 = vmatprep.subr.mxu0 0.0
        %1944 = vmatpush1.msra.mxu0 0.0
        %1945 = vmatprep.subr.mxu0 0.0
        %1946 = vmatpush1.msra.mxu0 0.0
        %1947 = vmatprep.subr.mxu0 0.0
        %1948 = vmatpush1.msra.mxu0 0.0
        %1949 = vmatprep.subr.mxu0 0.0
        %1950 = vmatpush1.msra.mxu0 0.0
        %1951 = vmatprep.subr.mxu0 0.0
        %1952 = vmatpush1.msra.mxu0 0.0
        %1953 = vmatprep.subr.mxu0 0.0
        %1954 = vmatpush1.msra.mxu0 0.0
        %1955 = vmatprep.subr.mxu0 0.0
        %1956 = vmatpush1.msra.mxu0 0.0
        %1957 = vmatprep.subr.mxu0 0.0
        %1958 = vmatpush1.msra.mxu0 0.0
        %1959 = vmatprep.subr.mxu0 0.0
        %1960 = vmatpush1.msra.mxu0 0.0
        %1961 = vmatprep.subr.mxu0 0.0
        %1962 = vmatpush1.msra.mxu0 0.0
        %1963 = vmatprep.subr.mxu0 0.0
        %1964 = vmatpush1.msra.mxu0 0.0
        %1965 = vmatprep.subr.mxu0 0.0
        %1966 = vmatpush1.msra.mxu0 0.0
        %1967 = vmatprep.subr.mxu0 0.0
        %1968 = vmatpush1.msra.mxu0 0.0
        %1969 = vmatprep.subr.mxu0 0.0
        %1970 = vmatpush1.msra.mxu0 0.0
        %1971 = vmatprep.subr.mxu0 0.0
        %1972 = vmatpush1.msra.mxu0 0.0
        %1973 = vmatprep.subr.mxu0 0.0
        %1974 = vmatpush1.msra.mxu0 0.0
        %1975 = vmatprep.mubr.f32.mxu0 0.0
        %1976 = vmatmul.mubr.f32.gmra.mrb[0].mxu0 %v1909
        %v1977 = vpop.f32.mrb[0].mxu0
        %v1978 = vadd.f32 %v1253, %v1977
        %v1979 = vpop.f32.mrb[0].mxu0
        %1980 = vdwg.mxu0
        %1981 = vst.msk [vmem:[#allocation3 + $0x1] sm:$0x1] %vm1619, %v1978
        %v1982 = vld [vmem:[#allocation2] sm:$0x3]
        %v1983 = vld [vmem:[#allocation3] sm:$0x3]
        %v1984 = vlaneseq
        %v1985 = vshrl.u32 %v1984, 7
        %v1986 = vsub.s32 2, %v1985
        %v1987 = vrot.slane %v1427, %v1986
        %v1988 = vmul.f32 %v1983, %v1987
        %vm1989 = vcmask 254976
        %v1990 = vsel %vm1989, %v1988, 0.0
        %1991 = vadd.xlane.f32.xlu0 %v1990
        %v1992 = vpop.xlane.xlu0 %1991
        %v1993 = vsub.f32 %v1992, %v1704
        %vm1994 = vcmask 17424
        %v1995 = vsel %vm1994, %v1993, -inf
        %v1996 = vrot.slane %v1995, 4
        %v1997 = vmax.f32 %v1995, %v1996
        %v1998 = vrot.slane %v1997, 2
        %v1999 = vmax.f32 %v1997, %v1998
        %v2000 = vrot.slane %v1999, 1
        %v2001 = vmax.f32 %v1999, %v2000
        %v2002 = vsub.f32 %v1993, %v2001
        %v2003 = vmul.f32 %v2002, 1.442695
        %v2004 = vpow.pop %v2003
        %v2005 = vsel %vm1994, %v2004, 0.0
        %v2006 = vrot.slane %v2005, 4
        %v2007 = vadd.f32 %v2005, %v2006
        %v2008 = vrot.slane %v2007, 2
        %v2009 = vadd.f32 %v2007, %v2008
        %v2010 = vrot.slane %v2009, 1
        %v2011 = vadd.f32 %v2009, %v2010
        %v2012 = vrcp.pop %v2011
        %v2013 = vmul.f32 %v2004, %v2012
        %2015 = vset.pattern.permute.xlu0 2
        %2016 = vperm.xlu0 %2015, %v2013
        %v2017 = vpop.permute.xlu0 %2016
        %v2019 = vmul.f32 %v2017, %v1982
        %v2020 = vsel %vm1989, %v2019, 0.0
        %v2021 = vrot.slane %v2020, 4
        %v2022 = vadd.f32 %v2020, %v2021
        %v2023 = vrot.slane %v2022, 2
        %v2024 = vadd.f32 %v2022, %v2023
        %v2025 = vrot.slane %v2024, 1
        %v2026 = vadd.f32 %v2024, %v2025
        %v2027 = vrot.slane %v1506, 2
        %v2030 = vsel %vm1084, %v2026, 0
        %2032 = vmatprep.subr.mxu0 0.0
        %2033 = vmatpush1.msra.mxu0 %v1254
        %2034 = vmatprep.subr.mxu0 0.0
        %2035 = vmatpush1.msra.mxu0 %v1255
        %2036 = vmatprep.subr.mxu0 0.0
        %2037 = vmatpush1.msra.mxu0 %v1256
        %2038 = vmatprep.subr.mxu0 0.0
        %2039 = vmatpush1.msra.mxu0 %v1257
        %2040 = vmatprep.subr.mxu0 0.0
        %2041 = vmatpush1.msra.mxu0 0.0
        %2042 = vmatprep.subr.mxu0 0.0
        %2043 = vmatpush1.msra.mxu0 0.0
        %2044 = vmatprep.subr.mxu0 0.0
        %2045 = vmatpush1.msra.mxu0 0.0
        %2046 = vmatprep.subr.mxu0 0.0
        %2047 = vmatpush1.msra.mxu0 0.0
        %2048 = vmatprep.subr.mxu0 0.0
        %2049 = vmatpush1.msra.mxu0 0.0
        %2050 = vmatprep.subr.mxu0 0.0
        %2051 = vmatpush1.msra.mxu0 0.0
        %2052 = vmatprep.subr.mxu0 0.0
        %2053 = vmatpush1.msra.mxu0 0.0
        %2054 = vmatprep.subr.mxu0 0.0
        %2055 = vmatpush1.msra.mxu0 0.0
        %2056 = vmatprep.subr.mxu0 0.0
        %2057 = vmatpush1.msra.mxu0 0.0
        %2058 = vmatprep.subr.mxu0 0.0
        %2059 = vmatpush1.msra.mxu0 0.0
        %2060 = vmatprep.subr.mxu0 0.0
        %2061 = vmatpush1.msra.mxu0 0.0
        %2062 = vmatprep.subr.mxu0 0.0
        %2063 = vmatpush1.msra.mxu0 0.0
        %2064 = vmatprep.subr.mxu0 0.0
        %2065 = vmatpush1.msra.mxu0 0.0
        %2066 = vmatprep.subr.mxu0 0.0
        %2067 = vmatpush1.msra.mxu0 0.0
        %2068 = vmatprep.subr.mxu0 0.0
        %2069 = vmatpush1.msra.mxu0 0.0
        %2070 = vmatprep.subr.mxu0 0.0
        %2071 = vmatpush1.msra.mxu0 0.0
        %2072 = vmatprep.subr.mxu0 0.0
        %2073 = vmatpush1.msra.mxu0 0.0
        %2074 = vmatprep.subr.mxu0 0.0
        %2075 = vmatpush1.msra.mxu0 0.0
        %2076 = vmatprep.subr.mxu0 0.0
        %2077 = vmatpush1.msra.mxu0 0.0
        %2078 = vmatprep.subr.mxu0 0.0
        %2079 = vmatpush1.msra.mxu0 0.0
        %2080 = vmatprep.subr.mxu0 0.0
        %2081 = vmatpush1.msra.mxu0 0.0
        %2082 = vmatprep.subr.mxu0 0.0
        %2083 = vmatpush1.msra.mxu0 0.0
        %2084 = vmatprep.subr.mxu0 0.0
        %2085 = vmatpush1.msra.mxu0 0.0
        %2086 = vmatprep.subr.mxu0 0.0
        %2087 = vmatpush1.msra.mxu0 0.0
        %2088 = vmatprep.subr.mxu0 0.0
        %2089 = vmatpush1.msra.mxu0 0.0
        %2090 = vmatprep.subr.mxu0 0.0
        %2091 = vmatpush1.msra.mxu0 0.0
        %2092 = vmatprep.subr.mxu0 0.0
        %2093 = vmatpush1.msra.mxu0 0.0
        %2094 = vmatprep.subr.mxu0 0.0
        %2095 = vmatpush1.msra.mxu0 0.0
        %2096 = vmatprep.mubr.f32.mxu0 0.0
        %2097 = vmatmul.mubr.f32.gmra.mrb[0].mxu0 %v2030
        %v2098 = vpop.f32.mrb[0].mxu0
        %v2099 = vadd.f32 %v2027, %v2098
        %v2100 = vpop.f32.mrb[0].mxu0
        %2101 = vdwg.mxu0
        %v2103 = vsel %vm1084, %v2099, 0
        %2105 = vmatprep.subr.mxu0 0.0
        %2106 = vmatpush1.msra.mxu0 %v1267
        %2107 = vmatprep.subr.mxu0 0.0
        %2108 = vmatpush1.msra.mxu0 %v1268
        %2109 = vmatprep.subr.mxu0 0.0
        %2110 = vmatpush1.msra.mxu0 %v1269
        %2111 = vmatprep.subr.mxu0 0.0
        %2112 = vmatpush1.msra.mxu0 %v1270
        %2113 = vmatprep.subr.mxu0 0.0
        %2114 = vmatpush1.msra.mxu0 0.0
        %2115 = vmatprep.subr.mxu0 0.0
        %2116 = vmatpush1.msra.mxu0 0.0
        %2117 = vmatprep.subr.mxu0 0.0
        %2118 = vmatpush1.msra.mxu0 0.0
        %2119 = vmatprep.subr.mxu0 0.0
        %2120 = vmatpush1.msra.mxu0 0.0
        %2121 = vmatprep.subr.mxu0 0.0
        %2122 = vmatpush1.msra.mxu0 0.0
        %2123 = vmatprep.subr.mxu0 0.0
        %2124 = vmatpush1.msra.mxu0 0.0
        %2125 = vmatprep.subr.mxu0 0.0
        %2126 = vmatpush1.msra.mxu0 0.0
        %2127 = vmatprep.subr.mxu0 0.0
        %2128 = vmatpush1.msra.mxu0 0.0
        %2129 = vmatprep.subr.mxu0 0.0
        %2130 = vmatpush1.msra.mxu0 0.0
        %2131 = vmatprep.subr.mxu0 0.0
        %2132 = vmatpush1.msra.mxu0 0.0
        %2133 = vmatprep.subr.mxu0 0.0
        %2134 = vmatpush1.msra.mxu0 0.0
        %2135 = vmatprep.subr.mxu0 0.0
        %2136 = vmatpush1.msra.mxu0 0.0
        %2137 = vmatprep.subr.mxu0 0.0
        %2138 = vmatpush1.msra.mxu0 0.0
        %2139 = vmatprep.subr.mxu0 0.0
        %2140 = vmatpush1.msra.mxu0 0.0
        %2141 = vmatprep.subr.mxu0 0.0
        %2142 = vmatpush1.msra.mxu0 0.0
        %2143 = vmatprep.subr.mxu0 0.0
        %2144 = vmatpush1.msra.mxu0 0.0
        %2145 = vmatprep.subr.mxu0 0.0
        %2146 = vmatpush1.msra.mxu0 0.0
        %2147 = vmatprep.subr.mxu0 0.0
        %2148 = vmatpush1.msra.mxu0 0.0
        %2149 = vmatprep.subr.mxu0 0.0
        %2150 = vmatpush1.msra.mxu0 0.0
        %2151 = vmatprep.subr.mxu0 0.0
        %2152 = vmatpush1.msra.mxu0 0.0
        %2153 = vmatprep.subr.mxu0 0.0
        %2154 = vmatpush1.msra.mxu0 0.0
        %2155 = vmatprep.subr.mxu0 0.0
        %2156 = vmatpush1.msra.mxu0 0.0
        %2157 = vmatprep.subr.mxu0 0.0
        %2158 = vmatpush1.msra.mxu0 0.0
        %2159 = vmatprep.subr.mxu0 0.0
        %2160 = vmatpush1.msra.mxu0 0.0
        %2161 = vmatprep.subr.mxu0 0.0
        %2162 = vmatpush1.msra.mxu0 0.0
        %2163 = vmatprep.subr.mxu0 0.0
        %2164 = vmatpush1.msra.mxu0 0.0
        %2165 = vmatprep.subr.mxu0 0.0
        %2166 = vmatpush1.msra.mxu0 0.0
        %2167 = vmatprep.subr.mxu0 0.0
        %2168 = vmatpush1.msra.mxu0 0.0
        %2169 = vmatprep.mubr.f32.mxu0 0.0
        %2170 = vmatmul.mubr.f32.gmra.mrb[0].mxu0 %v2103
        %v2171 = vpop.f32.mrb[0].mxu0
        %v2172 = vadd.f32 %v1272, %v2171
        %v2173 = vpop.f32.mrb[0].mxu0
        %2174 = vdwg.mxu0
        %v2176 = vrot.slane %v2172, 6
        %v2178 = vadd.f32 %v1582, %v2176
        %v2179 = vxor.u32 %v2178, 2147483648
        %v2180 = vmul.f32 %v2179, 1.442695
        %v2181 = vpow.pop %v2180
        %v2182 = vadd.f32 %v2181, 1.0
        %v2183 = vrcp.pop %v2182
        %v2184 = vmul.f32 1.0, %v2183
        %2185 = vrot.lane.b32.xlu0 %v2176, 64
        %v2186 = vpop.permute.xlu0 %2185
        %v2188 = vmul.f32 %v2184, %v2186
        %2190 = vrot.lane.b32.xlu0 %v2188, 64
        %v2191 = vpop.permute.xlu0 %2190
        %v2193 = vadd.f32 %v1582, %v2191
        %v2194 = vtanh.pop %v2193
        %v2195 = vsub.f32 1.0, %v2184
        %2197 = vrot.lane.b32.xlu0 %v2194, 96
        %v2198 = vpop.permute.xlu0 %2197
        %v2200 = vmul.f32 %v2195, %v2198
        %v2201 = vrot.slane %v2099, 6
        %2202 = vrot.lane.b32.xlu0 %v2201, 32
        %v2203 = vpop.permute.xlu0 %2202
        %v2205 = vmul.f32 %v2184, %v2203
        %v2206 = vadd.f32 %v2200, %v2205
        %2208 = vrot.lane.b32.xlu0 %v2206, 96
        %v2209 = vpop.permute.xlu0 %2208
        %vm2211 = vcmask 256002
        %2212 = vst.msk [vmem:[#allocation2] sm:$0x4] %vm2211, %v2209
        %v2213 = vrot.slane %v2206, 2
        %2214 = vrot.lane.b32.xlu0 %v2213, 96
        %v2215 = vpop.permute.xlu0 %2214
        %v2216 = vsel %vm1084, %v2215, 0
        %2218 = vmatprep.subr.mxu0 0.0
        %2219 = vmatpush1.msra.mxu0 %v1249
        %2220 = vmatprep.subr.mxu0 0.0
        %2221 = vmatpush1.msra.mxu0 %v1250
        %2222 = vmatprep.subr.mxu0 0.0
        %2223 = vmatpush1.msra.mxu0 %v1251
        %2224 = vmatprep.subr.mxu0 0.0
        %2225 = vmatpush1.msra.mxu0 %v1252
        %2226 = vmatprep.subr.mxu0 0.0
        %2227 = vmatpush1.msra.mxu0 0.0
        %2228 = vmatprep.subr.mxu0 0.0
        %2229 = vmatpush1.msra.mxu0 0.0
        %2230 = vmatprep.subr.mxu0 0.0
        %2231 = vmatpush1.msra.mxu0 0.0
        %2232 = vmatprep.subr.mxu0 0.0
        %2233 = vmatpush1.msra.mxu0 0.0
        %2234 = vmatprep.subr.mxu0 0.0
        %2235 = vmatpush1.msra.mxu0 0.0
        %2236 = vmatprep.subr.mxu0 0.0
        %2237 = vmatpush1.msra.mxu0 0.0
        %2238 = vmatprep.subr.mxu0 0.0
        %2239 = vmatpush1.msra.mxu0 0.0
        %2240 = vmatprep.subr.mxu0 0.0
        %2241 = vmatpush1.msra.mxu0 0.0
        %2242 = vmatprep.subr.mxu0 0.0
        %2243 = vmatpush1.msra.mxu0 0.0
        %2244 = vmatprep.subr.mxu0 0.0
        %2245 = vmatpush1.msra.mxu0 0.0
        %2246 = vmatprep.subr.mxu0 0.0
        %2247 = vmatpush1.msra.mxu0 0.0
        %2248 = vmatprep.subr.mxu0 0.0
        %2249 = vmatpush1.msra.mxu0 0.0
        %2250 = vmatprep.subr.mxu0 0.0
        %2251 = vmatpush1.msra.mxu0 0.0
        %2252 = vmatprep.subr.mxu0 0.0
        %2253 = vmatpush1.msra.mxu0 0.0
        %2254 = vmatprep.subr.mxu0 0.0
        %2255 = vmatpush1.msra.mxu0 0.0
        %2256 = vmatprep.subr.mxu0 0.0
        %2257 = vmatpush1.msra.mxu0 0.0
        %2258 = vmatprep.subr.mxu0 0.0
        %2259 = vmatpush1.msra.mxu0 0.0
        %2260 = vmatprep.subr.mxu0 0.0
        %2261 = vmatpush1.msra.mxu0 0.0
        %2262 = vmatprep.subr.mxu0 0.0
        %2263 = vmatpush1.msra.mxu0 0.0
        %2264 = vmatprep.subr.mxu0 0.0
        %2265 = vmatpush1.msra.mxu0 0.0
        %2266 = vmatprep.subr.mxu0 0.0
        %2267 = vmatpush1.msra.mxu0 0.0
        %2268 = vmatprep.subr.mxu0 0.0
        %2269 = vmatpush1.msra.mxu0 0.0
        %2270 = vmatprep.subr.mxu0 0.0
        %2271 = vmatpush1.msra.mxu0 0.0
        %2272 = vmatprep.subr.mxu0 0.0
        %2273 = vmatpush1.msra.mxu0 0.0
        %2274 = vmatprep.subr.mxu0 0.0
        %2275 = vmatpush1.msra.mxu0 0.0
        %2276 = vmatprep.subr.mxu0 0.0
        %2277 = vmatpush1.msra.mxu0 0.0
        %2278 = vmatprep.subr.mxu0 0.0
        %2279 = vmatpush1.msra.mxu0 0.0
        %2280 = vmatprep.subr.mxu0 0.0
        %2281 = vmatpush1.msra.mxu0 0.0
        %2282 = vmatprep.mubr.f32.mxu0 0.0
        %2283 = vmatmul.mubr.f32.gmra.mrb[0].mxu0 %v2216
        %v2284 = vpop.f32.mrb[0].mxu0
        %v2285 = vadd.f32 %v1253, %v2284
        %v2286 = vpop.f32.mrb[0].mxu0
        %2287 = vdwg.mxu0
        %2288 = vst.msk [vmem:[#allocation3 + $0x2] sm:$0x1] %vm1619, %v2285
        %v2289 = vld [vmem:[#allocation2] sm:$0x7]
        %v2290 = vld [vmem:[#allocation3] sm:$0x7]
        %v2291 = vlaneseq
        %v2292 = vshrl.u32 %v2291, 7
        %v2293 = vsub.s32 3, %v2292
        %v2294 = vrot.slane %v1427, %v2293
        %v2295 = vmul.f32 %v2290, %v2294
        %vm2296 = vcmask 256000
        %v2297 = vsel %vm2296, %v2295, 0.0
        %2298 = vadd.xlane.f32.xlu0 %v2297
        %v2299 = vpop.xlane.xlu0 %2298
        %v2300 = vsub.f32 %v2299, %v1704
        %vm2301 = vcmask 26648
        %v2302 = vsel %vm2301, %v2300, -inf
        %v2303 = vrot.slane %v2302, 4
        %v2304 = vmax.f32 %v2302, %v2303
        %v2305 = vrot.slane %v2304, 2
        %v2306 = vmax.f32 %v2304, %v2305
        %v2307 = vrot.slane %v2306, 1
        %v2308 = vmax.f32 %v2306, %v2307
        %v2309 = vsub.f32 %v2300, %v2308
        %v2310 = vmul.f32 %v2309, 1.442695
        %v2311 = vpow.pop %v2310
        %v2312 = vsel %vm2301, %v2311, 0.0
        %v2313 = vrot.slane %v2312, 4
        %v2314 = vadd.f32 %v2312, %v2313
        %v2315 = vrot.slane %v2314, 2
        %v2316 = vadd.f32 %v2314, %v2315
        %v2317 = vrot.slane %v2316, 1
        %v2318 = vadd.f32 %v2316, %v2317
        %v2319 = vrcp.pop %v2318
        %v2320 = vmul.f32 %v2311, %v2319
        %2322 = vset.pattern.permute.xlu0 3
        %2323 = vperm.xlu0 %2322, %v2320
        %v2324 = vpop.permute.xlu0 %2323
        %v2326 = vmul.f32 %v2324, %v2289
        %v2327 = vsel %vm2296, %v2326, 0.0
        %v2328 = vrot.slane %v2327, 4
        %v2329 = vadd.f32 %v2327, %v2328
        %v2330 = vrot.slane %v2329, 2
        %v2331 = vadd.f32 %v2329, %v2330
        %v2332 = vrot.slane %v2331, 1
        %v2333 = vadd.f32 %v2331, %v2332
        %v2334 = vrot.slane %v1506, 3
        %v2337 = vsel %vm1084, %v2333, 0
        %2339 = vmatprep.subr.mxu0 0.0
        %2340 = vmatpush1.msra.mxu0 %v1254
        %2341 = vmatprep.subr.mxu0 0.0
        %2342 = vmatpush1.msra.mxu0 %v1255
        %2343 = vmatprep.subr.mxu0 0.0
        %2344 = vmatpush1.msra.mxu0 %v1256
        %2345 = vmatprep.subr.mxu0 0.0
        %2346 = vmatpush1.msra.mxu0 %v1257
        %2347 = vmatprep.subr.mxu0 0.0
        %2348 = vmatpush1.msra.mxu0 0.0
        %2349 = vmatprep.subr.mxu0 0.0
        %2350 = vmatpush1.msra.mxu0 0.0
        %2351 = vmatprep.subr.mxu0 0.0
        %2352 = vmatpush1.msra.mxu0 0.0
        %2353 = vmatprep.subr.mxu0 0.0
        %2354 = vmatpush1.msra.mxu0 0.0
        %2355 = vmatprep.subr.mxu0 0.0
        %2356 = vmatpush1.msra.mxu0 0.0
        %2357 = vmatprep.subr.mxu0 0.0
        %2358 = vmatpush1.msra.mxu0 0.0
        %2359 = vmatprep.subr.mxu0 0.0
        %2360 = vmatpush1.msra.mxu0 0.0
        %2361 = vmatprep.subr.mxu0 0.0
        %2362 = vmatpush1.msra.mxu0 0.0
        %2363 = vmatprep.subr.mxu0 0.0
        %2364 = vmatpush1.msra.mxu0 0.0
        %2365 = vmatprep.subr.mxu0 0.0
        %2366 = vmatpush1.msra.mxu0 0.0
        %2367 = vmatprep.subr.mxu0 0.0
        %2368 = vmatpush1.msra.mxu0 0.0
        %2369 = vmatprep.subr.mxu0 0.0
        %2370 = vmatpush1.msra.mxu0 0.0
        %2371 = vmatprep.subr.mxu0 0.0
        %2372 = vmatpush1.msra.mxu0 0.0
        %2373 = vmatprep.subr.mxu0 0.0
        %2374 = vmatpush1.msra.mxu0 0.0
        %2375 = vmatprep.subr.mxu0 0.0
        %2376 = vmatpush1.msra.mxu0 0.0
        %2377 = vmatprep.subr.mxu0 0.0
        %2378 = vmatpush1.msra.mxu0 0.0
        %2379 = vmatprep.subr.mxu0 0.0
        %2380 = vmatpush1.msra.mxu0 0.0
        %2381 = vmatprep.subr.mxu0 0.0
        %2382 = vmatpush1.msra.mxu0 0.0
        %2383 = vmatprep.subr.mxu0 0.0
        %2384 = vmatpush1.msra.mxu0 0.0
        %2385 = vmatprep.subr.mxu0 0.0
        %2386 = vmatpush1.msra.mxu0 0.0
        %2387 = vmatprep.subr.mxu0 0.0
        %2388 = vmatpush1.msra.mxu0 0.0
        %2389 = vmatprep.subr.mxu0 0.0
        %2390 = vmatpush1.msra.mxu0 0.0
        %2391 = vmatprep.subr.mxu0 0.0
        %2392 = vmatpush1.msra.mxu0 0.0
        %2393 = vmatprep.subr.mxu0 0.0
        %2394 = vmatpush1.msra.mxu0 0.0
        %2395 = vmatprep.subr.mxu0 0.0
        %2396 = vmatpush1.msra.mxu0 0.0
        %2397 = vmatprep.subr.mxu0 0.0
        %2398 = vmatpush1.msra.mxu0 0.0
        %2399 = vmatprep.subr.mxu0 0.0
        %2400 = vmatpush1.msra.mxu0 0.0
        %2401 = vmatprep.subr.mxu0 0.0
        %2402 = vmatpush1.msra.mxu0 0.0
        %2403 = vmatprep.mubr.f32.mxu0 0.0
        %2404 = vmatmul.mubr.f32.gmra.mrb[0].mxu0 %v2337
        %v2405 = vpop.f32.mrb[0].mxu0
        %v2406 = vadd.f32 %v2334, %v2405
        %v2407 = vpop.f32.mrb[0].mxu0
        %2408 = vdwg.mxu0
        %v2410 = vsel %vm1084, %v2406, 0
        %2412 = vmatprep.subr.mxu0 0.0
        %2413 = vmatpush1.msra.mxu0 %v1267
        %2414 = vmatprep.subr.mxu0 0.0
        %2415 = vmatpush1.msra.mxu0 %v1268
        %2416 = vmatprep.subr.mxu0 0.0
        %2417 = vmatpush1.msra.mxu0 %v1269
        %2418 = vmatprep.subr.mxu0 0.0
        %2419 = vmatpush1.msra.mxu0 %v1270
        %2420 = vmatprep.subr.mxu0 0.0
        %2421 = vmatpush1.msra.mxu0 0.0
        %2422 = vmatprep.subr.mxu0 0.0
        %2423 = vmatpush1.msra.mxu0 0.0
        %2424 = vmatprep.subr.mxu0 0.0
        %2425 = vmatpush1.msra.mxu0 0.0
        %2426 = vmatprep.subr.mxu0 0.0
        %2427 = vmatpush1.msra.mxu0 0.0
        %2428 = vmatprep.subr.mxu0 0.0
        %2429 = vmatpush1.msra.mxu0 0.0
        %2430 = vmatprep.subr.mxu0 0.0
        %2431 = vmatpush1.msra.mxu0 0.0
        %2432 = vmatprep.subr.mxu0 0.0
        %2433 = vmatpush1.msra.mxu0 0.0
        %2434 = vmatprep.subr.mxu0 0.0
        %2435 = vmatpush1.msra.mxu0 0.0
        %2436 = vmatprep.subr.mxu0 0.0
        %2437 = vmatpush1.msra.mxu0 0.0
        %2438 = vmatprep.subr.mxu0 0.0
        %2439 = vmatpush1.msra.mxu0 0.0
        %2440 = vmatprep.subr.mxu0 0.0
        %2441 = vmatpush1.msra.mxu0 0.0
        %2442 = vmatprep.subr.mxu0 0.0
        %2443 = vmatpush1.msra.mxu0 0.0
        %2444 = vmatprep.subr.mxu0 0.0
        %2445 = vmatpush1.msra.mxu0 0.0
        %2446 = vmatprep.subr.mxu0 0.0
        %2447 = vmatpush1.msra.mxu0 0.0
        %2448 = vmatprep.subr.mxu0 0.0
        %2449 = vmatpush1.msra.mxu0 0.0
        %2450 = vmatprep.subr.mxu0 0.0
        %2451 = vmatpush1.msra.mxu0 0.0
        %2452 = vmatprep.subr.mxu0 0.0
        %2453 = vmatpush1.msra.mxu0 0.0
        %2454 = vmatprep.subr.mxu0 0.0
        %2455 = vmatpush1.msra.mxu0 0.0
        %2456 = vmatprep.subr.mxu0 0.0
        %2457 = vmatpush1.msra.mxu0 0.0
        %2458 = vmatprep.subr.mxu0 0.0
        %2459 = vmatpush1.msra.mxu0 0.0
        %2460 = vmatprep.subr.mxu0 0.0
        %2461 = vmatpush1.msra.mxu0 0.0
        %2462 = vmatprep.subr.mxu0 0.0
        %2463 = vmatpush1.msra.mxu0 0.0
        %2464 = vmatprep.subr.mxu0 0.0
        %2465 = vmatpush1.msra.mxu0 0.0
        %2466 = vmatprep.subr.mxu0 0.0
        %2467 = vmatpush1.msra.mxu0 0.0
        %2468 = vmatprep.subr.mxu0 0.0
        %2469 = vmatpush1.msra.mxu0 0.0
        %2470 = vmatprep.subr.mxu0 0.0
        %2471 = vmatpush1.msra.mxu0 0.0
        %2472 = vmatprep.subr.mxu0 0.0
        %2473 = vmatpush1.msra.mxu0 0.0
        %2474 = vmatprep.subr.mxu0 0.0
        %2475 = vmatpush1.msra.mxu0 0.0
        %2476 = vmatprep.mubr.f32.mxu0 0.0
        %2477 = vmatmul.mubr.f32.gmra.mrb[0].mxu0 %v2410
        %v2478 = vpop.f32.mrb[0].mxu0
        %v2479 = vadd.f32 %v1272, %v2478
        %v2480 = vpop.f32.mrb[0].mxu0
        %2481 = vdwg.mxu0
        %v2483 = vrot.slane %v2479, 5
        %v2485 = vadd.f32 %v1582, %v2483
        %v2486 = vxor.u32 %v2485, 2147483648
        %v2487 = vmul.f32 %v2486, 1.442695
        %v2488 = vpow.pop %v2487
        %v2489 = vadd.f32 %v2488, 1.0
        %v2490 = vrcp.pop %v2489
        %v2491 = vmul.f32 1.0, %v2490
        %2492 = vrot.lane.b32.xlu0 %v2483, 64
        %v2493 = vpop.permute.xlu0 %2492
        %v2495 = vmul.f32 %v2491, %v2493
        %2497 = vrot.lane.b32.xlu0 %v2495, 64
        %v2498 = vpop.permute.xlu0 %2497
        %v2500 = vadd.f32 %v1582, %v2498
        %v2501 = vtanh.pop %v2500
        %v2502 = vsub.f32 1.0, %v2491
        %2504 = vrot.lane.b32.xlu0 %v2501, 96
        %v2505 = vpop.permute.xlu0 %2504
        %v2507 = vmul.f32 %v2502, %v2505
        %v2508 = vrot.slane %v2406, 5
        %2509 = vrot.lane.b32.xlu0 %v2508, 32
        %v2510 = vpop.permute.xlu0 %2509
        %v2512 = vmul.f32 %v2491, %v2510
        %v2513 = vadd.f32 %v2507, %v2512
        %2515 = vrot.lane.b32.xlu0 %v2513, 96
        %v2516 = vpop.permute.xlu0 %2515
        %vm2518 = vcmask 257027
        %2519 = vst.msk [vmem:[#allocation2] sm:$0x8] %vm2518, %v2516
        %v2520 = vrot.slane %v2513, 3
        %2521 = vrot.lane.b32.xlu0 %v2520, 96
        %v2522 = vpop.permute.xlu0 %2521
        %v2523 = vsel %vm1084, %v2522, 0
        %2525 = vmatprep.subr.mxu0 0.0
        %2526 = vmatpush1.msra.mxu0 %v1249
        %2527 = vmatprep.subr.mxu0 0.0
        %2528 = vmatpush1.msra.mxu0 %v1250
        %2529 = vmatprep.subr.mxu0 0.0
        %2530 = vmatpush1.msra.mxu0 %v1251
        %2531 = vmatprep.subr.mxu0 0.0
        %2532 = vmatpush1.msra.mxu0 %v1252
        %2533 = vmatprep.subr.mxu0 0.0
        %2534 = vmatpush1.msra.mxu0 0.0
        %2535 = vmatprep.subr.mxu0 0.0
        %2536 = vmatpush1.msra.mxu0 0.0
        %2537 = vmatprep.subr.mxu0 0.0
        %2538 = vmatpush1.msra.mxu0 0.0
        %2539 = vmatprep.subr.mxu0 0.0
        %2540 = vmatpush1.msra.mxu0 0.0
        %2541 = vmatprep.subr.mxu0 0.0
        %2542 = vmatpush1.msra.mxu0 0.0
        %2543 = vmatprep.subr.mxu0 0.0
        %2544 = vmatpush1.msra.mxu0 0.0
        %2545 = vmatprep.subr.mxu0 0.0
        %2546 = vmatpush1.msra.mxu0 0.0
        %2547 = vmatprep.subr.mxu0 0.0
        %2548 = vmatpush1.msra.mxu0 0.0
        %2549 = vmatprep.subr.mxu0 0.0
        %2550 = vmatpush1.msra.mxu0 0.0
        %2551 = vmatprep.subr.mxu0 0.0
        %2552 = vmatpush1.msra.mxu0 0.0
        %2553 = vmatprep.subr.mxu0 0.0
        %2554 = vmatpush1.msra.mxu0 0.0
        %2555 = vmatprep.subr.mxu0 0.0
        %2556 = vmatpush1.msra.mxu0 0.0
        %2557 = vmatprep.subr.mxu0 0.0
        %2558 = vmatpush1.msra.mxu0 0.0
        %2559 = vmatprep.subr.mxu0 0.0
        %2560 = vmatpush1.msra.mxu0 0.0
        %2561 = vmatprep.subr.mxu0 0.0
        %2562 = vmatpush1.msra.mxu0 0.0
        %2563 = vmatprep.subr.mxu0 0.0
        %2564 = vmatpush1.msra.mxu0 0.0
        %2565 = vmatprep.subr.mxu0 0.0
        %2566 = vmatpush1.msra.mxu0 0.0
        %2567 = vmatprep.subr.mxu0 0.0
        %2568 = vmatpush1.msra.mxu0 0.0
        %2569 = vmatprep.subr.mxu0 0.0
        %2570 = vmatpush1.msra.mxu0 0.0
        %2571 = vmatprep.subr.mxu0 0.0
        %2572 = vmatpush1.msra.mxu0 0.0
        %2573 = vmatprep.subr.mxu0 0.0
        %2574 = vmatpush1.msra.mxu0 0.0
        %2575 = vmatprep.subr.mxu0 0.0
        %2576 = vmatpush1.msra.mxu0 0.0
        %2577 = vmatprep.subr.mxu0 0.0
        %2578 = vmatpush1.msra.mxu0 0.0
        %2579 = vmatprep.subr.mxu0 0.0
        %2580 = vmatpush1.msra.mxu0 0.0
        %2581 = vmatprep.subr.mxu0 0.0
        %2582 = vmatpush1.msra.mxu0 0.0
        %2583 = vmatprep.subr.mxu0 0.0
        %2584 = vmatpush1.msra.mxu0 0.0
        %2585 = vmatprep.subr.mxu0 0.0
        %2586 = vmatpush1.msra.mxu0 0.0
        %2587 = vmatprep.subr.mxu0 0.0
        %2588 = vmatpush1.msra.mxu0 0.0
        %2589 = vmatprep.mubr.f32.mxu0 0.0
        %2590 = vmatmul.mubr.f32.gmra.mrb[0].mxu0 %v2523
        %v2591 = vpop.f32.mrb[0].mxu0
        %v2592 = vadd.f32 %v1253, %v2591
        %v2593 = vpop.f32.mrb[0].mxu0
        %2594 = vdwg.mxu0
        %2595 = vst.msk [vmem:[#allocation3 + $0x3] sm:$0x1] %vm1619, %v2592
        %v2596 = vld [vmem:[#allocation2] sm:$0xf]
        %v2597 = vld [vmem:[#allocation3] sm:$0xf]
        %v2598 = vlaneseq
        %v2599 = vshrl.u32 %v2598, 7
        %v2600 = vsub.s32 4, %v2599
        %v2601 = vrot.slane %v1427, %v2600
        %v2602 = vmul.f32 %v2597, %v2601
        %vm2603 = vcmask 257024
        %v2604 = vsel %vm2603, %v2602, 0.0
        %2605 = vadd.xlane.f32.xlu0 %v2604
        %v2606 = vpop.xlane.xlu0 %2605
        %v2607 = vsub.f32 %v2606, %v1704
        %vm2608 = vcmask 35872
        %v2609 = vsel %vm2608, %v2607, -inf
        %v2610 = vrot.slane %v2609, 4
        %v2611 = vmax.f32 %v2609, %v2610
        %v2612 = vrot.slane %v2611, 2
        %v2613 = vmax.f32 %v2611, %v2612
        %v2614 = vrot.slane %v2613, 1
        %v2615 = vmax.f32 %v2613, %v2614
        %v2616 = vsub.f32 %v2607, %v2615
        %v2617 = vmul.f32 %v2616, 1.442695
        %v2618 = vpow.pop %v2617
        %v2619 = vsel %vm2608, %v2618, 0.0
        %v2620 = vrot.slane %v2619, 4
        %v2621 = vadd.f32 %v2619, %v2620
        %v2622 = vrot.slane %v2621, 2
        %v2623 = vadd.f32 %v2621, %v2622
        %v2624 = vrot.slane %v2623, 1
        %v2625 = vadd.f32 %v2623, %v2624
        %v2626 = vrcp.pop %v2625
        %v2627 = vmul.f32 %v2618, %v2626
        %2629 = vset.pattern.permute.xlu0 4
        %2630 = vperm.xlu0 %2629, %v2627
        %v2631 = vpop.permute.xlu0 %2630
        %v2633 = vmul.f32 %v2631, %v2596
        %v2634 = vsel %vm2603, %v2633, 0.0
        %v2635 = vrot.slane %v2634, 4
        %v2636 = vadd.f32 %v2634, %v2635
        %v2637 = vrot.slane %v2636, 2
        %v2638 = vadd.f32 %v2636, %v2637
        %v2639 = vrot.slane %v2638, 1
        %v2640 = vadd.f32 %v2638, %v2639
        %v2641 = vrot.slane %v1506, 4
        %v2644 = vsel %vm1084, %v2640, 0
        %2646 = vmatprep.subr.mxu0 0.0
        %2647 = vmatpush1.msra.mxu0 %v1254
        %2648 = vmatprep.subr.mxu0 0.0
        %2649 = vmatpush1.msra.mxu0 %v1255
        %2650 = vmatprep.subr.mxu0 0.0
        %2651 = vmatpush1.msra.mxu0 %v1256
        %2652 = vmatprep.subr.mxu0 0.0
        %2653 = vmatpush1.msra.mxu0 %v1257
        %2654 = vmatprep.subr.mxu0 0.0
        %2655 = vmatpush1.msra.mxu0 0.0
        %2656 = vmatprep.subr.mxu0 0.0
        %2657 = vmatpush1.msra.mxu0 0.0
        %2658 = vmatprep.subr.mxu0 0.0
        %2659 = vmatpush1.msra.mxu0 0.0
        %2660 = vmatprep.subr.mxu0 0.0
        %2661 = vmatpush1.msra.mxu0 0.0
        %2662 = vmatprep.subr.mxu0 0.0
        %2663 = vmatpush1.msra.mxu0 0.0
        %2664 = vmatprep.subr.mxu0 0.0
        %2665 = vmatpush1.msra.mxu0 0.0
        %2666 = vmatprep.subr.mxu0 0.0
        %2667 = vmatpush1.msra.mxu0 0.0
        %2668 = vmatprep.subr.mxu0 0.0
        %2669 = vmatpush1.msra.mxu0 0.0
        %2670 = vmatprep.subr.mxu0 0.0
        %2671 = vmatpush1.msra.mxu0 0.0
        %2672 = vmatprep.subr.mxu0 0.0
        %2673 = vmatpush1.msra.mxu0 0.0
        %2674 = vmatprep.subr.mxu0 0.0
        %2675 = vmatpush1.msra.mxu0 0.0
        %2676 = vmatprep.subr.mxu0 0.0
        %2677 = vmatpush1.msra.mxu0 0.0
        %2678 = vmatprep.subr.mxu0 0.0
        %2679 = vmatpush1.msra.mxu0 0.0
        %2680 = vmatprep.subr.mxu0 0.0
        %2681 = vmatpush1.msra.mxu0 0.0
        %2682 = vmatprep.subr.mxu0 0.0
        %2683 = vmatpush1.msra.mxu0 0.0
        %2684 = vmatprep.subr.mxu0 0.0
        %2685 = vmatpush1.msra.mxu0 0.0
        %2686 = vmatprep.subr.mxu0 0.0
        %2687 = vmatpush1.msra.mxu0 0.0
        %2688 = vmatprep.subr.mxu0 0.0
        %2689 = vmatpush1.msra.mxu0 0.0
        %2690 = vmatprep.subr.mxu0 0.0
        %2691 = vmatpush1.msra.mxu0 0.0
        %2692 = vmatprep.subr.mxu0 0.0
        %2693 = vmatpush1.msra.mxu0 0.0
        %2694 = vmatprep.subr.mxu0 0.0
        %2695 = vmatpush1.msra.mxu0 0.0
        %2696 = vmatprep.subr.mxu0 0.0
        %2697 = vmatpush1.msra.mxu0 0.0
        %2698 = vmatprep.subr.mxu0 0.0
        %2699 = vmatpush1.msra.mxu0 0.0
        %2700 = vmatprep.subr.mxu0 0.0
        %2701 = vmatpush1.msra.mxu0 0.0
        %2702 = vmatprep.subr.mxu0 0.0
        %2703 = vmatpush1.msra.mxu0 0.0
        %2704 = vmatprep.subr.mxu0 0.0
        %2705 = vmatpush1.msra.mxu0 0.0
        %2706 = vmatprep.subr.mxu0 0.0
        %2707 = vmatpush1.msra.mxu0 0.0
        %2708 = vmatprep.subr.mxu0 0.0
        %2709 = vmatpush1.msra.mxu0 0.0
        %2710 = vmatprep.mubr.f32.mxu0 0.0
        %2711 = vmatmul.mubr.f32.gmra.mrb[0].mxu0 %v2644
        %v2712 = vpop.f32.mrb[0].mxu0
        %v2713 = vadd.f32 %v2641, %v2712
        %v2714 = vpop.f32.mrb[0].mxu0
        %2715 = vdwg.mxu0
        %v2717 = vsel %vm1084, %v2713, 0
        %2719 = vmatprep.subr.mxu0 0.0
        %2720 = vmatpush1.msra.mxu0 %v1267
        %2721 = vmatprep.subr.mxu0 0.0
        %2722 = vmatpush1.msra.mxu0 %v1268
        %2723 = vmatprep.subr.mxu0 0.0
        %2724 = vmatpush1.msra.mxu0 %v1269
        %2725 = vmatprep.subr.mxu0 0.0
        %2726 = vmatpush1.msra.mxu0 %v1270
        %2727 = vmatprep.subr.mxu0 0.0
        %2728 = vmatpush1.msra.mxu0 0.0
        %2729 = vmatprep.subr.mxu0 0.0
        %2730 = vmatpush1.msra.mxu0 0.0
        %2731 = vmatprep.subr.mxu0 0.0
        %2732 = vmatpush1.msra.mxu0 0.0
        %2733 = vmatprep.subr.mxu0 0.0
        %2734 = vmatpush1.msra.mxu0 0.0
        %2735 = vmatprep.subr.mxu0 0.0
        %2736 = vmatpush1.msra.mxu0 0.0
        %2737 = vmatprep.subr.mxu0 0.0
        %2738 = vmatpush1.msra.mxu0 0.0
        %2739 = vmatprep.subr.mxu0 0.0
        %2740 = vmatpush1.msra.mxu0 0.0
        %2741 = vmatprep.subr.mxu0 0.0
        %2742 = vmatpush1.msra.mxu0 0.0
        %2743 = vmatprep.subr.mxu0 0.0
        %2744 = vmatpush1.msra.mxu0 0.0
        %2745 = vmatprep.subr.mxu0 0.0
        %2746 = vmatpush1.msra.mxu0 0.0
        %2747 = vmatprep.subr.mxu0 0.0
        %2748 = vmatpush1.msra.mxu0 0.0
        %2749 = vmatprep.subr.mxu0 0.0
        %2750 = vmatpush1.msra.mxu0 0.0
        %2751 = vmatprep.subr.mxu0 0.0
        %2752 = vmatpush1.msra.mxu0 0.0
        %2753 = vmatprep.subr.mxu0 0.0
        %2754 = vmatpush1.msra.mxu0 0.0
        %2755 = vmatprep.subr.mxu0 0.0
        %2756 = vmatpush1.msra.mxu0 0.0
        %2757 = vmatprep.subr.mxu0 0.0
        %2758 = vmatpush1.msra.mxu0 0.0
        %2759 = vmatprep.subr.mxu0 0.0
        %2760 = vmatpush1.msra.mxu0 0.0
        %2761 = vmatprep.subr.mxu0 0.0
        %2762 = vmatpush1.msra.mxu0 0.0
        %2763 = vmatprep.subr.mxu0 0.0
        %2764 = vmatpush1.msra.mxu0 0.0
        %2765 = vmatprep.subr.mxu0 0.0
        %2766 = vmatpush1.msra.mxu0 0.0
        %2767 = vmatprep.subr.mxu0 0.0
        %2768 = vmatpush1.msra.mxu0 0.0
        %2769 = vmatprep.subr.mxu0 0.0
        %2770 = vmatpush1.msra.mxu0 0.0
        %2771 = vmatprep.subr.mxu0 0.0
        %2772 = vmatpush1.msra.mxu0 0.0
        %2773 = vmatprep.subr.mxu0 0.0
        %2774 = vmatpush1.msra.mxu0 0.0
        %2775 = vmatprep.subr.mxu0 0.0
        %2776 = vmatpush1.msra.mxu0 0.0
        %2777 = vmatprep.subr.mxu0 0.0
        %2778 = vmatpush1.msra.mxu0 0.0
        %2779 = vmatprep.subr.mxu0 0.0
        %2780 = vmatpush1.msra.mxu0 0.0
        %2781 = vmatprep.subr.mxu0 0.0
        %2782 = vmatpush1.msra.mxu0 0.0
        %2783 = vmatprep.mubr.f32.mxu0 0.0
        %2784 = vmatmul.mubr.f32.gmra.mrb[0].mxu0 %v2717
        %v2785 = vpop.f32.mrb[0].mxu0
        %v2786 = vadd.f32 %v1272, %v2785
        %v2787 = vpop.f32.mrb[0].mxu0
        %2788 = vdwg.mxu0
        %v2790 = vrot.slane %v2786, 4
        %v2792 = vadd.f32 %v1582, %v2790
        %v2793 = vxor.u32 %v2792, 2147483648
        %v2794 = vmul.f32 %v2793, 1.442695
        %v2795 = vpow.pop %v2794
        %v2796 = vadd.f32 %v2795, 1.0
        %v2797 = vrcp.pop %v2796
        %v2798 = vmul.f32 1.0, %v2797
        %2799 = vrot.lane.b32.xlu0 %v2790, 64
        %v2800 = vpop.permute.xlu0 %2799
        %v2802 = vmul.f32 %v2798, %v2800
        %2804 = vrot.lane.b32.xlu0 %v2802, 64
        %v2805 = vpop.permute.xlu0 %2804
        %v2807 = vadd.f32 %v1582, %v2805
        %v2808 = vtanh.pop %v2807
        %v2809 = vsub.f32 1.0, %v2798
        %2811 = vrot.lane.b32.xlu0 %v2808, 96
        %v2812 = vpop.permute.xlu0 %2811
        %v2814 = vmul.f32 %v2809, %v2812
        %v2815 = vrot.slane %v2713, 4
        %2816 = vrot.lane.b32.xlu0 %v2815, 32
        %v2817 = vpop.permute.xlu0 %2816
        %v2819 = vmul.f32 %v2798, %v2817
        %v2820 = vadd.f32 %v2814, %v2819
        %2822 = vrot.lane.b32.xlu0 %v2820, 96
        %v2823 = vpop.permute.xlu0 %2822
        %vm2825 = vcmask 258052
        %2826 = vst.msk [vmem:[#allocation2] sm:$0x10] %vm2825, %v2823
        %v2827 = vrot.slane %v2820, 4
        %2828 = vrot.lane.b32.xlu0 %v2827, 96
        %v2829 = vpop.permute.xlu0 %2828
        %v2830 = vsel %vm1084, %v2829, 0
        %2832 = vmatprep.subr.mxu0 0.0
        %2833 = vmatpush1.msra.mxu0 %v1249
        %2834 = vmatprep.subr.mxu0 0.0
        %2835 = vmatpush1.msra.mxu0 %v1250
        %2836 = vmatprep.subr.mxu0 0.0
        %2837 = vmatpush1.msra.mxu0 %v1251
        %2838 = vmatprep.subr.mxu0 0.0
        %2839 = vmatpush1.msra.mxu0 %v1252
        %2840 = vmatprep.subr.mxu0 0.0
        %2841 = vmatpush1.msra.mxu0 0.0
        %2842 = vmatprep.subr.mxu0 0.0
        %2843 = vmatpush1.msra.mxu0 0.0
        %2844 = vmatprep.subr.mxu0 0.0
        %2845 = vmatpush1.msra.mxu0 0.0
        %2846 = vmatprep.subr.mxu0 0.0
        %2847 = vmatpush1.msra.mxu0 0.0
        %2848 = vmatprep.subr.mxu0 0.0
        %2849 = vmatpush1.msra.mxu0 0.0
        %2850 = vmatprep.subr.mxu0 0.0
        %2851 = vmatpush1.msra.mxu0 0.0
        %2852 = vmatprep.subr.mxu0 0.0
        %2853 = vmatpush1.msra.mxu0 0.0
        %2854 = vmatprep.subr.mxu0 0.0
        %2855 = vmatpush1.msra.mxu0 0.0
        %2856 = vmatprep.subr.mxu0 0.0
        %2857 = vmatpush1.msra.mxu0 0.0
        %2858 = vmatprep.subr.mxu0 0.0
        %2859 = vmatpush1.msra.mxu0 0.0
        %2860 = vmatprep.subr.mxu0 0.0
        %2861 = vmatpush1.msra.mxu0 0.0
        %2862 = vmatprep.subr.mxu0 0.0
        %2863 = vmatpush1.msra.mxu0 0.0
        %2864 = vmatprep.subr.mxu0 0.0
        %2865 = vmatpush1.msra.mxu0 0.0
        %2866 = vmatprep.subr.mxu0 0.0
        %2867 = vmatpush1.msra.mxu0 0.0
        %2868 = vmatprep.subr.mxu0 0.0
        %2869 = vmatpush1.msra.mxu0 0.0
        %2870 = vmatprep.subr.mxu0 0.0
        %2871 = vmatpush1.msra.mxu0 0.0
        %2872 = vmatprep.subr.mxu0 0.0
        %2873 = vmatpush1.msra.mxu0 0.0
        %2874 = vmatprep.subr.mxu0 0.0
        %2875 = vmatpush1.msra.mxu0 0.0
        %2876 = vmatprep.subr.mxu0 0.0
        %2877 = vmatpush1.msra.mxu0 0.0
        %2878 = vmatprep.subr.mxu0 0.0
        %2879 = vmatpush1.msra.mxu0 0.0
        %2880 = vmatprep.subr.mxu0 0.0
        %2881 = vmatpush1.msra.mxu0 0.0
        %2882 = vmatprep.subr.mxu0 0.0
        %2883 = vmatpush1.msra.mxu0 0.0
        %2884 = vmatprep.subr.mxu0 0.0
        %2885 = vmatpush1.msra.mxu0 0.0
        %2886 = vmatprep.subr.mxu0 0.0
        %2887 = vmatpush1.msra.mxu0 0.0
        %2888 = vmatprep.subr.mxu0 0.0
        %2889 = vmatpush1.msra.mxu0 0.0
        %2890 = vmatprep.subr.mxu0 0.0
        %2891 = vmatpush1.msra.mxu0 0.0
        %2892 = vmatprep.subr.mxu0 0.0
        %2893 = vmatpush1.msra.mxu0 0.0
        %2894 = vmatprep.subr.mxu0 0.0
        %2895 = vmatpush1.msra.mxu0 0.0
        %2896 = vmatprep.mubr.f32.mxu0 0.0
        %2897 = vmatmul.mubr.f32.gmra.mrb[0].mxu0 %v2830
        %v2898 = vpop.f32.mrb[0].mxu0
        %v2899 = vadd.f32 %v1253, %v2898
        %v2900 = vpop.f32.mrb[0].mxu0
        %2901 = vdwg.mxu0
        %2902 = vst.msk [vmem:[#allocation3 + $0x4] sm:$0x1] %vm1619, %v2899
        %v2903 = vld [vmem:[#allocation2] sm:$0x1f]
        %v2904 = vld [vmem:[#allocation3] sm:$0x1f]
        %v2905 = vlaneseq
        %v2906 = vshrl.u32 %v2905, 7
        %v2907 = vsub.s32 5, %v2906
        %v2908 = vrot.slane %v1427, %v2907
        %v2909 = vmul.f32 %v2904, %v2908
        %vm2910 = vcmask 258048
        %v2911 = vsel %vm2910, %v2909, 0.0
        %2912 = vadd.xlane.f32.xlu0 %v2911
        %v2913 = vpop.xlane.xlu0 %2912
        %v2914 = vsub.f32 %v2913, %v1704
        %vm2915 = vcmask 45096
        %v2916 = vsel %vm2915, %v2914, -inf
        %v2917 = vrot.slane %v2916, 4
        %v2918 = vmax.f32 %v2916, %v2917
        %v2919 = vrot.slane %v2918, 2
        %v2920 = vmax.f32 %v2918, %v2919
        %v2921 = vrot.slane %v2920, 1
        %v2922 = vmax.f32 %v2920, %v2921
        %v2923 = vsub.f32 %v2914, %v2922
        %v2924 = vmul.f32 %v2923, 1.442695
        %v2925 = vpow.pop %v2924
        %v2926 = vsel %vm2915, %v2925, 0.0
        %v2927 = vrot.slane %v2926, 4
        %v2928 = vadd.f32 %v2926, %v2927
        %v2929 = vrot.slane %v2928, 2
        %v2930 = vadd.f32 %v2928, %v2929
        %v2931 = vrot.slane %v2930, 1
        %v2932 = vadd.f32 %v2930, %v2931
        %v2933 = vrcp.pop %v2932
        %v2934 = vmul.f32 %v2925, %v2933
        %2936 = vset.pattern.permute.xlu0 5
        %2937 = vperm.xlu0 %2936, %v2934
        %v2938 = vpop.permute.xlu0 %2937
        %v2940 = vmul.f32 %v2938, %v2903
        %v2941 = vsel %vm2910, %v2940, 0.0
        %v2942 = vrot.slane %v2941, 4
        %v2943 = vadd.f32 %v2941, %v2942
        %v2944 = vrot.slane %v2943, 2
        %v2945 = vadd.f32 %v2943, %v2944
        %v2946 = vrot.slane %v2945, 1
        %v2947 = vadd.f32 %v2945, %v2946
        %v2948 = vrot.slane %v1506, 5
        %v2951 = vsel %vm1084, %v2947, 0
        %2953 = vmatprep.subr.mxu0 0.0
        %2954 = vmatpush1.msra.mxu0 %v1254
        %2955 = vmatprep.subr.mxu0 0.0
        %2956 = vmatpush1.msra.mxu0 %v1255
        %2957 = vmatprep.subr.mxu0 0.0
        %2958 = vmatpush1.msra.mxu0 %v1256
        %2959 = vmatprep.subr.mxu0 0.0
        %2960 = vmatpush1.msra.mxu0 %v1257
        %2961 = vmatprep.subr.mxu0 0.0
        %2962 = vmatpush1.msra.mxu0 0.0
        %2963 = vmatprep.subr.mxu0 0.0
        %2964 = vmatpush1.msra.mxu0 0.0
        %2965 = vmatprep.subr.mxu0 0.0
        %2966 = vmatpush1.msra.mxu0 0.0
        %2967 = vmatprep.subr.mxu0 0.0
        %2968 = vmatpush1.msra.mxu0 0.0
        %2969 = vmatprep.subr.mxu0 0.0
        %2970 = vmatpush1.msra.mxu0 0.0
        %2971 = vmatprep.subr.mxu0 0.0
        %2972 = vmatpush1.msra.mxu0 0.0
        %2973 = vmatprep.subr.mxu0 0.0
        %2974 = vmatpush1.msra.mxu0 0.0
        %2975 = vmatprep.subr.mxu0 0.0
        %2976 = vmatpush1.msra.mxu0 0.0
        %2977 = vmatprep.subr.mxu0 0.0
        %2978 = vmatpush1.msra.mxu0 0.0
        %2979 = vmatprep.subr.mxu0 0.0
        %2980 = vmatpush1.msra.mxu0 0.0
        %2981 = vmatprep.subr.mxu0 0.0
        %2982 = vmatpush1.msra.mxu0 0.0
        %2983 = vmatprep.subr.mxu0 0.0
        %2984 = vmatpush1.msra.mxu0 0.0
        %2985 = vmatprep.subr.mxu0 0.0
        %2986 = vmatpush1.msra.mxu0 0.0
        %2987 = vmatprep.subr.mxu0 0.0
        %2988 = vmatpush1.msra.mxu0 0.0
        %2989 = vmatprep.subr.mxu0 0.0
        %2990 = vmatpush1.msra.mxu0 0.0
        %2991 = vmatprep.subr.mxu0 0.0
        %2992 = vmatpush1.msra.mxu0 0.0
        %2993 = vmatprep.subr.mxu0 0.0
        %2994 = vmatpush1.msra.mxu0 0.0
        %2995 = vmatprep.subr.mxu0 0.0
        %2996 = vmatpush1.msra.mxu0 0.0
        %2997 = vmatprep.subr.mxu0 0.0
        %2998 = vmatpush1.msra.mxu0 0.0
        %2999 = vmatprep.subr.mxu0 0.0
        %3000 = vmatpush1.msra.mxu0 0.0
        %3001 = vmatprep.subr.mxu0 0.0
        %3002 = vmatpush1.msra.mxu0 0.0
        %3003 = vmatprep.subr.mxu0 0.0
        %3004 = vmatpush1.msra.mxu0 0.0
        %3005 = vmatprep.subr.mxu0 0.0
        %3006 = vmatpush1.msra.mxu0 0.0
        %3007 = vmatprep.subr.mxu0 0.0
        %3008 = vmatpush1.msra.mxu0 0.0
        %3009 = vmatprep.subr.mxu0 0.0
        %3010 = vmatpush1.msra.mxu0 0.0
        %3011 = vmatprep.subr.mxu0 0.0
        %3012 = vmatpush1.msra.mxu0 0.0
        %3013 = vmatprep.subr.mxu0 0.0
        %3014 = vmatpush1.msra.mxu0 0.0
        %3015 = vmatprep.subr.mxu0 0.0
        %3016 = vmatpush1.msra.mxu0 0.0
        %3017 = vmatprep.mubr.f32.mxu0 0.0
        %3018 = vmatmul.mubr.f32.gmra.mrb[0].mxu0 %v2951
        %v3019 = vpop.f32.mrb[0].mxu0
        %v3020 = vadd.f32 %v2948, %v3019
        %v3021 = vpop.f32.mrb[0].mxu0
        %3022 = vdwg.mxu0
        %v3024 = vsel %vm1084, %v3020, 0
        %3026 = vmatprep.subr.mxu0 0.0
        %3027 = vmatpush1.msra.mxu0 %v1267
        %3028 = vmatprep.subr.mxu0 0.0
        %3029 = vmatpush1.msra.mxu0 %v1268
        %3030 = vmatprep.subr.mxu0 0.0
        %3031 = vmatpush1.msra.mxu0 %v1269
        %3032 = vmatprep.subr.mxu0 0.0
        %3033 = vmatpush1.msra.mxu0 %v1270
        %3034 = vmatprep.subr.mxu0 0.0
        %3035 = vmatpush1.msra.mxu0 0.0
        %3036 = vmatprep.subr.mxu0 0.0
        %3037 = vmatpush1.msra.mxu0 0.0
        %3038 = vmatprep.subr.mxu0 0.0
        %3039 = vmatpush1.msra.mxu0 0.0
        %3040 = vmatprep.subr.mxu0 0.0
        %3041 = vmatpush1.msra.mxu0 0.0
        %3042 = vmatprep.subr.mxu0 0.0
        %3043 = vmatpush1.msra.mxu0 0.0
        %3044 = vmatprep.subr.mxu0 0.0
        %3045 = vmatpush1.msra.mxu0 0.0
        %3046 = vmatprep.subr.mxu0 0.0
        %3047 = vmatpush1.msra.mxu0 0.0
        %3048 = vmatprep.subr.mxu0 0.0
        %3049 = vmatpush1.msra.mxu0 0.0
        %3050 = vmatprep.subr.mxu0 0.0
        %3051 = vmatpush1.msra.mxu0 0.0
        %3052 = vmatprep.subr.mxu0 0.0
        %3053 = vmatpush1.msra.mxu0 0.0
        %3054 = vmatprep.subr.mxu0 0.0
        %3055 = vmatpush1.msra.mxu0 0.0
        %3056 = vmatprep.subr.mxu0 0.0
        %3057 = vmatpush1.msra.mxu0 0.0
        %3058 = vmatprep.subr.mxu0 0.0
        %3059 = vmatpush1.msra.mxu0 0.0
        %3060 = vmatprep.subr.mxu0 0.0
        %3061 = vmatpush1.msra.mxu0 0.0
        %3062 = vmatprep.subr.mxu0 0.0
        %3063 = vmatpush1.msra.mxu0 0.0
        %3064 = vmatprep.subr.mxu0 0.0
        %3065 = vmatpush1.msra.mxu0 0.0
        %3066 = vmatprep.subr.mxu0 0.0
        %3067 = vmatpush1.msra.mxu0 0.0
        %3068 = vmatprep.subr.mxu0 0.0
        %3069 = vmatpush1.msra.mxu0 0.0
        %3070 = vmatprep.subr.mxu0 0.0
        %3071 = vmatpush1.msra.mxu0 0.0
        %3072 = vmatprep.subr.mxu0 0.0
        %3073 = vmatpush1.msra.mxu0 0.0
        %3074 = vmatprep.subr.mxu0 0.0
        %3075 = vmatpush1.msra.mxu0 0.0
        %3076 = vmatprep.subr.mxu0 0.0
        %3077 = vmatpush1.msra.mxu0 0.0
        %3078 = vmatprep.subr.mxu0 0.0
        %3079 = vmatpush1.msra.mxu0 0.0
        %3080 = vmatprep.subr.mxu0 0.0
        %3081 = vmatpush1.msra.mxu0 0.0
        %3082 = vmatprep.subr.mxu0 0.0
        %3083 = vmatpush1.msra.mxu0 0.0
        %3084 = vmatprep.subr.mxu0 0.0
        %3085 = vmatpush1.msra.mxu0 0.0
        %3086 = vmatprep.subr.mxu0 0.0
        %3087 = vmatpush1.msra.mxu0 0.0
        %3088 = vmatprep.subr.mxu0 0.0
        %3089 = vmatpush1.msra.mxu0 0.0
        %3090 = vmatprep.mubr.f32.mxu0 0.0
        %3091 = vmatmul.mubr.f32.gmra.mrb[0].mxu0 %v3024
        %v3092 = vpop.f32.mrb[0].mxu0
        %v3093 = vadd.f32 %v1272, %v3092
        %v3094 = vpop.f32.mrb[0].mxu0
        %3095 = vdwg.mxu0
        %v3097 = vrot.slane %v3093, 3
        %v3099 = vadd.f32 %v1582, %v3097
        %v3100 = vxor.u32 %v3099, 2147483648
        %v3101 = vmul.f32 %v3100, 1.442695
        %v3102 = vpow.pop %v3101
        %v3103 = vadd.f32 %v3102, 1.0
        %v3104 = vrcp.pop %v3103
        %v3105 = vmul.f32 1.0, %v3104
        %3106 = vrot.lane.b32.xlu0 %v3097, 64
        %v3107 = vpop.permute.xlu0 %3106
        %v3109 = vmul.f32 %v3105, %v3107
        %3111 = vrot.lane.b32.xlu0 %v3109, 64
        %v3112 = vpop.permute.xlu0 %3111
        %v3114 = vadd.f32 %v1582, %v3112
        %v3115 = vtanh.pop %v3114
        %v3116 = vsub.f32 1.0, %v3105
        %3118 = vrot.lane.b32.xlu0 %v3115, 96
        %v3119 = vpop.permute.xlu0 %3118
        %v3121 = vmul.f32 %v3116, %v3119
        %v3122 = vrot.slane %v3020, 3
        %3123 = vrot.lane.b32.xlu0 %v3122, 32
        %v3124 = vpop.permute.xlu0 %3123
        %v3126 = vmul.f32 %v3105, %v3124
        %v3127 = vadd.f32 %v3121, %v3126
        %3129 = vrot.lane.b32.xlu0 %v3127, 96
        %v3130 = vpop.permute.xlu0 %3129
        %vm3132 = vcmask 259077
        %3133 = vst.msk [vmem:[#allocation2] sm:$0x20] %vm3132, %v3130
        %v3134 = vrot.slane %v3127, 5
        %3135 = vrot.lane.b32.xlu0 %v3134, 96
        %v3136 = vpop.permute.xlu0 %3135
        %v3137 = vsel %vm1084, %v3136, 0
        %3139 = vmatprep.subr.mxu0 0.0
        %3140 = vmatpush1.msra.mxu0 %v1249
        %3141 = vmatprep.subr.mxu0 0.0
        %3142 = vmatpush1.msra.mxu0 %v1250
        %3143 = vmatprep.subr.mxu0 0.0
        %3144 = vmatpush1.msra.mxu0 %v1251
        %3145 = vmatprep.subr.mxu0 0.0
        %3146 = vmatpush1.msra.mxu0 %v1252
        %3147 = vmatprep.subr.mxu0 0.0
        %3148 = vmatpush1.msra.mxu0 0.0
        %3149 = vmatprep.subr.mxu0 0.0
        %3150 = vmatpush1.msra.mxu0 0.0
        %3151 = vmatprep.subr.mxu0 0.0
        %3152 = vmatpush1.msra.mxu0 0.0
        %3153 = vmatprep.subr.mxu0 0.0
        %3154 = vmatpush1.msra.mxu0 0.0
        %3155 = vmatprep.subr.mxu0 0.0
        %3156 = vmatpush1.msra.mxu0 0.0
        %3157 = vmatprep.subr.mxu0 0.0
        %3158 = vmatpush1.msra.mxu0 0.0
        %3159 = vmatprep.subr.mxu0 0.0
        %3160 = vmatpush1.msra.mxu0 0.0
        %3161 = vmatprep.subr.mxu0 0.0
        %3162 = vmatpush1.msra.mxu0 0.0
        %3163 = vmatprep.subr.mxu0 0.0
        %3164 = vmatpush1.msra.mxu0 0.0
        %3165 = vmatprep.subr.mxu0 0.0
        %3166 = vmatpush1.msra.mxu0 0.0
        %3167 = vmatprep.subr.mxu0 0.0
        %3168 = vmatpush1.msra.mxu0 0.0
        %3169 = vmatprep.subr.mxu0 0.0
        %3170 = vmatpush1.msra.mxu0 0.0
        %3171 = vmatprep.subr.mxu0 0.0
        %3172 = vmatpush1.msra.mxu0 0.0
        %3173 = vmatprep.subr.mxu0 0.0
        %3174 = vmatpush1.msra.mxu0 0.0
        %3175 = vmatprep.subr.mxu0 0.0
        %3176 = vmatpush1.msra.mxu0 0.0
        %3177 = vmatprep.subr.mxu0 0.0
        %3178 = vmatpush1.msra.mxu0 0.0
        %3179 = vmatprep.subr.mxu0 0.0
        %3180 = vmatpush1.msra.mxu0 0.0
        %3181 = vmatprep.subr.mxu0 0.0
        %3182 = vmatpush1.msra.mxu0 0.0
        %3183 = vmatprep.subr.mxu0 0.0
        %3184 = vmatpush1.msra.mxu0 0.0
        %3185 = vmatprep.subr.mxu0 0.0
        %3186 = vmatpush1.msra.mxu0 0.0
        %3187 = vmatprep.subr.mxu0 0.0
        %3188 = vmatpush1.msra.mxu0 0.0
        %3189 = vmatprep.subr.mxu0 0.0
        %3190 = vmatpush1.msra.mxu0 0.0
        %3191 = vmatprep.subr.mxu0 0.0
        %3192 = vmatpush1.msra.mxu0 0.0
        %3193 = vmatprep.subr.mxu0 0.0
        %3194 = vmatpush1.msra.mxu0 0.0
        %3195 = vmatprep.subr.mxu0 0.0
        %3196 = vmatpush1.msra.mxu0 0.0
        %3197 = vmatprep.subr.mxu0 0.0
        %3198 = vmatpush1.msra.mxu0 0.0
        %3199 = vmatprep.subr.mxu0 0.0
        %3200 = vmatpush1.msra.mxu0 0.0
        %3201 = vmatprep.subr.mxu0 0.0
        %3202 = vmatpush1.msra.mxu0 0.0
        %3203 = vmatprep.mubr.f32.mxu0 0.0
        %3204 = vmatmul.mubr.f32.gmra.mrb[0].mxu0 %v3137
        %v3205 = vpop.f32.mrb[0].mxu0
        %v3206 = vadd.f32 %v1253, %v3205
        %v3207 = vpop.f32.mrb[0].mxu0
        %3208 = vdwg.mxu0
        %3209 = vst.msk [vmem:[#allocation3 + $0x5] sm:$0x1] %vm1619, %v3206
        %v3210 = vld [vmem:[#allocation2] sm:$0x3f]
        %v3211 = vld [vmem:[#allocation3] sm:$0x3f]
        %v3212 = vlaneseq
        %v3213 = vshrl.u32 %v3212, 7
        %v3214 = vsub.s32 6, %v3213
        %v3215 = vrot.slane %v1427, %v3214
        %v3216 = vmul.f32 %v3211, %v3215
        %vm3217 = vcmask 259072
        %v3218 = vsel %vm3217, %v3216, 0.0
        %3219 = vadd.xlane.f32.xlu0 %v3218
        %v3220 = vpop.xlane.xlu0 %3219
        %v3221 = vsub.f32 %v3220, %v1704
        %vm3222 = vcmask 54320
        %v3223 = vsel %vm3222, %v3221, -inf
        %v3224 = vrot.slane %v3223, 4
        %v3225 = vmax.f32 %v3223, %v3224
        %v3226 = vrot.slane %v3225, 2
        %v3227 = vmax.f32 %v3225, %v3226
        %v3228 = vrot.slane %v3227, 1
        %v3229 = vmax.f32 %v3227, %v3228
        %v3230 = vsub.f32 %v3221, %v3229
        %v3231 = vmul.f32 %v3230, 1.442695
        %v3232 = vpow.pop %v3231
        %v3233 = vsel %vm3222, %v3232, 0.0
        %v3234 = vrot.slane %v3233, 4
        %v3235 = vadd.f32 %v3233, %v3234
        %v3236 = vrot.slane %v3235, 2
        %v3237 = vadd.f32 %v3235, %v3236
        %v3238 = vrot.slane %v3237, 1
        %v3239 = vadd.f32 %v3237, %v3238
        %v3240 = vrcp.pop %v3239
        %v3241 = vmul.f32 %v3232, %v3240
        %3243 = vset.pattern.permute.xlu0 6
        %3244 = vperm.xlu0 %3243, %v3241
        %v3245 = vpop.permute.xlu0 %3244
        %v3247 = vmul.f32 %v3245, %v3210
        %v3248 = vsel %vm3217, %v3247, 0.0
        %v3249 = vrot.slane %v3248, 4
        %v3250 = vadd.f32 %v3248, %v3249
        %v3251 = vrot.slane %v3250, 2
        %v3252 = vadd.f32 %v3250, %v3251
        %v3253 = vrot.slane %v3252, 1
        %v3254 = vadd.f32 %v3252, %v3253
        %v3255 = vrot.slane %v1506, 6
        %v3258 = vsel %vm1084, %v3254, 0
        %3260 = vmatprep.subr.mxu0 0.0
        %3261 = vmatpush1.msra.mxu0 %v1254
        %3262 = vmatprep.subr.mxu0 0.0
        %3263 = vmatpush1.msra.mxu0 %v1255
        %3264 = vmatprep.subr.mxu0 0.0
        %3265 = vmatpush1.msra.mxu0 %v1256
        %3266 = vmatprep.subr.mxu0 0.0
        %3267 = vmatpush1.msra.mxu0 %v1257
        %3268 = vmatprep.subr.mxu0 0.0
        %3269 = vmatpush1.msra.mxu0 0.0
        %3270 = vmatprep.subr.mxu0 0.0
        %3271 = vmatpush1.msra.mxu0 0.0
        %3272 = vmatprep.subr.mxu0 0.0
        %3273 = vmatpush1.msra.mxu0 0.0
        %3274 = vmatprep.subr.mxu0 0.0
        %3275 = vmatpush1.msra.mxu0 0.0
        %3276 = vmatprep.subr.mxu0 0.0
        %3277 = vmatpush1.msra.mxu0 0.0
        %3278 = vmatprep.subr.mxu0 0.0
        %3279 = vmatpush1.msra.mxu0 0.0
        %3280 = vmatprep.subr.mxu0 0.0
        %3281 = vmatpush1.msra.mxu0 0.0
        %3282 = vmatprep.subr.mxu0 0.0
        %3283 = vmatpush1.msra.mxu0 0.0
        %3284 = vmatprep.subr.mxu0 0.0
        %3285 = vmatpush1.msra.mxu0 0.0
        %3286 = vmatprep.subr.mxu0 0.0
        %3287 = vmatpush1.msra.mxu0 0.0
        %3288 = vmatprep.subr.mxu0 0.0
        %3289 = vmatpush1.msra.mxu0 0.0
        %3290 = vmatprep.subr.mxu0 0.0
        %3291 = vmatpush1.msra.mxu0 0.0
        %3292 = vmatprep.subr.mxu0 0.0
        %3293 = vmatpush1.msra.mxu0 0.0
        %3294 = vmatprep.subr.mxu0 0.0
        %3295 = vmatpush1.msra.mxu0 0.0
        %3296 = vmatprep.subr.mxu0 0.0
        %3297 = vmatpush1.msra.mxu0 0.0
        %3298 = vmatprep.subr.mxu0 0.0
        %3299 = vmatpush1.msra.mxu0 0.0
        %3300 = vmatprep.subr.mxu0 0.0
        %3301 = vmatpush1.msra.mxu0 0.0
        %3302 = vmatprep.subr.mxu0 0.0
        %3303 = vmatpush1.msra.mxu0 0.0
        %3304 = vmatprep.subr.mxu0 0.0
        %3305 = vmatpush1.msra.mxu0 0.0
        %3306 = vmatprep.subr.mxu0 0.0
        %3307 = vmatpush1.msra.mxu0 0.0
        %3308 = vmatprep.subr.mxu0 0.0
        %3309 = vmatpush1.msra.mxu0 0.0
        %3310 = vmatprep.subr.mxu0 0.0
        %3311 = vmatpush1.msra.mxu0 0.0
        %3312 = vmatprep.subr.mxu0 0.0
        %3313 = vmatpush1.msra.mxu0 0.0
        %3314 = vmatprep.subr.mxu0 0.0
        %3315 = vmatpush1.msra.mxu0 0.0
        %3316 = vmatprep.subr.mxu0 0.0
        %3317 = vmatpush1.msra.mxu0 0.0
        %3318 = vmatprep.subr.mxu0 0.0
        %3319 = vmatpush1.msra.mxu0 0.0
        %3320 = vmatprep.subr.mxu0 0.0
        %3321 = vmatpush1.msra.mxu0 0.0
        %3322 = vmatprep.subr.mxu0 0.0
        %3323 = vmatpush1.msra.mxu0 0.0
        %3324 = vmatprep.mubr.f32.mxu0 0.0
        %3325 = vmatmul.mubr.f32.gmra.mrb[0].mxu0 %v3258
        %v3326 = vpop.f32.mrb[0].mxu0
        %v3327 = vadd.f32 %v3255, %v3326
        %v3328 = vpop.f32.mrb[0].mxu0
        %3329 = vdwg.mxu0
        %v3331 = vsel %vm1084, %v3327, 0
        %3333 = vmatprep.subr.mxu0 0.0
        %3334 = vmatpush1.msra.mxu0 %v1267
        %3335 = vmatprep.subr.mxu0 0.0
        %3336 = vmatpush1.msra.mxu0 %v1268
        %3337 = vmatprep.subr.mxu0 0.0
        %3338 = vmatpush1.msra.mxu0 %v1269
        %3339 = vmatprep.subr.mxu0 0.0
        %3340 = vmatpush1.msra.mxu0 %v1270
        %3341 = vmatprep.subr.mxu0 0.0
        %3342 = vmatpush1.msra.mxu0 0.0
        %3343 = vmatprep.subr.mxu0 0.0
        %3344 = vmatpush1.msra.mxu0 0.0
        %3345 = vmatprep.subr.mxu0 0.0
        %3346 = vmatpush1.msra.mxu0 0.0
        %3347 = vmatprep.subr.mxu0 0.0
        %3348 = vmatpush1.msra.mxu0 0.0
        %3349 = vmatprep.subr.mxu0 0.0
        %3350 = vmatpush1.msra.mxu0 0.0
        %3351 = vmatprep.subr.mxu0 0.0
        %3352 = vmatpush1.msra.mxu0 0.0
        %3353 = vmatprep.subr.mxu0 0.0
        %3354 = vmatpush1.msra.mxu0 0.0
        %3355 = vmatprep.subr.mxu0 0.0
        %3356 = vmatpush1.msra.mxu0 0.0
        %3357 = vmatprep.subr.mxu0 0.0
        %3358 = vmatpush1.msra.mxu0 0.0
        %3359 = vmatprep.subr.mxu0 0.0
        %3360 = vmatpush1.msra.mxu0 0.0
        %3361 = vmatprep.subr.mxu0 0.0
        %3362 = vmatpush1.msra.mxu0 0.0
        %3363 = vmatprep.subr.mxu0 0.0
        %3364 = vmatpush1.msra.mxu0 0.0
        %3365 = vmatprep.subr.mxu0 0.0
        %3366 = vmatpush1.msra.mxu0 0.0
        %3367 = vmatprep.subr.mxu0 0.0
        %3368 = vmatpush1.msra.mxu0 0.0
        %3369 = vmatprep.subr.mxu0 0.0
        %3370 = vmatpush1.msra.mxu0 0.0
        %3371 = vmatprep.subr.mxu0 0.0
        %3372 = vmatpush1.msra.mxu0 0.0
        %3373 = vmatprep.subr.mxu0 0.0
        %3374 = vmatpush1.msra.mxu0 0.0
        %3375 = vmatprep.subr.mxu0 0.0
        %3376 = vmatpush1.msra.mxu0 0.0
        %3377 = vmatprep.subr.mxu0 0.0
        %3378 = vmatpush1.msra.mxu0 0.0
        %3379 = vmatprep.subr.mxu0 0.0
        %3380 = vmatpush1.msra.mxu0 0.0
        %3381 = vmatprep.subr.mxu0 0.0
        %3382 = vmatpush1.msra.mxu0 0.0
        %3383 = vmatprep.subr.mxu0 0.0
        %3384 = vmatpush1.msra.mxu0 0.0
        %3385 = vmatprep.subr.mxu0 0.0
        %3386 = vmatpush1.msra.mxu0 0.0
        %3387 = vmatprep.subr.mxu0 0.0
        %3388 = vmatpush1.msra.mxu0 0.0
        %3389 = vmatprep.subr.mxu0 0.0
        %3390 = vmatpush1.msra.mxu0 0.0
        %3391 = vmatprep.subr.mxu0 0.0
        %3392 = vmatpush1.msra.mxu0 0.0
        %3393 = vmatprep.subr.mxu0 0.0
        %3394 = vmatpush1.msra.mxu0 0.0
        %3395 = vmatprep.subr.mxu0 0.0
        %3396 = vmatpush1.msra.mxu0 0.0
        %3397 = vmatprep.mubr.f32.mxu0 0.0
        %3398 = vmatmul.mubr.f32.gmra.mrb[0].mxu0 %v3331
        %v3399 = vpop.f32.mrb[0].mxu0
        %v3400 = vadd.f32 %v1272, %v3399
        %v3401 = vpop.f32.mrb[0].mxu0
        %3402 = vdwg.mxu0
        %v3404 = vrot.slane %v3400, 2
        %v3406 = vadd.f32 %v1582, %v3404
        %v3407 = vxor.u32 %v3406, 2147483648
        %v3408 = vmul.f32 %v3407, 1.442695
        %v3409 = vpow.pop %v3408
        %v3410 = vadd.f32 %v3409, 1.0
        %v3411 = vrcp.pop %v3410
        %v3412 = vmul.f32 1.0, %v3411
        %3413 = vrot.lane.b32.xlu0 %v3404, 64
        %v3414 = vpop.permute.xlu0 %3413
        %v3416 = vmul.f32 %v3412, %v3414
        %3418 = vrot.lane.b32.xlu0 %v3416, 64
        %v3419 = vpop.permute.xlu0 %3418
        %v3421 = vadd.f32 %v1582, %v3419
        %v3422 = vtanh.pop %v3421
        %v3423 = vsub.f32 1.0, %v3412
        %3425 = vrot.lane.b32.xlu0 %v3422, 96
        %v3426 = vpop.permute.xlu0 %3425
        %v3428 = vmul.f32 %v3423, %v3426
        %v3429 = vrot.slane %v3327, 2
        %3430 = vrot.lane.b32.xlu0 %v3429, 32
        %v3431 = vpop.permute.xlu0 %3430
        %v3433 = vmul.f32 %v3412, %v3431
        %v3434 = vadd.f32 %v3428, %v3433
        %3436 = vrot.lane.b32.xlu0 %v3434, 96
        %v3437 = vpop.permute.xlu0 %3436
        %vm3439 = vcmask 260102
        %3440 = vst.msk [vmem:[#allocation2] sm:$0x40] %vm3439, %v3437
        %v3441 = vrot.slane %v3434, 6
        %3442 = vrot.lane.b32.xlu0 %v3441, 96
        %v3443 = vpop.permute.xlu0 %3442
        %v3444 = vsel %vm1084, %v3443, 0
        %3446 = vmatprep.subr.mxu0 0.0
        %3447 = vmatpush1.msra.mxu0 %v1249
        %3448 = vmatprep.subr.mxu0 0.0
        %3449 = vmatpush1.msra.mxu0 %v1250
        %3450 = vmatprep.subr.mxu0 0.0
        %3451 = vmatpush1.msra.mxu0 %v1251
        %3452 = vmatprep.subr.mxu0 0.0
        %3453 = vmatpush1.msra.mxu0 %v1252
        %3454 = vmatprep.subr.mxu0 0.0
        %3455 = vmatpush1.msra.mxu0 0.0
        %3456 = vmatprep.subr.mxu0 0.0
        %3457 = vmatpush1.msra.mxu0 0.0
        %3458 = vmatprep.subr.mxu0 0.0
        %3459 = vmatpush1.msra.mxu0 0.0
        %3460 = vmatprep.subr.mxu0 0.0
        %3461 = vmatpush1.msra.mxu0 0.0
        %3462 = vmatprep.subr.mxu0 0.0
        %3463 = vmatpush1.msra.mxu0 0.0
        %3464 = vmatprep.subr.mxu0 0.0
        %3465 = vmatpush1.msra.mxu0 0.0
        %3466 = vmatprep.subr.mxu0 0.0
        %3467 = vmatpush1.msra.mxu0 0.0
        %3468 = vmatprep.subr.mxu0 0.0
        %3469 = vmatpush1.msra.mxu0 0.0
        %3470 = vmatprep.subr.mxu0 0.0
        %3471 = vmatpush1.msra.mxu0 0.0
        %3472 = vmatprep.subr.mxu0 0.0
        %3473 = vmatpush1.msra.mxu0 0.0
        %3474 = vmatprep.subr.mxu0 0.0
        %3475 = vmatpush1.msra.mxu0 0.0
        %3476 = vmatprep.subr.mxu0 0.0
        %3477 = vmatpush1.msra.mxu0 0.0
        %3478 = vmatprep.subr.mxu0 0.0
        %3479 = vmatpush1.msra.mxu0 0.0
        %3480 = vmatprep.subr.mxu0 0.0
        %3481 = vmatpush1.msra.mxu0 0.0
        %3482 = vmatprep.subr.mxu0 0.0
        %3483 = vmatpush1.msra.mxu0 0.0
        %3484 = vmatprep.subr.mxu0 0.0
        %3485 = vmatpush1.msra.mxu0 0.0
        %3486 = vmatprep.subr.mxu0 0.0
        %3487 = vmatpush1.msra.mxu0 0.0
        %3488 = vmatprep.subr.mxu0 0.0
        %3489 = vmatpush1.msra.mxu0 0.0
        %3490 = vmatprep.subr.mxu0 0.0
        %3491 = vmatpush1.msra.mxu0 0.0
        %3492 = vmatprep.subr.mxu0 0.0
        %3493 = vmatpush1.msra.mxu0 0.0
        %3494 = vmatprep.subr.mxu0 0.0
        %3495 = vmatpush1.msra.mxu0 0.0
        %3496 = vmatprep.subr.mxu0 0.0
        %3497 = vmatpush1.msra.mxu0 0.0
        %3498 = vmatprep.subr.mxu0 0.0
        %3499 = vmatpush1.msra.mxu0 0.0
        %3500 = vmatprep.subr.mxu0 0.0
        %3501 = vmatpush1.msra.mxu0 0.0
        %3502 = vmatprep.subr.mxu0 0.0
        %3503 = vmatpush1.msra.mxu0 0.0
        %3504 = vmatprep.subr.mxu0 0.0
        %3505 = vmatpush1.msra.mxu0 0.0
        %3506 = vmatprep.subr.mxu0 0.0
        %3507 = vmatpush1.msra.mxu0 0.0
        %3508 = vmatprep.subr.mxu0 0.0
        %3509 = vmatpush1.msra.mxu0 0.0
        %3510 = vmatprep.mubr.f32.mxu0 0.0
        %3511 = vmatmul.mubr.f32.gmra.mrb[0].mxu0 %v3444
        %v3512 = vpop.f32.mrb[0].mxu0
        %v3513 = vadd.f32 %v1253, %v3512
        %v3514 = vpop.f32.mrb[0].mxu0
        %3515 = vdwg.mxu0
        %3516 = vst.msk [vmem:[#allocation3 + $0x6] sm:$0x1] %vm1619, %v3513
        %v3517 = vld [vmem:[#allocation2] sm:$0x7f]
        %v3518 = vld [vmem:[#allocation3] sm:$0x7f]
        %v3519 = vlaneseq
        %v3520 = vshrl.u32 %v3519, 7
        %v3521 = vsub.s32 7, %v3520
        %v3522 = vrot.slane %v1427, %v3521
        %v3523 = vmul.f32 %v3518, %v3522
        %vm3524 = vcmask 260096
        %v3525 = vsel %vm3524, %v3523, 0.0
        %3526 = vadd.xlane.f32.xlu0 %v3525
        %v3527 = vpop.xlane.xlu0 %3526
        %v3528 = vsub.f32 %v3527, %v1704
        %vm3529 = vcmask 63544
        %v3530 = vsel %vm3529, %v3528, -inf
        %v3531 = vrot.slane %v3530, 4
        %v3532 = vmax.f32 %v3530, %v3531
        %v3533 = vrot.slane %v3532, 2
        %v3534 = vmax.f32 %v3532, %v3533
        %v3535 = vrot.slane %v3534, 1
        %v3536 = vmax.f32 %v3534, %v3535
        %v3537 = vsub.f32 %v3528, %v3536
        %v3538 = vmul.f32 %v3537, 1.442695
        %v3539 = vpow.pop %v3538
        %v3540 = vsel %vm3529, %v3539, 0.0
        %v3541 = vrot.slane %v3540, 4
        %v3542 = vadd.f32 %v3540, %v3541
        %v3543 = vrot.slane %v3542, 2
        %v3544 = vadd.f32 %v3542, %v3543
        %v3545 = vrot.slane %v3544, 1
        %v3546 = vadd.f32 %v3544, %v3545
        %v3547 = vrcp.pop %v3546
        %v3548 = vmul.f32 %v3539, %v3547
        %3550 = vset.pattern.permute.xlu0 7
        %3551 = vperm.xlu0 %3550, %v3548
        %v3552 = vpop.permute.xlu0 %3551
        %v3554 = vmul.f32 %v3552, %v3517
        %v3555 = vsel %vm3524, %v3554, 0.0
        %v3556 = vrot.slane %v3555, 4
        %v3557 = vadd.f32 %v3555, %v3556
        %v3558 = vrot.slane %v3557, 2
        %v3559 = vadd.f32 %v3557, %v3558
        %v3560 = vrot.slane %v3559, 1
        %v3561 = vadd.f32 %v3559, %v3560
        %v3562 = vrot.slane %v1506, 7
        %v3565 = vsel %vm1084, %v3561, 0
        %3567 = vmatprep.subr.mxu0 0.0
        %3568 = vmatpush1.msra.mxu0 %v1254
        %3569 = vmatprep.subr.mxu0 0.0
        %3570 = vmatpush1.msra.mxu0 %v1255
        %3571 = vmatprep.subr.mxu0 0.0
        %3572 = vmatpush1.msra.mxu0 %v1256
        %3573 = vmatprep.subr.mxu0 0.0
        %3574 = vmatpush1.msra.mxu0 %v1257
        %3575 = vmatprep.subr.mxu0 0.0
        %3576 = vmatpush1.msra.mxu0 0.0
        %3577 = vmatprep.subr.mxu0 0.0
        %3578 = vmatpush1.msra.mxu0 0.0
        %3579 = vmatprep.subr.mxu0 0.0
        %3580 = vmatpush1.msra.mxu0 0.0
        %3581 = vmatprep.subr.mxu0 0.0
        %3582 = vmatpush1.msra.mxu0 0.0
        %3583 = vmatprep.subr.mxu0 0.0
        %3584 = vmatpush1.msra.mxu0 0.0
        %3585 = vmatprep.subr.mxu0 0.0
        %3586 = vmatpush1.msra.mxu0 0.0
        %3587 = vmatprep.subr.mxu0 0.0
        %3588 = vmatpush1.msra.mxu0 0.0
        %3589 = vmatprep.subr.mxu0 0.0
        %3590 = vmatpush1.msra.mxu0 0.0
        %3591 = vmatprep.subr.mxu0 0.0
        %3592 = vmatpush1.msra.mxu0 0.0
        %3593 = vmatprep.subr.mxu0 0.0
        %3594 = vmatpush1.msra.mxu0 0.0
        %3595 = vmatprep.subr.mxu0 0.0
        %3596 = vmatpush1.msra.mxu0 0.0
        %3597 = vmatprep.subr.mxu0 0.0
        %3598 = vmatpush1.msra.mxu0 0.0
        %3599 = vmatprep.subr.mxu0 0.0
        %3600 = vmatpush1.msra.mxu0 0.0
        %3601 = vmatprep.subr.mxu0 0.0
        %3602 = vmatpush1.msra.mxu0 0.0
        %3603 = vmatprep.subr.mxu0 0.0
        %3604 = vmatpush1.msra.mxu0 0.0
        %3605 = vmatprep.subr.mxu0 0.0
        %3606 = vmatpush1.msra.mxu0 0.0
        %3607 = vmatprep.subr.mxu0 0.0
        %3608 = vmatpush1.msra.mxu0 0.0
        %3609 = vmatprep.subr.mxu0 0.0
        %3610 = vmatpush1.msra.mxu0 0.0
        %3611 = vmatprep.subr.mxu0 0.0
        %3612 = vmatpush1.msra.mxu0 0.0
        %3613 = vmatprep.subr.mxu0 0.0
        %3614 = vmatpush1.msra.mxu0 0.0
        %3615 = vmatprep.subr.mxu0 0.0
        %3616 = vmatpush1.msra.mxu0 0.0
        %3617 = vmatprep.subr.mxu0 0.0
        %3618 = vmatpush1.msra.mxu0 0.0
        %3619 = vmatprep.subr.mxu0 0.0
        %3620 = vmatpush1.msra.mxu0 0.0
        %3621 = vmatprep.subr.mxu0 0.0
        %3622 = vmatpush1.msra.mxu0 0.0
        %3623 = vmatprep.subr.mxu0 0.0
        %3624 = vmatpush1.msra.mxu0 0.0
        %3625 = vmatprep.subr.mxu0 0.0
        %3626 = vmatpush1.msra.mxu0 0.0
        %3627 = vmatprep.subr.mxu0 0.0
        %3628 = vmatpush1.msra.mxu0 0.0
        %3629 = vmatprep.subr.mxu0 0.0
        %3630 = vmatpush1.msra.mxu0 0.0
        %3631 = vmatprep.mubr.f32.mxu0 0.0
        %3632 = vmatmul.mubr.f32.gmra.mrb[0].mxu0 %v3565
        %v3633 = vpop.f32.mrb[0].mxu0
        %v3634 = vadd.f32 %v3562, %v3633
        %v3635 = vpop.f32.mrb[0].mxu0
        %3636 = vdwg.mxu0
        %v3638 = vsel %vm1084, %v3634, 0
        %3640 = vmatprep.subr.mxu0 0.0
        %3641 = vmatpush1.msra.mxu0 %v1267
        %3642 = vmatprep.subr.mxu0 0.0
        %3643 = vmatpush1.msra.mxu0 %v1268
        %3644 = vmatprep.subr.mxu0 0.0
        %3645 = vmatpush1.msra.mxu0 %v1269
        %3646 = vmatprep.subr.mxu0 0.0
        %3647 = vmatpush1.msra.mxu0 %v1270
        %3648 = vmatprep.subr.mxu0 0.0
        %3649 = vmatpush1.msra.mxu0 0.0
        %3650 = vmatprep.subr.mxu0 0.0
        %3651 = vmatpush1.msra.mxu0 0.0
        %3652 = vmatprep.subr.mxu0 0.0
        %3653 = vmatpush1.msra.mxu0 0.0
        %3654 = vmatprep.subr.mxu0 0.0
        %3655 = vmatpush1.msra.mxu0 0.0
        %3656 = vmatprep.subr.mxu0 0.0
        %3657 = vmatpush1.msra.mxu0 0.0
        %3658 = vmatprep.subr.mxu0 0.0
        %3659 = vmatpush1.msra.mxu0 0.0
        %3660 = vmatprep.subr.mxu0 0.0
        %3661 = vmatpush1.msra.mxu0 0.0
        %3662 = vmatprep.subr.mxu0 0.0
        %3663 = vmatpush1.msra.mxu0 0.0
        %3664 = vmatprep.subr.mxu0 0.0
        %3665 = vmatpush1.msra.mxu0 0.0
        %3666 = vmatprep.subr.mxu0 0.0
        %3667 = vmatpush1.msra.mxu0 0.0
        %3668 = vmatprep.subr.mxu0 0.0
        %3669 = vmatpush1.msra.mxu0 0.0
        %3670 = vmatprep.subr.mxu0 0.0
        %3671 = vmatpush1.msra.mxu0 0.0
        %3672 = vmatprep.subr.mxu0 0.0
        %3673 = vmatpush1.msra.mxu0 0.0
        %3674 = vmatprep.subr.mxu0 0.0
        %3675 = vmatpush1.msra.mxu0 0.0
        %3676 = vmatprep.subr.mxu0 0.0
        %3677 = vmatpush1.msra.mxu0 0.0
        %3678 = vmatprep.subr.mxu0 0.0
        %3679 = vmatpush1.msra.mxu0 0.0
        %3680 = vmatprep.subr.mxu0 0.0
        %3681 = vmatpush1.msra.mxu0 0.0
        %3682 = vmatprep.subr.mxu0 0.0
        %3683 = vmatpush1.msra.mxu0 0.0
        %3684 = vmatprep.subr.mxu0 0.0
        %3685 = vmatpush1.msra.mxu0 0.0
        %3686 = vmatprep.subr.mxu0 0.0
        %3687 = vmatpush1.msra.mxu0 0.0
        %3688 = vmatprep.subr.mxu0 0.0
        %3689 = vmatpush1.msra.mxu0 0.0
        %3690 = vmatprep.subr.mxu0 0.0
        %3691 = vmatpush1.msra.mxu0 0.0
        %3692 = vmatprep.subr.mxu0 0.0
        %3693 = vmatpush1.msra.mxu0 0.0
        %3694 = vmatprep.subr.mxu0 0.0
        %3695 = vmatpush1.msra.mxu0 0.0
        %3696 = vmatprep.subr.mxu0 0.0
        %3697 = vmatpush1.msra.mxu0 0.0
        %3698 = vmatprep.subr.mxu0 0.0
        %3699 = vmatpush1.msra.mxu0 0.0
        %3700 = vmatprep.subr.mxu0 0.0
        %3701 = vmatpush1.msra.mxu0 0.0
        %3702 = vmatprep.subr.mxu0 0.0
        %3703 = vmatpush1.msra.mxu0 0.0
        %3704 = vmatprep.mubr.f32.mxu0 0.0
        %3705 = vmatmul.mubr.f32.gmra.mrb[0].mxu0 %v3638
        %v3706 = vpop.f32.mrb[0].mxu0
        %v3707 = vadd.f32 %v1272, %v3706
        %v3708 = vpop.f32.mrb[0].mxu0
        %3709 = vdwg.mxu0
        %v3711 = vrot.slane %v3707, 1
        %v3713 = vadd.f32 %v1582, %v3711
        %v3714 = vxor.u32 %v3713, 2147483648
        %v3715 = vmul.f32 %v3714, 1.442695
        %v3716 = vpow.pop %v3715
        %v3717 = vadd.f32 %v3716, 1.0
        %v3718 = vrcp.pop %v3717
        %v3719 = vmul.f32 1.0, %v3718
        %3720 = vrot.lane.b32.xlu0 %v3711, 64
        %v3721 = vpop.permute.xlu0 %3720
        %v3723 = vmul.f32 %v3719, %v3721
        %3725 = vrot.lane.b32.xlu0 %v3723, 64
        %v3726 = vpop.permute.xlu0 %3725
        %v3728 = vadd.f32 %v1582, %v3726
        %v3729 = vtanh.pop %v3728
        %v3730 = vsub.f32 1.0, %v3719
        %3732 = vrot.lane.b32.xlu0 %v3729, 96
        %v3733 = vpop.permute.xlu0 %3732
        %v3735 = vmul.f32 %v3730, %v3733
        %v3736 = vrot.slane %v3634, 1
        %3737 = vrot.lane.b32.xlu0 %v3736, 32
        %v3738 = vpop.permute.xlu0 %3737
        %v3740 = vmul.f32 %v3719, %v3738
        %v3741 = vadd.f32 %v3735, %v3740
        %3743 = vrot.lane.b32.xlu0 %v3741, 96
        %v3744 = vpop.permute.xlu0 %3743
        %vm3746 = vcmask 261127
        %3747 = vst.msk [vmem:[#allocation2] sm:$0x80] %vm3746, %v3744
        %v3748 = vrot.slane %v3741, 7
        %3749 = vrot.lane.b32.xlu0 %v3748, 96
        %v3750 = vpop.permute.xlu0 %3749
        %v3751 = vsel %vm1084, %v3750, 0
        %3753 = vmatprep.subr.mxu0 0.0
        %3754 = vmatpush1.msra.mxu0 %v1249
        %3755 = vmatprep.subr.mxu0 0.0
        %3756 = vmatpush1.msra.mxu0 %v1250
        %3757 = vmatprep.subr.mxu0 0.0
        %3758 = vmatpush1.msra.mxu0 %v1251
        %3759 = vmatprep.subr.mxu0 0.0
        %3760 = vmatpush1.msra.mxu0 %v1252
        %3761 = vmatprep.subr.mxu0 0.0
        %3762 = vmatpush1.msra.mxu0 0.0
        %3763 = vmatprep.subr.mxu0 0.0
        %3764 = vmatpush1.msra.mxu0 0.0
        %3765 = vmatprep.subr.mxu0 0.0
        %3766 = vmatpush1.msra.mxu0 0.0
        %3767 = vmatprep.subr.mxu0 0.0
        %3768 = vmatpush1.msra.mxu0 0.0
        %3769 = vmatprep.subr.mxu0 0.0
        %3770 = vmatpush1.msra.mxu0 0.0
        %3771 = vmatprep.subr.mxu0 0.0
        %3772 = vmatpush1.msra.mxu0 0.0
        %3773 = vmatprep.subr.mxu0 0.0
        %3774 = vmatpush1.msra.mxu0 0.0
        %3775 = vmatprep.subr.mxu0 0.0
        %3776 = vmatpush1.msra.mxu0 0.0
        %3777 = vmatprep.subr.mxu0 0.0
        %3778 = vmatpush1.msra.mxu0 0.0
        %3779 = vmatprep.subr.mxu0 0.0
        %3780 = vmatpush1.msra.mxu0 0.0
        %3781 = vmatprep.subr.mxu0 0.0
        %3782 = vmatpush1.msra.mxu0 0.0
        %3783 = vmatprep.subr.mxu0 0.0
        %3784 = vmatpush1.msra.mxu0 0.0
        %3785 = vmatprep.subr.mxu0 0.0
        %3786 = vmatpush1.msra.mxu0 0.0
        %3787 = vmatprep.subr.mxu0 0.0
        %3788 = vmatpush1.msra.mxu0 0.0
        %3789 = vmatprep.subr.mxu0 0.0
        %3790 = vmatpush1.msra.mxu0 0.0
        %3791 = vmatprep.subr.mxu0 0.0
        %3792 = vmatpush1.msra.mxu0 0.0
        %3793 = vmatprep.subr.mxu0 0.0
        %3794 = vmatpush1.msra.mxu0 0.0
        %3795 = vmatprep.subr.mxu0 0.0
        %3796 = vmatpush1.msra.mxu0 0.0
        %3797 = vmatprep.subr.mxu0 0.0
        %3798 = vmatpush1.msra.mxu0 0.0
        %3799 = vmatprep.subr.mxu0 0.0
        %3800 = vmatpush1.msra.mxu0 0.0
        %3801 = vmatprep.subr.mxu0 0.0
        %3802 = vmatpush1.msra.mxu0 0.0
        %3803 = vmatprep.subr.mxu0 0.0
        %3804 = vmatpush1.msra.mxu0 0.0
        %3805 = vmatprep.subr.mxu0 0.0
        %3806 = vmatpush1.msra.mxu0 0.0
        %3807 = vmatprep.subr.mxu0 0.0
        %3808 = vmatpush1.msra.mxu0 0.0
        %3809 = vmatprep.subr.mxu0 0.0
        %3810 = vmatpush1.msra.mxu0 0.0
        %3811 = vmatprep.subr.mxu0 0.0
        %3812 = vmatpush1.msra.mxu0 0.0
        %3813 = vmatprep.subr.mxu0 0.0
        %3814 = vmatpush1.msra.mxu0 0.0
        %3815 = vmatprep.subr.mxu0 0.0
        %3816 = vmatpush1.msra.mxu0 0.0
        %3817 = vmatprep.mubr.f32.mxu0 0.0
        %3818 = vmatmul.mubr.f32.gmra.mrb[0].mxu0 %v3751
        %v3819 = vpop.f32.mrb[0].mxu0
        %v3820 = vadd.f32 %v1253, %v3819
        %v3821 = vpop.f32.mrb[0].mxu0
        %3822 = vdwg.mxu0
        %3823 = vst.msk [vmem:[#allocation3 + $0x7] sm:$0x1] %vm1619, %v3820
        %v3824 = vld [vmem:[#allocation2] sm:$0xff]
        %vm3825 = vcmask 64512
        %v3827 = vsel %vm3825, %v1071, 0
        %3829 = vmatprep.subr.mxu0 0.0
        %3830 = vmatpush1.msra.mxu0 %v3824
        %3831 = vmatprep.subr.mxu0 0.0
        %3832 = vmatpush1.msra.mxu0 0.0
        %3833 = vmatprep.subr.mxu0 0.0
        %3834 = vmatpush1.msra.mxu0 0.0
        %3835 = vmatprep.subr.mxu0 0.0
        %3836 = vmatpush1.msra.mxu0 0.0
        %3837 = vmatprep.subr.mxu0 0.0
        %3838 = vmatpush1.msra.mxu0 0.0
        %3839 = vmatprep.subr.mxu0 0.0
        %3840 = vmatpush1.msra.mxu0 0.0
        %3841 = vmatprep.subr.mxu0 0.0
        %3842 = vmatpush1.msra.mxu0 0.0
        %3843 = vmatprep.subr.mxu0 0.0
        %3844 = vmatpush1.msra.mxu0 0.0
        %3845 = vmatprep.subr.mxu0 0.0
        %3846 = vmatpush1.msra.mxu0 0.0
        %3847 = vmatprep.subr.mxu0 0.0
        %3848 = vmatpush1.msra.mxu0 0.0
        %3849 = vmatprep.subr.mxu0 0.0
        %3850 = vmatpush1.msra.mxu0 0.0
        %3851 = vmatprep.subr.mxu0 0.0
        %3852 = vmatpush1.msra.mxu0 0.0
        %3853 = vmatprep.subr.mxu0 0.0
        %3854 = vmatpush1.msra.mxu0 0.0
        %3855 = vmatprep.subr.mxu0 0.0
        %3856 = vmatpush1.msra.mxu0 0.0
        %3857 = vmatprep.subr.mxu0 0.0
        %3858 = vmatpush1.msra.mxu0 0.0
        %3859 = vmatprep.subr.mxu0 0.0
        %3860 = vmatpush1.msra.mxu0 0.0
        %3861 = vmatprep.subr.mxu0 0.0
        %3862 = vmatpush1.msra.mxu0 0.0
        %3863 = vmatprep.subr.mxu0 0.0
        %3864 = vmatpush1.msra.mxu0 0.0
        %3865 = vmatprep.subr.mxu0 0.0
        %3866 = vmatpush1.msra.mxu0 0.0
        %3867 = vmatprep.subr.mxu0 0.0
        %3868 = vmatpush1.msra.mxu0 0.0
        %3869 = vmatprep.subr.mxu0 0.0
        %3870 = vmatpush1.msra.mxu0 0.0
        %3871 = vmatprep.subr.mxu0 0.0
        %3872 = vmatpush1.msra.mxu0 0.0
        %3873 = vmatprep.subr.mxu0 0.0
        %3874 = vmatpush1.msra.mxu0 0.0
        %3875 = vmatprep.subr.mxu0 0.0
        %3876 = vmatpush1.msra.mxu0 0.0
        %3877 = vmatprep.subr.mxu0 0.0
        %3878 = vmatpush1.msra.mxu0 0.0
        %3879 = vmatprep.subr.mxu0 0.0
        %3880 = vmatpush1.msra.mxu0 0.0
        %3881 = vmatprep.subr.mxu0 0.0
        %3882 = vmatpush1.msra.mxu0 0.0
        %3883 = vmatprep.subr.mxu0 0.0
        %3884 = vmatpush1.msra.mxu0 0.0
        %3885 = vmatprep.subr.mxu0 0.0
        %3886 = vmatpush1.msra.mxu0 0.0
        %3887 = vmatprep.subr.mxu0 0.0
        %3888 = vmatpush1.msra.mxu0 0.0
        %3889 = vmatprep.subr.mxu0 0.0
        %3890 = vmatpush1.msra.mxu0 0.0
        %3891 = vmatprep.subr.mxu0 0.0
        %3892 = vmatpush1.msra.mxu0 0.0
        %3893 = vmatprep.mubr.f32.mxu0 0.0
        %3894 = vmatmul.mubr.f32.gmra.mrb[0].mxu0 %v3827
        %v3895 = vpop.f32.mrb[0].mxu0
        %v3896 = vadd.f32 0.0, %v3895
        %v3897 = vpop.f32.mrb[0].mxu0
        %3898 = vdwg.mxu0
        %v3899 = vsel %vm1084, %v1243, 0
        %3901 = vmatprep.subr.mxu0 0.0
        %3902 = vmatpush1.msra.mxu0 %v1263
        %3903 = vmatprep.subr.mxu0 0.0
        %3904 = vmatpush1.msra.mxu0 %v1264
        %3905 = vmatprep.subr.mxu0 0.0
        %3906 = vmatpush1.msra.mxu0 %v1265
        %3907 = vmatprep.subr.mxu0 0.0
        %3908 = vmatpush1.msra.mxu0 %v1266
        %3909 = vmatprep.subr.mxu0 0.0
        %3910 = vmatpush1.msra.mxu0 0.0
        %3911 = vmatprep.subr.mxu0 0.0
        %3912 = vmatpush1.msra.mxu0 0.0
        %3913 = vmatprep.subr.mxu0 0.0
        %3914 = vmatpush1.msra.mxu0 0.0
        %3915 = vmatprep.subr.mxu0 0.0
        %3916 = vmatpush1.msra.mxu0 0.0
        %3917 = vmatprep.subr.mxu0 0.0
        %3918 = vmatpush1.msra.mxu0 0.0
        %3919 = vmatprep.subr.mxu0 0.0
        %3920 = vmatpush1.msra.mxu0 0.0
        %3921 = vmatprep.subr.mxu0 0.0
        %3922 = vmatpush1.msra.mxu0 0.0
        %3923 = vmatprep.subr.mxu0 0.0
        %3924 = vmatpush1.msra.mxu0 0.0
        %3925 = vmatprep.subr.mxu0 0.0
        %3926 = vmatpush1.msra.mxu0 0.0
        %3927 = vmatprep.subr.mxu0 0.0
        %3928 = vmatpush1.msra.mxu0 0.0
        %3929 = vmatprep.subr.mxu0 0.0
        %3930 = vmatpush1.msra.mxu0 0.0
        %3931 = vmatprep.subr.mxu0 0.0
        %3932 = vmatpush1.msra.mxu0 0.0
        %3933 = vmatprep.subr.mxu0 0.0
        %3934 = vmatpush1.msra.mxu0 0.0
        %3935 = vmatprep.subr.mxu0 0.0
        %3936 = vmatpush1.msra.mxu0 0.0
        %3937 = vmatprep.subr.mxu0 0.0
        %3938 = vmatpush1.msra.mxu0 0.0
        %3939 = vmatprep.subr.mxu0 0.0
        %3940 = vmatpush1.msra.mxu0 0.0
        %3941 = vmatprep.subr.mxu0 0.0
        %3942 = vmatpush1.msra.mxu0 0.0
        %3943 = vmatprep.subr.mxu0 0.0
        %3944 = vmatpush1.msra.mxu0 0.0
        %3945 = vmatprep.subr.mxu0 0.0
        %3946 = vmatpush1.msra.mxu0 0.0
        %3947 = vmatprep.subr.mxu0 0.0
        %3948 = vmatpush1.msra.mxu0 0.0
        %3949 = vmatprep.subr.mxu0 0.0
        %3950 = vmatpush1.msra.mxu0 0.0
        %3951 = vmatprep.subr.mxu0 0.0
        %3952 = vmatpush1.msra.mxu0 0.0
        %3953 = vmatprep.subr.mxu0 0.0
        %3954 = vmatpush1.msra.mxu0 0.0
        %3955 = vmatprep.subr.mxu0 0.0
        %3956 = vmatpush1.msra.mxu0 0.0
        %3957 = vmatprep.subr.mxu0 0.0
        %3958 = vmatpush1.msra.mxu0 0.0
        %3959 = vmatprep.subr.mxu0 0.0
        %3960 = vmatpush1.msra.mxu0 0.0
        %3961 = vmatprep.subr.mxu0 0.0
        %3962 = vmatpush1.msra.mxu0 0.0
        %3963 = vmatprep.subr.mxu0 0.0
        %3964 = vmatpush1.msra.mxu0 0.0
        %3965 = vmatprep.mubr.f32.mxu0 0.0
        %3966 = vmatmul.mubr.f32.gmra.mrb[0].mxu0 %v3899
        %v3967 = vpop.f32.mrb[0].mxu0
        %v3968 = vadd.f32 %v1513, %v3967
        %v3969 = vpop.f32.mrb[0].mxu0
        %3970 = vdwg.mxu0
        %v3973 = vsel %vm1084, %v3896, 0
        %3975 = vmatprep.subr.mxu0 0.0
        %3976 = vmatpush1.msra.mxu0 %v1267
        %3977 = vmatprep.subr.mxu0 0.0
        %3978 = vmatpush1.msra.mxu0 %v1268
        %3979 = vmatprep.subr.mxu0 0.0
        %3980 = vmatpush1.msra.mxu0 %v1269
        %3981 = vmatprep.subr.mxu0 0.0
        %3982 = vmatpush1.msra.mxu0 %v1270
        %3983 = vmatprep.subr.mxu0 0.0
        %3984 = vmatpush1.msra.mxu0 0.0
        %3985 = vmatprep.subr.mxu0 0.0
        %3986 = vmatpush1.msra.mxu0 0.0
        %3987 = vmatprep.subr.mxu0 0.0
        %3988 = vmatpush1.msra.mxu0 0.0
        %3989 = vmatprep.subr.mxu0 0.0
        %3990 = vmatpush1.msra.mxu0 0.0
        %3991 = vmatprep.subr.mxu0 0.0
        %3992 = vmatpush1.msra.mxu0 0.0
        %3993 = vmatprep.subr.mxu0 0.0
        %3994 = vmatpush1.msra.mxu0 0.0
        %3995 = vmatprep.subr.mxu0 0.0
        %3996 = vmatpush1.msra.mxu0 0.0
        %3997 = vmatprep.subr.mxu0 0.0
        %3998 = vmatpush1.msra.mxu0 0.0
        %3999 = vmatprep.subr.mxu0 0.0
        %4000 = vmatpush1.msra.mxu0 0.0
        %4001 = vmatprep.subr.mxu0 0.0
        %4002 = vmatpush1.msra.mxu0 0.0
        %4003 = vmatprep.subr.mxu0 0.0
        %4004 = vmatpush1.msra.mxu0 0.0
        %4005 = vmatprep.subr.mxu0 0.0
        %4006 = vmatpush1.msra.mxu0 0.0
        %4007 = vmatprep.subr.mxu0 0.0
        %4008 = vmatpush1.msra.mxu0 0.0
        %4009 = vmatprep.subr.mxu0 0.0
        %4010 = vmatpush1.msra.mxu0 0.0
        %4011 = vmatprep.subr.mxu0 0.0
        %4012 = vmatpush1.msra.mxu0 0.0
        %4013 = vmatprep.subr.mxu0 0.0
        %4014 = vmatpush1.msra.mxu0 0.0
        %4015 = vmatprep.subr.mxu0 0.0
        %4016 = vmatpush1.msra.mxu0 0.0
        %4017 = vmatprep.subr.mxu0 0.0
        %4018 = vmatpush1.msra.mxu0 0.0
        %4019 = vmatprep.subr.mxu0 0.0
        %4020 = vmatpush1.msra.mxu0 0.0
        %4021 = vmatprep.subr.mxu0 0.0
        %4022 = vmatpush1.msra.mxu0 0.0
        %4023 = vmatprep.subr.mxu0 0.0
        %4024 = vmatpush1.msra.mxu0 0.0
        %4025 = vmatprep.subr.mxu0 0.0
        %4026 = vmatpush1.msra.mxu0 0.0
        %4027 = vmatprep.subr.mxu0 0.0
        %4028 = vmatpush1.msra.mxu0 0.0
        %4029 = vmatprep.subr.mxu0 0.0
        %4030 = vmatpush1.msra.mxu0 0.0
        %4031 = vmatprep.subr.mxu0 0.0
        %4032 = vmatpush1.msra.mxu0 0.0
        %4033 = vmatprep.subr.mxu0 0.0
        %4034 = vmatpush1.msra.mxu0 0.0
        %4035 = vmatprep.subr.mxu0 0.0
        %4036 = vmatpush1.msra.mxu0 0.0
        %4037 = vmatprep.subr.mxu0 0.0
        %4038 = vmatpush1.msra.mxu0 0.0
        %4039 = vmatprep.mubr.f32.mxu0 0.0
        %4040 = vmatmul.mubr.f32.gmra.mrb[0].mxu0 %v3973
        %v4041 = vpop.f32.mrb[0].mxu0
        %v4042 = vadd.f32 %v1596, %v4041
        %v4043 = vpop.f32.mrb[0].mxu0
        %4044 = vdwg.mxu0
        %v4045 = vadd.f32 %v3968, %v4042
        %v4046 = vxor.u32 %v4045, 2147483648
        %v4047 = vmul.f32 %v4046, 1.442695
        %v4048 = vpow.pop %v4047
        %v4049 = vadd.f32 %v4048, 1.0
        %v4050 = vrcp.pop %v4049
        %v4051 = vmul.f32 1.0, %v4050
        %4053 = vrot.lane.b32.xlu0 %v4042, 64
        %v4054 = vpop.permute.xlu0 %4053
        %v4056 = vmul.f32 %v4051, %v4054
        %4058 = vrot.lane.b32.xlu0 %v4056, 64
        %v4059 = vpop.permute.xlu0 %4058
        %v4061 = vadd.f32 %v3968, %v4059
        %v4062 = vtanh.pop %v4061
        %v4063 = vsub.f32 1.0, %v4051
        %4065 = vrot.lane.b32.xlu0 %v4062, 96
        %v4066 = vpop.permute.xlu0 %4065
        %v4068 = vmul.f32 %v4063, %v4066
        %4069 = vrot.lane.b32.xlu0 %v3896, 32
        %v4070 = vpop.permute.xlu0 %4069
        %v4072 = vmul.f32 %v4051, %v4070
        %v4073 = vadd.f32 %v4068, %v4072
        %s4074 = scalar_lea.vmem %s9, 32
        %v4075 = vld [vmem:[%s4074] sm:$0xff]
        %v4076 = vld [vmem:[%s4074 + $0x8] sm:$0xff]
        %v4077 = vld [vmem:[%s4074 + $0x10] sm:$0xff]
        %v4078 = vld [vmem:[%s4074 + $0x18] sm:$0xff]
        %s4079 = scalar_lea.vmem [#allocation12], 1
        %v4080 = vld [vmem:[%s4079] sm:$0x1]
        %s4081 = scalar_lea.vmem %s11, 32
        %v4082 = vld [vmem:[%s4081] sm:$0xff]
        %v4083 = vld [vmem:[%s4081 + $0x8] sm:$0xff]
        %v4084 = vld [vmem:[%s4081 + $0x10] sm:$0xff]
        %v4085 = vld [vmem:[%s4081 + $0x18] sm:$0xff]
        %s4086 = scalar_lea.vmem [#allocation14], 1
        %v4087 = vld [vmem:[%s4086] sm:$0x1]
        %s4088 = scalar_lea.vmem %s13, 32
        %v4089 = vld [vmem:[%s4088] sm:$0xff]
        %v4090 = vld [vmem:[%s4088 + $0x8] sm:$0xff]
        %v4091 = vld [vmem:[%s4088 + $0x10] sm:$0xff]
        %v4092 = vld [vmem:[%s4088 + $0x18] sm:$0xff]
        %s4093 = scalar_lea.vmem %s14, 32
        %v4094 = vld [vmem:[%s4093] sm:$0xff]
        %v4095 = vld [vmem:[%s4093 + $0x8] sm:$0xff]
        %v4096 = vld [vmem:[%s4093 + $0x10] sm:$0xff]
        %v4097 = vld [vmem:[%s4093 + $0x18] sm:$0xff]
        %s4098 = scalar_lea.vmem [#allocation15], 1
        %v4099 = vld [vmem:[%s4098] sm:$0x1]
        %s4100 = scalar_lea.vmem %s16, 32
        %v4101 = vld [vmem:[%s4100] sm:$0xff]
        %v4102 = vld [vmem:[%s4100 + $0x8] sm:$0xff]
        %v4103 = vld [vmem:[%s4100 + $0x10] sm:$0xff]
        %v4104 = vld [vmem:[%s4100 + $0x18] sm:$0xff]
        %s4105 = scalar_lea.vmem [#allocation17], 32
        %v4106 = vld [vmem:[%s4105] sm:$0xff]
        %v4107 = vld [vmem:[%s4105 + $0x8] sm:$0xff]
        %v4108 = vld [vmem:[%s4105 + $0x10] sm:$0xff]
        %v4109 = vld [vmem:[%s4105 + $0x18] sm:$0xff]
        %s4110 = scalar_lea.vmem [#allocation18], 1
        %v4111 = vld [vmem:[%s4110] sm:$0x1]
        %s4112 = scalar_lea.vmem [#allocation20], 1
        %v4113 = vld [vmem:[%s4112] sm:$0x1]
        %4115 = vrot.lane.b32.xlu0 %v4073, 96
        %v4116 = vpop.permute.xlu0 %4115
        %v4117 = vsel %vm1277, %v4116, 0
        %4119 = vmatprep.subr.mxu0 0.0
        %4120 = vmatpush1.msra.mxu0 %v4117
        %4121 = vmatprep.subr.mxu0 0.0
        %4122 = vmatpush1.msra.mxu0 0.0
        %4123 = vmatprep.subr.mxu0 0.0
        %4124 = vmatpush1.msra.mxu0 0.0
        %4125 = vmatprep.subr.mxu0 0.0
        %4126 = vmatpush1.msra.mxu0 0.0
        %4127 = vmatprep.subr.mxu0 0.0
        %4128 = vmatpush1.msra.mxu0 0.0
        %4129 = vmatprep.subr.mxu0 0.0
        %4130 = vmatpush1.msra.mxu0 0.0
        %4131 = vmatprep.subr.mxu0 0.0
        %4132 = vmatpush1.msra.mxu0 0.0
        %4133 = vmatprep.subr.mxu0 0.0
        %4134 = vmatpush1.msra.mxu0 0.0
        %4135 = vmatprep.subr.mxu0 0.0
        %4136 = vmatpush1.msra.mxu0 0.0
        %4137 = vmatprep.subr.mxu0 0.0
        %4138 = vmatpush1.msra.mxu0 0.0
        %4139 = vmatprep.subr.mxu0 0.0
        %4140 = vmatpush1.msra.mxu0 0.0
        %4141 = vmatprep.subr.mxu0 0.0
        %4142 = vmatpush1.msra.mxu0 0.0
        %4143 = vmatprep.subr.mxu0 0.0
        %4144 = vmatpush1.msra.mxu0 0.0
        %4145 = vmatprep.subr.mxu0 0.0
        %4146 = vmatpush1.msra.mxu0 0.0
        %4147 = vmatprep.subr.mxu0 0.0
        %4148 = vmatpush1.msra.mxu0 0.0
        %4149 = vmatprep.subr.mxu0 0.0
        %4150 = vmatpush1.msra.mxu0 0.0
        %4151 = vmatprep.subr.mxu0 0.0
        %4152 = vmatpush1.msra.mxu0 0.0
        %4153 = vmatprep.subr.mxu0 0.0
        %4154 = vmatpush1.msra.mxu0 0.0
        %4155 = vmatprep.subr.mxu0 0.0
        %4156 = vmatpush1.msra.mxu0 0.0
        %4157 = vmatprep.subr.mxu0 0.0
        %4158 = vmatpush1.msra.mxu0 0.0
        %4159 = vmatprep.subr.mxu0 0.0
        %4160 = vmatpush1.msra.mxu0 0.0
        %4161 = vmatprep.subr.mxu0 0.0
        %4162 = vmatpush1.msra.mxu0 0.0
        %4163 = vmatprep.subr.mxu0 0.0
        %4164 = vmatpush1.msra.mxu0 0.0
        %4165 = vmatprep.subr.mxu0 0.0
        %4166 = vmatpush1.msra.mxu0 0.0
        %4167 = vmatprep.subr.mxu0 0.0
        %4168 = vmatpush1.msra.mxu0 0.0
        %4169 = vmatprep.subr.mxu0 0.0
        %4170 = vmatpush1.msra.mxu0 0.0
        %4171 = vmatprep.subr.mxu0 0.0
        %4172 = vmatpush1.msra.mxu0 0.0
        %4173 = vmatprep.subr.mxu0 0.0
        %4174 = vmatpush1.msra.mxu0 0.0
        %4175 = vmatprep.subr.mxu0 0.0
        %4176 = vmatpush1.msra.mxu0 0.0
        %4177 = vmatprep.subr.mxu0 0.0
        %4178 = vmatpush1.msra.mxu0 0.0
        %4179 = vmatprep.subr.mxu0 0.0
        %4180 = vmatpush1.msra.mxu0 0.0
        %4181 = vmatprep.subr.mxu0 0.0
        %4182 = vmatpush1.msra.mxu0 0.0
        %4183 = vmatprep.mubr.f32.mxu0 0.0
        %4184 = vmatmul.mubr.f32.gmra.mrb[0].mxu0 %v1275
        %v4185 = vpop.f32.mrb[0].mxu0
        %v4186 = vadd.f32 0.0, %v4185
        %v4187 = vpop.f32.mrb[0].mxu0
        %4188 = vdwg.mxu0
        %v4190 = vlaneseq
        %v4191 = vshrl.u32 %v4190, 7
        %v4192 = vsub.s32 0, %v4191
        %v4193 = vrot.slane %v4080, %v4192
        %v4196 = vsel %vm1084, %v3824, 0
        %4198 = vmatprep.subr.mxu0 0.0
        %4199 = vmatpush1.msra.mxu0 %v4075
        %4200 = vmatprep.subr.mxu0 0.0
        %4201 = vmatpush1.msra.mxu0 %v4076
        %4202 = vmatprep.subr.mxu0 0.0
        %4203 = vmatpush1.msra.mxu0 %v4077
        %4204 = vmatprep.subr.mxu0 0.0
        %4205 = vmatpush1.msra.mxu0 %v4078
        %4206 = vmatprep.subr.mxu0 0.0
        %4207 = vmatpush1.msra.mxu0 0.0
        %4208 = vmatprep.subr.mxu0 0.0
        %4209 = vmatpush1.msra.mxu0 0.0
        %4210 = vmatprep.subr.mxu0 0.0
        %4211 = vmatpush1.msra.mxu0 0.0
        %4212 = vmatprep.subr.mxu0 0.0
        %4213 = vmatpush1.msra.mxu0 0.0
        %4214 = vmatprep.subr.mxu0 0.0
        %4215 = vmatpush1.msra.mxu0 0.0
        %4216 = vmatprep.subr.mxu0 0.0
        %4217 = vmatpush1.msra.mxu0 0.0
        %4218 = vmatprep.subr.mxu0 0.0
        %4219 = vmatpush1.msra.mxu0 0.0
        %4220 = vmatprep.subr.mxu0 0.0
        %4221 = vmatpush1.msra.mxu0 0.0
        %4222 = vmatprep.subr.mxu0 0.0
        %4223 = vmatpush1.msra.mxu0 0.0
        %4224 = vmatprep.subr.mxu0 0.0
        %4225 = vmatpush1.msra.mxu0 0.0
        %4226 = vmatprep.subr.mxu0 0.0
        %4227 = vmatpush1.msra.mxu0 0.0
        %4228 = vmatprep.subr.mxu0 0.0
        %4229 = vmatpush1.msra.mxu0 0.0
        %4230 = vmatprep.subr.mxu0 0.0
        %4231 = vmatpush1.msra.mxu0 0.0
        %4232 = vmatprep.subr.mxu0 0.0
        %4233 = vmatpush1.msra.mxu0 0.0
        %4234 = vmatprep.subr.mxu0 0.0
        %4235 = vmatpush1.msra.mxu0 0.0
        %4236 = vmatprep.subr.mxu0 0.0
        %4237 = vmatpush1.msra.mxu0 0.0
        %4238 = vmatprep.subr.mxu0 0.0
        %4239 = vmatpush1.msra.mxu0 0.0
        %4240 = vmatprep.subr.mxu0 0.0
        %4241 = vmatpush1.msra.mxu0 0.0
        %4242 = vmatprep.subr.mxu0 0.0
        %4243 = vmatpush1.msra.mxu0 0.0
        %4244 = vmatprep.subr.mxu0 0.0
        %4245 = vmatpush1.msra.mxu0 0.0
        %4246 = vmatprep.subr.mxu0 0.0
        %4247 = vmatpush1.msra.mxu0 0.0
        %4248 = vmatprep.subr.mxu0 0.0
        %4249 = vmatpush1.msra.mxu0 0.0
        %4250 = vmatprep.subr.mxu0 0.0
        %4251 = vmatpush1.msra.mxu0 0.0
        %4252 = vmatprep.subr.mxu0 0.0
        %4253 = vmatpush1.msra.mxu0 0.0
        %4254 = vmatprep.subr.mxu0 0.0
        %4255 = vmatpush1.msra.mxu0 0.0
        %4256 = vmatprep.subr.mxu0 0.0
        %4257 = vmatpush1.msra.mxu0 0.0
        %4258 = vmatprep.subr.mxu0 0.0
        %4259 = vmatpush1.msra.mxu0 0.0
        %4260 = vmatprep.subr.mxu0 0.0
        %4261 = vmatpush1.msra.mxu0 0.0
        %4262 = vmatprep.mubr.f32.mxu0 0.0
        %4263 = vmatmul.mubr.f32.gmra.mrb[0].mxu0 %v4196
        %v4264 = vpop.f32.mrb[0].mxu0
        %v4265 = vadd.f32 %v4193, %v4264
        %v4266 = vpop.f32.mrb[0].mxu0
        %4267 = vdwg.mxu0
        %v4269 = vlaneseq
        %v4270 = vshrl.u32 %v4269, 7
        %v4271 = vsub.s32 0, %v4270
        %v4272 = vrot.slane %v4099, %v4271
        %v4275 = vsel %vm1084, %v4186, 0
        %4277 = vmatprep.subr.mxu0 0.0
        %4278 = vmatpush1.msra.mxu0 %v4094
        %4279 = vmatprep.subr.mxu0 0.0
        %4280 = vmatpush1.msra.mxu0 %v4095
        %4281 = vmatprep.subr.mxu0 0.0
        %4282 = vmatpush1.msra.mxu0 %v4096
        %4283 = vmatprep.subr.mxu0 0.0
        %4284 = vmatpush1.msra.mxu0 %v4097
        %4285 = vmatprep.subr.mxu0 0.0
        %4286 = vmatpush1.msra.mxu0 0.0
        %4287 = vmatprep.subr.mxu0 0.0
        %4288 = vmatpush1.msra.mxu0 0.0
        %4289 = vmatprep.subr.mxu0 0.0
        %4290 = vmatpush1.msra.mxu0 0.0
        %4291 = vmatprep.subr.mxu0 0.0
        %4292 = vmatpush1.msra.mxu0 0.0
        %4293 = vmatprep.subr.mxu0 0.0
        %4294 = vmatpush1.msra.mxu0 0.0
        %4295 = vmatprep.subr.mxu0 0.0
        %4296 = vmatpush1.msra.mxu0 0.0
        %4297 = vmatprep.subr.mxu0 0.0
        %4298 = vmatpush1.msra.mxu0 0.0
        %4299 = vmatprep.subr.mxu0 0.0
        %4300 = vmatpush1.msra.mxu0 0.0
        %4301 = vmatprep.subr.mxu0 0.0
        %4302 = vmatpush1.msra.mxu0 0.0
        %4303 = vmatprep.subr.mxu0 0.0
        %4304 = vmatpush1.msra.mxu0 0.0
        %4305 = vmatprep.subr.mxu0 0.0
        %4306 = vmatpush1.msra.mxu0 0.0
        %4307 = vmatprep.subr.mxu0 0.0
        %4308 = vmatpush1.msra.mxu0 0.0
        %4309 = vmatprep.subr.mxu0 0.0
        %4310 = vmatpush1.msra.mxu0 0.0
        %4311 = vmatprep.subr.mxu0 0.0
        %4312 = vmatpush1.msra.mxu0 0.0
        %4313 = vmatprep.subr.mxu0 0.0
        %4314 = vmatpush1.msra.mxu0 0.0
        %4315 = vmatprep.subr.mxu0 0.0
        %4316 = vmatpush1.msra.mxu0 0.0
        %4317 = vmatprep.subr.mxu0 0.0
        %4318 = vmatpush1.msra.mxu0 0.0
        %4319 = vmatprep.subr.mxu0 0.0
        %4320 = vmatpush1.msra.mxu0 0.0
        %4321 = vmatprep.subr.mxu0 0.0
        %4322 = vmatpush1.msra.mxu0 0.0
        %4323 = vmatprep.subr.mxu0 0.0
        %4324 = vmatpush1.msra.mxu0 0.0
        %4325 = vmatprep.subr.mxu0 0.0
        %4326 = vmatpush1.msra.mxu0 0.0
        %4327 = vmatprep.subr.mxu0 0.0
        %4328 = vmatpush1.msra.mxu0 0.0
        %4329 = vmatprep.subr.mxu0 0.0
        %4330 = vmatpush1.msra.mxu0 0.0
        %4331 = vmatprep.subr.mxu0 0.0
        %4332 = vmatpush1.msra.mxu0 0.0
        %4333 = vmatprep.subr.mxu0 0.0
        %4334 = vmatpush1.msra.mxu0 0.0
        %4335 = vmatprep.subr.mxu0 0.0
        %4336 = vmatpush1.msra.mxu0 0.0
        %4337 = vmatprep.subr.mxu0 0.0
        %4338 = vmatpush1.msra.mxu0 0.0
        %4339 = vmatprep.subr.mxu0 0.0
        %4340 = vmatpush1.msra.mxu0 0.0
        %4341 = vmatprep.mubr.f32.mxu0 0.0
        %4342 = vmatmul.mubr.f32.gmra.mrb[0].mxu0 %v4275
        %v4343 = vpop.f32.mrb[0].mxu0
        %v4344 = vadd.f32 %v4272, %v4343
        %v4345 = vpop.f32.mrb[0].mxu0
        %4346 = vdwg.mxu0
        %v4348 = vlaneseq
        %v4349 = vshrl.u32 %v4348, 7
        %v4350 = vsub.s32 0, %v4349
        %v4351 = vrot.slane %v4111, %v4350
        %4353 = vmatprep.subr.mxu0 0.0
        %4354 = vmatpush1.msra.mxu0 %v4101
        %4355 = vmatprep.subr.mxu0 0.0
        %4356 = vmatpush1.msra.mxu0 %v4102
        %4357 = vmatprep.subr.mxu0 0.0
        %4358 = vmatpush1.msra.mxu0 %v4103
        %4359 = vmatprep.subr.mxu0 0.0
        %4360 = vmatpush1.msra.mxu0 %v4104
        %4361 = vmatprep.subr.mxu0 0.0
        %4362 = vmatpush1.msra.mxu0 0.0
        %4363 = vmatprep.subr.mxu0 0.0
        %4364 = vmatpush1.msra.mxu0 0.0
        %4365 = vmatprep.subr.mxu0 0.0
        %4366 = vmatpush1.msra.mxu0 0.0
        %4367 = vmatprep.subr.mxu0 0.0
        %4368 = vmatpush1.msra.mxu0 0.0
        %4369 = vmatprep.subr.mxu0 0.0
        %4370 = vmatpush1.msra.mxu0 0.0
        %4371 = vmatprep.subr.mxu0 0.0
        %4372 = vmatpush1.msra.mxu0 0.0
        %4373 = vmatprep.subr.mxu0 0.0
        %4374 = vmatpush1.msra.mxu0 0.0
        %4375 = vmatprep.subr.mxu0 0.0
        %4376 = vmatpush1.msra.mxu0 0.0
        %4377 = vmatprep.subr.mxu0 0.0
        %4378 = vmatpush1.msra.mxu0 0.0
        %4379 = vmatprep.subr.mxu0 0.0
        %4380 = vmatpush1.msra.mxu0 0.0
        %4381 = vmatprep.subr.mxu0 0.0
        %4382 = vmatpush1.msra.mxu0 0.0
        %4383 = vmatprep.subr.mxu0 0.0
        %4384 = vmatpush1.msra.mxu0 0.0
        %4385 = vmatprep.subr.mxu0 0.0
        %4386 = vmatpush1.msra.mxu0 0.0
        %4387 = vmatprep.subr.mxu0 0.0
        %4388 = vmatpush1.msra.mxu0 0.0
        %4389 = vmatprep.subr.mxu0 0.0
        %4390 = vmatpush1.msra.mxu0 0.0
        %4391 = vmatprep.subr.mxu0 0.0
        %4392 = vmatpush1.msra.mxu0 0.0
        %4393 = vmatprep.subr.mxu0 0.0
        %4394 = vmatpush1.msra.mxu0 0.0
        %4395 = vmatprep.subr.mxu0 0.0
        %4396 = vmatpush1.msra.mxu0 0.0
        %4397 = vmatprep.subr.mxu0 0.0
        %4398 = vmatpush1.msra.mxu0 0.0
        %4399 = vmatprep.subr.mxu0 0.0
        %4400 = vmatpush1.msra.mxu0 0.0
        %4401 = vmatprep.subr.mxu0 0.0
        %4402 = vmatpush1.msra.mxu0 0.0
        %4403 = vmatprep.subr.mxu0 0.0
        %4404 = vmatpush1.msra.mxu0 0.0
        %4405 = vmatprep.subr.mxu0 0.0
        %4406 = vmatpush1.msra.mxu0 0.0
        %4407 = vmatprep.subr.mxu0 0.0
        %4408 = vmatpush1.msra.mxu0 0.0
        %4409 = vmatprep.subr.mxu0 0.0
        %4410 = vmatpush1.msra.mxu0 0.0
        %4411 = vmatprep.subr.mxu0 0.0
        %4412 = vmatpush1.msra.mxu0 0.0
        %4413 = vmatprep.subr.mxu0 0.0
        %4414 = vmatpush1.msra.mxu0 0.0
        %4415 = vmatprep.subr.mxu0 0.0
        %4416 = vmatpush1.msra.mxu0 0.0
        %4417 = vmatprep.mubr.f32.mxu0 0.0
        %4418 = vmatmul.mubr.f32.gmra.mrb[0].mxu0 %v4196
        %v4419 = vpop.f32.mrb[0].mxu0
        %v4420 = vadd.f32 %v4351, %v4419
        %v4421 = vpop.f32.mrb[0].mxu0
        %4422 = vdwg.mxu0
        %v4423 = vadd.f32 %v4420, %v4113
        %v4424 = vxor.u32 %v4423, 2147483648
        %v4425 = vmul.f32 %v4424, 1.442695
        %v4426 = vpow.pop %v4425
        %v4427 = vadd.f32 %v4426, 1.0
        %v4428 = vrcp.pop %v4427
        %v4429 = vmul.f32 1.0, %v4428
        %v4431 = vlaneseq
        %v4432 = vshrl.u32 %v4431, 7
        %v4433 = vsub.s32 0, %v4432
        %v4434 = vrot.slane %v4113, %v4433
        %4435 = vrot.lane.b32.xlu0 %v4434, 64
        %v4436 = vpop.permute.xlu0 %4435
        %v4438 = vmul.f32 %v4429, %v4436
        %4440 = vrot.lane.b32.xlu0 %v4438, 64
        %v4441 = vpop.permute.xlu0 %4440
        %v4443 = vadd.f32 %v4420, %v4441
        %v4444 = vtanh.pop %v4443
        %v4445 = vsub.f32 1.0, %v4429
        %4447 = vrot.lane.b32.xlu0 %v4444, 96
        %v4448 = vpop.permute.xlu0 %4447
        %v4450 = vmul.f32 %v4445, %v4448
        %v4451 = vmul.f32 %v4429, 0.0
        %v4452 = vadd.f32 %v4450, %v4451
        %4454 = vrot.lane.b32.xlu0 %v4452, 96
        %v4455 = vpop.permute.xlu0 %4454
        %4457 = vst.msk [vmem:[#allocation2] sm:$0x1] %vm1619, %v4455
        %v4458 = vsel %vm1084, %v4455, 0
        %4460 = vmatprep.subr.mxu0 0.0
        %4461 = vmatpush1.msra.mxu0 %v4082
        %4462 = vmatprep.subr.mxu0 0.0
        %4463 = vmatpush1.msra.mxu0 %v4083
        %4464 = vmatprep.subr.mxu0 0.0
        %4465 = vmatpush1.msra.mxu0 %v4084
        %4466 = vmatprep.subr.mxu0 0.0
        %4467 = vmatpush1.msra.mxu0 %v4085
        %4468 = vmatprep.subr.mxu0 0.0
        %4469 = vmatpush1.msra.mxu0 0.0
        %4470 = vmatprep.subr.mxu0 0.0
        %4471 = vmatpush1.msra.mxu0 0.0
        %4472 = vmatprep.subr.mxu0 0.0
        %4473 = vmatpush1.msra.mxu0 0.0
        %4474 = vmatprep.subr.mxu0 0.0
        %4475 = vmatpush1.msra.mxu0 0.0
        %4476 = vmatprep.subr.mxu0 0.0
        %4477 = vmatpush1.msra.mxu0 0.0
        %4478 = vmatprep.subr.mxu0 0.0
        %4479 = vmatpush1.msra.mxu0 0.0
        %4480 = vmatprep.subr.mxu0 0.0
        %4481 = vmatpush1.msra.mxu0 0.0
        %4482 = vmatprep.subr.mxu0 0.0
        %4483 = vmatpush1.msra.mxu0 0.0
        %4484 = vmatprep.subr.mxu0 0.0
        %4485 = vmatpush1.msra.mxu0 0.0
        %4486 = vmatprep.subr.mxu0 0.0
        %4487 = vmatpush1.msra.mxu0 0.0
        %4488 = vmatprep.subr.mxu0 0.0
        %4489 = vmatpush1.msra.mxu0 0.0
        %4490 = vmatprep.subr.mxu0 0.0
        %4491 = vmatpush1.msra.mxu0 0.0
        %4492 = vmatprep.subr.mxu0 0.0
        %4493 = vmatpush1.msra.mxu0 0.0
        %4494 = vmatprep.subr.mxu0 0.0
        %4495 = vmatpush1.msra.mxu0 0.0
        %4496 = vmatprep.subr.mxu0 0.0
        %4497 = vmatpush1.msra.mxu0 0.0
        %4498 = vmatprep.subr.mxu0 0.0
        %4499 = vmatpush1.msra.mxu0 0.0
        %4500 = vmatprep.subr.mxu0 0.0
        %4501 = vmatpush1.msra.mxu0 0.0
        %4502 = vmatprep.subr.mxu0 0.0
        %4503 = vmatpush1.msra.mxu0 0.0
        %4504 = vmatprep.subr.mxu0 0.0
        %4505 = vmatpush1.msra.mxu0 0.0
        %4506 = vmatprep.subr.mxu0 0.0
        %4507 = vmatpush1.msra.mxu0 0.0
        %4508 = vmatprep.subr.mxu0 0.0
        %4509 = vmatpush1.msra.mxu0 0.0
        %4510 = vmatprep.subr.mxu0 0.0
        %4511 = vmatpush1.msra.mxu0 0.0
        %4512 = vmatprep.subr.mxu0 0.0
        %4513 = vmatpush1.msra.mxu0 0.0
        %4514 = vmatprep.subr.mxu0 0.0
        %4515 = vmatpush1.msra.mxu0 0.0
        %4516 = vmatprep.subr.mxu0 0.0
        %4517 = vmatpush1.msra.mxu0 0.0
        %4518 = vmatprep.subr.mxu0 0.0
        %4519 = vmatpush1.msra.mxu0 0.0
        %4520 = vmatprep.subr.mxu0 0.0
        %4521 = vmatpush1.msra.mxu0 0.0
        %4522 = vmatprep.subr.mxu0 0.0
        %4523 = vmatpush1.msra.mxu0 0.0
        %4524 = vmatprep.mubr.f32.mxu0 0.0
        %4525 = vmatmul.mubr.f32.gmra.mrb[0].mxu0 %v4458
        %v4526 = vpop.f32.mrb[0].mxu0
        %v4527 = vadd.f32 %v4087, %v4526
        %v4528 = vpop.f32.mrb[0].mxu0
        %4529 = vdwg.mxu0
        %4530 = vst.msk [vmem:[#allocation3] sm:$0x1] %vm1619, %v4527
        %v4531 = vld [vmem:[#allocation2] sm:$0x1]
        %v4532 = vld [vmem:[#allocation3] sm:$0x1]
        %v4534 = vrot.slane %v4265, 1
        %v4536 = vmul.f32 %v4532, %v4534
        %v4537 = vsel %vm1619, %v4536, 0.0
        %4538 = vadd.xlane.f32.xlu0 %v4537
        %v4539 = vpop.xlane.xlu0 %4538
        %v4540 = vsub.f32 %v4539, %v1704
        %v4541 = vsub.f32 %v4540, %v4540
        %v4542 = vmul.f32 %v4541, 1.442695
        %v4543 = vpow.pop %v4542
        %v4544 = vadd.f32 %v4543, 0.0
        %v4545 = vrcp.pop %v4544
        %v4546 = vmul.f32 %v4543, %v4545
        %4548 = vset.pattern.permute.xlu0 1
        %4549 = vperm.xlu0 %4548, %v4546
        %v4550 = vpop.permute.xlu0 %4549
        %v4552 = vmul.f32 %v4550, %v4531
        %v4553 = vadd.f32 %v4552, 0.0
        %v4555 = vrot.slane %v4344, 1
        %v4558 = vsel %vm1084, %v4553, 0
        %4560 = vmatprep.subr.mxu0 0.0
        %4561 = vmatpush1.msra.mxu0 %v4089
        %4562 = vmatprep.subr.mxu0 0.0
        %4563 = vmatpush1.msra.mxu0 %v4090
        %4564 = vmatprep.subr.mxu0 0.0
        %4565 = vmatpush1.msra.mxu0 %v4091
        %4566 = vmatprep.subr.mxu0 0.0
        %4567 = vmatpush1.msra.mxu0 %v4092
        %4568 = vmatprep.subr.mxu0 0.0
        %4569 = vmatpush1.msra.mxu0 0.0
        %4570 = vmatprep.subr.mxu0 0.0
        %4571 = vmatpush1.msra.mxu0 0.0
        %4572 = vmatprep.subr.mxu0 0.0
        %4573 = vmatpush1.msra.mxu0 0.0
        %4574 = vmatprep.subr.mxu0 0.0
        %4575 = vmatpush1.msra.mxu0 0.0
        %4576 = vmatprep.subr.mxu0 0.0
        %4577 = vmatpush1.msra.mxu0 0.0
        %4578 = vmatprep.subr.mxu0 0.0
        %4579 = vmatpush1.msra.mxu0 0.0
        %4580 = vmatprep.subr.mxu0 0.0
        %4581 = vmatpush1.msra.mxu0 0.0
        %4582 = vmatprep.subr.mxu0 0.0
        %4583 = vmatpush1.msra.mxu0 0.0
        %4584 = vmatprep.subr.mxu0 0.0
        %4585 = vmatpush1.msra.mxu0 0.0
        %4586 = vmatprep.subr.mxu0 0.0
        %4587 = vmatpush1.msra.mxu0 0.0
        %4588 = vmatprep.subr.mxu0 0.0
        %4589 = vmatpush1.msra.mxu0 0.0
        %4590 = vmatprep.subr.mxu0 0.0
        %4591 = vmatpush1.msra.mxu0 0.0
        %4592 = vmatprep.subr.mxu0 0.0
        %4593 = vmatpush1.msra.mxu0 0.0
        %4594 = vmatprep.subr.mxu0 0.0
        %4595 = vmatpush1.msra.mxu0 0.0
        %4596 = vmatprep.subr.mxu0 0.0
        %4597 = vmatpush1.msra.mxu0 0.0
        %4598 = vmatprep.subr.mxu0 0.0
        %4599 = vmatpush1.msra.mxu0 0.0
        %4600 = vmatprep.subr.mxu0 0.0
        %4601 = vmatpush1.msra.mxu0 0.0
        %4602 = vmatprep.subr.mxu0 0.0
        %4603 = vmatpush1.msra.mxu0 0.0
        %4604 = vmatprep.subr.mxu0 0.0
        %4605 = vmatpush1.msra.mxu0 0.0
        %4606 = vmatprep.subr.mxu0 0.0
        %4607 = vmatpush1.msra.mxu0 0.0
        %4608 = vmatprep.subr.mxu0 0.0
        %4609 = vmatpush1.msra.mxu0 0.0
        %4610 = vmatprep.subr.mxu0 0.0
        %4611 = vmatpush1.msra.mxu0 0.0
        %4612 = vmatprep.subr.mxu0 0.0
        %4613 = vmatpush1.msra.mxu0 0.0
        %4614 = vmatprep.subr.mxu0 0.0
        %4615 = vmatpush1.msra.mxu0 0.0
        %4616 = vmatprep.subr.mxu0 0.0
        %4617 = vmatpush1.msra.mxu0 0.0
        %4618 = vmatprep.subr.mxu0 0.0
        %4619 = vmatpush1.msra.mxu0 0.0
        %4620 = vmatprep.subr.mxu0 0.0
        %4621 = vmatpush1.msra.mxu0 0.0
        %4622 = vmatprep.subr.mxu0 0.0
        %4623 = vmatpush1.msra.mxu0 0.0
        %4624 = vmatprep.mubr.f32.mxu0 0.0
        %4625 = vmatmul.mubr.f32.gmra.mrb[0].mxu0 %v4558
        %v4626 = vpop.f32.mrb[0].mxu0
        %v4627 = vadd.f32 %v4555, %v4626
        %v4628 = vpop.f32.mrb[0].mxu0
        %4629 = vdwg.mxu0
        %v4631 = vsel %vm1084, %v4627, 0
        %4633 = vmatprep.subr.mxu0 0.0
        %4634 = vmatpush1.msra.mxu0 %v4106
        %4635 = vmatprep.subr.mxu0 0.0
        %4636 = vmatpush1.msra.mxu0 %v4107
        %4637 = vmatprep.subr.mxu0 0.0
        %4638 = vmatpush1.msra.mxu0 %v4108
        %4639 = vmatprep.subr.mxu0 0.0
        %4640 = vmatpush1.msra.mxu0 %v4109
        %4641 = vmatprep.subr.mxu0 0.0
        %4642 = vmatpush1.msra.mxu0 0.0
        %4643 = vmatprep.subr.mxu0 0.0
        %4644 = vmatpush1.msra.mxu0 0.0
        %4645 = vmatprep.subr.mxu0 0.0
        %4646 = vmatpush1.msra.mxu0 0.0
        %4647 = vmatprep.subr.mxu0 0.0
        %4648 = vmatpush1.msra.mxu0 0.0
        %4649 = vmatprep.subr.mxu0 0.0
        %4650 = vmatpush1.msra.mxu0 0.0
        %4651 = vmatprep.subr.mxu0 0.0
        %4652 = vmatpush1.msra.mxu0 0.0
        %4653 = vmatprep.subr.mxu0 0.0
        %4654 = vmatpush1.msra.mxu0 0.0
        %4655 = vmatprep.subr.mxu0 0.0
        %4656 = vmatpush1.msra.mxu0 0.0
        %4657 = vmatprep.subr.mxu0 0.0
        %4658 = vmatpush1.msra.mxu0 0.0
        %4659 = vmatprep.subr.mxu0 0.0
        %4660 = vmatpush1.msra.mxu0 0.0
        %4661 = vmatprep.subr.mxu0 0.0
        %4662 = vmatpush1.msra.mxu0 0.0
        %4663 = vmatprep.subr.mxu0 0.0
        %4664 = vmatpush1.msra.mxu0 0.0
        %4665 = vmatprep.subr.mxu0 0.0
        %4666 = vmatpush1.msra.mxu0 0.0
        %4667 = vmatprep.subr.mxu0 0.0
        %4668 = vmatpush1.msra.mxu0 0.0
        %4669 = vmatprep.subr.mxu0 0.0
        %4670 = vmatpush1.msra.mxu0 0.0
        %4671 = vmatprep.subr.mxu0 0.0
        %4672 = vmatpush1.msra.mxu0 0.0
        %4673 = vmatprep.subr.mxu0 0.0
        %4674 = vmatpush1.msra.mxu0 0.0
        %4675 = vmatprep.subr.mxu0 0.0
        %4676 = vmatpush1.msra.mxu0 0.0
        %4677 = vmatprep.subr.mxu0 0.0
        %4678 = vmatpush1.msra.mxu0 0.0
        %4679 = vmatprep.subr.mxu0 0.0
        %4680 = vmatpush1.msra.mxu0 0.0
        %4681 = vmatprep.subr.mxu0 0.0
        %4682 = vmatpush1.msra.mxu0 0.0
        %4683 = vmatprep.subr.mxu0 0.0
        %4684 = vmatpush1.msra.mxu0 0.0
        %4685 = vmatprep.subr.mxu0 0.0
        %4686 = vmatpush1.msra.mxu0 0.0
        %4687 = vmatprep.subr.mxu0 0.0
        %4688 = vmatpush1.msra.mxu0 0.0
        %4689 = vmatprep.subr.mxu0 0.0
        %4690 = vmatpush1.msra.mxu0 0.0
        %4691 = vmatprep.subr.mxu0 0.0
        %4692 = vmatpush1.msra.mxu0 0.0
        %4693 = vmatprep.subr.mxu0 0.0
        %4694 = vmatpush1.msra.mxu0 0.0
        %4695 = vmatprep.subr.mxu0 0.0
        %4696 = vmatpush1.msra.mxu0 0.0
        %4697 = vmatprep.mubr.f32.mxu0 0.0
        %4698 = vmatmul.mubr.f32.gmra.mrb[0].mxu0 %v4631
        %v4699 = vpop.f32.mrb[0].mxu0
        %v4700 = vadd.f32 %v4113, %v4699
        %v4701 = vpop.f32.mrb[0].mxu0
        %4702 = vdwg.mxu0
        %v4704 = vrot.slane %v4700, 7
        %v4706 = vadd.f32 %v4420, %v4704
        %v4707 = vxor.u32 %v4706, 2147483648
        %v4708 = vmul.f32 %v4707, 1.442695
        %v4709 = vpow.pop %v4708
        %v4710 = vadd.f32 %v4709, 1.0
        %v4711 = vrcp.pop %v4710
        %v4712 = vmul.f32 1.0, %v4711
        %4713 = vrot.lane.b32.xlu0 %v4704, 64
        %v4714 = vpop.permute.xlu0 %4713
        %v4716 = vmul.f32 %v4712, %v4714
        %4718 = vrot.lane.b32.xlu0 %v4716, 64
        %v4719 = vpop.permute.xlu0 %4718
        %v4721 = vadd.f32 %v4420, %v4719
        %v4722 = vtanh.pop %v4721
        %v4723 = vsub.f32 1.0, %v4712
        %4725 = vrot.lane.b32.xlu0 %v4722, 96
        %v4726 = vpop.permute.xlu0 %4725
        %v4728 = vmul.f32 %v4723, %v4726
        %v4729 = vrot.slane %v4627, 7
        %4730 = vrot.lane.b32.xlu0 %v4729, 32
        %v4731 = vpop.permute.xlu0 %4730
        %v4733 = vmul.f32 %v4712, %v4731
        %v4734 = vadd.f32 %v4728, %v4733
        %4736 = vrot.lane.b32.xlu0 %v4734, 96
        %v4737 = vpop.permute.xlu0 %4736
        %4739 = vst.msk [vmem:[#allocation2] sm:$0x2] %vm1904, %v4737
        %v4740 = vrot.slane %v4734, 1
        %4741 = vrot.lane.b32.xlu0 %v4740, 96
        %v4742 = vpop.permute.xlu0 %4741
        %v4743 = vsel %vm1084, %v4742, 0
        %4745 = vmatprep.subr.mxu0 0.0
        %4746 = vmatpush1.msra.mxu0 %v4082
        %4747 = vmatprep.subr.mxu0 0.0
        %4748 = vmatpush1.msra.mxu0 %v4083
        %4749 = vmatprep.subr.mxu0 0.0
        %4750 = vmatpush1.msra.mxu0 %v4084
        %4751 = vmatprep.subr.mxu0 0.0
        %4752 = vmatpush1.msra.mxu0 %v4085
        %4753 = vmatprep.subr.mxu0 0.0
        %4754 = vmatpush1.msra.mxu0 0.0
        %4755 = vmatprep.subr.mxu0 0.0
        %4756 = vmatpush1.msra.mxu0 0.0
        %4757 = vmatprep.subr.mxu0 0.0
        %4758 = vmatpush1.msra.mxu0 0.0
        %4759 = vmatprep.subr.mxu0 0.0
        %4760 = vmatpush1.msra.mxu0 0.0
        %4761 = vmatprep.subr.mxu0 0.0
        %4762 = vmatpush1.msra.mxu0 0.0
        %4763 = vmatprep.subr.mxu0 0.0
        %4764 = vmatpush1.msra.mxu0 0.0
        %4765 = vmatprep.subr.mxu0 0.0
        %4766 = vmatpush1.msra.mxu0 0.0
        %4767 = vmatprep.subr.mxu0 0.0
        %4768 = vmatpush1.msra.mxu0 0.0
        %4769 = vmatprep.subr.mxu0 0.0
        %4770 = vmatpush1.msra.mxu0 0.0
        %4771 = vmatprep.subr.mxu0 0.0
        %4772 = vmatpush1.msra.mxu0 0.0
        %4773 = vmatprep.subr.mxu0 0.0
        %4774 = vmatpush1.msra.mxu0 0.0
        %4775 = vmatprep.subr.mxu0 0.0
        %4776 = vmatpush1.msra.mxu0 0.0
        %4777 = vmatprep.subr.mxu0 0.0
        %4778 = vmatpush1.msra.mxu0 0.0
        %4779 = vmatprep.subr.mxu0 0.0
        %4780 = vmatpush1.msra.mxu0 0.0
        %4781 = vmatprep.subr.mxu0 0.0
        %4782 = vmatpush1.msra.mxu0 0.0
        %4783 = vmatprep.subr.mxu0 0.0
        %4784 = vmatpush1.msra.mxu0 0.0
        %4785 = vmatprep.subr.mxu0 0.0
        %4786 = vmatpush1.msra.mxu0 0.0
        %4787 = vmatprep.subr.mxu0 0.0
        %4788 = vmatpush1.msra.mxu0 0.0
        %4789 = vmatprep.subr.mxu0 0.0
        %4790 = vmatpush1.msra.mxu0 0.0
        %4791 = vmatprep.subr.mxu0 0.0
        %4792 = vmatpush1.msra.mxu0 0.0
        %4793 = vmatprep.subr.mxu0 0.0
        %4794 = vmatpush1.msra.mxu0 0.0
        %4795 = vmatprep.subr.mxu0 0.0
        %4796 = vmatpush1.msra.mxu0 0.0
        %4797 = vmatprep.subr.mxu0 0.0
        %4798 = vmatpush1.msra.mxu0 0.0
        %4799 = vmatprep.subr.mxu0 0.0
        %4800 = vmatpush1.msra.mxu0 0.0
        %4801 = vmatprep.subr.mxu0 0.0
        %4802 = vmatpush1.msra.mxu0 0.0
        %4803 = vmatprep.subr.mxu0 0.0
        %4804 = vmatpush1.msra.mxu0 0.0
        %4805 = vmatprep.subr.mxu0 0.0
        %4806 = vmatpush1.msra.mxu0 0.0
        %4807 = vmatprep.subr.mxu0 0.0
        %4808 = vmatpush1.msra.mxu0 0.0
        %4809 = vmatprep.mubr.f32.mxu0 0.0
        %4810 = vmatmul.mubr.f32.gmra.mrb[0].mxu0 %v4743
        %v4811 = vpop.f32.mrb[0].mxu0
        %v4812 = vadd.f32 %v4087, %v4811
        %v4813 = vpop.f32.mrb[0].mxu0
        %4814 = vdwg.mxu0
        %4815 = vst.msk [vmem:[#allocation3 + $0x1] sm:$0x1] %vm1619, %v4812
        %v4816 = vld [vmem:[#allocation2] sm:$0x3]
        %v4817 = vld [vmem:[#allocation3] sm:$0x3]
        %v4818 = vlaneseq
        %v4819 = vshrl.u32 %v4818, 7
        %v4820 = vsub.s32 2, %v4819
        %v4821 = vrot.slane %v4265, %v4820
        %v4822 = vmul.f32 %v4817, %v4821
        %v4823 = vsel %vm1989, %v4822, 0.0
        %4824 = vadd.xlane.f32.xlu0 %v4823
        %v4825 = vpop.xlane.xlu0 %4824
        %v4826 = vsub.f32 %v4825, %v1704
        %v4827 = vsel %vm1994, %v4826, -inf
        %v4828 = vrot.slane %v4827, 4
        %v4829 = vmax.f32 %v4827, %v4828
        %v4830 = vrot.slane %v4829, 2
        %v4831 = vmax.f32 %v4829, %v4830
        %v4832 = vrot.slane %v4831, 1
        %v4833 = vmax.f32 %v4831, %v4832
        %v4834 = vsub.f32 %v4826, %v4833
        %v4835 = vmul.f32 %v4834, 1.442695
        %v4836 = vpow.pop %v4835
        %v4837 = vsel %vm1994, %v4836, 0.0
        %v4838 = vrot.slane %v4837, 4
        %v4839 = vadd.f32 %v4837, %v4838
        %v4840 = vrot.slane %v4839, 2
        %v4841 = vadd.f32 %v4839, %v4840
        %v4842 = vrot.slane %v4841, 1
        %v4843 = vadd.f32 %v4841, %v4842
        %v4844 = vrcp.pop %v4843
        %v4845 = vmul.f32 %v4836, %v4844
        %4847 = vset.pattern.permute.xlu0 2
        %4848 = vperm.xlu0 %4847, %v4845
        %v4849 = vpop.permute.xlu0 %4848
        %v4851 = vmul.f32 %v4849, %v4816
        %v4852 = vsel %vm1989, %v4851, 0.0
        %v4853 = vrot.slane %v4852, 4
        %v4854 = vadd.f32 %v4852, %v4853
        %v4855 = vrot.slane %v4854, 2
        %v4856 = vadd.f32 %v4854, %v4855
        %v4857 = vrot.slane %v4856, 1
        %v4858 = vadd.f32 %v4856, %v4857
        %v4859 = vrot.slane %v4344, 2
        %v4862 = vsel %vm1084, %v4858, 0
        %4864 = vmatprep.subr.mxu0 0.0
        %4865 = vmatpush1.msra.mxu0 %v4089
        %4866 = vmatprep.subr.mxu0 0.0
        %4867 = vmatpush1.msra.mxu0 %v4090
        %4868 = vmatprep.subr.mxu0 0.0
        %4869 = vmatpush1.msra.mxu0 %v4091
        %4870 = vmatprep.subr.mxu0 0.0
        %4871 = vmatpush1.msra.mxu0 %v4092
        %4872 = vmatprep.subr.mxu0 0.0
        %4873 = vmatpush1.msra.mxu0 0.0
        %4874 = vmatprep.subr.mxu0 0.0
        %4875 = vmatpush1.msra.mxu0 0.0
        %4876 = vmatprep.subr.mxu0 0.0
        %4877 = vmatpush1.msra.mxu0 0.0
        %4878 = vmatprep.subr.mxu0 0.0
        %4879 = vmatpush1.msra.mxu0 0.0
        %4880 = vmatprep.subr.mxu0 0.0
        %4881 = vmatpush1.msra.mxu0 0.0
        %4882 = vmatprep.subr.mxu0 0.0
        %4883 = vmatpush1.msra.mxu0 0.0
        %4884 = vmatprep.subr.mxu0 0.0
        %4885 = vmatpush1.msra.mxu0 0.0
        %4886 = vmatprep.subr.mxu0 0.0
        %4887 = vmatpush1.msra.mxu0 0.0
        %4888 = vmatprep.subr.mxu0 0.0
        %4889 = vmatpush1.msra.mxu0 0.0
        %4890 = vmatprep.subr.mxu0 0.0
        %4891 = vmatpush1.msra.mxu0 0.0
        %4892 = vmatprep.subr.mxu0 0.0
        %4893 = vmatpush1.msra.mxu0 0.0
        %4894 = vmatprep.subr.mxu0 0.0
        %4895 = vmatpush1.msra.mxu0 0.0
        %4896 = vmatprep.subr.mxu0 0.0
        %4897 = vmatpush1.msra.mxu0 0.0
        %4898 = vmatprep.subr.mxu0 0.0
        %4899 = vmatpush1.msra.mxu0 0.0
        %4900 = vmatprep.subr.mxu0 0.0
        %4901 = vmatpush1.msra.mxu0 0.0
        %4902 = vmatprep.subr.mxu0 0.0
        %4903 = vmatpush1.msra.mxu0 0.0
        %4904 = vmatprep.subr.mxu0 0.0
        %4905 = vmatpush1.msra.mxu0 0.0
        %4906 = vmatprep.subr.mxu0 0.0
        %4907 = vmatpush1.msra.mxu0 0.0
        %4908 = vmatprep.subr.mxu0 0.0
        %4909 = vmatpush1.msra.mxu0 0.0
        %4910 = vmatprep.subr.mxu0 0.0
        %4911 = vmatpush1.msra.mxu0 0.0
        %4912 = vmatprep.subr.mxu0 0.0
        %4913 = vmatpush1.msra.mxu0 0.0
        %4914 = vmatprep.subr.mxu0 0.0
        %4915 = vmatpush1.msra.mxu0 0.0
        %4916 = vmatprep.subr.mxu0 0.0
        %4917 = vmatpush1.msra.mxu0 0.0
        %4918 = vmatprep.subr.mxu0 0.0
        %4919 = vmatpush1.msra.mxu0 0.0
        %4920 = vmatprep.subr.mxu0 0.0
        %4921 = vmatpush1.msra.mxu0 0.0
        %4922 = vmatprep.subr.mxu0 0.0
        %4923 = vmatpush1.msra.mxu0 0.0
        %4924 = vmatprep.subr.mxu0 0.0
        %4925 = vmatpush1.msra.mxu0 0.0
        %4926 = vmatprep.subr.mxu0 0.0
        %4927 = vmatpush1.msra.mxu0 0.0
        %4928 = vmatprep.mubr.f32.mxu0 0.0
        %4929 = vmatmul.mubr.f32.gmra.mrb[0].mxu0 %v4862
        %v4930 = vpop.f32.mrb[0].mxu0
        %v4931 = vadd.f32 %v4859, %v4930
        %v4932 = vpop.f32.mrb[0].mxu0
        %4933 = vdwg.mxu0
        %v4935 = vsel %vm1084, %v4931, 0
        %4937 = vmatprep.subr.mxu0 0.0
        %4938 = vmatpush1.msra.mxu0 %v4106
        %4939 = vmatprep.subr.mxu0 0.0
        %4940 = vmatpush1.msra.mxu0 %v4107
        %4941 = vmatprep.subr.mxu0 0.0
        %4942 = vmatpush1.msra.mxu0 %v4108
        %4943 = vmatprep.subr.mxu0 0.0
        %4944 = vmatpush1.msra.mxu0 %v4109
        %4945 = vmatprep.subr.mxu0 0.0
        %4946 = vmatpush1.msra.mxu0 0.0
        %4947 = vmatprep.subr.mxu0 0.0
        %4948 = vmatpush1.msra.mxu0 0.0
        %4949 = vmatprep.subr.mxu0 0.0
        %4950 = vmatpush1.msra.mxu0 0.0
        %4951 = vmatprep.subr.mxu0 0.0
        %4952 = vmatpush1.msra.mxu0 0.0
        %4953 = vmatprep.subr.mxu0 0.0
        %4954 = vmatpush1.msra.mxu0 0.0
        %4955 = vmatprep.subr.mxu0 0.0
        %4956 = vmatpush1.msra.mxu0 0.0
        %4957 = vmatprep.subr.mxu0 0.0
        %4958 = vmatpush1.msra.mxu0 0.0
        %4959 = vmatprep.subr.mxu0 0.0
        %4960 = vmatpush1.msra.mxu0 0.0
        %4961 = vmatprep.subr.mxu0 0.0
        %4962 = vmatpush1.msra.mxu0 0.0
        %4963 = vmatprep.subr.mxu0 0.0
        %4964 = vmatpush1.msra.mxu0 0.0
        %4965 = vmatprep.subr.mxu0 0.0
        %4966 = vmatpush1.msra.mxu0 0.0
        %4967 = vmatprep.subr.mxu0 0.0
        %4968 = vmatpush1.msra.mxu0 0.0
        %4969 = vmatprep.subr.mxu0 0.0
        %4970 = vmatpush1.msra.mxu0 0.0
        %4971 = vmatprep.subr.mxu0 0.0
        %4972 = vmatpush1.msra.mxu0 0.0
        %4973 = vmatprep.subr.mxu0 0.0
        %4974 = vmatpush1.msra.mxu0 0.0
        %4975 = vmatprep.subr.mxu0 0.0
        %4976 = vmatpush1.msra.mxu0 0.0
        %4977 = vmatprep.subr.mxu0 0.0
        %4978 = vmatpush1.msra.mxu0 0.0
        %4979 = vmatprep.subr.mxu0 0.0
        %4980 = vmatpush1.msra.mxu0 0.0
        %4981 = vmatprep.subr.mxu0 0.0
        %4982 = vmatpush1.msra.mxu0 0.0
        %4983 = vmatprep.subr.mxu0 0.0
        %4984 = vmatpush1.msra.mxu0 0.0
        %4985 = vmatprep.subr.mxu0 0.0
        %4986 = vmatpush1.msra.mxu0 0.0
        %4987 = vmatprep.subr.mxu0 0.0
        %4988 = vmatpush1.msra.mxu0 0.0
        %4989 = vmatprep.subr.mxu0 0.0
        %4990 = vmatpush1.msra.mxu0 0.0
        %4991 = vmatprep.subr.mxu0 0.0
        %4992 = vmatpush1.msra.mxu0 0.0
        %4993 = vmatprep.subr.mxu0 0.0
        %4994 = vmatpush1.msra.mxu0 0.0
        %4995 = vmatprep.subr.mxu0 0.0
        %4996 = vmatpush1.msra.mxu0 0.0
        %4997 = vmatprep.subr.mxu0 0.0
        %4998 = vmatpush1.msra.mxu0 0.0
        %4999 = vmatprep.subr.mxu0 0.0
        %5000 = vmatpush1.msra.mxu0 0.0
        %5001 = vmatprep.mubr.f32.mxu0 0.0
        %5002 = vmatmul.mubr.f32.gmra.mrb[0].mxu0 %v4935
        %v5003 = vpop.f32.mrb[0].mxu0
        %v5004 = vadd.f32 %v4113, %v5003
        %v5005 = vpop.f32.mrb[0].mxu0
        %5006 = vdwg.mxu0
        %v5008 = vrot.slane %v5004, 6
        %v5010 = vadd.f32 %v4420, %v5008
        %v5011 = vxor.u32 %v5010, 2147483648
        %v5012 = vmul.f32 %v5011, 1.442695
        %v5013 = vpow.pop %v5012
        %v5014 = vadd.f32 %v5013, 1.0
        %v5015 = vrcp.pop %v5014
        %v5016 = vmul.f32 1.0, %v5015
        %5017 = vrot.lane.b32.xlu0 %v5008, 64
        %v5018 = vpop.permute.xlu0 %5017
        %v5020 = vmul.f32 %v5016, %v5018
        %5022 = vrot.lane.b32.xlu0 %v5020, 64
        %v5023 = vpop.permute.xlu0 %5022
        %v5025 = vadd.f32 %v4420, %v5023
        %v5026 = vtanh.pop %v5025
        %v5027 = vsub.f32 1.0, %v5016
        %5029 = vrot.lane.b32.xlu0 %v5026, 96
        %v5030 = vpop.permute.xlu0 %5029
        %v5032 = vmul.f32 %v5027, %v5030
        %v5033 = vrot.slane %v4931, 6
        %5034 = vrot.lane.b32.xlu0 %v5033, 32
        %v5035 = vpop.permute.xlu0 %5034
        %v5037 = vmul.f32 %v5016, %v5035
        %v5038 = vadd.f32 %v5032, %v5037
        %5040 = vrot.lane.b32.xlu0 %v5038, 96
        %v5041 = vpop.permute.xlu0 %5040
        %5043 = vst.msk [vmem:[#allocation2] sm:$0x4] %vm2211, %v5041
        %v5044 = vrot.slane %v5038, 2
        %5045 = vrot.lane.b32.xlu0 %v5044, 96
        %v5046 = vpop.permute.xlu0 %5045
        %v5047 = vsel %vm1084, %v5046, 0
        %5049 = vmatprep.subr.mxu0 0.0
        %5050 = vmatpush1.msra.mxu0 %v4082
        %5051 = vmatprep.subr.mxu0 0.0
        %5052 = vmatpush1.msra.mxu0 %v4083
        %5053 = vmatprep.subr.mxu0 0.0
        %5054 = vmatpush1.msra.mxu0 %v4084
        %5055 = vmatprep.subr.mxu0 0.0
        %5056 = vmatpush1.msra.mxu0 %v4085
        %5057 = vmatprep.subr.mxu0 0.0
        %5058 = vmatpush1.msra.mxu0 0.0
        %5059 = vmatprep.subr.mxu0 0.0
        %5060 = vmatpush1.msra.mxu0 0.0
        %5061 = vmatprep.subr.mxu0 0.0
        %5062 = vmatpush1.msra.mxu0 0.0
        %5063 = vmatprep.subr.mxu0 0.0
        %5064 = vmatpush1.msra.mxu0 0.0
        %5065 = vmatprep.subr.mxu0 0.0
        %5066 = vmatpush1.msra.mxu0 0.0
        %5067 = vmatprep.subr.mxu0 0.0
        %5068 = vmatpush1.msra.mxu0 0.0
        %5069 = vmatprep.subr.mxu0 0.0
        %5070 = vmatpush1.msra.mxu0 0.0
        %5071 = vmatprep.subr.mxu0 0.0
        %5072 = vmatpush1.msra.mxu0 0.0
        %5073 = vmatprep.subr.mxu0 0.0
        %5074 = vmatpush1.msra.mxu0 0.0
        %5075 = vmatprep.subr.mxu0 0.0
        %5076 = vmatpush1.msra.mxu0 0.0
        %5077 = vmatprep.subr.mxu0 0.0
        %5078 = vmatpush1.msra.mxu0 0.0
        %5079 = vmatprep.subr.mxu0 0.0
        %5080 = vmatpush1.msra.mxu0 0.0
        %5081 = vmatprep.subr.mxu0 0.0
        %5082 = vmatpush1.msra.mxu0 0.0
        %5083 = vmatprep.subr.mxu0 0.0
        %5084 = vmatpush1.msra.mxu0 0.0
        %5085 = vmatprep.subr.mxu0 0.0
        %5086 = vmatpush1.msra.mxu0 0.0
        %5087 = vmatprep.subr.mxu0 0.0
        %5088 = vmatpush1.msra.mxu0 0.0
        %5089 = vmatprep.subr.mxu0 0.0
        %5090 = vmatpush1.msra.mxu0 0.0
        %5091 = vmatprep.subr.mxu0 0.0
        %5092 = vmatpush1.msra.mxu0 0.0
        %5093 = vmatprep.subr.mxu0 0.0
        %5094 = vmatpush1.msra.mxu0 0.0
        %5095 = vmatprep.subr.mxu0 0.0
        %5096 = vmatpush1.msra.mxu0 0.0
        %5097 = vmatprep.subr.mxu0 0.0
        %5098 = vmatpush1.msra.mxu0 0.0
        %5099 = vmatprep.subr.mxu0 0.0
        %5100 = vmatpush1.msra.mxu0 0.0
        %5101 = vmatprep.subr.mxu0 0.0
        %5102 = vmatpush1.msra.mxu0 0.0
        %5103 = vmatprep.subr.mxu0 0.0
        %5104 = vmatpush1.msra.mxu0 0.0
        %5105 = vmatprep.subr.mxu0 0.0
        %5106 = vmatpush1.msra.mxu0 0.0
        %5107 = vmatprep.subr.mxu0 0.0
        %5108 = vmatpush1.msra.mxu0 0.0
        %5109 = vmatprep.subr.mxu0 0.0
        %5110 = vmatpush1.msra.mxu0 0.0
        %5111 = vmatprep.subr.mxu0 0.0
        %5112 = vmatpush1.msra.mxu0 0.0
        %5113 = vmatprep.mubr.f32.mxu0 0.0
        %5114 = vmatmul.mubr.f32.gmra.mrb[0].mxu0 %v5047
        %v5115 = vpop.f32.mrb[0].mxu0
        %v5116 = vadd.f32 %v4087, %v5115
        %v5117 = vpop.f32.mrb[0].mxu0
        %5118 = vdwg.mxu0
        %5119 = vst.msk [vmem:[#allocation3 + $0x2] sm:$0x1] %vm1619, %v5116
        %v5120 = vld [vmem:[#allocation2] sm:$0x7]
        %v5121 = vld [vmem:[#allocation3] sm:$0x7]
        %v5122 = vlaneseq
        %v5123 = vshrl.u32 %v5122, 7
        %v5124 = vsub.s32 3, %v5123
        %v5125 = vrot.slane %v4265, %v5124
        %v5126 = vmul.f32 %v5121, %v5125
        %v5127 = vsel %vm2296, %v5126, 0.0
        %5128 = vadd.xlane.f32.xlu0 %v5127
        %v5129 = vpop.xlane.xlu0 %5128
        %v5130 = vsub.f32 %v5129, %v1704
        %v5131 = vsel %vm2301, %v5130, -inf
        %v5132 = vrot.slane %v5131, 4
        %v5133 = vmax.f32 %v5131, %v5132
        %v5134 = vrot.slane %v5133, 2
        %v5135 = vmax.f32 %v5133, %v5134
        %v5136 = vrot.slane %v5135, 1
        %v5137 = vmax.f32 %v5135, %v5136
        %v5138 = vsub.f32 %v5130, %v5137
        %v5139 = vmul.f32 %v5138, 1.442695
        %v5140 = vpow.pop %v5139
        %v5141 = vsel %vm2301, %v5140, 0.0
        %v5142 = vrot.slane %v5141, 4
        %v5143 = vadd.f32 %v5141, %v5142
        %v5144 = vrot.slane %v5143, 2
        %v5145 = vadd.f32 %v5143, %v5144
        %v5146 = vrot.slane %v5145, 1
        %v5147 = vadd.f32 %v5145, %v5146
        %v5148 = vrcp.pop %v5147
        %v5149 = vmul.f32 %v5140, %v5148
        %5151 = vset.pattern.permute.xlu0 3
        %5152 = vperm.xlu0 %5151, %v5149
        %v5153 = vpop.permute.xlu0 %5152
        %v5155 = vmul.f32 %v5153, %v5120
        %v5156 = vsel %vm2296, %v5155, 0.0
        %v5157 = vrot.slane %v5156, 4
        %v5158 = vadd.f32 %v5156, %v5157
        %v5159 = vrot.slane %v5158, 2
        %v5160 = vadd.f32 %v5158, %v5159
        %v5161 = vrot.slane %v5160, 1
        %v5162 = vadd.f32 %v5160, %v5161
        %v5163 = vrot.slane %v4344, 3
        %v5166 = vsel %vm1084, %v5162, 0
        %5168 = vmatprep.subr.mxu0 0.0
        %5169 = vmatpush1.msra.mxu0 %v4089
        %5170 = vmatprep.subr.mxu0 0.0
        %5171 = vmatpush1.msra.mxu0 %v4090
        %5172 = vmatprep.subr.mxu0 0.0
        %5173 = vmatpush1.msra.mxu0 %v4091
        %5174 = vmatprep.subr.mxu0 0.0
        %5175 = vmatpush1.msra.mxu0 %v4092
        %5176 = vmatprep.subr.mxu0 0.0
        %5177 = vmatpush1.msra.mxu0 0.0
        %5178 = vmatprep.subr.mxu0 0.0
        %5179 = vmatpush1.msra.mxu0 0.0
        %5180 = vmatprep.subr.mxu0 0.0
        %5181 = vmatpush1.msra.mxu0 0.0
        %5182 = vmatprep.subr.mxu0 0.0
        %5183 = vmatpush1.msra.mxu0 0.0
        %5184 = vmatprep.subr.mxu0 0.0
        %5185 = vmatpush1.msra.mxu0 0.0
        %5186 = vmatprep.subr.mxu0 0.0
        %5187 = vmatpush1.msra.mxu0 0.0
        %5188 = vmatprep.subr.mxu0 0.0
        %5189 = vmatpush1.msra.mxu0 0.0
        %5190 = vmatprep.subr.mxu0 0.0
        %5191 = vmatpush1.msra.mxu0 0.0
        %5192 = vmatprep.subr.mxu0 0.0
        %5193 = vmatpush1.msra.mxu0 0.0
        %5194 = vmatprep.subr.mxu0 0.0
        %5195 = vmatpush1.msra.mxu0 0.0
        %5196 = vmatprep.subr.mxu0 0.0
        %5197 = vmatpush1.msra.mxu0 0.0
        %5198 = vmatprep.subr.mxu0 0.0
        %5199 = vmatpush1.msra.mxu0 0.0
        %5200 = vmatprep.subr.mxu0 0.0
        %5201 = vmatpush1.msra.mxu0 0.0
        %5202 = vmatprep.subr.mxu0 0.0
        %5203 = vmatpush1.msra.mxu0 0.0
        %5204 = vmatprep.subr.mxu0 0.0
        %5205 = vmatpush1.msra.mxu0 0.0
        %5206 = vmatprep.subr.mxu0 0.0
        %5207 = vmatpush1.msra.mxu0 0.0
        %5208 = vmatprep.subr.mxu0 0.0
        %5209 = vmatpush1.msra.mxu0 0.0
        %5210 = vmatprep.subr.mxu0 0.0
        %5211 = vmatpush1.msra.mxu0 0.0
        %5212 = vmatprep.subr.mxu0 0.0
        %5213 = vmatpush1.msra.mxu0 0.0
        %5214 = vmatprep.subr.mxu0 0.0
        %5215 = vmatpush1.msra.mxu0 0.0
        %5216 = vmatprep.subr.mxu0 0.0
        %5217 = vmatpush1.msra.mxu0 0.0
        %5218 = vmatprep.subr.mxu0 0.0
        %5219 = vmatpush1.msra.mxu0 0.0
        %5220 = vmatprep.subr.mxu0 0.0
        %5221 = vmatpush1.msra.mxu0 0.0
        %5222 = vmatprep.subr.mxu0 0.0
        %5223 = vmatpush1.msra.mxu0 0.0
        %5224 = vmatprep.subr.mxu0 0.0
        %5225 = vmatpush1.msra.mxu0 0.0
        %5226 = vmatprep.subr.mxu0 0.0
        %5227 = vmatpush1.msra.mxu0 0.0
        %5228 = vmatprep.subr.mxu0 0.0
        %5229 = vmatpush1.msra.mxu0 0.0
        %5230 = vmatprep.subr.mxu0 0.0
        %5231 = vmatpush1.msra.mxu0 0.0
        %5232 = vmatprep.mubr.f32.mxu0 0.0
        %5233 = vmatmul.mubr.f32.gmra.mrb[0].mxu0 %v5166
        %v5234 = vpop.f32.mrb[0].mxu0
        %v5235 = vadd.f32 %v5163, %v5234
        %v5236 = vpop.f32.mrb[0].mxu0
        %5237 = vdwg.mxu0
        %v5239 = vsel %vm1084, %v5235, 0
        %5241 = vmatprep.subr.mxu0 0.0
        %5242 = vmatpush1.msra.mxu0 %v4106
        %5243 = vmatprep.subr.mxu0 0.0
        %5244 = vmatpush1.msra.mxu0 %v4107
        %5245 = vmatprep.subr.mxu0 0.0
        %5246 = vmatpush1.msra.mxu0 %v4108
        %5247 = vmatprep.subr.mxu0 0.0
        %5248 = vmatpush1.msra.mxu0 %v4109
        %5249 = vmatprep.subr.mxu0 0.0
        %5250 = vmatpush1.msra.mxu0 0.0
        %5251 = vmatprep.subr.mxu0 0.0
        %5252 = vmatpush1.msra.mxu0 0.0
        %5253 = vmatprep.subr.mxu0 0.0
        %5254 = vmatpush1.msra.mxu0 0.0
        %5255 = vmatprep.subr.mxu0 0.0
        %5256 = vmatpush1.msra.mxu0 0.0
        %5257 = vmatprep.subr.mxu0 0.0
        %5258 = vmatpush1.msra.mxu0 0.0
        %5259 = vmatprep.subr.mxu0 0.0
        %5260 = vmatpush1.msra.mxu0 0.0
        %5261 = vmatprep.subr.mxu0 0.0
        %5262 = vmatpush1.msra.mxu0 0.0
        %5263 = vmatprep.subr.mxu0 0.0
        %5264 = vmatpush1.msra.mxu0 0.0
        %5265 = vmatprep.subr.mxu0 0.0
        %5266 = vmatpush1.msra.mxu0 0.0
        %5267 = vmatprep.subr.mxu0 0.0
        %5268 = vmatpush1.msra.mxu0 0.0
        %5269 = vmatprep.subr.mxu0 0.0
        %5270 = vmatpush1.msra.mxu0 0.0
        %5271 = vmatprep.subr.mxu0 0.0
        %5272 = vmatpush1.msra.mxu0 0.0
        %5273 = vmatprep.subr.mxu0 0.0
        %5274 = vmatpush1.msra.mxu0 0.0
        %5275 = vmatprep.subr.mxu0 0.0
        %5276 = vmatpush1.msra.mxu0 0.0
        %5277 = vmatprep.subr.mxu0 0.0
        %5278 = vmatpush1.msra.mxu0 0.0
        %5279 = vmatprep.subr.mxu0 0.0
        %5280 = vmatpush1.msra.mxu0 0.0
        %5281 = vmatprep.subr.mxu0 0.0
        %5282 = vmatpush1.msra.mxu0 0.0
        %5283 = vmatprep.subr.mxu0 0.0
        %5284 = vmatpush1.msra.mxu0 0.0
        %5285 = vmatprep.subr.mxu0 0.0
        %5286 = vmatpush1.msra.mxu0 0.0
        %5287 = vmatprep.subr.mxu0 0.0
        %5288 = vmatpush1.msra.mxu0 0.0
        %5289 = vmatprep.subr.mxu0 0.0
        %5290 = vmatpush1.msra.mxu0 0.0
        %5291 = vmatprep.subr.mxu0 0.0
        %5292 = vmatpush1.msra.mxu0 0.0
        %5293 = vmatprep.subr.mxu0 0.0
        %5294 = vmatpush1.msra.mxu0 0.0
        %5295 = vmatprep.subr.mxu0 0.0
        %5296 = vmatpush1.msra.mxu0 0.0
        %5297 = vmatprep.subr.mxu0 0.0
        %5298 = vmatpush1.msra.mxu0 0.0
        %5299 = vmatprep.subr.mxu0 0.0
        %5300 = vmatpush1.msra.mxu0 0.0
        %5301 = vmatprep.subr.mxu0 0.0
        %5302 = vmatpush1.msra.mxu0 0.0
        %5303 = vmatprep.subr.mxu0 0.0
        %5304 = vmatpush1.msra.mxu0 0.0
        %5305 = vmatprep.mubr.f32.mxu0 0.0
        %5306 = vmatmul.mubr.f32.gmra.mrb[0].mxu0 %v5239
        %v5307 = vpop.f32.mrb[0].mxu0
        %v5308 = vadd.f32 %v4113, %v5307
        %v5309 = vpop.f32.mrb[0].mxu0
        %5310 = vdwg.mxu0
        %v5312 = vrot.slane %v5308, 5
        %v5314 = vadd.f32 %v4420, %v5312
        %v5315 = vxor.u32 %v5314, 2147483648
        %v5316 = vmul.f32 %v5315, 1.442695
        %v5317 = vpow.pop %v5316
        %v5318 = vadd.f32 %v5317, 1.0
        %v5319 = vrcp.pop %v5318
        %v5320 = vmul.f32 1.0, %v5319
        %5321 = vrot.lane.b32.xlu0 %v5312, 64
        %v5322 = vpop.permute.xlu0 %5321
        %v5324 = vmul.f32 %v5320, %v5322
        %5326 = vrot.lane.b32.xlu0 %v5324, 64
        %v5327 = vpop.permute.xlu0 %5326
        %v5329 = vadd.f32 %v4420, %v5327
        %v5330 = vtanh.pop %v5329
        %v5331 = vsub.f32 1.0, %v5320
        %5333 = vrot.lane.b32.xlu0 %v5330, 96
        %v5334 = vpop.permute.xlu0 %5333
        %v5336 = vmul.f32 %v5331, %v5334
        %v5337 = vrot.slane %v5235, 5
        %5338 = vrot.lane.b32.xlu0 %v5337, 32
        %v5339 = vpop.permute.xlu0 %5338
        %v5341 = vmul.f32 %v5320, %v5339
        %v5342 = vadd.f32 %v5336, %v5341
        %5344 = vrot.lane.b32.xlu0 %v5342, 96
        %v5345 = vpop.permute.xlu0 %5344
        %5347 = vst.msk [vmem:[#allocation2] sm:$0x8] %vm2518, %v5345
        %v5348 = vrot.slane %v5342, 3
        %5349 = vrot.lane.b32.xlu0 %v5348, 96
        %v5350 = vpop.permute.xlu0 %5349
        %v5351 = vsel %vm1084, %v5350, 0
        %5353 = vmatprep.subr.mxu0 0.0
        %5354 = vmatpush1.msra.mxu0 %v4082
        %5355 = vmatprep.subr.mxu0 0.0
        %5356 = vmatpush1.msra.mxu0 %v4083
        %5357 = vmatprep.subr.mxu0 0.0
        %5358 = vmatpush1.msra.mxu0 %v4084
        %5359 = vmatprep.subr.mxu0 0.0
        %5360 = vmatpush1.msra.mxu0 %v4085
        %5361 = vmatprep.subr.mxu0 0.0
        %5362 = vmatpush1.msra.mxu0 0.0
        %5363 = vmatprep.subr.mxu0 0.0
        %5364 = vmatpush1.msra.mxu0 0.0
        %5365 = vmatprep.subr.mxu0 0.0
        %5366 = vmatpush1.msra.mxu0 0.0
        %5367 = vmatprep.subr.mxu0 0.0
        %5368 = vmatpush1.msra.mxu0 0.0
        %5369 = vmatprep.subr.mxu0 0.0
        %5370 = vmatpush1.msra.mxu0 0.0
        %5371 = vmatprep.subr.mxu0 0.0
        %5372 = vmatpush1.msra.mxu0 0.0
        %5373 = vmatprep.subr.mxu0 0.0
        %5374 = vmatpush1.msra.mxu0 0.0
        %5375 = vmatprep.subr.mxu0 0.0
        %5376 = vmatpush1.msra.mxu0 0.0
        %5377 = vmatprep.subr.mxu0 0.0
        %5378 = vmatpush1.msra.mxu0 0.0
        %5379 = vmatprep.subr.mxu0 0.0
        %5380 = vmatpush1.msra.mxu0 0.0
        %5381 = vmatprep.subr.mxu0 0.0
        %5382 = vmatpush1.msra.mxu0 0.0
        %5383 = vmatprep.subr.mxu0 0.0
        %5384 = vmatpush1.msra.mxu0 0.0
        %5385 = vmatprep.subr.mxu0 0.0
        %5386 = vmatpush1.msra.mxu0 0.0
        %5387 = vmatprep.subr.mxu0 0.0
        %5388 = vmatpush1.msra.mxu0 0.0
        %5389 = vmatprep.subr.mxu0 0.0
        %5390 = vmatpush1.msra.mxu0 0.0
        %5391 = vmatprep.subr.mxu0 0.0
        %5392 = vmatpush1.msra.mxu0 0.0
        %5393 = vmatprep.subr.mxu0 0.0
        %5394 = vmatpush1.msra.mxu0 0.0
        %5395 = vmatprep.subr.mxu0 0.0
        %5396 = vmatpush1.msra.mxu0 0.0
        %5397 = vmatprep.subr.mxu0 0.0
        %5398 = vmatpush1.msra.mxu0 0.0
        %5399 = vmatprep.subr.mxu0 0.0
        %5400 = vmatpush1.msra.mxu0 0.0
        %5401 = vmatprep.subr.mxu0 0.0
        %5402 = vmatpush1.msra.mxu0 0.0
        %5403 = vmatprep.subr.mxu0 0.0
        %5404 = vmatpush1.msra.mxu0 0.0
        %5405 = vmatprep.subr.mxu0 0.0
        %5406 = vmatpush1.msra.mxu0 0.0
        %5407 = vmatprep.subr.mxu0 0.0
        %5408 = vmatpush1.msra.mxu0 0.0
        %5409 = vmatprep.subr.mxu0 0.0
        %5410 = vmatpush1.msra.mxu0 0.0
        %5411 = vmatprep.subr.mxu0 0.0
        %5412 = vmatpush1.msra.mxu0 0.0
        %5413 = vmatprep.subr.mxu0 0.0
        %5414 = vmatpush1.msra.mxu0 0.0
        %5415 = vmatprep.subr.mxu0 0.0
        %5416 = vmatpush1.msra.mxu0 0.0
        %5417 = vmatprep.mubr.f32.mxu0 0.0
        %5418 = vmatmul.mubr.f32.gmra.mrb[0].mxu0 %v5351
        %v5419 = vpop.f32.mrb[0].mxu0
        %v5420 = vadd.f32 %v4087, %v5419
        %v5421 = vpop.f32.mrb[0].mxu0
        %5422 = vdwg.mxu0
        %5423 = vst.msk [vmem:[#allocation3 + $0x3] sm:$0x1] %vm1619, %v5420
        %v5424 = vld [vmem:[#allocation2] sm:$0xf]
        %v5425 = vld [vmem:[#allocation3] sm:$0xf]
        %v5426 = vlaneseq
        %v5427 = vshrl.u32 %v5426, 7
        %v5428 = vsub.s32 4, %v5427
        %v5429 = vrot.slane %v4265, %v5428
        %v5430 = vmul.f32 %v5425, %v5429
        %v5431 = vsel %vm2603, %v5430, 0.0
        %5432 = vadd.xlane.f32.xlu0 %v5431
        %v5433 = vpop.xlane.xlu0 %5432
        %v5434 = vsub.f32 %v5433, %v1704
        %v5435 = vsel %vm2608, %v5434, -inf
        %v5436 = vrot.slane %v5435, 4
        %v5437 = vmax.f32 %v5435, %v5436
        %v5438 = vrot.slane %v5437, 2
        %v5439 = vmax.f32 %v5437, %v5438
        %v5440 = vrot.slane %v5439, 1
        %v5441 = vmax.f32 %v5439, %v5440
        %v5442 = vsub.f32 %v5434, %v5441
        %v5443 = vmul.f32 %v5442, 1.442695
        %v5444 = vpow.pop %v5443
        %v5445 = vsel %vm2608, %v5444, 0.0
        %v5446 = vrot.slane %v5445, 4
        %v5447 = vadd.f32 %v5445, %v5446
        %v5448 = vrot.slane %v5447, 2
        %v5449 = vadd.f32 %v5447, %v5448
        %v5450 = vrot.slane %v5449, 1
        %v5451 = vadd.f32 %v5449, %v5450
        %v5452 = vrcp.pop %v5451
        %v5453 = vmul.f32 %v5444, %v5452
        %5455 = vset.pattern.permute.xlu0 4
        %5456 = vperm.xlu0 %5455, %v5453
        %v5457 = vpop.permute.xlu0 %5456
        %v5459 = vmul.f32 %v5457, %v5424
        %v5460 = vsel %vm2603, %v5459, 0.0
        %v5461 = vrot.slane %v5460, 4
        %v5462 = vadd.f32 %v5460, %v5461
        %v5463 = vrot.slane %v5462, 2
        %v5464 = vadd.f32 %v5462, %v5463
        %v5465 = vrot.slane %v5464, 1
        %v5466 = vadd.f32 %v5464, %v5465
        %v5467 = vrot.slane %v4344, 4
        %v5470 = vsel %vm1084, %v5466, 0
        %5472 = vmatprep.subr.mxu0 0.0
        %5473 = vmatpush1.msra.mxu0 %v4089
        %5474 = vmatprep.subr.mxu0 0.0
        %5475 = vmatpush1.msra.mxu0 %v4090
        %5476 = vmatprep.subr.mxu0 0.0
        %5477 = vmatpush1.msra.mxu0 %v4091
        %5478 = vmatprep.subr.mxu0 0.0
        %5479 = vmatpush1.msra.mxu0 %v4092
        %5480 = vmatprep.subr.mxu0 0.0
        %5481 = vmatpush1.msra.mxu0 0.0
        %5482 = vmatprep.subr.mxu0 0.0
        %5483 = vmatpush1.msra.mxu0 0.0
        %5484 = vmatprep.subr.mxu0 0.0
        %5485 = vmatpush1.msra.mxu0 0.0
        %5486 = vmatprep.subr.mxu0 0.0
        %5487 = vmatpush1.msra.mxu0 0.0
        %5488 = vmatprep.subr.mxu0 0.0
        %5489 = vmatpush1.msra.mxu0 0.0
        %5490 = vmatprep.subr.mxu0 0.0
        %5491 = vmatpush1.msra.mxu0 0.0
        %5492 = vmatprep.subr.mxu0 0.0
        %5493 = vmatpush1.msra.mxu0 0.0
        %5494 = vmatprep.subr.mxu0 0.0
        %5495 = vmatpush1.msra.mxu0 0.0
        %5496 = vmatprep.subr.mxu0 0.0
        %5497 = vmatpush1.msra.mxu0 0.0
        %5498 = vmatprep.subr.mxu0 0.0
        %5499 = vmatpush1.msra.mxu0 0.0
        %5500 = vmatprep.subr.mxu0 0.0
        %5501 = vmatpush1.msra.mxu0 0.0
        %5502 = vmatprep.subr.mxu0 0.0
        %5503 = vmatpush1.msra.mxu0 0.0
        %5504 = vmatprep.subr.mxu0 0.0
        %5505 = vmatpush1.msra.mxu0 0.0
        %5506 = vmatprep.subr.mxu0 0.0
        %5507 = vmatpush1.msra.mxu0 0.0
        %5508 = vmatprep.subr.mxu0 0.0
        %5509 = vmatpush1.msra.mxu0 0.0
        %5510 = vmatprep.subr.mxu0 0.0
        %5511 = vmatpush1.msra.mxu0 0.0
        %5512 = vmatprep.subr.mxu0 0.0
        %5513 = vmatpush1.msra.mxu0 0.0
        %5514 = vmatprep.subr.mxu0 0.0
        %5515 = vmatpush1.msra.mxu0 0.0
        %5516 = vmatprep.subr.mxu0 0.0
        %5517 = vmatpush1.msra.mxu0 0.0
        %5518 = vmatprep.subr.mxu0 0.0
        %5519 = vmatpush1.msra.mxu0 0.0
        %5520 = vmatprep.subr.mxu0 0.0
        %5521 = vmatpush1.msra.mxu0 0.0
        %5522 = vmatprep.subr.mxu0 0.0
        %5523 = vmatpush1.msra.mxu0 0.0
        %5524 = vmatprep.subr.mxu0 0.0
        %5525 = vmatpush1.msra.mxu0 0.0
        %5526 = vmatprep.subr.mxu0 0.0
        %5527 = vmatpush1.msra.mxu0 0.0
        %5528 = vmatprep.subr.mxu0 0.0
        %5529 = vmatpush1.msra.mxu0 0.0
        %5530 = vmatprep.subr.mxu0 0.0
        %5531 = vmatpush1.msra.mxu0 0.0
        %5532 = vmatprep.subr.mxu0 0.0
        %5533 = vmatpush1.msra.mxu0 0.0
        %5534 = vmatprep.subr.mxu0 0.0
        %5535 = vmatpush1.msra.mxu0 0.0
        %5536 = vmatprep.mubr.f32.mxu0 0.0
        %5537 = vmatmul.mubr.f32.gmra.mrb[0].mxu0 %v5470
        %v5538 = vpop.f32.mrb[0].mxu0
        %v5539 = vadd.f32 %v5467, %v5538
        %v5540 = vpop.f32.mrb[0].mxu0
        %5541 = vdwg.mxu0
        %v5543 = vsel %vm1084, %v5539, 0
        %5545 = vmatprep.subr.mxu0 0.0
        %5546 = vmatpush1.msra.mxu0 %v4106
        %5547 = vmatprep.subr.mxu0 0.0
        %5548 = vmatpush1.msra.mxu0 %v4107
        %5549 = vmatprep.subr.mxu0 0.0
        %5550 = vmatpush1.msra.mxu0 %v4108
        %5551 = vmatprep.subr.mxu0 0.0
        %5552 = vmatpush1.msra.mxu0 %v4109
        %5553 = vmatprep.subr.mxu0 0.0
        %5554 = vmatpush1.msra.mxu0 0.0
        %5555 = vmatprep.subr.mxu0 0.0
        %5556 = vmatpush1.msra.mxu0 0.0
        %5557 = vmatprep.subr.mxu0 0.0
        %5558 = vmatpush1.msra.mxu0 0.0
        %5559 = vmatprep.subr.mxu0 0.0
        %5560 = vmatpush1.msra.mxu0 0.0
        %5561 = vmatprep.subr.mxu0 0.0
        %5562 = vmatpush1.msra.mxu0 0.0
        %5563 = vmatprep.subr.mxu0 0.0
        %5564 = vmatpush1.msra.mxu0 0.0
        %5565 = vmatprep.subr.mxu0 0.0
        %5566 = vmatpush1.msra.mxu0 0.0
        %5567 = vmatprep.subr.mxu0 0.0
        %5568 = vmatpush1.msra.mxu0 0.0
        %5569 = vmatprep.subr.mxu0 0.0
        %5570 = vmatpush1.msra.mxu0 0.0
        %5571 = vmatprep.subr.mxu0 0.0
        %5572 = vmatpush1.msra.mxu0 0.0
        %5573 = vmatprep.subr.mxu0 0.0
        %5574 = vmatpush1.msra.mxu0 0.0
        %5575 = vmatprep.subr.mxu0 0.0
        %5576 = vmatpush1.msra.mxu0 0.0
        %5577 = vmatprep.subr.mxu0 0.0
        %5578 = vmatpush1.msra.mxu0 0.0
        %5579 = vmatprep.subr.mxu0 0.0
        %5580 = vmatpush1.msra.mxu0 0.0
        %5581 = vmatprep.subr.mxu0 0.0
        %5582 = vmatpush1.msra.mxu0 0.0
        %5583 = vmatprep.subr.mxu0 0.0
        %5584 = vmatpush1.msra.mxu0 0.0
        %5585 = vmatprep.subr.mxu0 0.0
        %5586 = vmatpush1.msra.mxu0 0.0
        %5587 = vmatprep.subr.mxu0 0.0
        %5588 = vmatpush1.msra.mxu0 0.0
        %5589 = vmatprep.subr.mxu0 0.0
        %5590 = vmatpush1.msra.mxu0 0.0
        %5591 = vmatprep.subr.mxu0 0.0
        %5592 = vmatpush1.msra.mxu0 0.0
        %5593 = vmatprep.subr.mxu0 0.0
        %5594 = vmatpush1.msra.mxu0 0.0
        %5595 = vmatprep.subr.mxu0 0.0
        %5596 = vmatpush1.msra.mxu0 0.0
        %5597 = vmatprep.subr.mxu0 0.0
        %5598 = vmatpush1.msra.mxu0 0.0
        %5599 = vmatprep.subr.mxu0 0.0
        %5600 = vmatpush1.msra.mxu0 0.0
        %5601 = vmatprep.subr.mxu0 0.0
        %5602 = vmatpush1.msra.mxu0 0.0
        %5603 = vmatprep.subr.mxu0 0.0
        %5604 = vmatpush1.msra.mxu0 0.0
        %5605 = vmatprep.subr.mxu0 0.0
        %5606 = vmatpush1.msra.mxu0 0.0
        %5607 = vmatprep.subr.mxu0 0.0
        %5608 = vmatpush1.msra.mxu0 0.0
        %5609 = vmatprep.mubr.f32.mxu0 0.0
        %5610 = vmatmul.mubr.f32.gmra.mrb[0].mxu0 %v5543
        %v5611 = vpop.f32.mrb[0].mxu0
        %v5612 = vadd.f32 %v4113, %v5611
        %v5613 = vpop.f32.mrb[0].mxu0
        %5614 = vdwg.mxu0
        %v5616 = vrot.slane %v5612, 4
        %v5618 = vadd.f32 %v4420, %v5616
        %v5619 = vxor.u32 %v5618, 2147483648
        %v5620 = vmul.f32 %v5619, 1.442695
        %v5621 = vpow.pop %v5620
        %v5622 = vadd.f32 %v5621, 1.0
        %v5623 = vrcp.pop %v5622
        %v5624 = vmul.f32 1.0, %v5623
        %5625 = vrot.lane.b32.xlu0 %v5616, 64
        %v5626 = vpop.permute.xlu0 %5625
        %v5628 = vmul.f32 %v5624, %v5626
        %5630 = vrot.lane.b32.xlu0 %v5628, 64
        %v5631 = vpop.permute.xlu0 %5630
        %v5633 = vadd.f32 %v4420, %v5631
        %v5634 = vtanh.pop %v5633
        %v5635 = vsub.f32 1.0, %v5624
        %5637 = vrot.lane.b32.xlu0 %v5634, 96
        %v5638 = vpop.permute.xlu0 %5637
        %v5640 = vmul.f32 %v5635, %v5638
        %v5641 = vrot.slane %v5539, 4
        %5642 = vrot.lane.b32.xlu0 %v5641, 32
        %v5643 = vpop.permute.xlu0 %5642
        %v5645 = vmul.f32 %v5624, %v5643
        %v5646 = vadd.f32 %v5640, %v5645
        %5648 = vrot.lane.b32.xlu0 %v5646, 96
        %v5649 = vpop.permute.xlu0 %5648
        %5651 = vst.msk [vmem:[#allocation2] sm:$0x10] %vm2825, %v5649
        %v5652 = vrot.slane %v5646, 4
        %5653 = vrot.lane.b32.xlu0 %v5652, 96
        %v5654 = vpop.permute.xlu0 %5653
        %v5655 = vsel %vm1084, %v5654, 0
        %5657 = vmatprep.subr.mxu0 0.0
        %5658 = vmatpush1.msra.mxu0 %v4082
        %5659 = vmatprep.subr.mxu0 0.0
        %5660 = vmatpush1.msra.mxu0 %v4083
        %5661 = vmatprep.subr.mxu0 0.0
        %5662 = vmatpush1.msra.mxu0 %v4084
        %5663 = vmatprep.subr.mxu0 0.0
        %5664 = vmatpush1.msra.mxu0 %v4085
        %5665 = vmatprep.subr.mxu0 0.0
        %5666 = vmatpush1.msra.mxu0 0.0
        %5667 = vmatprep.subr.mxu0 0.0
        %5668 = vmatpush1.msra.mxu0 0.0
        %5669 = vmatprep.subr.mxu0 0.0
        %5670 = vmatpush1.msra.mxu0 0.0
        %5671 = vmatprep.subr.mxu0 0.0
        %5672 = vmatpush1.msra.mxu0 0.0
        %5673 = vmatprep.subr.mxu0 0.0
        %5674 = vmatpush1.msra.mxu0 0.0
        %5675 = vmatprep.subr.mxu0 0.0
        %5676 = vmatpush1.msra.mxu0 0.0
        %5677 = vmatprep.subr.mxu0 0.0
        %5678 = vmatpush1.msra.mxu0 0.0
        %5679 = vmatprep.subr.mxu0 0.0
        %5680 = vmatpush1.msra.mxu0 0.0
        %5681 = vmatprep.subr.mxu0 0.0
        %5682 = vmatpush1.msra.mxu0 0.0
        %5683 = vmatprep.subr.mxu0 0.0
        %5684 = vmatpush1.msra.mxu0 0.0
        %5685 = vmatprep.subr.mxu0 0.0
        %5686 = vmatpush1.msra.mxu0 0.0
        %5687 = vmatprep.subr.mxu0 0.0
        %5688 = vmatpush1.msra.mxu0 0.0
        %5689 = vmatprep.subr.mxu0 0.0
        %5690 = vmatpush1.msra.mxu0 0.0
        %5691 = vmatprep.subr.mxu0 0.0
        %5692 = vmatpush1.msra.mxu0 0.0
        %5693 = vmatprep.subr.mxu0 0.0
        %5694 = vmatpush1.msra.mxu0 0.0
        %5695 = vmatprep.subr.mxu0 0.0
        %5696 = vmatpush1.msra.mxu0 0.0
        %5697 = vmatprep.subr.mxu0 0.0
        %5698 = vmatpush1.msra.mxu0 0.0
        %5699 = vmatprep.subr.mxu0 0.0
        %5700 = vmatpush1.msra.mxu0 0.0
        %5701 = vmatprep.subr.mxu0 0.0
        %5702 = vmatpush1.msra.mxu0 0.0
        %5703 = vmatprep.subr.mxu0 0.0
        %5704 = vmatpush1.msra.mxu0 0.0
        %5705 = vmatprep.subr.mxu0 0.0
        %5706 = vmatpush1.msra.mxu0 0.0
        %5707 = vmatprep.subr.mxu0 0.0
        %5708 = vmatpush1.msra.mxu0 0.0
        %5709 = vmatprep.subr.mxu0 0.0
        %5710 = vmatpush1.msra.mxu0 0.0
        %5711 = vmatprep.subr.mxu0 0.0
        %5712 = vmatpush1.msra.mxu0 0.0
        %5713 = vmatprep.subr.mxu0 0.0
        %5714 = vmatpush1.msra.mxu0 0.0
        %5715 = vmatprep.subr.mxu0 0.0
        %5716 = vmatpush1.msra.mxu0 0.0
        %5717 = vmatprep.subr.mxu0 0.0
        %5718 = vmatpush1.msra.mxu0 0.0
        %5719 = vmatprep.subr.mxu0 0.0
        %5720 = vmatpush1.msra.mxu0 0.0
        %5721 = vmatprep.mubr.f32.mxu0 0.0
        %5722 = vmatmul.mubr.f32.gmra.mrb[0].mxu0 %v5655
        %v5723 = vpop.f32.mrb[0].mxu0
        %v5724 = vadd.f32 %v4087, %v5723
        %v5725 = vpop.f32.mrb[0].mxu0
        %5726 = vdwg.mxu0
        %5727 = vst.msk [vmem:[#allocation3 + $0x4] sm:$0x1] %vm1619, %v5724
        %v5728 = vld [vmem:[#allocation2] sm:$0x1f]
        %v5729 = vld [vmem:[#allocation3] sm:$0x1f]
        %v5730 = vlaneseq
        %v5731 = vshrl.u32 %v5730, 7
        %v5732 = vsub.s32 5, %v5731
        %v5733 = vrot.slane %v4265, %v5732
        %v5734 = vmul.f32 %v5729, %v5733
        %v5735 = vsel %vm2910, %v5734, 0.0
        %5736 = vadd.xlane.f32.xlu0 %v5735
        %v5737 = vpop.xlane.xlu0 %5736
        %v5738 = vsub.f32 %v5737, %v1704
        %v5739 = vsel %vm2915, %v5738, -inf
        %v5740 = vrot.slane %v5739, 4
        %v5741 = vmax.f32 %v5739, %v5740
        %v5742 = vrot.slane %v5741, 2
        %v5743 = vmax.f32 %v5741, %v5742
        %v5744 = vrot.slane %v5743, 1
        %v5745 = vmax.f32 %v5743, %v5744
        %v5746 = vsub.f32 %v5738, %v5745
        %v5747 = vmul.f32 %v5746, 1.442695
        %v5748 = vpow.pop %v5747
        %v5749 = vsel %vm2915, %v5748, 0.0
        %v5750 = vrot.slane %v5749, 4
        %v5751 = vadd.f32 %v5749, %v5750
        %v5752 = vrot.slane %v5751, 2
        %v5753 = vadd.f32 %v5751, %v5752
        %v5754 = vrot.slane %v5753, 1
        %v5755 = vadd.f32 %v5753, %v5754
        %v5756 = vrcp.pop %v5755
        %v5757 = vmul.f32 %v5748, %v5756
        %5759 = vset.pattern.permute.xlu0 5
        %5760 = vperm.xlu0 %5759, %v5757
        %v5761 = vpop.permute.xlu0 %5760
        %v5763 = vmul.f32 %v5761, %v5728
        %v5764 = vsel %vm2910, %v5763, 0.0
        %v5765 = vrot.slane %v5764, 4
        %v5766 = vadd.f32 %v5764, %v5765
        %v5767 = vrot.slane %v5766, 2
        %v5768 = vadd.f32 %v5766, %v5767
        %v5769 = vrot.slane %v5768, 1
        %v5770 = vadd.f32 %v5768, %v5769
        %v5771 = vrot.slane %v4344, 5
        %v5774 = vsel %vm1084, %v5770, 0
        %5776 = vmatprep.subr.mxu0 0.0
        %5777 = vmatpush1.msra.mxu0 %v4089
        %5778 = vmatprep.subr.mxu0 0.0
        %5779 = vmatpush1.msra.mxu0 %v4090
        %5780 = vmatprep.subr.mxu0 0.0
        %5781 = vmatpush1.msra.mxu0 %v4091
        %5782 = vmatprep.subr.mxu0 0.0
        %5783 = vmatpush1.msra.mxu0 %v4092
        %5784 = vmatprep.subr.mxu0 0.0
        %5785 = vmatpush1.msra.mxu0 0.0
        %5786 = vmatprep.subr.mxu0 0.0
        %5787 = vmatpush1.msra.mxu0 0.0
        %5788 = vmatprep.subr.mxu0 0.0
        %5789 = vmatpush1.msra.mxu0 0.0
        %5790 = vmatprep.subr.mxu0 0.0
        %5791 = vmatpush1.msra.mxu0 0.0
        %5792 = vmatprep.subr.mxu0 0.0
        %5793 = vmatpush1.msra.mxu0 0.0
        %5794 = vmatprep.subr.mxu0 0.0
        %5795 = vmatpush1.msra.mxu0 0.0
        %5796 = vmatprep.subr.mxu0 0.0
        %5797 = vmatpush1.msra.mxu0 0.0
        %5798 = vmatprep.subr.mxu0 0.0
        %5799 = vmatpush1.msra.mxu0 0.0
        %5800 = vmatprep.subr.mxu0 0.0
        %5801 = vmatpush1.msra.mxu0 0.0
        %5802 = vmatprep.subr.mxu0 0.0
        %5803 = vmatpush1.msra.mxu0 0.0
        %5804 = vmatprep.subr.mxu0 0.0
        %5805 = vmatpush1.msra.mxu0 0.0
        %5806 = vmatprep.subr.mxu0 0.0
        %5807 = vmatpush1.msra.mxu0 0.0
        %5808 = vmatprep.subr.mxu0 0.0
        %5809 = vmatpush1.msra.mxu0 0.0
        %5810 = vmatprep.subr.mxu0 0.0
        %5811 = vmatpush1.msra.mxu0 0.0
        %5812 = vmatprep.subr.mxu0 0.0
        %5813 = vmatpush1.msra.mxu0 0.0
        %5814 = vmatprep.subr.mxu0 0.0
        %5815 = vmatpush1.msra.mxu0 0.0
        %5816 = vmatprep.subr.mxu0 0.0
        %5817 = vmatpush1.msra.mxu0 0.0
        %5818 = vmatprep.subr.mxu0 0.0
        %5819 = vmatpush1.msra.mxu0 0.0
        %5820 = vmatprep.subr.mxu0 0.0
        %5821 = vmatpush1.msra.mxu0 0.0
        %5822 = vmatprep.subr.mxu0 0.0
        %5823 = vmatpush1.msra.mxu0 0.0
        %5824 = vmatprep.subr.mxu0 0.0
        %5825 = vmatpush1.msra.mxu0 0.0
        %5826 = vmatprep.subr.mxu0 0.0
        %5827 = vmatpush1.msra.mxu0 0.0
        %5828 = vmatprep.subr.mxu0 0.0
        %5829 = vmatpush1.msra.mxu0 0.0
        %5830 = vmatprep.subr.mxu0 0.0
        %5831 = vmatpush1.msra.mxu0 0.0
        %5832 = vmatprep.subr.mxu0 0.0
        %5833 = vmatpush1.msra.mxu0 0.0
        %5834 = vmatprep.subr.mxu0 0.0
        %5835 = vmatpush1.msra.mxu0 0.0
        %5836 = vmatprep.subr.mxu0 0.0
        %5837 = vmatpush1.msra.mxu0 0.0
        %5838 = vmatprep.subr.mxu0 0.0
        %5839 = vmatpush1.msra.mxu0 0.0
        %5840 = vmatprep.mubr.f32.mxu0 0.0
        %5841 = vmatmul.mubr.f32.gmra.mrb[0].mxu0 %v5774
        %v5842 = vpop.f32.mrb[0].mxu0
        %v5843 = vadd.f32 %v5771, %v5842
        %v5844 = vpop.f32.mrb[0].mxu0
        %5845 = vdwg.mxu0
        %v5847 = vsel %vm1084, %v5843, 0
        %5849 = vmatprep.subr.mxu0 0.0
        %5850 = vmatpush1.msra.mxu0 %v4106
        %5851 = vmatprep.subr.mxu0 0.0
        %5852 = vmatpush1.msra.mxu0 %v4107
        %5853 = vmatprep.subr.mxu0 0.0
        %5854 = vmatpush1.msra.mxu0 %v4108
        %5855 = vmatprep.subr.mxu0 0.0
        %5856 = vmatpush1.msra.mxu0 %v4109
        %5857 = vmatprep.subr.mxu0 0.0
        %5858 = vmatpush1.msra.mxu0 0.0
        %5859 = vmatprep.subr.mxu0 0.0
        %5860 = vmatpush1.msra.mxu0 0.0
        %5861 = vmatprep.subr.mxu0 0.0
        %5862 = vmatpush1.msra.mxu0 0.0
        %5863 = vmatprep.subr.mxu0 0.0
        %5864 = vmatpush1.msra.mxu0 0.0
        %5865 = vmatprep.subr.mxu0 0.0
        %5866 = vmatpush1.msra.mxu0 0.0
        %5867 = vmatprep.subr.mxu0 0.0
        %5868 = vmatpush1.msra.mxu0 0.0
        %5869 = vmatprep.subr.mxu0 0.0
        %5870 = vmatpush1.msra.mxu0 0.0
        %5871 = vmatprep.subr.mxu0 0.0
        %5872 = vmatpush1.msra.mxu0 0.0
        %5873 = vmatprep.subr.mxu0 0.0
        %5874 = vmatpush1.msra.mxu0 0.0
        %5875 = vmatprep.subr.mxu0 0.0
        %5876 = vmatpush1.msra.mxu0 0.0
        %5877 = vmatprep.subr.mxu0 0.0
        %5878 = vmatpush1.msra.mxu0 0.0
        %5879 = vmatprep.subr.mxu0 0.0
        %5880 = vmatpush1.msra.mxu0 0.0
        %5881 = vmatprep.subr.mxu0 0.0
        %5882 = vmatpush1.msra.mxu0 0.0
        %5883 = vmatprep.subr.mxu0 0.0
        %5884 = vmatpush1.msra.mxu0 0.0
        %5885 = vmatprep.subr.mxu0 0.0
        %5886 = vmatpush1.msra.mxu0 0.0
        %5887 = vmatprep.subr.mxu0 0.0
        %5888 = vmatpush1.msra.mxu0 0.0
        %5889 = vmatprep.subr.mxu0 0.0
        %5890 = vmatpush1.msra.mxu0 0.0
        %5891 = vmatprep.subr.mxu0 0.0
        %5892 = vmatpush1.msra.mxu0 0.0
        %5893 = vmatprep.subr.mxu0 0.0
        %5894 = vmatpush1.msra.mxu0 0.0
        %5895 = vmatprep.subr.mxu0 0.0
        %5896 = vmatpush1.msra.mxu0 0.0
        %5897 = vmatprep.subr.mxu0 0.0
        %5898 = vmatpush1.msra.mxu0 0.0
        %5899 = vmatprep.subr.mxu0 0.0
        %5900 = vmatpush1.msra.mxu0 0.0
        %5901 = vmatprep.subr.mxu0 0.0
        %5902 = vmatpush1.msra.mxu0 0.0
        %5903 = vmatprep.subr.mxu0 0.0
        %5904 = vmatpush1.msra.mxu0 0.0
        %5905 = vmatprep.subr.mxu0 0.0
        %5906 = vmatpush1.msra.mxu0 0.0
        %5907 = vmatprep.subr.mxu0 0.0
        %5908 = vmatpush1.msra.mxu0 0.0
        %5909 = vmatprep.subr.mxu0 0.0
        %5910 = vmatpush1.msra.mxu0 0.0
        %5911 = vmatprep.subr.mxu0 0.0
        %5912 = vmatpush1.msra.mxu0 0.0
        %5913 = vmatprep.mubr.f32.mxu0 0.0
        %5914 = vmatmul.mubr.f32.gmra.mrb[0].mxu0 %v5847
        %v5915 = vpop.f32.mrb[0].mxu0
        %v5916 = vadd.f32 %v4113, %v5915
        %v5917 = vpop.f32.mrb[0].mxu0
        %5918 = vdwg.mxu0
        %v5920 = vrot.slane %v5916, 3
        %v5922 = vadd.f32 %v4420, %v5920
        %v5923 = vxor.u32 %v5922, 2147483648
        %v5924 = vmul.f32 %v5923, 1.442695
        %v5925 = vpow.pop %v5924
        %v5926 = vadd.f32 %v5925, 1.0
        %v5927 = vrcp.pop %v5926
        %v5928 = vmul.f32 1.0, %v5927
        %5929 = vrot.lane.b32.xlu0 %v5920, 64
        %v5930 = vpop.permute.xlu0 %5929
        %v5932 = vmul.f32 %v5928, %v5930
        %5934 = vrot.lane.b32.xlu0 %v5932, 64
        %v5935 = vpop.permute.xlu0 %5934
        %v5937 = vadd.f32 %v4420, %v5935
        %v5938 = vtanh.pop %v5937
        %v5939 = vsub.f32 1.0, %v5928
        %5941 = vrot.lane.b32.xlu0 %v5938, 96
        %v5942 = vpop.permute.xlu0 %5941
        %v5944 = vmul.f32 %v5939, %v5942
        %v5945 = vrot.slane %v5843, 3
        %5946 = vrot.lane.b32.xlu0 %v5945, 32
        %v5947 = vpop.permute.xlu0 %5946
        %v5949 = vmul.f32 %v5928, %v5947
        %v5950 = vadd.f32 %v5944, %v5949
        %5952 = vrot.lane.b32.xlu0 %v5950, 96
        %v5953 = vpop.permute.xlu0 %5952
        %5955 = vst.msk [vmem:[#allocation2] sm:$0x20] %vm3132, %v5953
        %v5956 = vrot.slane %v5950, 5
        %5957 = vrot.lane.b32.xlu0 %v5956, 96
        %v5958 = vpop.permute.xlu0 %5957
        %v5959 = vsel %vm1084, %v5958, 0
        %5961 = vmatprep.subr.mxu0 0.0
        %5962 = vmatpush1.msra.mxu0 %v4082
        %5963 = vmatprep.subr.mxu0 0.0
        %5964 = vmatpush1.msra.mxu0 %v4083
        %5965 = vmatprep.subr.mxu0 0.0
        %5966 = vmatpush1.msra.mxu0 %v4084
        %5967 = vmatprep.subr.mxu0 0.0
        %5968 = vmatpush1.msra.mxu0 %v4085
        %5969 = vmatprep.subr.mxu0 0.0
        %5970 = vmatpush1.msra.mxu0 0.0
        %5971 = vmatprep.subr.mxu0 0.0
        %5972 = vmatpush1.msra.mxu0 0.0
        %5973 = vmatprep.subr.mxu0 0.0
        %5974 = vmatpush1.msra.mxu0 0.0
        %5975 = vmatprep.subr.mxu0 0.0
        %5976 = vmatpush1.msra.mxu0 0.0
        %5977 = vmatprep.subr.mxu0 0.0
        %5978 = vmatpush1.msra.mxu0 0.0
        %5979 = vmatprep.subr.mxu0 0.0
        %5980 = vmatpush1.msra.mxu0 0.0
        %5981 = vmatprep.subr.mxu0 0.0
        %5982 = vmatpush1.msra.mxu0 0.0
        %5983 = vmatprep.subr.mxu0 0.0
        %5984 = vmatpush1.msra.mxu0 0.0
        %5985 = vmatprep.subr.mxu0 0.0
        %5986 = vmatpush1.msra.mxu0 0.0
        %5987 = vmatprep.subr.mxu0 0.0
        %5988 = vmatpush1.msra.mxu0 0.0
        %5989 = vmatprep.subr.mxu0 0.0
        %5990 = vmatpush1.msra.mxu0 0.0
        %5991 = vmatprep.subr.mxu0 0.0
        %5992 = vmatpush1.msra.mxu0 0.0
        %5993 = vmatprep.subr.mxu0 0.0
        %5994 = vmatpush1.msra.mxu0 0.0
        %5995 = vmatprep.subr.mxu0 0.0
        %5996 = vmatpush1.msra.mxu0 0.0
        %5997 = vmatprep.subr.mxu0 0.0
        %5998 = vmatpush1.msra.mxu0 0.0
        %5999 = vmatprep.subr.mxu0 0.0
        %6000 = vmatpush1.msra.mxu0 0.0
        %6001 = vmatprep.subr.mxu0 0.0
        %6002 = vmatpush1.msra.mxu0 0.0
        %6003 = vmatprep.subr.mxu0 0.0
        %6004 = vmatpush1.msra.mxu0 0.0
        %6005 = vmatprep.subr.mxu0 0.0
        %6006 = vmatpush1.msra.mxu0 0.0
        %6007 = vmatprep.subr.mxu0 0.0
        %6008 = vmatpush1.msra.mxu0 0.0
        %6009 = vmatprep.subr.mxu0 0.0
        %6010 = vmatpush1.msra.mxu0 0.0
        %6011 = vmatprep.subr.mxu0 0.0
        %6012 = vmatpush1.msra.mxu0 0.0
        %6013 = vmatprep.subr.mxu0 0.0
        %6014 = vmatpush1.msra.mxu0 0.0
        %6015 = vmatprep.subr.mxu0 0.0
        %6016 = vmatpush1.msra.mxu0 0.0
        %6017 = vmatprep.subr.mxu0 0.0
        %6018 = vmatpush1.msra.mxu0 0.0
        %6019 = vmatprep.subr.mxu0 0.0
        %6020 = vmatpush1.msra.mxu0 0.0
        %6021 = vmatprep.subr.mxu0 0.0
        %6022 = vmatpush1.msra.mxu0 0.0
        %6023 = vmatprep.subr.mxu0 0.0
        %6024 = vmatpush1.msra.mxu0 0.0
        %6025 = vmatprep.mubr.f32.mxu0 0.0
        %6026 = vmatmul.mubr.f32.gmra.mrb[0].mxu0 %v5959
        %v6027 = vpop.f32.mrb[0].mxu0
        %v6028 = vadd.f32 %v4087, %v6027
        %v6029 = vpop.f32.mrb[0].mxu0
        %6030 = vdwg.mxu0
        %6031 = vst.msk [vmem:[#allocation3 + $0x5] sm:$0x1] %vm1619, %v6028
        %v6032 = vld [vmem:[#allocation2] sm:$0x3f]
        %v6033 = vld [vmem:[#allocation3] sm:$0x3f]
        %v6034 = vlaneseq
        %v6035 = vshrl.u32 %v6034, 7
        %v6036 = vsub.s32 6, %v6035
        %v6037 = vrot.slane %v4265, %v6036
        %v6038 = vmul.f32 %v6033, %v6037
        %v6039 = vsel %vm3217, %v6038, 0.0
        %6040 = vadd.xlane.f32.xlu0 %v6039
        %v6041 = vpop.xlane.xlu0 %6040
        %v6042 = vsub.f32 %v6041, %v1704
        %v6043 = vsel %vm3222, %v6042, -inf
        %v6044 = vrot.slane %v6043, 4
        %v6045 = vmax.f32 %v6043, %v6044
        %v6046 = vrot.slane %v6045, 2
        %v6047 = vmax.f32 %v6045, %v6046
        %v6048 = vrot.slane %v6047, 1
        %v6049 = vmax.f32 %v6047, %v6048
        %v6050 = vsub.f32 %v6042, %v6049
        %v6051 = vmul.f32 %v6050, 1.442695
        %v6052 = vpow.pop %v6051
        %v6053 = vsel %vm3222, %v6052, 0.0
        %v6054 = vrot.slane %v6053, 4
        %v6055 = vadd.f32 %v6053, %v6054
        %v6056 = vrot.slane %v6055, 2
        %v6057 = vadd.f32 %v6055, %v6056
        %v6058 = vrot.slane %v6057, 1
        %v6059 = vadd.f32 %v6057, %v6058
        %v6060 = vrcp.pop %v6059
        %v6061 = vmul.f32 %v6052, %v6060
        %6063 = vset.pattern.permute.xlu0 6
        %6064 = vperm.xlu0 %6063, %v6061
        %v6065 = vpop.permute.xlu0 %6064
        %v6067 = vmul.f32 %v6065, %v6032
        %v6068 = vsel %vm3217, %v6067, 0.0
        %v6069 = vrot.slane %v6068, 4
        %v6070 = vadd.f32 %v6068, %v6069
        %v6071 = vrot.slane %v6070, 2
        %v6072 = vadd.f32 %v6070, %v6071
        %v6073 = vrot.slane %v6072, 1
        %v6074 = vadd.f32 %v6072, %v6073
        %v6075 = vrot.slane %v4344, 6
        %v6078 = vsel %vm1084, %v6074, 0
        %6080 = vmatprep.subr.mxu0 0.0
        %6081 = vmatpush1.msra.mxu0 %v4089
        %6082 = vmatprep.subr.mxu0 0.0
        %6083 = vmatpush1.msra.mxu0 %v4090
        %6084 = vmatprep.subr.mxu0 0.0
        %6085 = vmatpush1.msra.mxu0 %v4091
        %6086 = vmatprep.subr.mxu0 0.0
        %6087 = vmatpush1.msra.mxu0 %v4092
        %6088 = vmatprep.subr.mxu0 0.0
        %6089 = vmatpush1.msra.mxu0 0.0
        %6090 = vmatprep.subr.mxu0 0.0
        %6091 = vmatpush1.msra.mxu0 0.0
        %6092 = vmatprep.subr.mxu0 0.0
        %6093 = vmatpush1.msra.mxu0 0.0
        %6094 = vmatprep.subr.mxu0 0.0
        %6095 = vmatpush1.msra.mxu0 0.0
        %6096 = vmatprep.subr.mxu0 0.0
        %6097 = vmatpush1.msra.mxu0 0.0
        %6098 = vmatprep.subr.mxu0 0.0
        %6099 = vmatpush1.msra.mxu0 0.0
        %6100 = vmatprep.subr.mxu0 0.0
        %6101 = vmatpush1.msra.mxu0 0.0
        %6102 = vmatprep.subr.mxu0 0.0
        %6103 = vmatpush1.msra.mxu0 0.0
        %6104 = vmatprep.subr.mxu0 0.0
        %6105 = vmatpush1.msra.mxu0 0.0
        %6106 = vmatprep.subr.mxu0 0.0
        %6107 = vmatpush1.msra.mxu0 0.0
        %6108 = vmatprep.subr.mxu0 0.0
        %6109 = vmatpush1.msra.mxu0 0.0
        %6110 = vmatprep.subr.mxu0 0.0
        %6111 = vmatpush1.msra.mxu0 0.0
        %6112 = vmatprep.subr.mxu0 0.0
        %6113 = vmatpush1.msra.mxu0 0.0
        %6114 = vmatprep.subr.mxu0 0.0
        %6115 = vmatpush1.msra.mxu0 0.0
        %6116 = vmatprep.subr.mxu0 0.0
        %6117 = vmatpush1.msra.mxu0 0.0
        %6118 = vmatprep.subr.mxu0 0.0
        %6119 = vmatpush1.msra.mxu0 0.0
        %6120 = vmatprep.subr.mxu0 0.0
        %6121 = vmatpush1.msra.mxu0 0.0
        %6122 = vmatprep.subr.mxu0 0.0
        %6123 = vmatpush1.msra.mxu0 0.0
        %6124 = vmatprep.subr.mxu0 0.0
        %6125 = vmatpush1.msra.mxu0 0.0
        %6126 = vmatprep.subr.mxu0 0.0
        %6127 = vmatpush1.msra.mxu0 0.0
        %6128 = vmatprep.subr.mxu0 0.0
        %6129 = vmatpush1.msra.mxu0 0.0
        %6130 = vmatprep.subr.mxu0 0.0
        %6131 = vmatpush1.msra.mxu0 0.0
        %6132 = vmatprep.subr.mxu0 0.0
        %6133 = vmatpush1.msra.mxu0 0.0
        %6134 = vmatprep.subr.mxu0 0.0
        %6135 = vmatpush1.msra.mxu0 0.0
        %6136 = vmatprep.subr.mxu0 0.0
        %6137 = vmatpush1.msra.mxu0 0.0
        %6138 = vmatprep.subr.mxu0 0.0
        %6139 = vmatpush1.msra.mxu0 0.0
        %6140 = vmatprep.subr.mxu0 0.0
        %6141 = vmatpush1.msra.mxu0 0.0
        %6142 = vmatprep.subr.mxu0 0.0
        %6143 = vmatpush1.msra.mxu0 0.0
        %6144 = vmatprep.mubr.f32.mxu0 0.0
        %6145 = vmatmul.mubr.f32.gmra.mrb[0].mxu0 %v6078
        %v6146 = vpop.f32.mrb[0].mxu0
        %v6147 = vadd.f32 %v6075, %v6146
        %v6148 = vpop.f32.mrb[0].mxu0
        %6149 = vdwg.mxu0
        %v6151 = vsel %vm1084, %v6147, 0
        %6153 = vmatprep.subr.mxu0 0.0
        %6154 = vmatpush1.msra.mxu0 %v4106
        %6155 = vmatprep.subr.mxu0 0.0
        %6156 = vmatpush1.msra.mxu0 %v4107
        %6157 = vmatprep.subr.mxu0 0.0
        %6158 = vmatpush1.msra.mxu0 %v4108
        %6159 = vmatprep.subr.mxu0 0.0
        %6160 = vmatpush1.msra.mxu0 %v4109
        %6161 = vmatprep.subr.mxu0 0.0
        %6162 = vmatpush1.msra.mxu0 0.0
        %6163 = vmatprep.subr.mxu0 0.0
        %6164 = vmatpush1.msra.mxu0 0.0
        %6165 = vmatprep.subr.mxu0 0.0
        %6166 = vmatpush1.msra.mxu0 0.0
        %6167 = vmatprep.subr.mxu0 0.0
        %6168 = vmatpush1.msra.mxu0 0.0
        %6169 = vmatprep.subr.mxu0 0.0
        %6170 = vmatpush1.msra.mxu0 0.0
        %6171 = vmatprep.subr.mxu0 0.0
        %6172 = vmatpush1.msra.mxu0 0.0
        %6173 = vmatprep.subr.mxu0 0.0
        %6174 = vmatpush1.msra.mxu0 0.0
        %6175 = vmatprep.subr.mxu0 0.0
        %6176 = vmatpush1.msra.mxu0 0.0
        %6177 = vmatprep.subr.mxu0 0.0
        %6178 = vmatpush1.msra.mxu0 0.0
        %6179 = vmatprep.subr.mxu0 0.0
        %6180 = vmatpush1.msra.mxu0 0.0
        %6181 = vmatprep.subr.mxu0 0.0
        %6182 = vmatpush1.msra.mxu0 0.0
        %6183 = vmatprep.subr.mxu0 0.0
        %6184 = vmatpush1.msra.mxu0 0.0
        %6185 = vmatprep.subr.mxu0 0.0
        %6186 = vmatpush1.msra.mxu0 0.0
        %6187 = vmatprep.subr.mxu0 0.0
        %6188 = vmatpush1.msra.mxu0 0.0
        %6189 = vmatprep.subr.mxu0 0.0
        %6190 = vmatpush1.msra.mxu0 0.0
        %6191 = vmatprep.subr.mxu0 0.0
        %6192 = vmatpush1.msra.mxu0 0.0
        %6193 = vmatprep.subr.mxu0 0.0
        %6194 = vmatpush1.msra.mxu0 0.0
        %6195 = vmatprep.subr.mxu0 0.0
        %6196 = vmatpush1.msra.mxu0 0.0
        %6197 = vmatprep.subr.mxu0 0.0
        %6198 = vmatpush1.msra.mxu0 0.0
        %6199 = vmatprep.subr.mxu0 0.0
        %6200 = vmatpush1.msra.mxu0 0.0
        %6201 = vmatprep.subr.mxu0 0.0
        %6202 = vmatpush1.msra.mxu0 0.0
        %6203 = vmatprep.subr.mxu0 0.0
        %6204 = vmatpush1.msra.mxu0 0.0
        %6205 = vmatprep.subr.mxu0 0.0
        %6206 = vmatpush1.msra.mxu0 0.0
        %6207 = vmatprep.subr.mxu0 0.0
        %6208 = vmatpush1.msra.mxu0 0.0
        %6209 = vmatprep.subr.mxu0 0.0
        %6210 = vmatpush1.msra.mxu0 0.0
        %6211 = vmatprep.subr.mxu0 0.0
        %6212 = vmatpush1.msra.mxu0 0.0
        %6213 = vmatprep.subr.mxu0 0.0
        %6214 = vmatpush1.msra.mxu0 0.0
        %6215 = vmatprep.subr.mxu0 0.0
        %6216 = vmatpush1.msra.mxu0 0.0
        %6217 = vmatprep.mubr.f32.mxu0 0.0
        %6218 = vmatmul.mubr.f32.gmra.mrb[0].mxu0 %v6151
        %v6219 = vpop.f32.mrb[0].mxu0
        %v6220 = vadd.f32 %v4113, %v6219
        %v6221 = vpop.f32.mrb[0].mxu0
        %6222 = vdwg.mxu0
        %v6224 = vrot.slane %v6220, 2
        %v6226 = vadd.f32 %v4420, %v6224
        %v6227 = vxor.u32 %v6226, 2147483648
        %v6228 = vmul.f32 %v6227, 1.442695
        %v6229 = vpow.pop %v6228
        %v6230 = vadd.f32 %v6229, 1.0
        %v6231 = vrcp.pop %v6230
        %v6232 = vmul.f32 1.0, %v6231
        %6233 = vrot.lane.b32.xlu0 %v6224, 64
        %v6234 = vpop.permute.xlu0 %6233
        %v6236 = vmul.f32 %v6232, %v6234
        %6238 = vrot.lane.b32.xlu0 %v6236, 64
        %v6239 = vpop.permute.xlu0 %6238
        %v6241 = vadd.f32 %v4420, %v6239
        %v6242 = vtanh.pop %v6241
        %v6243 = vsub.f32 1.0, %v6232
        %6245 = vrot.lane.b32.xlu0 %v6242, 96
        %v6246 = vpop.permute.xlu0 %6245
        %v6248 = vmul.f32 %v6243, %v6246
        %v6249 = vrot.slane %v6147, 2
        %6250 = vrot.lane.b32.xlu0 %v6249, 32
        %v6251 = vpop.permute.xlu0 %6250
        %v6253 = vmul.f32 %v6232, %v6251
        %v6254 = vadd.f32 %v6248, %v6253
        %6256 = vrot.lane.b32.xlu0 %v6254, 96
        %v6257 = vpop.permute.xlu0 %6256
        %6259 = vst.msk [vmem:[#allocation2] sm:$0x40] %vm3439, %v6257
        %v6260 = vrot.slane %v6254, 6
        %6261 = vrot.lane.b32.xlu0 %v6260, 96
        %v6262 = vpop.permute.xlu0 %6261
        %v6263 = vsel %vm1084, %v6262, 0
        %6265 = vmatprep.subr.mxu0 0.0
        %6266 = vmatpush1.msra.mxu0 %v4082
        %6267 = vmatprep.subr.mxu0 0.0
        %6268 = vmatpush1.msra.mxu0 %v4083
        %6269 = vmatprep.subr.mxu0 0.0
        %6270 = vmatpush1.msra.mxu0 %v4084
        %6271 = vmatprep.subr.mxu0 0.0
        %6272 = vmatpush1.msra.mxu0 %v4085
        %6273 = vmatprep.subr.mxu0 0.0
        %6274 = vmatpush1.msra.mxu0 0.0
        %6275 = vmatprep.subr.mxu0 0.0
        %6276 = vmatpush1.msra.mxu0 0.0
        %6277 = vmatprep.subr.mxu0 0.0
        %6278 = vmatpush1.msra.mxu0 0.0
        %6279 = vmatprep.subr.mxu0 0.0
        %6280 = vmatpush1.msra.mxu0 0.0
        %6281 = vmatprep.subr.mxu0 0.0
        %6282 = vmatpush1.msra.mxu0 0.0
        %6283 = vmatprep.subr.mxu0 0.0
        %6284 = vmatpush1.msra.mxu0 0.0
        %6285 = vmatprep.subr.mxu0 0.0
        %6286 = vmatpush1.msra.mxu0 0.0
        %6287 = vmatprep.subr.mxu0 0.0
        %6288 = vmatpush1.msra.mxu0 0.0
        %6289 = vmatprep.subr.mxu0 0.0
        %6290 = vmatpush1.msra.mxu0 0.0
        %6291 = vmatprep.subr.mxu0 0.0
        %6292 = vmatpush1.msra.mxu0 0.0
        %6293 = vmatprep.subr.mxu0 0.0
        %6294 = vmatpush1.msra.mxu0 0.0
        %6295 = vmatprep.subr.mxu0 0.0
        %6296 = vmatpush1.msra.mxu0 0.0
        %6297 = vmatprep.subr.mxu0 0.0
        %6298 = vmatpush1.msra.mxu0 0.0
        %6299 = vmatprep.subr.mxu0 0.0
        %6300 = vmatpush1.msra.mxu0 0.0
        %6301 = vmatprep.subr.mxu0 0.0
        %6302 = vmatpush1.msra.mxu0 0.0
        %6303 = vmatprep.subr.mxu0 0.0
        %6304 = vmatpush1.msra.mxu0 0.0
        %6305 = vmatprep.subr.mxu0 0.0
        %6306 = vmatpush1.msra.mxu0 0.0
        %6307 = vmatprep.subr.mxu0 0.0
        %6308 = vmatpush1.msra.mxu0 0.0
        %6309 = vmatprep.subr.mxu0 0.0
        %6310 = vmatpush1.msra.mxu0 0.0
        %6311 = vmatprep.subr.mxu0 0.0
        %6312 = vmatpush1.msra.mxu0 0.0
        %6313 = vmatprep.subr.mxu0 0.0
        %6314 = vmatpush1.msra.mxu0 0.0
        %6315 = vmatprep.subr.mxu0 0.0
        %6316 = vmatpush1.msra.mxu0 0.0
        %6317 = vmatprep.subr.mxu0 0.0
        %6318 = vmatpush1.msra.mxu0 0.0
        %6319 = vmatprep.subr.mxu0 0.0
        %6320 = vmatpush1.msra.mxu0 0.0
        %6321 = vmatprep.subr.mxu0 0.0
        %6322 = vmatpush1.msra.mxu0 0.0
        %6323 = vmatprep.subr.mxu0 0.0
        %6324 = vmatpush1.msra.mxu0 0.0
        %6325 = vmatprep.subr.mxu0 0.0
        %6326 = vmatpush1.msra.mxu0 0.0
        %6327 = vmatprep.subr.mxu0 0.0
        %6328 = vmatpush1.msra.mxu0 0.0
        %6329 = vmatprep.mubr.f32.mxu0 0.0
        %6330 = vmatmul.mubr.f32.gmra.mrb[0].mxu0 %v6263
        %v6331 = vpop.f32.mrb[0].mxu0
        %v6332 = vadd.f32 %v4087, %v6331
        %v6333 = vpop.f32.mrb[0].mxu0
        %6334 = vdwg.mxu0
        %6335 = vst.msk [vmem:[#allocation3 + $0x6] sm:$0x1] %vm1619, %v6332
        %v6336 = vld [vmem:[#allocation2] sm:$0x7f]
        %v6337 = vld [vmem:[#allocation3] sm:$0x7f]
        %v6338 = vlaneseq
        %v6339 = vshrl.u32 %v6338, 7
        %v6340 = vsub.s32 7, %v6339
        %v6341 = vrot.slane %v4265, %v6340
        %v6342 = vmul.f32 %v6337, %v6341
        %v6343 = vsel %vm3524, %v6342, 0.0
        %6344 = vadd.xlane.f32.xlu0 %v6343
        %v6345 = vpop.xlane.xlu0 %6344
        %v6346 = vsub.f32 %v6345, %v1704
        %v6347 = vsel %vm3529, %v6346, -inf
        %v6348 = vrot.slane %v6347, 4
        %v6349 = vmax.f32 %v6347, %v6348
        %v6350 = vrot.slane %v6349, 2
        %v6351 = vmax.f32 %v6349, %v6350
        %v6352 = vrot.slane %v6351, 1
        %v6353 = vmax.f32 %v6351, %v6352
        %v6354 = vsub.f32 %v6346, %v6353
        %v6355 = vmul.f32 %v6354, 1.442695
        %v6356 = vpow.pop %v6355
        %v6357 = vsel %vm3529, %v6356, 0.0
        %v6358 = vrot.slane %v6357, 4
        %v6359 = vadd.f32 %v6357, %v6358
        %v6360 = vrot.slane %v6359, 2
        %v6361 = vadd.f32 %v6359, %v6360
        %v6362 = vrot.slane %v6361, 1
        %v6363 = vadd.f32 %v6361, %v6362
        %v6364 = vrcp.pop %v6363
        %v6365 = vmul.f32 %v6356, %v6364
        %6367 = vset.pattern.permute.xlu0 7
        %6368 = vperm.xlu0 %6367, %v6365
        %v6369 = vpop.permute.xlu0 %6368
        %v6371 = vmul.f32 %v6369, %v6336
        %v6372 = vsel %vm3524, %v6371, 0.0
        %v6373 = vrot.slane %v6372, 4
        %v6374 = vadd.f32 %v6372, %v6373
        %v6375 = vrot.slane %v6374, 2
        %v6376 = vadd.f32 %v6374, %v6375
        %v6377 = vrot.slane %v6376, 1
        %v6378 = vadd.f32 %v6376, %v6377
        %v6379 = vrot.slane %v4344, 7
        %v6382 = vsel %vm1084, %v6378, 0
        %6384 = vmatprep.subr.mxu0 0.0
        %6385 = vmatpush1.msra.mxu0 %v4089
        %6386 = vmatprep.subr.mxu0 0.0
        %6387 = vmatpush1.msra.mxu0 %v4090
        %6388 = vmatprep.subr.mxu0 0.0
        %6389 = vmatpush1.msra.mxu0 %v4091
        %6390 = vmatprep.subr.mxu0 0.0
        %6391 = vmatpush1.msra.mxu0 %v4092
        %6392 = vmatprep.subr.mxu0 0.0
        %6393 = vmatpush1.msra.mxu0 0.0
        %6394 = vmatprep.subr.mxu0 0.0
        %6395 = vmatpush1.msra.mxu0 0.0
        %6396 = vmatprep.subr.mxu0 0.0
        %6397 = vmatpush1.msra.mxu0 0.0
        %6398 = vmatprep.subr.mxu0 0.0
        %6399 = vmatpush1.msra.mxu0 0.0
        %6400 = vmatprep.subr.mxu0 0.0
        %6401 = vmatpush1.msra.mxu0 0.0
        %6402 = vmatprep.subr.mxu0 0.0
        %6403 = vmatpush1.msra.mxu0 0.0
        %6404 = vmatprep.subr.mxu0 0.0
        %6405 = vmatpush1.msra.mxu0 0.0
        %6406 = vmatprep.subr.mxu0 0.0
        %6407 = vmatpush1.msra.mxu0 0.0
        %6408 = vmatprep.subr.mxu0 0.0
        %6409 = vmatpush1.msra.mxu0 0.0
        %6410 = vmatprep.subr.mxu0 0.0
        %6411 = vmatpush1.msra.mxu0 0.0
        %6412 = vmatprep.subr.mxu0 0.0
        %6413 = vmatpush1.msra.mxu0 0.0
        %6414 = vmatprep.subr.mxu0 0.0
        %6415 = vmatpush1.msra.mxu0 0.0
        %6416 = vmatprep.subr.mxu0 0.0
        %6417 = vmatpush1.msra.mxu0 0.0
        %6418 = vmatprep.subr.mxu0 0.0
        %6419 = vmatpush1.msra.mxu0 0.0
        %6420 = vmatprep.subr.mxu0 0.0
        %6421 = vmatpush1.msra.mxu0 0.0
        %6422 = vmatprep.subr.mxu0 0.0
        %6423 = vmatpush1.msra.mxu0 0.0
        %6424 = vmatprep.subr.mxu0 0.0
        %6425 = vmatpush1.msra.mxu0 0.0
        %6426 = vmatprep.subr.mxu0 0.0
        %6427 = vmatpush1.msra.mxu0 0.0
        %6428 = vmatprep.subr.mxu0 0.0
        %6429 = vmatpush1.msra.mxu0 0.0
        %6430 = vmatprep.subr.mxu0 0.0
        %6431 = vmatpush1.msra.mxu0 0.0
        %6432 = vmatprep.subr.mxu0 0.0
        %6433 = vmatpush1.msra.mxu0 0.0
        %6434 = vmatprep.subr.mxu0 0.0
        %6435 = vmatpush1.msra.mxu0 0.0
        %6436 = vmatprep.subr.mxu0 0.0
        %6437 = vmatpush1.msra.mxu0 0.0
        %6438 = vmatprep.subr.mxu0 0.0
        %6439 = vmatpush1.msra.mxu0 0.0
        %6440 = vmatprep.subr.mxu0 0.0
        %6441 = vmatpush1.msra.mxu0 0.0
        %6442 = vmatprep.subr.mxu0 0.0
        %6443 = vmatpush1.msra.mxu0 0.0
        %6444 = vmatprep.subr.mxu0 0.0
        %6445 = vmatpush1.msra.mxu0 0.0
        %6446 = vmatprep.subr.mxu0 0.0
        %6447 = vmatpush1.msra.mxu0 0.0
        %6448 = vmatprep.mubr.f32.mxu0 0.0
        %6449 = vmatmul.mubr.f32.gmra.mrb[0].mxu0 %v6382
        %v6450 = vpop.f32.mrb[0].mxu0
        %v6451 = vadd.f32 %v6379, %v6450
        %v6452 = vpop.f32.mrb[0].mxu0
        %6453 = vdwg.mxu0
        %v6455 = vsel %vm1084, %v6451, 0
        %6457 = vmatprep.subr.mxu0 0.0
        %6458 = vmatpush1.msra.mxu0 %v4106
        %6459 = vmatprep.subr.mxu0 0.0
        %6460 = vmatpush1.msra.mxu0 %v4107
        %6461 = vmatprep.subr.mxu0 0.0
        %6462 = vmatpush1.msra.mxu0 %v4108
        %6463 = vmatprep.subr.mxu0 0.0
        %6464 = vmatpush1.msra.mxu0 %v4109
        %6465 = vmatprep.subr.mxu0 0.0
        %6466 = vmatpush1.msra.mxu0 0.0
        %6467 = vmatprep.subr.mxu0 0.0
        %6468 = vmatpush1.msra.mxu0 0.0
        %6469 = vmatprep.subr.mxu0 0.0
        %6470 = vmatpush1.msra.mxu0 0.0
        %6471 = vmatprep.subr.mxu0 0.0
        %6472 = vmatpush1.msra.mxu0 0.0
        %6473 = vmatprep.subr.mxu0 0.0
        %6474 = vmatpush1.msra.mxu0 0.0
        %6475 = vmatprep.subr.mxu0 0.0
        %6476 = vmatpush1.msra.mxu0 0.0
        %6477 = vmatprep.subr.mxu0 0.0
        %6478 = vmatpush1.msra.mxu0 0.0
        %6479 = vmatprep.subr.mxu0 0.0
        %6480 = vmatpush1.msra.mxu0 0.0
        %6481 = vmatprep.subr.mxu0 0.0
        %6482 = vmatpush1.msra.mxu0 0.0
        %6483 = vmatprep.subr.mxu0 0.0
        %6484 = vmatpush1.msra.mxu0 0.0
        %6485 = vmatprep.subr.mxu0 0.0
        %6486 = vmatpush1.msra.mxu0 0.0
        %6487 = vmatprep.subr.mxu0 0.0
        %6488 = vmatpush1.msra.mxu0 0.0
        %6489 = vmatprep.subr.mxu0 0.0
        %6490 = vmatpush1.msra.mxu0 0.0
        %6491 = vmatprep.subr.mxu0 0.0
        %6492 = vmatpush1.msra.mxu0 0.0
        %6493 = vmatprep.subr.mxu0 0.0
        %6494 = vmatpush1.msra.mxu0 0.0
        %6495 = vmatprep.subr.mxu0 0.0
        %6496 = vmatpush1.msra.mxu0 0.0
        %6497 = vmatprep.subr.mxu0 0.0
        %6498 = vmatpush1.msra.mxu0 0.0
        %6499 = vmatprep.subr.mxu0 0.0
        %6500 = vmatpush1.msra.mxu0 0.0
        %6501 = vmatprep.subr.mxu0 0.0
        %6502 = vmatpush1.msra.mxu0 0.0
        %6503 = vmatprep.subr.mxu0 0.0
        %6504 = vmatpush1.msra.mxu0 0.0
        %6505 = vmatprep.subr.mxu0 0.0
        %6506 = vmatpush1.msra.mxu0 0.0
        %6507 = vmatprep.subr.mxu0 0.0
        %6508 = vmatpush1.msra.mxu0 0.0
        %6509 = vmatprep.subr.mxu0 0.0
        %6510 = vmatpush1.msra.mxu0 0.0
        %6511 = vmatprep.subr.mxu0 0.0
        %6512 = vmatpush1.msra.mxu0 0.0
        %6513 = vmatprep.subr.mxu0 0.0
        %6514 = vmatpush1.msra.mxu0 0.0
        %6515 = vmatprep.subr.mxu0 0.0
        %6516 = vmatpush1.msra.mxu0 0.0
        %6517 = vmatprep.subr.mxu0 0.0
        %6518 = vmatpush1.msra.mxu0 0.0
        %6519 = vmatprep.subr.mxu0 0.0
        %6520 = vmatpush1.msra.mxu0 0.0
        %6521 = vmatprep.mubr.f32.mxu0 0.0
        %6522 = vmatmul.mubr.f32.gmra.mrb[0].mxu0 %v6455
        %v6523 = vpop.f32.mrb[0].mxu0
        %v6524 = vadd.f32 %v4113, %v6523
        %v6525 = vpop.f32.mrb[0].mxu0
        %6526 = vdwg.mxu0
        %v6528 = vrot.slane %v6524, 1
        %v6530 = vadd.f32 %v4420, %v6528
        %v6531 = vxor.u32 %v6530, 2147483648
        %v6532 = vmul.f32 %v6531, 1.442695
        %v6533 = vpow.pop %v6532
        %v6534 = vadd.f32 %v6533, 1.0
        %v6535 = vrcp.pop %v6534
        %v6536 = vmul.f32 1.0, %v6535
        %6537 = vrot.lane.b32.xlu0 %v6528, 64
        %v6538 = vpop.permute.xlu0 %6537
        %v6540 = vmul.f32 %v6536, %v6538
        %6542 = vrot.lane.b32.xlu0 %v6540, 64
        %v6543 = vpop.permute.xlu0 %6542
        %v6545 = vadd.f32 %v4420, %v6543
        %v6546 = vtanh.pop %v6545
        %v6547 = vsub.f32 1.0, %v6536
        %6549 = vrot.lane.b32.xlu0 %v6546, 96
        %v6550 = vpop.permute.xlu0 %6549
        %v6552 = vmul.f32 %v6547, %v6550
        %v6553 = vrot.slane %v6451, 1
        %6554 = vrot.lane.b32.xlu0 %v6553, 32
        %v6555 = vpop.permute.xlu0 %6554
        %v6557 = vmul.f32 %v6536, %v6555
        %v6558 = vadd.f32 %v6552, %v6557
        %6560 = vrot.lane.b32.xlu0 %v6558, 96
        %v6561 = vpop.permute.xlu0 %6560
        %6563 = vst.msk [vmem:[#allocation2] sm:$0x80] %vm3746, %v6561
        %v6564 = vrot.slane %v6558, 7
        %6565 = vrot.lane.b32.xlu0 %v6564, 96
        %v6566 = vpop.permute.xlu0 %6565
        %v6567 = vsel %vm1084, %v6566, 0
        %6569 = vmatprep.subr.mxu0 0.0
        %6570 = vmatpush1.msra.mxu0 %v4082
        %6571 = vmatprep.subr.mxu0 0.0
        %6572 = vmatpush1.msra.mxu0 %v4083
        %6573 = vmatprep.subr.mxu0 0.0
        %6574 = vmatpush1.msra.mxu0 %v4084
        %6575 = vmatprep.subr.mxu0 0.0
        %6576 = vmatpush1.msra.mxu0 %v4085
        %6577 = vmatprep.subr.mxu0 0.0
        %6578 = vmatpush1.msra.mxu0 0.0
        %6579 = vmatprep.subr.mxu0 0.0
        %6580 = vmatpush1.msra.mxu0 0.0
        %6581 = vmatprep.subr.mxu0 0.0
        %6582 = vmatpush1.msra.mxu0 0.0
        %6583 = vmatprep.subr.mxu0 0.0
        %6584 = vmatpush1.msra.mxu0 0.0
        %6585 = vmatprep.subr.mxu0 0.0
        %6586 = vmatpush1.msra.mxu0 0.0
        %6587 = vmatprep.subr.mxu0 0.0
        %6588 = vmatpush1.msra.mxu0 0.0
        %6589 = vmatprep.subr.mxu0 0.0
        %6590 = vmatpush1.msra.mxu0 0.0
        %6591 = vmatprep.subr.mxu0 0.0
        %6592 = vmatpush1.msra.mxu0 0.0
        %6593 = vmatprep.subr.mxu0 0.0
        %6594 = vmatpush1.msra.mxu0 0.0
        %6595 = vmatprep.subr.mxu0 0.0
        %6596 = vmatpush1.msra.mxu0 0.0
        %6597 = vmatprep.subr.mxu0 0.0
        %6598 = vmatpush1.msra.mxu0 0.0
        %6599 = vmatprep.subr.mxu0 0.0
        %6600 = vmatpush1.msra.mxu0 0.0
        %6601 = vmatprep.subr.mxu0 0.0
        %6602 = vmatpush1.msra.mxu0 0.0
        %6603 = vmatprep.subr.mxu0 0.0
        %6604 = vmatpush1.msra.mxu0 0.0
        %6605 = vmatprep.subr.mxu0 0.0
        %6606 = vmatpush1.msra.mxu0 0.0
        %6607 = vmatprep.subr.mxu0 0.0
        %6608 = vmatpush1.msra.mxu0 0.0
        %6609 = vmatprep.subr.mxu0 0.0
        %6610 = vmatpush1.msra.mxu0 0.0
        %6611 = vmatprep.subr.mxu0 0.0
        %6612 = vmatpush1.msra.mxu0 0.0
        %6613 = vmatprep.subr.mxu0 0.0
        %6614 = vmatpush1.msra.mxu0 0.0
        %6615 = vmatprep.subr.mxu0 0.0
        %6616 = vmatpush1.msra.mxu0 0.0
        %6617 = vmatprep.subr.mxu0 0.0
        %6618 = vmatpush1.msra.mxu0 0.0
        %6619 = vmatprep.subr.mxu0 0.0
        %6620 = vmatpush1.msra.mxu0 0.0
        %6621 = vmatprep.subr.mxu0 0.0
        %6622 = vmatpush1.msra.mxu0 0.0
        %6623 = vmatprep.subr.mxu0 0.0
        %6624 = vmatpush1.msra.mxu0 0.0
        %6625 = vmatprep.subr.mxu0 0.0
        %6626 = vmatpush1.msra.mxu0 0.0
        %6627 = vmatprep.subr.mxu0 0.0
        %6628 = vmatpush1.msra.mxu0 0.0
        %6629 = vmatprep.subr.mxu0 0.0
        %6630 = vmatpush1.msra.mxu0 0.0
        %6631 = vmatprep.subr.mxu0 0.0
        %6632 = vmatpush1.msra.mxu0 0.0
        %6633 = vmatprep.mubr.f32.mxu0 0.0
        %6634 = vmatmul.mubr.f32.gmra.mrb[0].mxu0 %v6567
        %v6635 = vpop.f32.mrb[0].mxu0
        %v6636 = vadd.f32 %v4087, %v6635
        %v6637 = vpop.f32.mrb[0].mxu0
        %6638 = vdwg.mxu0
        %6639 = vst.msk [vmem:[#allocation3 + $0x7] sm:$0x1] %vm1619, %v6636
        %v6640 = vld [vmem:[#allocation2] sm:$0xff]
        %v6641 = vld [vmem:[#allocation21] sm:$0x1]
        %v6642 = vld [vmem:[%s20] sm:$0xff]
        %v6643 = vld [vmem:[%s20 + $0x8] sm:$0xff]
        %v6644 = vld [vmem:[%s20 + $0x10] sm:$0xff]
        %v6645 = vld [vmem:[%s20 + $0x18] sm:$0xff]
        %6646 = vmatprep.subr.mxu0 0.0
        %6647 = vmatpush1.msra.mxu0 %v6642
        %6648 = vmatprep.subr.mxu0 0.0
        %6649 = vmatpush1.msra.mxu0 %v6643
        %6650 = vmatprep.subr.mxu0 0.0
        %6651 = vmatpush1.msra.mxu0 %v6644
        %6652 = vmatprep.subr.mxu0 0.0
        %6653 = vmatpush1.msra.mxu0 %v6645
        %6654 = vmatprep.subr.mxu0 0.0
        %6655 = vmatpush1.msra.mxu0 0.0
        %6656 = vmatprep.subr.mxu0 0.0
        %6657 = vmatpush1.msra.mxu0 0.0
        %6658 = vmatprep.subr.mxu0 0.0
        %6659 = vmatpush1.msra.mxu0 0.0
        %6660 = vmatprep.subr.mxu0 0.0
        %6661 = vmatpush1.msra.mxu0 0.0
        %6662 = vmatprep.subr.mxu0 0.0
        %6663 = vmatpush1.msra.mxu0 0.0
        %6664 = vmatprep.subr.mxu0 0.0
        %6665 = vmatpush1.msra.mxu0 0.0
        %6666 = vmatprep.subr.mxu0 0.0
        %6667 = vmatpush1.msra.mxu0 0.0
        %6668 = vmatprep.subr.mxu0 0.0
        %6669 = vmatpush1.msra.mxu0 0.0
        %6670 = vmatprep.subr.mxu0 0.0
        %6671 = vmatpush1.msra.mxu0 0.0
        %6672 = vmatprep.subr.mxu0 0.0
        %6673 = vmatpush1.msra.mxu0 0.0
        %6674 = vmatprep.subr.mxu0 0.0
        %6675 = vmatpush1.msra.mxu0 0.0
        %6676 = vmatprep.subr.mxu0 0.0
        %6677 = vmatpush1.msra.mxu0 0.0
        %6678 = vmatprep.subr.mxu0 0.0
        %6679 = vmatpush1.msra.mxu0 0.0
        %6680 = vmatprep.subr.mxu0 0.0
        %6681 = vmatpush1.msra.mxu0 0.0
        %6682 = vmatprep.subr.mxu0 0.0
        %6683 = vmatpush1.msra.mxu0 0.0
        %6684 = vmatprep.subr.mxu0 0.0
        %6685 = vmatpush1.msra.mxu0 0.0
        %6686 = vmatprep.subr.mxu0 0.0
        %6687 = vmatpush1.msra.mxu0 0.0
        %6688 = vmatprep.subr.mxu0 0.0
        %6689 = vmatpush1.msra.mxu0 0.0
        %6690 = vmatprep.subr.mxu0 0.0
        %6691 = vmatpush1.msra.mxu0 0.0
        %6692 = vmatprep.subr.mxu0 0.0
        %6693 = vmatpush1.msra.mxu0 0.0
        %6694 = vmatprep.subr.mxu0 0.0
        %6695 = vmatpush1.msra.mxu0 0.0
        %6696 = vmatprep.subr.mxu0 0.0
        %6697 = vmatpush1.msra.mxu0 0.0
        %6698 = vmatprep.subr.mxu0 0.0
        %6699 = vmatpush1.msra.mxu0 0.0
        %6700 = vmatprep.subr.mxu0 0.0
        %6701 = vmatpush1.msra.mxu0 0.0
        %6702 = vmatprep.subr.mxu0 0.0
        %6703 = vmatpush1.msra.mxu0 0.0
        %6704 = vmatprep.subr.mxu0 0.0
        %6705 = vmatpush1.msra.mxu0 0.0
        %6706 = vmatprep.subr.mxu0 0.0
        %6707 = vmatpush1.msra.mxu0 0.0
        %6708 = vmatprep.subr.mxu0 0.0
        %6709 = vmatpush1.msra.mxu0 0.0
        %6710 = vmatprep.mubr.f32.mxu0 0.0
        %6711 = vmatmul.mubr.f32.gmra.mrb[0].mxu0 %v1358
        %v6712 = vpop.f32.mrb[0].mxu0
        %v6713 = vadd.f32 0.0, %v6712
        %v6714 = vpop.f32.mrb[0].mxu0
        %6715 = vdwg.mxu0
        %v6717 = vlaneseq
        %v6718 = vshrl.u32 %v6717, 7
        %v6719 = vsub.s32 0, %v6718
        %v6720 = vrot.slane %v6641, %v6719
        %v6722 = vadd.f32 %v6720, %v6713
        %v6723 = vld [vmem:[%s20 + $0x20] sm:$0xff]
        %v6724 = vld [vmem:[%s20 + $0x28] sm:$0xff]
        %v6725 = vld [vmem:[%s20 + $0x30] sm:$0xff]
        %v6726 = vld [vmem:[%s20 + $0x38] sm:$0xff]
        %6727 = vmatprep.subr.mxu0 0.0
        %6728 = vmatpush1.msra.mxu0 %v6723
        %6729 = vmatprep.subr.mxu0 0.0
        %6730 = vmatpush1.msra.mxu0 %v6724
        %6731 = vmatprep.subr.mxu0 0.0
        %6732 = vmatpush1.msra.mxu0 %v6725
        %6733 = vmatprep.subr.mxu0 0.0
        %6734 = vmatpush1.msra.mxu0 %v6726
        %6735 = vmatprep.subr.mxu0 0.0
        %6736 = vmatpush1.msra.mxu0 0.0
        %6737 = vmatprep.subr.mxu0 0.0
        %6738 = vmatpush1.msra.mxu0 0.0
        %6739 = vmatprep.subr.mxu0 0.0
        %6740 = vmatpush1.msra.mxu0 0.0
        %6741 = vmatprep.subr.mxu0 0.0
        %6742 = vmatpush1.msra.mxu0 0.0
        %6743 = vmatprep.subr.mxu0 0.0
        %6744 = vmatpush1.msra.mxu0 0.0
        %6745 = vmatprep.subr.mxu0 0.0
        %6746 = vmatpush1.msra.mxu0 0.0
        %6747 = vmatprep.subr.mxu0 0.0
        %6748 = vmatpush1.msra.mxu0 0.0
        %6749 = vmatprep.subr.mxu0 0.0
        %6750 = vmatpush1.msra.mxu0 0.0
        %6751 = vmatprep.subr.mxu0 0.0
        %6752 = vmatpush1.msra.mxu0 0.0
        %6753 = vmatprep.subr.mxu0 0.0
        %6754 = vmatpush1.msra.mxu0 0.0
        %6755 = vmatprep.subr.mxu0 0.0
        %6756 = vmatpush1.msra.mxu0 0.0
        %6757 = vmatprep.subr.mxu0 0.0
        %6758 = vmatpush1.msra.mxu0 0.0
        %6759 = vmatprep.subr.mxu0 0.0
        %6760 = vmatpush1.msra.mxu0 0.0
        %6761 = vmatprep.subr.mxu0 0.0
        %6762 = vmatpush1.msra.mxu0 0.0
        %6763 = vmatprep.subr.mxu0 0.0
        %6764 = vmatpush1.msra.mxu0 0.0
        %6765 = vmatprep.subr.mxu0 0.0
        %6766 = vmatpush1.msra.mxu0 0.0
        %6767 = vmatprep.subr.mxu0 0.0
        %6768 = vmatpush1.msra.mxu0 0.0
        %6769 = vmatprep.subr.mxu0 0.0
        %6770 = vmatpush1.msra.mxu0 0.0
        %6771 = vmatprep.subr.mxu0 0.0
        %6772 = vmatpush1.msra.mxu0 0.0
        %6773 = vmatprep.subr.mxu0 0.0
        %6774 = vmatpush1.msra.mxu0 0.0
        %6775 = vmatprep.subr.mxu0 0.0
        %6776 = vmatpush1.msra.mxu0 0.0
        %6777 = vmatprep.subr.mxu0 0.0
        %6778 = vmatpush1.msra.mxu0 0.0
        %6779 = vmatprep.subr.mxu0 0.0
        %6780 = vmatpush1.msra.mxu0 0.0
        %6781 = vmatprep.subr.mxu0 0.0
        %6782 = vmatpush1.msra.mxu0 0.0
        %6783 = vmatprep.subr.mxu0 0.0
        %6784 = vmatpush1.msra.mxu0 0.0
        %6785 = vmatprep.subr.mxu0 0.0
        %6786 = vmatpush1.msra.mxu0 0.0
        %6787 = vmatprep.subr.mxu0 0.0
        %6788 = vmatpush1.msra.mxu0 0.0
        %6789 = vmatprep.subr.mxu0 0.0
        %6790 = vmatpush1.msra.mxu0 0.0
        %6791 = vmatprep.mubr.f32.mxu0 0.0
        %6792 = vmatmul.mubr.f32.gmra.mrb[0].mxu0 %v4196
        %v6793 = vpop.f32.mrb[0].mxu0
        %v6794 = vadd.f32 0.0, %v6793
        %v6795 = vpop.f32.mrb[0].mxu0
        %6796 = vdwg.mxu0
        %v6797 = vadd.f32 %v6722, %v6794
        %v6798 = vld [vmem:[%s20 + $0x40] sm:$0xff]
        %v6799 = vld [vmem:[%s20 + $0x48] sm:$0xff]
        %v6800 = vld [vmem:[%s20 + $0x50] sm:$0xff]
        %v6801 = vld [vmem:[%s20 + $0x58] sm:$0xff]
        %v6803 = vsel %vm1084, %v6640, 0
        %6805 = vmatprep.subr.mxu0 0.0
        %6806 = vmatpush1.msra.mxu0 %v6798
        %6807 = vmatprep.subr.mxu0 0.0
        %6808 = vmatpush1.msra.mxu0 %v6799
        %6809 = vmatprep.subr.mxu0 0.0
        %6810 = vmatpush1.msra.mxu0 %v6800
        %6811 = vmatprep.subr.mxu0 0.0
        %6812 = vmatpush1.msra.mxu0 %v6801
        %6813 = vmatprep.subr.mxu0 0.0
        %6814 = vmatpush1.msra.mxu0 0.0
        %6815 = vmatprep.subr.mxu0 0.0
        %6816 = vmatpush1.msra.mxu0 0.0
        %6817 = vmatprep.subr.mxu0 0.0
        %6818 = vmatpush1.msra.mxu0 0.0
        %6819 = vmatprep.subr.mxu0 0.0
        %6820 = vmatpush1.msra.mxu0 0.0
        %6821 = vmatprep.subr.mxu0 0.0
        %6822 = vmatpush1.msra.mxu0 0.0
        %6823 = vmatprep.subr.mxu0 0.0
        %6824 = vmatpush1.msra.mxu0 0.0
        %6825 = vmatprep.subr.mxu0 0.0
        %6826 = vmatpush1.msra.mxu0 0.0
        %6827 = vmatprep.subr.mxu0 0.0
        %6828 = vmatpush1.msra.mxu0 0.0
        %6829 = vmatprep.subr.mxu0 0.0
        %6830 = vmatpush1.msra.mxu0 0.0
        %6831 = vmatprep.subr.mxu0 0.0
        %6832 = vmatpush1.msra.mxu0 0.0
        %6833 = vmatprep.subr.mxu0 0.0
        %6834 = vmatpush1.msra.mxu0 0.0
        %6835 = vmatprep.subr.mxu0 0.0
        %6836 = vmatpush1.msra.mxu0 0.0
        %6837 = vmatprep.subr.mxu0 0.0
        %6838 = vmatpush1.msra.mxu0 0.0
        %6839 = vmatprep.subr.mxu0 0.0
        %6840 = vmatpush1.msra.mxu0 0.0
        %6841 = vmatprep.subr.mxu0 0.0
        %6842 = vmatpush1.msra.mxu0 0.0
        %6843 = vmatprep.subr.mxu0 0.0
        %6844 = vmatpush1.msra.mxu0 0.0
        %6845 = vmatprep.subr.mxu0 0.0
        %6846 = vmatpush1.msra.mxu0 0.0
        %6847 = vmatprep.subr.mxu0 0.0
        %6848 = vmatpush1.msra.mxu0 0.0
        %6849 = vmatprep.subr.mxu0 0.0
        %6850 = vmatpush1.msra.mxu0 0.0
        %6851 = vmatprep.subr.mxu0 0.0
        %6852 = vmatpush1.msra.mxu0 0.0
        %6853 = vmatprep.subr.mxu0 0.0
        %6854 = vmatpush1.msra.mxu0 0.0
        %6855 = vmatprep.subr.mxu0 0.0
        %6856 = vmatpush1.msra.mxu0 0.0
        %6857 = vmatprep.subr.mxu0 0.0
        %6858 = vmatpush1.msra.mxu0 0.0
        %6859 = vmatprep.subr.mxu0 0.0
        %6860 = vmatpush1.msra.mxu0 0.0
        %6861 = vmatprep.subr.mxu0 0.0
        %6862 = vmatpush1.msra.mxu0 0.0
        %6863 = vmatprep.subr.mxu0 0.0
        %6864 = vmatpush1.msra.mxu0 0.0
        %6865 = vmatprep.subr.mxu0 0.0
        %6866 = vmatpush1.msra.mxu0 0.0
        %6867 = vmatprep.subr.mxu0 0.0
        %6868 = vmatpush1.msra.mxu0 0.0
        %6869 = vmatprep.mubr.f32.mxu0 0.0
        %6870 = vmatmul.mubr.f32.gmra.mrb[0].mxu0 %v6803
        %v6871 = vpop.f32.mrb[0].mxu0
        %v6872 = vadd.f32 0.0, %v6871
        %v6873 = vpop.f32.mrb[0].mxu0
        %6874 = vdwg.mxu0
        %v6875 = vadd.f32 %v6797, %v6872
        %v6876 = vld [vmem:[%s20 + $0x60] sm:$0xff]
        %v6877 = vld [vmem:[%s20 + $0x68] sm:$0xff]
        %v6878 = vld [vmem:[%s20 + $0x70] sm:$0xff]
        %v6879 = vld [vmem:[%s20 + $0x78] sm:$0xff]
        %6880 = vmatprep.subr.mxu0 0.0
        %6881 = vmatpush1.msra.mxu0 %v6876
        %6882 = vmatprep.subr.mxu0 0.0
        %6883 = vmatpush1.msra.mxu0 %v6877
        %6884 = vmatprep.subr.mxu0 0.0
        %6885 = vmatpush1.msra.mxu0 %v6878
        %6886 = vmatprep.subr.mxu0 0.0
        %6887 = vmatpush1.msra.mxu0 %v6879
        %6888 = vmatprep.subr.mxu0 0.0
        %6889 = vmatpush1.msra.mxu0 0.0
        %6890 = vmatprep.subr.mxu0 0.0
        %6891 = vmatpush1.msra.mxu0 0.0
        %6892 = vmatprep.subr.mxu0 0.0
        %6893 = vmatpush1.msra.mxu0 0.0
        %6894 = vmatprep.subr.mxu0 0.0
        %6895 = vmatpush1.msra.mxu0 0.0
        %6896 = vmatprep.subr.mxu0 0.0
        %6897 = vmatpush1.msra.mxu0 0.0
        %6898 = vmatprep.subr.mxu0 0.0
        %6899 = vmatpush1.msra.mxu0 0.0
        %6900 = vmatprep.subr.mxu0 0.0
        %6901 = vmatpush1.msra.mxu0 0.0
        %6902 = vmatprep.subr.mxu0 0.0
        %6903 = vmatpush1.msra.mxu0 0.0
        %6904 = vmatprep.subr.mxu0 0.0
        %6905 = vmatpush1.msra.mxu0 0.0
        %6906 = vmatprep.subr.mxu0 0.0
        %6907 = vmatpush1.msra.mxu0 0.0
        %6908 = vmatprep.subr.mxu0 0.0
        %6909 = vmatpush1.msra.mxu0 0.0
        %6910 = vmatprep.subr.mxu0 0.0
        %6911 = vmatpush1.msra.mxu0 0.0
        %6912 = vmatprep.subr.mxu0 0.0
        %6913 = vmatpush1.msra.mxu0 0.0
        %6914 = vmatprep.subr.mxu0 0.0
        %6915 = vmatpush1.msra.mxu0 0.0
        %6916 = vmatprep.subr.mxu0 0.0
        %6917 = vmatpush1.msra.mxu0 0.0
        %6918 = vmatprep.subr.mxu0 0.0
        %6919 = vmatpush1.msra.mxu0 0.0
        %6920 = vmatprep.subr.mxu0 0.0
        %6921 = vmatpush1.msra.mxu0 0.0
        %6922 = vmatprep.subr.mxu0 0.0
        %6923 = vmatpush1.msra.mxu0 0.0
        %6924 = vmatprep.subr.mxu0 0.0
        %6925 = vmatpush1.msra.mxu0 0.0
        %6926 = vmatprep.subr.mxu0 0.0
        %6927 = vmatpush1.msra.mxu0 0.0
        %6928 = vmatprep.subr.mxu0 0.0
        %6929 = vmatpush1.msra.mxu0 0.0
        %6930 = vmatprep.subr.mxu0 0.0
        %6931 = vmatpush1.msra.mxu0 0.0
        %6932 = vmatprep.subr.mxu0 0.0
        %6933 = vmatpush1.msra.mxu0 0.0
        %6934 = vmatprep.subr.mxu0 0.0
        %6935 = vmatpush1.msra.mxu0 0.0
        %6936 = vmatprep.subr.mxu0 0.0
        %6937 = vmatpush1.msra.mxu0 0.0
        %6938 = vmatprep.subr.mxu0 0.0
        %6939 = vmatpush1.msra.mxu0 0.0
        %6940 = vmatprep.subr.mxu0 0.0
        %6941 = vmatpush1.msra.mxu0 0.0
        %6942 = vmatprep.subr.mxu0 0.0
        %6943 = vmatpush1.msra.mxu0 0.0
        %6944 = vmatprep.mubr.f32.mxu0 0.0
        %6945 = vmatmul.mubr.f32.gmra.mrb[0].mxu0 %v1086
        %v6946 = vpop.f32.mrb[0].mxu0
        %v6947 = vadd.f32 0.0, %v6946
        %v6948 = vpop.f32.mrb[0].mxu0
        %6949 = vdwg.mxu0
        %v6950 = vadd.f32 %v6875, %v6947
        %v6951 = vmax.f32 %v6950, 0.0
        %v6952 = vld [vmem:[#allocation23] sm:$0xff]
        %v6953 = vld [vmem:[#allocation23 + $0x8] sm:$0xff]
        %v6954 = vld [vmem:[#allocation23 + $0x10] sm:$0xff]
        %v6955 = vld [vmem:[#allocation23 + $0x18] sm:$0xff]
        %v6956 = vld [vmem:[#allocation24] sm:$0x1]
        %v6958 = vlaneseq
        %v6959 = vshrl.u32 %v6958, 7
        %v6960 = vsub.s32 0, %v6959
        %v6961 = vrot.slane %v6956, %v6960
        %v6964 = vsel %vm1084, %v6951, 0
        %6966 = vmatprep.subr.mxu0 0.0
        %6967 = vmatpush1.msra.mxu0 %v6952
        %6968 = vmatprep.subr.mxu0 0.0
        %6969 = vmatpush1.msra.mxu0 %v6953
        %6970 = vmatprep.subr.mxu0 0.0
        %6971 = vmatpush1.msra.mxu0 %v6954
        %6972 = vmatprep.subr.mxu0 0.0
        %6973 = vmatpush1.msra.mxu0 %v6955
        %6974 = vmatprep.subr.mxu0 0.0
        %6975 = vmatpush1.msra.mxu0 0.0
        %6976 = vmatprep.subr.mxu0 0.0
        %6977 = vmatpush1.msra.mxu0 0.0
        %6978 = vmatprep.subr.mxu0 0.0
        %6979 = vmatpush1.msra.mxu0 0.0
        %6980 = vmatprep.subr.mxu0 0.0
        %6981 = vmatpush1.msra.mxu0 0.0
        %6982 = vmatprep.subr.mxu0 0.0
        %6983 = vmatpush1.msra.mxu0 0.0
        %6984 = vmatprep.subr.mxu0 0.0
        %6985 = vmatpush1.msra.mxu0 0.0
        %6986 = vmatprep.subr.mxu0 0.0
        %6987 = vmatpush1.msra.mxu0 0.0
        %6988 = vmatprep.subr.mxu0 0.0
        %6989 = vmatpush1.msra.mxu0 0.0
        %6990 = vmatprep.subr.mxu0 0.0
        %6991 = vmatpush1.msra.mxu0 0.0
        %6992 = vmatprep.subr.mxu0 0.0
        %6993 = vmatpush1.msra.mxu0 0.0
        %6994 = vmatprep.subr.mxu0 0.0
        %6995 = vmatpush1.msra.mxu0 0.0
        %6996 = vmatprep.subr.mxu0 0.0
        %6997 = vmatpush1.msra.mxu0 0.0
        %6998 = vmatprep.subr.mxu0 0.0
        %6999 = vmatpush1.msra.mxu0 0.0
        %7000 = vmatprep.subr.mxu0 0.0
        %7001 = vmatpush1.msra.mxu0 0.0
        %7002 = vmatprep.subr.mxu0 0.0
        %7003 = vmatpush1.msra.mxu0 0.0
        %7004 = vmatprep.subr.mxu0 0.0
        %7005 = vmatpush1.msra.mxu0 0.0
        %7006 = vmatprep.subr.mxu0 0.0
        %7007 = vmatpush1.msra.mxu0 0.0
        %7008 = vmatprep.subr.mxu0 0.0
        %7009 = vmatpush1.msra.mxu0 0.0
        %7010 = vmatprep.subr.mxu0 0.0
        %7011 = vmatpush1.msra.mxu0 0.0
        %7012 = vmatprep.subr.mxu0 0.0
        %7013 = vmatpush1.msra.mxu0 0.0
        %7014 = vmatprep.subr.mxu0 0.0
        %7015 = vmatpush1.msra.mxu0 0.0
        %7016 = vmatprep.subr.mxu0 0.0
        %7017 = vmatpush1.msra.mxu0 0.0
        %7018 = vmatprep.subr.mxu0 0.0
        %7019 = vmatpush1.msra.mxu0 0.0
        %7020 = vmatprep.subr.mxu0 0.0
        %7021 = vmatpush1.msra.mxu0 0.0
        %7022 = vmatprep.subr.mxu0 0.0
        %7023 = vmatpush1.msra.mxu0 0.0
        %7024 = vmatprep.subr.mxu0 0.0
        %7025 = vmatpush1.msra.mxu0 0.0
        %7026 = vmatprep.subr.mxu0 0.0
        %7027 = vmatpush1.msra.mxu0 0.0
        %7028 = vmatprep.subr.mxu0 0.0
        %7029 = vmatpush1.msra.mxu0 0.0
        %7030 = vmatprep.mubr.f32.mxu0 0.0
        %7031 = vmatmul.mubr.f32.gmra.mrb[0].mxu0 %v6964
        %v7032 = vpop.f32.mrb[0].mxu0
        %v7033 = vadd.f32 %v6961, %v7032
        %v7034 = vpop.f32.mrb[0].mxu0
        %7035 = vdwg.mxu0
        %v7036 = vmax.f32 %v7033, 0.0
        %v7037 = vld [vmem:[%s24] sm:$0xff]
        %v7038 = vld [vmem:[%s24 + $0x8] sm:$0xff]
        %v7039 = vld [vmem:[%s24 + $0x10] sm:$0xff]
        %v7040 = vld [vmem:[%s24 + $0x18] sm:$0xff]
        %v7041 = vld [vmem:[#allocation26] sm:$0x1]
        %v7043 = vlaneseq
        %v7044 = vshrl.u32 %v7043, 7
        %v7045 = vsub.s32 0, %v7044
        %v7046 = vrot.slane %v7041, %v7045
        %v7049 = vsel %vm1084, %v7036, 0
        %7051 = vmatprep.subr.mxu0 0.0
        %7052 = vmatpush1.msra.mxu0 %v7037
        %7053 = vmatprep.subr.mxu0 0.0
        %7054 = vmatpush1.msra.mxu0 %v7038
        %7055 = vmatprep.subr.mxu0 0.0
        %7056 = vmatpush1.msra.mxu0 %v7039
        %7057 = vmatprep.subr.mxu0 0.0
        %7058 = vmatpush1.msra.mxu0 %v7040
        %7059 = vmatprep.subr.mxu0 0.0
        %7060 = vmatpush1.msra.mxu0 0.0
        %7061 = vmatprep.subr.mxu0 0.0
        %7062 = vmatpush1.msra.mxu0 0.0
        %7063 = vmatprep.subr.mxu0 0.0
        %7064 = vmatpush1.msra.mxu0 0.0
        %7065 = vmatprep.subr.mxu0 0.0
        %7066 = vmatpush1.msra.mxu0 0.0
        %7067 = vmatprep.subr.mxu0 0.0
        %7068 = vmatpush1.msra.mxu0 0.0
        %7069 = vmatprep.subr.mxu0 0.0
        %7070 = vmatpush1.msra.mxu0 0.0
        %7071 = vmatprep.subr.mxu0 0.0
        %7072 = vmatpush1.msra.mxu0 0.0
        %7073 = vmatprep.subr.mxu0 0.0
        %7074 = vmatpush1.msra.mxu0 0.0
        %7075 = vmatprep.subr.mxu0 0.0
        %7076 = vmatpush1.msra.mxu0 0.0
        %7077 = vmatprep.subr.mxu0 0.0
        %7078 = vmatpush1.msra.mxu0 0.0
        %7079 = vmatprep.subr.mxu0 0.0
        %7080 = vmatpush1.msra.mxu0 0.0
        %7081 = vmatprep.subr.mxu0 0.0
        %7082 = vmatpush1.msra.mxu0 0.0
        %7083 = vmatprep.subr.mxu0 0.0
        %7084 = vmatpush1.msra.mxu0 0.0
        %7085 = vmatprep.subr.mxu0 0.0
        %7086 = vmatpush1.msra.mxu0 0.0
        %7087 = vmatprep.subr.mxu0 0.0
        %7088 = vmatpush1.msra.mxu0 0.0
        %7089 = vmatprep.subr.mxu0 0.0
        %7090 = vmatpush1.msra.mxu0 0.0
        %7091 = vmatprep.subr.mxu0 0.0
        %7092 = vmatpush1.msra.mxu0 0.0
        %7093 = vmatprep.subr.mxu0 0.0
        %7094 = vmatpush1.msra.mxu0 0.0
        %7095 = vmatprep.subr.mxu0 0.0
        %7096 = vmatpush1.msra.mxu0 0.0
        %7097 = vmatprep.subr.mxu0 0.0
        %7098 = vmatpush1.msra.mxu0 0.0
        %7099 = vmatprep.subr.mxu0 0.0
        %7100 = vmatpush1.msra.mxu0 0.0
        %7101 = vmatprep.subr.mxu0 0.0
        %7102 = vmatpush1.msra.mxu0 0.0
        %7103 = vmatprep.subr.mxu0 0.0
        %7104 = vmatpush1.msra.mxu0 0.0
        %7105 = vmatprep.subr.mxu0 0.0
        %7106 = vmatpush1.msra.mxu0 0.0
        %7107 = vmatprep.subr.mxu0 0.0
        %7108 = vmatpush1.msra.mxu0 0.0
        %7109 = vmatprep.subr.mxu0 0.0
        %7110 = vmatpush1.msra.mxu0 0.0
        %7111 = vmatprep.subr.mxu0 0.0
        %7112 = vmatpush1.msra.mxu0 0.0
        %7113 = vmatprep.subr.mxu0 0.0
        %7114 = vmatpush1.msra.mxu0 0.0
        %7115 = vmatprep.mubr.f32.mxu0 0.0
        %7116 = vmatmul.mubr.f32.gmra.mrb[0].mxu0 %v7049
        %v7117 = vpop.f32.mrb[0].mxu0
        %v7118 = vadd.f32 %v7046, %v7117
        %v7119 = vpop.f32.mrb[0].mxu0
        %7120 = vdwg.mxu0
        %7121 = vst.msk [vmem:[%s1067] sm:$0xff] %vm1273, %v7118
        %p7122 = scmp.lt.s32.totalorder %s47, 1
        %s7123 = scalar_select %p7122, %s47, 1
        %s7124 = smul.addr %s7123, 8
        %s7125 = scalar_lea.vmem %s26, %s7124
        // Predicated region
        $region185: #{dagerc_forward.1} parent=123 // pred_check
          %p7126 = pneg %p636
        $region186: #{dagerc_forward.1} parent=123 // pred_check_branch
          %7128 = sbr.rel (%p7126) target = $region188
        $region187: #{dagerc_forward.1} parent=123 // pred_region
          _
        $region188: #{dagerc_forward.1} parent=123 // pred_fallthru
          _
      $region124: #{dagerc_forward.1} parent=5 // pred_fallthru
        _
      %p7129 = scmp.le.s32.totalorder 2, %s42
      // Predicated region
      $region189: #{dagerc_forward.1} parent=5 // pred_check
        %p7130 = pneg %p7129
      $region190: #{dagerc_forward.1} parent=5 // pred_check_branch
        %7132 = sbr.rel (%p7130) target = $region192
      $region191: #{dagerc_forward.1} parent=5 // pred_region
        %s7133 = ssub.s32 %s42, 2
        // Predicated region
        $region193: #{dagerc_forward.1} parent=191 // pred_check
          %p7134 = pneg %p642
        $region194: #{dagerc_forward.1} parent=191 // pred_check_branch
          %7136 = sbr.rel (%p7134) target = $region196
        $region195: #{dagerc_forward.1} parent=191 // pred_region
          %p7137 = scmp.lt.s32.totalorder %s48, 1
          %s7138 = scalar_select %p7137, %s48, 1
          %s7139 = smul.addr %s7138, 8
          %s7140 = scalar_lea.vmem %s26, %s7139
        $region196: #{dagerc_forward.1} parent=191 // pred_fallthru
          _
      $region192: #{dagerc_forward.1} parent=5 // pred_fallthru
        _
    $region6: #{dagerc_forward.1} parent=1 // loop_footer
      %s46 = sadd.s32 1, %s42
    $region7: #{dagerc_forward.1} parent=1 // loop_footer_branch
      %41 = sbr.rel target = $region3
    $region8: #{dagerc_forward.1} parent=1 // loop_exit
      _
    %7141 = vsyncpa [#allocation5], 1
    %s7142 = scalar_lea.sflag [#allocation5], 1
    %7143 = vsyncpa %s7142, 1
    %7144 = vsyncpa [#allocation7], 1
    %7145 = vsyncpa [#allocation10], 1
    %7146 = vsyncpa [#allocation13], 1
    %7147 = vsyncpa [#allocation16], 1
    %7148 = vsyncpa [#allocation19], 1
    %7149 = vsyncpa [#allocation22], 1
    %7150 = vsyncpa [#allocation25], 1

</llo_original>
